<compile_context>
chip_gen: v7x
topology: tpu7x:2x2x1
jax: 0.10.0
libtpu: 0.0.40
codegen_flags: <defaults>
</compile_context>

<pallas_src>
import functools

import jax
import jax.numpy as jnp
from jax import lax
from jax.experimental import pallas as pl
from jax.experimental.pallas import tpu as pltpu


# ------------------------------ Pallas kernel -------------------------------

def _lenet_kernel(p1_ref, w1_ref, b1_ref, w2_ref, b2_ref,
                  fw1_ref, fb1_ref, fw2_ref, fb2_ref, fw3_ref, fb3_ref,
                  out_ref,
                  a1_ref, wide_ref, y2_ref, mlp_ref, *, batch):
    f32 = jnp.float32
    n = batch * 144                                    # rows (b, h, w) on the 12x12 grid

    # ---- conv1 + bias + ReLU + 2x2 maxpool: ONE matmul over all 4 pool offsets
    y1 = jnp.dot(p1_ref[...], w1_ref[...], preferred_element_type=f32)   # (4n, 128)
    m = jnp.maximum(jnp.maximum(y1[0:n, :], y1[n:2 * n, :]),
                    jnp.maximum(y1[2 * n:3 * n, :], y1[3 * n:4 * n, :]))
    a1_ref[0:n, :] = jnp.maximum(m + b1_ref[...], 0.0)                   # bias/ReLU hoisted
    a1_ref[n:n + 64, :] = jnp.zeros((64, 128), f32)    # zero tail read by the row shifts

    # ---- conv2: im2col built in-kernel from row-shifted slices of a1, ONE matmul
    wide_ref[...] = jnp.zeros(wide_ref.shape, f32)
    for k in range(25):
        kh, kw = k // 5, k % 5
        s = kh * 12 + kw                               # row shift for kernel offset (kh, kw)
        wide_ref[:, k * 8:(k + 1) * 8] = a1_ref[s:s + n, :][:, 0:8]
    y2 = jnp.dot(wide_ref[...], w2_ref[...], preferred_element_type=f32)  # (n, 128)
    y2_ref[...] = jnp.maximum(y2 + b2_ref[...], 0.0)

    # ---- 2x2 maxpool of conv2 + flatten into (hp, wp, c) lane order
    mlp_ref[...] = jnp.zeros(mlp_ref.shape, f32)
    for b in range(batch):
        for hp in range(4):
            for wp in range(4):
                r = b * 144 + hp * 24 + wp * 2
                v = jnp.maximum(
                    jnp.maximum(y2_ref[r:r + 1, :], y2_ref[r + 1:r + 2, :]),
                    jnp.maximum(y2_ref[r + 12:r + 13, :], y2_ref[r + 13:r + 14, :]))
                col = (hp * 4 + wp) * 16
                mlp_ref[b:b + 1, col:col + 16] = v[:, 0:16]

    # ---- fused MLP: fc1+ReLU -> fc2+ReLU -> fc3
    h = jnp.dot(mlp_ref[...], fw1_ref[...], preferred_element_type=f32)
    h = jnp.maximum(h + fb1_ref[...], 0.0)
    h = jnp.dot(h, fw2_ref[...], preferred_element_type=f32)
    h = jnp.maximum(h + fb2_ref[...], 0.0)
    h = jnp.dot(h, fw3_ref[...], preferred_element_type=f32) + fb3_ref[...]
    out_ref[...] = h


# --------------------------- wrapper (JAX glue) -----------------------------

def _conv1_pool_patches(x):
    """(B,1,28,28) -> (4*B*144, 32) pool-decomposed im2col, columns kh*5+kw."""
    B = x.shape[0]
    xs = x[:, 0]
    cols = jnp.stack([xs[:, kh:kh + 24, kw:kw + 24]
                      for kh in range(5) for kw in range(5)], axis=-1)   # (B,24,24,25)
    cols = cols.reshape(B, 12, 2, 12, 2, 25)
    cols = jnp.transpose(cols, (2, 4, 0, 1, 3, 5))      # (dh, dw, B, hp, wp, k)
    cols = cols.reshape(4 * B * 144, 25)
    return jnp.pad(cols, ((0, 0), (0, 7)))              # pad K: 25 -> 32


def _pad_to(a, shape):
    return jnp.pad(a, [(0, t - s) for s, t in zip(a.shape, shape)])


def _prep_params(p):
    w1 = _pad_to(p["conv1_w"].reshape(6, 25).T, (32, 128))
    b1 = _pad_to(p["conv1_b"].reshape(1, 6), (1, 128))
    w2 = jnp.transpose(p["conv2_w"], (2, 3, 1, 0))       # (kh, kw, ci, co)
    w2 = jnp.pad(w2, ((0, 0), (0, 0), (0, 2), (0, 0))).reshape(200, 16)
    w2 = _pad_to(w2, (256, 128))
    b2 = _pad_to(p["conv2_b"].reshape(1, 16), (1, 128))
    # fc1 input reordered from torch's (c, hp, wp) flatten to the kernel's (hp, wp, c)
    fw1 = jnp.transpose(p["fc1_w"].reshape(120, 16, 4, 4), (0, 2, 3, 1))
    fw1 = _pad_to(fw1.reshape(120, 256).T, (256, 128))
    fb1 = _pad_to(p["fc1_b"].reshape(1, 120), (1, 128))
    fw2 = _pad_to(p["fc2_w"].T, (128, 128))
    fb2 = _pad_to(p["fc2_b"].reshape(1, 84), (1, 128))
    fw3 = _pad_to(p["fc3_w"].T, (128, 128))
    fb3 = _pad_to(p["fc3_b"].reshape(1, 10), (1, 128))
    return w1, b1, w2, b2, fw1, fb1, fw2, fb2, fw3, fb3


def lenet_forward(x, params):
    B = x.shape[0]
    Bp = ((B + 7) // 8) * 8
    n = B * 144
    p1 = _conv1_pool_patches(x)
    w1, b1, w2, b2, fw1, fb1, fw2, fb2, fw3, fb3 = _prep_params(params)
    out = pl.pallas_call(
        functools.partial(_lenet_kernel, batch=B),
        out_shape=jax.ShapeDtypeStruct((Bp, 128), jnp.float32),
        in_specs=[pl.BlockSpec(memory_space=pltpu.MemorySpace.VMEM)] * 11,
        out_specs=pl.BlockSpec(memory_space=pltpu.MemorySpace.VMEM),
        scratch_shapes=[
            pltpu.VMEM((n + 64, 128), jnp.float32),   # a1: pooled conv1 (+ zero tail)
            pltpu.VMEM((n, 256), jnp.float32),        # conv2 im2col (widened LHS)
            pltpu.VMEM((n, 128), jnp.float32),        # relu(conv2 + b2) on 12x12 grid
            pltpu.VMEM((Bp, 256), jnp.float32),       # flattened MLP input
        ],
    )(p1, w1, b1, w2, b2, fw1, fb1, fw2, fb2, fw3, fb3)
    return out[:B, :10]


# ------------------------- params & pure-JAX reference ----------------------

def init_params(key):
    ks = jax.random.split(key, 10)

    def mk(k, fan_in, shape):
        return jax.random.normal(k, shape, jnp.float32) / jnp.sqrt(fan_in)

    return {
        "conv1_w": mk(ks[0], 1 * 25, (6, 1, 5, 5)),
        "conv1_b": mk(ks[1], 1 * 25, (6,)),
        "conv2_w": mk(ks[2], 6 * 25, (16, 6, 5, 5)),
        "conv2_b": mk(ks[3], 6 * 25, (16,)),
        "fc1_w": mk(ks[4], 256, (120, 256)),
        "fc1_b": mk(ks[5], 256, (120,)),
        "fc2_w": mk(ks[6], 120, (84, 120)),
        "fc2_b": mk(ks[7], 120, (84,)),
        "fc3_w": mk(ks[8], 84, (10, 84)),
        "fc3_b": mk(ks[9], 84, (10,)),
    }


def reference_forward(x, p):
    def conv(x, w, b):
        y = lax.conv_general_dilated(
            x, w, (1, 1), "VALID",
            dimension_numbers=("NCHW", "OIHW", "NCHW"),
            precision=lax.Precision.HIGHEST)
        return y + b[None, :, None, None]

    def pool(x):
        return lax.reduce_window(x, -jnp.inf, lax.max, (1, 1, 2, 2), (1, 1, 2, 2), "VALID")

    x = pool(jnp.maximum(conv(x, p["conv1_w"], p["conv1_b"]), 0.0))
    x = pool(jnp.maximum(conv(x, p["conv2_w"], p["conv2_b"]), 0.0))
    x = x.reshape(x.shape[0], -1)
    x = jnp.maximum(x @ p["fc1_w"].T + p["fc1_b"], 0.0)
    x = jnp.maximum(x @ p["fc2_w"].T + p["fc2_b"], 0.0)
    return x @ p["fc3_w"].T + p["fc3_b"]


if __name__ == "__main__":
    key = jax.random.PRNGKey(0)
    pkey, xkey = jax.random.split(key)
    params = init_params(pkey)
    # fc1 expects 16*4*4, which pins the spatial size to 28x28 (MNIST), 1 channel.
    x = jax.random.normal(xkey, (2, 1, 28, 28), jnp.float32)

    out = jax.jit(lenet_forward)(x, params)
    out = jax.block_until_ready(out)

    ref = reference_forward(x, params)
    assert out.shape == (2, 10), out.shape
    max_err = float(jnp.max(jnp.abs(out - ref)))
    assert jnp.allclose(out, ref, atol=5e-2, rtol=5e-2), max_err
    print("KERNEL_OK")
</pallas_src>

<mosaic_0001>
module attributes {stable_mosaic.version = 11 : i64} {
  func.func @_lenet_kernel(%arg0: memref<1152x32xf32, #tpu.memory_space<vmem>>, %arg1: memref<32x128xf32, #tpu.memory_space<vmem>>, %arg2: memref<1x128xf32, #tpu.memory_space<vmem>>, %arg3: memref<256x128xf32, #tpu.memory_space<vmem>>, %arg4: memref<1x128xf32, #tpu.memory_space<vmem>>, %arg5: memref<256x128xf32, #tpu.memory_space<vmem>>, %arg6: memref<1x128xf32, #tpu.memory_space<vmem>>, %arg7: memref<128x128xf32, #tpu.memory_space<vmem>>, %arg8: memref<1x128xf32, #tpu.memory_space<vmem>>, %arg9: memref<128x128xf32, #tpu.memory_space<vmem>>, %arg10: memref<1x128xf32, #tpu.memory_space<vmem>>, %arg11: memref<8x128xf32, #tpu.memory_space<vmem>>, %arg12: memref<352x128xf32, #tpu.memory_space<vmem>>, %arg13: memref<288x256xf32, #tpu.memory_space<vmem>>, %arg14: memref<288x128xf32, #tpu.memory_space<vmem>>, %arg15: memref<8x256xf32, #tpu.memory_space<vmem>>) attributes {dimension_semantics = [], scalar_prefetch = 0 : i64, scratch_operands = 4 : i64, tpu.core_type = #tpu.core_type<tc>} {
    %c0 = arith.constant 0 : index
    %c0_0 = arith.constant 0 : index
    %0 = vector.load %arg0[%c0, %c0_0] : memref<1152x32xf32, #tpu.memory_space<vmem>>, vector<1152x32xf32>
    %c0_1 = arith.constant 0 : index
    %c0_2 = arith.constant 0 : index
    %1 = vector.load %arg1[%c0_1, %c0_2] : memref<32x128xf32, #tpu.memory_space<vmem>>, vector<32x128xf32>
    %cst = arith.constant dense<0.000000e+00> : vector<1152x128xf32>
    %2 = tpu.matmul %0, %1, %cst {dimension_numbers = #tpu.dot_dimension_numbers<[1], [0], [0], [1], [0, 0, 1, 1], [], []>} : vector<1152x32xf32>, vector<32x128xf32>, vector<1152x128xf32> -> vector<1152x128xf32>
    %3 = vector.extract_strided_slice %2 {offsets = [0, 0], sizes = [288, 128], strides = [1, 1]} : vector<1152x128xf32> to vector<288x128xf32>
    %4 = vector.extract_strided_slice %2 {offsets = [288, 0], sizes = [288, 128], strides = [1, 1]} : vector<1152x128xf32> to vector<288x128xf32>
    %5 = arith.maximumf %3, %4 : vector<288x128xf32>
    %6 = vector.extract_strided_slice %2 {offsets = [576, 0], sizes = [288, 128], strides = [1, 1]} : vector<1152x128xf32> to vector<288x128xf32>
    %7 = vector.extract_strided_slice %2 {offsets = [864, 0], sizes = [288, 128], strides = [1, 1]} : vector<1152x128xf32> to vector<288x128xf32>
    %8 = arith.maximumf %6, %7 : vector<288x128xf32>
    %9 = arith.maximumf %5, %8 : vector<288x128xf32>
    %c0_3 = arith.constant 0 : index
    %c0_4 = arith.constant 0 : index
    %10 = vector.load %arg2[%c0_3, %c0_4] : memref<1x128xf32, #tpu.memory_space<vmem>>, vector<1x128xf32>
    %11 = vector.broadcast %10 : vector<1x128xf32> to vector<288x128xf32>
    %12 = arith.addf %9, %11 : vector<288x128xf32>
    %cst_5 = arith.constant 0.000000e+00 : f32
    %13 = vector.broadcast %cst_5 : f32 to vector<288x128xf32>
    %14 = arith.maximumf %12, %13 : vector<288x128xf32>
    %c0_6 = arith.constant 0 : index
    %c0_7 = arith.constant 0 : index
    %15 = vector.load %arg12[%c0_6, %c0_7] : memref<352x128xf32, #tpu.memory_space<vmem>>, vector<288x128xf32>
    tpu.vector_store %arg12[%c0_6, %c0_7], %14 {strides = array<i32>} : memref<352x128xf32, #tpu.memory_space<vmem>>, vector<288x128xf32>,
    %cst_8 = arith.constant 0.000000e+00 : f32
    %16 = vector.broadcast %cst_8 : f32 to vector<64x128xf32>
    %c288 = arith.constant 288 : index
    %c0_9 = arith.constant 0 : index
    %17 = vector.load %arg12[%c288, %c0_9] : memref<352x128xf32, #tpu.memory_space<vmem>>, vector<64x128xf32>
    tpu.vector_store %arg12[%c288, %c0_9], %16 {strides = array<i32>} : memref<352x128xf32, #tpu.memory_space<vmem>>, vector<64x128xf32>,
    %cst_10 = arith.constant 0.000000e+00 : f32
    %18 = vector.broadcast %cst_10 : f32 to vector<288x256xf32>
    %c0_11 = arith.constant 0 : index
    %c0_12 = arith.constant 0 : index
    %19 = vector.load %arg13[%c0_11, %c0_12] : memref<288x256xf32, #tpu.memory_space<vmem>>, vector<288x256xf32>
    tpu.vector_store %arg13[%c0_11, %c0_12], %18 {strides = array<i32>} : memref<288x256xf32, #tpu.memory_space<vmem>>, vector<288x256xf32>,
    %c0_13 = arith.constant 0 : index
    %c0_14 = arith.constant 0 : index
    %20 = vector.load %arg12[%c0_13, %c0_14] : memref<352x128xf32, #tpu.memory_space<vmem>>, vector<288x128xf32>
    %21 = vector.extract_strided_slice %20 {offsets = [0, 0], sizes = [288, 8], strides = [1, 1]} : vector<288x128xf32> to vector<288x8xf32>
    %c0_15 = arith.constant 0 : index
    %c0_16 = arith.constant 0 : index
    %22 = vector.load %arg13[%c0_15, %c0_16] : memref<288x256xf32, #tpu.memory_space<vmem>>, vector<288x8xf32>
    tpu.vector_store %arg13[%c0_15, %c0_16], %21 {strides = array<i32>} : memref<288x256xf32, #tpu.memory_space<vmem>>, vector<288x8xf32>,
    %c1 = arith.constant 1 : index
    %c0_17 = arith.constant 0 : index
    %23 = vector.load %arg12[%c1, %c0_17] : memref<352x128xf32, #tpu.memory_space<vmem>>, vector<288x128xf32>
    %24 = vector.extract_strided_slice %23 {offsets = [0, 0], sizes = [288, 8], strides = [1, 1]} : vector<288x128xf32> to vector<288x8xf32>
    %c0_18 = arith.constant 0 : index
    %c8 = arith.constant 8 : index
    %25 = vector.load %arg13[%c0_18, %c8] : memref<288x256xf32, #tpu.memory_space<vmem>>, vector<288x8xf32>
    tpu.vector_store %arg13[%c0_18, %c8], %24 {strides = array<i32>} : memref<288x256xf32, #tpu.memory_space<vmem>>, vector<288x8xf32>,
    %c2 = arith.constant 2 : index
    %c0_19 = arith.constant 0 : index
    %26 = vector.load %arg12[%c2, %c0_19] : memref<352x128xf32, #tpu.memory_space<vmem>>, vector<288x128xf32>
    %27 = vector.extract_strided_slice %26 {offsets = [0, 0], sizes = [288, 8], strides = [1, 1]} : vector<288x128xf32> to vector<288x8xf32>
    %c0_20 = arith.constant 0 : index
    %c16 = arith.constant 16 : index
    %28 = vector.load %arg13[%c0_20, %c16] : memref<288x256xf32, #tpu.memory_space<vmem>>, vector<288x8xf32>
    tpu.vector_store %arg13[%c0_20, %c16], %27 {strides = array<i32>} : memref<288x256xf32, #tpu.memory_space<vmem>>, vector<288x8xf32>,
    %c3 = arith.constant 3 : index
    %c0_21 = arith.constant 0 : index
    %29 = vector.load %arg12[%c3, %c0_21] : memref<352x128xf32, #tpu.memory_space<vmem>>, vector<288x128xf32>
    %30 = vector.extract_strided_slice %29 {offsets = [0, 0], sizes = [288, 8], strides = [1, 1]} : vector<288x128xf32> to vector<288x8xf32>
    %c0_22 = arith.constant 0 : index
    %c24 = arith.constant 24 : index
    %31 = vector.load %arg13[%c0_22, %c24] : memref<288x256xf32, #tpu.memory_space<vmem>>, vector<288x8xf32>
    tpu.vector_store %arg13[%c0_22, %c24], %30 {strides = array<i32>} : memref<288x256xf32, #tpu.memory_space<vmem>>, vector<288x8xf32>,
    %c4 = arith.constant 4 : index
    %c0_23 = arith.constant 0 : index
    %32 = vector.load %arg12[%c4, %c0_23] : memref<352x128xf32, #tpu.memory_space<vmem>>, vector<288x128xf32>
    %33 = vector.extract_strided_slice %32 {offsets = [0, 0], sizes = [288, 8], strides = [1, 1]} : vector<288x128xf32> to vector<288x8xf32>
    %c0_24 = arith.constant 0 : index
    %c32 = arith.constant 32 : index
    %34 = vector.load %arg13[%c0_24, %c32] : memref<288x256xf32, #tpu.memory_space<vmem>>, vector<288x8xf32>
    tpu.vector_store %arg13[%c0_24, %c32], %33 {strides = array<i32>} : memref<288x256xf32, #tpu.memory_space<vmem>>, vector<288x8xf32>,
    %c12 = arith.constant 12 : index
    %c0_25 = arith.constant 0 : index
    %35 = vector.load %arg12[%c12, %c0_25] : memref<352x128xf32, #tpu.memory_space<vmem>>, vector<288x128xf32>
    %36 = vector.extract_strided_slice %35 {offsets = [0, 0], sizes = [288, 8], strides = [1, 1]} : vector<288x128xf32> to vector<288x8xf32>
    %c0_26 = arith.constant 0 : index
    %c40 = arith.constant 40 : index
    %37 = vector.load %arg13[%c0_26, %c40] : memref<288x256xf32, #tpu.memory_space<vmem>>, vector<288x8xf32>
    tpu.vector_store %arg13[%c0_26, %c40], %36 {strides = array<i32>} : memref<288x256xf32, #tpu.memory_space<vmem>>, vector<288x8xf32>,
    %c13 = arith.constant 13 : index
    %c0_27 = arith.constant 0 : index
    %38 = vector.load %arg12[%c13, %c0_27] : memref<352x128xf32, #tpu.memory_space<vmem>>, vector<288x128xf32>
    %39 = vector.extract_strided_slice %38 {offsets = [0, 0], sizes = [288, 8], strides = [1, 1]} : vector<288x128xf32> to vector<288x8xf32>
    %c0_28 = arith.constant 0 : index
    %c48 = arith.constant 48 : index
    %40 = vector.load %arg13[%c0_28, %c48] : memref<288x256xf32, #tpu.memory_space<vmem>>, vector<288x8xf32>
    tpu.vector_store %arg13[%c0_28, %c48], %39 {strides = array<i32>} : memref<288x256xf32, #tpu.memory_space<vmem>>, vector<288x8xf32>,
    %c14 = arith.constant 14 : index
    %c0_29 = arith.constant 0 : index
    %41 = vector.load %arg12[%c14, %c0_29] : memref<352x128xf32, #tpu.memory_space<vmem>>, vector<288x128xf32>
    %42 = vector.extract_strided_slice %41 {offsets = [0, 0], sizes = [288, 8], strides = [1, 1]} : vector<288x128xf32> to vector<288x8xf32>
    %c0_30 = arith.constant 0 : index
    %c56 = arith.constant 56 : index
    %43 = vector.load %arg13[%c0_30, %c56] : memref<288x256xf32, #tpu.memory_space<vmem>>, vector<288x8xf32>
    tpu.vector_store %arg13[%c0_30, %c56], %42 {strides = array<i32>} : memref<288x256xf32, #tpu.memory_space<vmem>>, vector<288x8xf32>,
    %c15 = arith.constant 15 : index
    %c0_31 = arith.constant 0 : index
    %44 = vector.load %arg12[%c15, %c0_31] : memref<352x128xf32, #tpu.memory_space<vmem>>, vector<288x128xf32>
    %45 = vector.extract_strided_slice %44 {offsets = [0, 0], sizes = [288, 8], strides = [1, 1]} : vector<288x128xf32> to vector<288x8xf32>
    %c0_32 = arith.constant 0 : index
    %c64 = arith.constant 64 : index
    %46 = vector.load %arg13[%c0_32, %c64] : memref<288x256xf32, #tpu.memory_space<vmem>>, vector<288x8xf32>
    tpu.vector_store %arg13[%c0_32, %c64], %45 {strides = array<i32>} : memref<288x256xf32, #tpu.memory_space<vmem>>, vector<288x8xf32>,
    %c16_33 = arith.constant 16 : index
    %c0_34 = arith.constant 0 : index
    %47 = vector.load %arg12[%c16_33, %c0_34] : memref<352x128xf32, #tpu.memory_space<vmem>>, vector<288x128xf32>
    %48 = vector.extract_strided_slice %47 {offsets = [0, 0], sizes = [288, 8], strides = [1, 1]} : vector<288x128xf32> to vector<288x8xf32>
    %c0_35 = arith.constant 0 : index
    %c72 = arith.constant 72 : index
    %49 = vector.load %arg13[%c0_35, %c72] : memref<288x256xf32, #tpu.memory_space<vmem>>, vector<288x8xf32>
    tpu.vector_store %arg13[%c0_35, %c72], %48 {strides = array<i32>} : memref<288x256xf32, #tpu.memory_space<vmem>>, vector<288x8xf32>,
    %c24_36 = arith.constant 24 : index
    %c0_37 = arith.constant 0 : index
    %50 = vector.load %arg12[%c24_36, %c0_37] : memref<352x128xf32, #tpu.memory_space<vmem>>, vector<288x128xf32>
    %51 = vector.extract_strided_slice %50 {offsets = [0, 0], sizes = [288, 8], strides = [1, 1]} : vector<288x128xf32> to vector<288x8xf32>
    %c0_38 = arith.constant 0 : index
    %c80 = arith.constant 80 : index
    %52 = vector.load %arg13[%c0_38, %c80] : memref<288x256xf32, #tpu.memory_space<vmem>>, vector<288x8xf32>
    tpu.vector_store %arg13[%c0_38, %c80], %51 {strides = array<i32>} : memref<288x256xf32, #tpu.memory_space<vmem>>, vector<288x8xf32>,
    %c25 = arith.constant 25 : index
    %c0_39 = arith.constant 0 : index
    %53 = vector.load %arg12[%c25, %c0_39] : memref<352x128xf32, #tpu.memory_space<vmem>>, vector<288x128xf32>
    %54 = vector.extract_strided_slice %53 {offsets = [0, 0], sizes = [288, 8], strides = [1, 1]} : vector<288x128xf32> to vector<288x8xf32>
    %c0_40 = arith.constant 0 : index
    %c88 = arith.constant 88 : index
    %55 = vector.load %arg13[%c0_40, %c88] : memref<288x256xf32, #tpu.memory_space<vmem>>, vector<288x8xf32>
    tpu.vector_store %arg13[%c0_40, %c88], %54 {strides = array<i32>} : memref<288x256xf32, #tpu.memory_space<vmem>>, vector<288x8xf32>,
    %c26 = arith.constant 26 : index
    %c0_41 = arith.constant 0 : index
    %56 = vector.load %arg12[%c26, %c0_41] : memref<352x128xf32, #tpu.memory_space<vmem>>, vector<288x128xf32>
    %57 = vector.extract_strided_slice %56 {offsets = [0, 0], sizes = [288, 8], strides = [1, 1]} : vector<288x128xf32> to vector<288x8xf32>
    %c0_42 = arith.constant 0 : index
    %c96 = arith.constant 96 : index
    %58 = vector.load %arg13[%c0_42, %c96] : memref<288x256xf32, #tpu.memory_space<vmem>>, vector<288x8xf32>
    tpu.vector_store %arg13[%c0_42, %c96], %57 {strides = array<i32>} : memref<288x256xf32, #tpu.memory_space<vmem>>, vector<288x8xf32>,
    %c27 = arith.constant 27 : index
    %c0_43 = arith.constant 0 : index
    %59 = vector.load %arg12[%c27, %c0_43] : memref<352x128xf32, #tpu.memory_space<vmem>>, vector<288x128xf32>
    %60 = vector.extract_strided_slice %59 {offsets = [0, 0], sizes = [288, 8], strides = [1, 1]} : vector<288x128xf32> to vector<288x8xf32>
    %c0_44 = arith.constant 0 : index
    %c104 = arith.constant 104 : index
    %61 = vector.load %arg13[%c0_44, %c104] : memref<288x256xf32, #tpu.memory_space<vmem>>, vector<288x8xf32>
    tpu.vector_store %arg13[%c0_44, %c104], %60 {strides = array<i32>} : memref<288x256xf32, #tpu.memory_space<vmem>>, vector<288x8xf32>,
    %c28 = arith.constant 28 : index
    %c0_45 = arith.constant 0 : index
    %62 = vector.load %arg12[%c28, %c0_45] : memref<352x128xf32, #tpu.memory_space<vmem>>, vector<288x128xf32>
    %63 = vector.extract_strided_slice %62 {offsets = [0, 0], sizes = [288, 8], strides = [1, 1]} : vector<288x128xf32> to vector<288x8xf32>
    %c0_46 = arith.constant 0 : index
    %c112 = arith.constant 112 : index
    %64 = vector.load %arg13[%c0_46, %c112] : memref<288x256xf32, #tpu.memory_space<vmem>>, vector<288x8xf32>
    tpu.vector_store %arg13[%c0_46, %c112], %63 {strides = array<i32>} : memref<288x256xf32, #tpu.memory_space<vmem>>, vector<288x8xf32>,
    %c36 = arith.constant 36 : index
    %c0_47 = arith.constant 0 : index
    %65 = vector.load %arg12[%c36, %c0_47] : memref<352x128xf32, #tpu.memory_space<vmem>>, vector<288x128xf32>
    %66 = vector.extract_strided_slice %65 {offsets = [0, 0], sizes = [288, 8], strides = [1, 1]} : vector<288x128xf32> to vector<288x8xf32>
    %c0_48 = arith.constant 0 : index
    %c120 = arith.constant 120 : index
    %67 = vector.load %arg13[%c0_48, %c120] : memref<288x256xf32, #tpu.memory_space<vmem>>, vector<288x8xf32>
    tpu.vector_store %arg13[%c0_48, %c120], %66 {strides = array<i32>} : memref<288x256xf32, #tpu.memory_space<vmem>>, vector<288x8xf32>,
    %c37 = arith.constant 37 : index
    %c0_49 = arith.constant 0 : index
    %68 = vector.load %arg12[%c37, %c0_49] : memref<352x128xf32, #tpu.memory_space<vmem>>, vector<288x128xf32>
    %69 = vector.extract_strided_slice %68 {offsets = [0, 0], sizes = [288, 8], strides = [1, 1]} : vector<288x128xf32> to vector<288x8xf32>
    %c0_50 = arith.constant 0 : index
    %c128 = arith.constant 128 : index
    %70 = vector.load %arg13[%c0_50, %c128] : memref<288x256xf32, #tpu.memory_space<vmem>>, vector<288x8xf32>
    tpu.vector_store %arg13[%c0_50, %c128], %69 {strides = array<i32>} : memref<288x256xf32, #tpu.memory_space<vmem>>, vector<288x8xf32>,
    %c38 = arith.constant 38 : index
    %c0_51 = arith.constant 0 : index
    %71 = vector.load %arg12[%c38, %c0_51] : memref<352x128xf32, #tpu.memory_space<vmem>>, vector<288x128xf32>
    %72 = vector.extract_strided_slice %71 {offsets = [0, 0], sizes = [288, 8], strides = [1, 1]} : vector<288x128xf32> to vector<288x8xf32>
    %c0_52 = arith.constant 0 : index
    %c136 = arith.constant 136 : index
    %73 = vector.load %arg13[%c0_52, %c136] : memref<288x256xf32, #tpu.memory_space<vmem>>, vector<288x8xf32>
    tpu.vector_store %arg13[%c0_52, %c136], %72 {strides = array<i32>} : memref<288x256xf32, #tpu.memory_space<vmem>>, vector<288x8xf32>,
    %c39 = arith.constant 39 : index
    %c0_53 = arith.constant 0 : index
    %74 = vector.load %arg12[%c39, %c0_53] : memref<352x128xf32, #tpu.memory_space<vmem>>, vector<288x128xf32>
    %75 = vector.extract_strided_slice %74 {offsets = [0, 0], sizes = [288, 8], strides = [1, 1]} : vector<288x128xf32> to vector<288x8xf32>
    %c0_54 = arith.constant 0 : index
    %c144 = arith.constant 144 : index
    %76 = vector.load %arg13[%c0_54, %c144] : memref<288x256xf32, #tpu.memory_space<vmem>>, vector<288x8xf32>
    tpu.vector_store %arg13[%c0_54, %c144], %75 {strides = array<i32>} : memref<288x256xf32, #tpu.memory_space<vmem>>, vector<288x8xf32>,
    %c40_55 = arith.constant 40 : index
    %c0_56 = arith.constant 0 : index
    %77 = vector.load %arg12[%c40_55, %c0_56] : memref<352x128xf32, #tpu.memory_space<vmem>>, vector<288x128xf32>
    %78 = vector.extract_strided_slice %77 {offsets = [0, 0], sizes = [288, 8], strides = [1, 1]} : vector<288x128xf32> to vector<288x8xf32>
    %c0_57 = arith.constant 0 : index
    %c152 = arith.constant 152 : index
    %79 = vector.load %arg13[%c0_57, %c152] : memref<288x256xf32, #tpu.memory_space<vmem>>, vector<288x8xf32>
    tpu.vector_store %arg13[%c0_57, %c152], %78 {strides = array<i32>} : memref<288x256xf32, #tpu.memory_space<vmem>>, vector<288x8xf32>,
    %c48_58 = arith.constant 48 : index
    %c0_59 = arith.constant 0 : index
    %80 = vector.load %arg12[%c48_58, %c0_59] : memref<352x128xf32, #tpu.memory_space<vmem>>, vector<288x128xf32>
    %81 = vector.extract_strided_slice %80 {offsets = [0, 0], sizes = [288, 8], strides = [1, 1]} : vector<288x128xf32> to vector<288x8xf32>
    %c0_60 = arith.constant 0 : index
    %c160 = arith.constant 160 : index
    %82 = vector.load %arg13[%c0_60, %c160] : memref<288x256xf32, #tpu.memory_space<vmem>>, vector<288x8xf32>
    tpu.vector_store %arg13[%c0_60, %c160], %81 {strides = array<i32>} : memref<288x256xf32, #tpu.memory_space<vmem>>, vector<288x8xf32>,
    %c49 = arith.constant 49 : index
    %c0_61 = arith.constant 0 : index
    %83 = vector.load %arg12[%c49, %c0_61] : memref<352x128xf32, #tpu.memory_space<vmem>>, vector<288x128xf32>
    %84 = vector.extract_strided_slice %83 {offsets = [0, 0], sizes = [288, 8], strides = [1, 1]} : vector<288x128xf32> to vector<288x8xf32>
    %c0_62 = arith.constant 0 : index
    %c168 = arith.constant 168 : index
    %85 = vector.load %arg13[%c0_62, %c168] : memref<288x256xf32, #tpu.memory_space<vmem>>, vector<288x8xf32>
    tpu.vector_store %arg13[%c0_62, %c168], %84 {strides = array<i32>} : memref<288x256xf32, #tpu.memory_space<vmem>>, vector<288x8xf32>,
    %c50 = arith.constant 50 : index
    %c0_63 = arith.constant 0 : index
    %86 = vector.load %arg12[%c50, %c0_63] : memref<352x128xf32, #tpu.memory_space<vmem>>, vector<288x128xf32>
    %87 = vector.extract_strided_slice %86 {offsets = [0, 0], sizes = [288, 8], strides = [1, 1]} : vector<288x128xf32> to vector<288x8xf32>
    %c0_64 = arith.constant 0 : index
    %c176 = arith.constant 176 : index
    %88 = vector.load %arg13[%c0_64, %c176] : memref<288x256xf32, #tpu.memory_space<vmem>>, vector<288x8xf32>
    tpu.vector_store %arg13[%c0_64, %c176], %87 {strides = array<i32>} : memref<288x256xf32, #tpu.memory_space<vmem>>, vector<288x8xf32>,
    %c51 = arith.constant 51 : index
    %c0_65 = arith.constant 0 : index
    %89 = vector.load %arg12[%c51, %c0_65] : memref<352x128xf32, #tpu.memory_space<vmem>>, vector<288x128xf32>
    %90 = vector.extract_strided_slice %89 {offsets = [0, 0], sizes = [288, 8], strides = [1, 1]} : vector<288x128xf32> to vector<288x8xf32>
    %c0_66 = arith.constant 0 : index
    %c184 = arith.constant 184 : index
    %91 = vector.load %arg13[%c0_66, %c184] : memref<288x256xf32, #tpu.memory_space<vmem>>, vector<288x8xf32>
    tpu.vector_store %arg13[%c0_66, %c184], %90 {strides = array<i32>} : memref<288x256xf32, #tpu.memory_space<vmem>>, vector<288x8xf32>,
    %c52 = arith.constant 52 : index
    %c0_67 = arith.constant 0 : index
    %92 = vector.load %arg12[%c52, %c0_67] : memref<352x128xf32, #tpu.memory_space<vmem>>, vector<288x128xf32>
    %93 = vector.extract_strided_slice %92 {offsets = [0, 0], sizes = [288, 8], strides = [1, 1]} : vector<288x128xf32> to vector<288x8xf32>
    %c0_68 = arith.constant 0 : index
    %c192 = arith.constant 192 : index
    %94 = vector.load %arg13[%c0_68, %c192] : memref<288x256xf32, #tpu.memory_space<vmem>>, vector<288x8xf32>
    tpu.vector_store %arg13[%c0_68, %c192], %93 {strides = array<i32>} : memref<288x256xf32, #tpu.memory_space<vmem>>, vector<288x8xf32>,
    %c0_69 = arith.constant 0 : index
    %c0_70 = arith.constant 0 : index
    %95 = vector.load %arg13[%c0_69, %c0_70] : memref<288x256xf32, #tpu.memory_space<vmem>>, vector<288x256xf32>
    %c0_71 = arith.constant 0 : index
    %c0_72 = arith.constant 0 : index
    %96 = vector.load %arg3[%c0_71, %c0_72] : memref<256x128xf32, #tpu.memory_space<vmem>>, vector<256x128xf32>
    %cst_73 = arith.constant dense<0.000000e+00> : vector<288x128xf32>
    %97 = tpu.matmul %95, %96, %cst_73 {dimension_numbers = #tpu.dot_dimension_numbers<[1], [0], [0], [1], [0, 0, 1, 1], [], []>} : vector<288x256xf32>, vector<256x128xf32>, vector<288x128xf32> -> vector<288x128xf32>
    %c0_74 = arith.constant 0 : index
    %c0_75 = arith.constant 0 : index
    %98 = vector.load %arg4[%c0_74, %c0_75] : memref<1x128xf32, #tpu.memory_space<vmem>>, vector<1x128xf32>
    %99 = vector.broadcast %98 : vector<1x128xf32> to vector<288x128xf32>
    %100 = arith.addf %97, %99 : vector<288x128xf32>
    %cst_76 = arith.constant 0.000000e+00 : f32
    %101 = vector.broadcast %cst_76 : f32 to vector<288x128xf32>
    %102 = arith.maximumf %100, %101 : vector<288x128xf32>
    %c0_77 = arith.constant 0 : index
    %c0_78 = arith.constant 0 : index
    %103 = vector.load %arg14[%c0_77, %c0_78] : memref<288x128xf32, #tpu.memory_space<vmem>>, vector<288x128xf32>
    tpu.vector_store %arg14[%c0_77, %c0_78], %102 {strides = array<i32>} : memref<288x128xf32, #tpu.memory_space<vmem>>, vector<288x128xf32>,
    %cst_79 = arith.constant 0.000000e+00 : f32
    %104 = vector.broadcast %cst_79 : f32 to vector<8x256xf32>
    %c0_80 = arith.constant 0 : index
    %c0_81 = arith.constant 0 : index
    %105 = vector.load %arg15[%c0_80, %c0_81] : memref<8x256xf32, #tpu.memory_space<vmem>>, vector<8x256xf32>
    tpu.vector_store %arg15[%c0_80, %c0_81], %104 {strides = array<i32>} : memref<8x256xf32, #tpu.memory_space<vmem>>, vector<8x256xf32>,
    %c0_82 = arith.constant 0 : index
    %c0_83 = arith.constant 0 : index
    %106 = vector.load %arg14[%c0_82, %c0_83] : memref<288x128xf32, #tpu.memory_space<vmem>>, vector<1x128xf32>
    %c1_84 = arith.constant 1 : index
    %c0_85 = arith.constant 0 : index
    %107 = vector.load %arg14[%c1_84, %c0_85] : memref<288x128xf32, #tpu.memory_space<vmem>>, vector<1x128xf32>
    %108 = arith.maximumf %106, %107 : vector<1x128xf32>
    %c12_86 = arith.constant 12 : index
    %c0_87 = arith.constant 0 : index
    %109 = vector.load %arg14[%c12_86, %c0_87] : memref<288x128xf32, #tpu.memory_space<vmem>>, vector<1x128xf32>
    %c13_88 = arith.constant 13 : index
    %c0_89 = arith.constant 0 : index
    %110 = vector.load %arg14[%c13_88, %c0_89] : memref<288x128xf32, #tpu.memory_space<vmem>>, vector<1x128xf32>
    %111 = arith.maximumf %109, %110 : vector<1x128xf32>
    %112 = arith.maximumf %108, %111 : vector<1x128xf32>
    %113 = vector.extract_strided_slice %112 {offsets = [0, 0], sizes = [1, 16], strides = [1, 1]} : vector<1x128xf32> to vector<1x16xf32>
    %c0_90 = arith.constant 0 : index
    %c0_91 = arith.constant 0 : index
    %114 = vector.load %arg15[%c0_90, %c0_91] : memref<8x256xf32, #tpu.memory_space<vmem>>, vector<1x16xf32>
    tpu.vector_store %arg15[%c0_90, %c0_91], %113 {strides = array<i32>} : memref<8x256xf32, #tpu.memory_space<vmem>>, vector<1x16xf32>,
    %c2_92 = arith.constant 2 : index
    %c0_93 = arith.constant 0 : index
    %115 = vector.load %arg14[%c2_92, %c0_93] : memref<288x128xf32, #tpu.memory_space<vmem>>, vector<1x128xf32>
    %c3_94 = arith.constant 3 : index
    %c0_95 = arith.constant 0 : index
    %116 = vector.load %arg14[%c3_94, %c0_95] : memref<288x128xf32, #tpu.memory_space<vmem>>, vector<1x128xf32>
    %117 = arith.maximumf %115, %116 : vector<1x128xf32>
    %c14_96 = arith.constant 14 : index
    %c0_97 = arith.constant 0 : index
    %118 = vector.load %arg14[%c14_96, %c0_97] : memref<288x128xf32, #tpu.memory_space<vmem>>, vector<1x128xf32>
    %c15_98 = arith.constant 15 : index
    %c0_99 = arith.constant 0 : index
    %119 = vector.load %arg14[%c15_98, %c0_99] : memref<288x128xf32, #tpu.memory_space<vmem>>, vector<1x128xf32>
    %120 = arith.maximumf %118, %119 : vector<1x128xf32>
    %121 = arith.maximumf %117, %120 : vector<1x128xf32>
    %122 = vector.extract_strided_slice %121 {offsets = [0, 0], sizes = [1, 16], strides = [1, 1]} : vector<1x128xf32> to vector<1x16xf32>
    %c0_100 = arith.constant 0 : index
    %c16_101 = arith.constant 16 : index
    %123 = vector.load %arg15[%c0_100, %c16_101] : memref<8x256xf32, #tpu.memory_space<vmem>>, vector<1x16xf32>
    tpu.vector_store %arg15[%c0_100, %c16_101], %122 {strides = array<i32>} : memref<8x256xf32, #tpu.memory_space<vmem>>, vector<1x16xf32>,
    %c4_102 = arith.constant 4 : index
    %c0_103 = arith.constant 0 : index
    %124 = vector.load %arg14[%c4_102, %c0_103] : memref<288x128xf32, #tpu.memory_space<vmem>>, vector<1x128xf32>
    %c5 = arith.constant 5 : index
    %c0_104 = arith.constant 0 : index
    %125 = vector.load %arg14[%c5, %c0_104] : memref<288x128xf32, #tpu.memory_space<vmem>>, vector<1x128xf32>
    %126 = arith.maximumf %124, %125 : vector<1x128xf32>
    %c16_105 = arith.constant 16 : index
    %c0_106 = arith.constant 0 : index
    %127 = vector.load %arg14[%c16_105, %c0_106] : memref<288x128xf32, #tpu.memory_space<vmem>>, vector<1x128xf32>
    %c17 = arith.constant 17 : index
    %c0_107 = arith.constant 0 : index
    %128 = vector.load %arg14[%c17, %c0_107] : memref<288x128xf32, #tpu.memory_space<vmem>>, vector<1x128xf32>
    %129 = arith.maximumf %127, %128 : vector<1x128xf32>
    %130 = arith.maximumf %126, %129 : vector<1x128xf32>
    %131 = vector.extract_strided_slice %130 {offsets = [0, 0], sizes = [1, 16], strides = [1, 1]} : vector<1x128xf32> to vector<1x16xf32>
    %c0_108 = arith.constant 0 : index
    %c32_109 = arith.constant 32 : index
    %132 = vector.load %arg15[%c0_108, %c32_109] : memref<8x256xf32, #tpu.memory_space<vmem>>, vector<1x16xf32>
    tpu.vector_store %arg15[%c0_108, %c32_109], %131 {strides = array<i32>} : memref<8x256xf32, #tpu.memory_space<vmem>>, vector<1x16xf32>,
    %c6 = arith.constant 6 : index
    %c0_110 = arith.constant 0 : index
    %133 = vector.load %arg14[%c6, %c0_110] : memref<288x128xf32, #tpu.memory_space<vmem>>, vector<1x128xf32>
    %c7 = arith.constant 7 : index
    %c0_111 = arith.constant 0 : index
    %134 = vector.load %arg14[%c7, %c0_111] : memref<288x128xf32, #tpu.memory_space<vmem>>, vector<1x128xf32>
    %135 = arith.maximumf %133, %134 : vector<1x128xf32>
    %c18 = arith.constant 18 : index
    %c0_112 = arith.constant 0 : index
    %136 = vector.load %arg14[%c18, %c0_112] : memref<288x128xf32, #tpu.memory_space<vmem>>, vector<1x128xf32>
    %c19 = arith.constant 19 : index
    %c0_113 = arith.constant 0 : index
    %137 = vector.load %arg14[%c19, %c0_113] : memref<288x128xf32, #tpu.memory_space<vmem>>, vector<1x128xf32>
    %138 = arith.maximumf %136, %137 : vector<1x128xf32>
    %139 = arith.maximumf %135, %138 : vector<1x128xf32>
    %140 = vector.extract_strided_slice %139 {offsets = [0, 0], sizes = [1, 16], strides = [1, 1]} : vector<1x128xf32> to vector<1x16xf32>
    %c0_114 = arith.constant 0 : index
    %c48_115 = arith.constant 48 : index
    %141 = vector.load %arg15[%c0_114, %c48_115] : memref<8x256xf32, #tpu.memory_space<vmem>>, vector<1x16xf32>
    tpu.vector_store %arg15[%c0_114, %c48_115], %140 {strides = array<i32>} : memref<8x256xf32, #tpu.memory_space<vmem>>, vector<1x16xf32>,
    %c24_116 = arith.constant 24 : index
    %c0_117 = arith.constant 0 : index
    %142 = vector.load %arg14[%c24_116, %c0_117] : memref<288x128xf32, #tpu.memory_space<vmem>>, vector<1x128xf32>
    %c25_118 = arith.constant 25 : index
    %c0_119 = arith.constant 0 : index
    %143 = vector.load %arg14[%c25_118, %c0_119] : memref<288x128xf32, #tpu.memory_space<vmem>>, vector<1x128xf32>
    %144 = arith.maximumf %142, %143 : vector<1x128xf32>
    %c36_120 = arith.constant 36 : index
    %c0_121 = arith.constant 0 : index
    %145 = vector.load %arg14[%c36_120, %c0_121] : memref<288x128xf32, #tpu.memory_space<vmem>>, vector<1x128xf32>
    %c37_122 = arith.constant 37 : index
    %c0_123 = arith.constant 0 : index
    %146 = vector.load %arg14[%c37_122, %c0_123] : memref<288x128xf32, #tpu.memory_space<vmem>>, vector<1x128xf32>
    %147 = arith.maximumf %145, %146 : vector<1x128xf32>
    %148 = arith.maximumf %144, %147 : vector<1x128xf32>
    %149 = vector.extract_strided_slice %148 {offsets = [0, 0], sizes = [1, 16], strides = [1, 1]} : vector<1x128xf32> to vector<1x16xf32>
    %c0_124 = arith.constant 0 : index
    %c64_125 = arith.constant 64 : index
    %150 = vector.load %arg15[%c0_124, %c64_125] : memref<8x256xf32, #tpu.memory_space<vmem>>, vector<1x16xf32>
    tpu.vector_store %arg15[%c0_124, %c64_125], %149 {strides = array<i32>} : memref<8x256xf32, #tpu.memory_space<vmem>>, vector<1x16xf32>,
    %c26_126 = arith.constant 26 : index
    %c0_127 = arith.constant 0 : index
    %151 = vector.load %arg14[%c26_126, %c0_127] : memref<288x128xf32, #tpu.memory_space<vmem>>, vector<1x128xf32>
    %c27_128 = arith.constant 27 : index
    %c0_129 = arith.constant 0 : index
    %152 = vector.load %arg14[%c27_128, %c0_129] : memref<288x128xf32, #tpu.memory_space<vmem>>, vector<1x128xf32>
    %153 = arith.maximumf %151, %152 : vector<1x128xf32>
    %c38_130 = arith.constant 38 : index
    %c0_131 = arith.constant 0 : index
    %154 = vector.load %arg14[%c38_130, %c0_131] : memref<288x128xf32, #tpu.memory_space<vmem>>, vector<1x128xf32>
    %c39_132 = arith.constant 39 : index
    %c0_133 = arith.constant 0 : index
    %155 = vector.load %arg14[%c39_132, %c0_133] : memref<288x128xf32, #tpu.memory_space<vmem>>, vector<1x128xf32>
    %156 = arith.maximumf %154, %155 : vector<1x128xf32>
    %157 = arith.maximumf %153, %156 : vector<1x128xf32>
    %158 = vector.extract_strided_slice %157 {offsets = [0, 0], sizes = [1, 16], strides = [1, 1]} : vector<1x128xf32> to vector<1x16xf32>
    %c0_134 = arith.constant 0 : index
    %c80_135 = arith.constant 80 : index
    %159 = vector.load %arg15[%c0_134, %c80_135] : memref<8x256xf32, #tpu.memory_space<vmem>>, vector<1x16xf32>
    tpu.vector_store %arg15[%c0_134, %c80_135], %158 {strides = array<i32>} : memref<8x256xf32, #tpu.memory_space<vmem>>, vector<1x16xf32>,
    %c28_136 = arith.constant 28 : index
    %c0_137 = arith.constant 0 : index
    %160 = vector.load %arg14[%c28_136, %c0_137] : memref<288x128xf32, #tpu.memory_space<vmem>>, vector<1x128xf32>
    %c29 = arith.constant 29 : index
    %c0_138 = arith.constant 0 : index
    %161 = vector.load %arg14[%c29, %c0_138] : memref<288x128xf32, #tpu.memory_space<vmem>>, vector<1x128xf32>
    %162 = arith.maximumf %160, %161 : vector<1x128xf32>
    %c40_139 = arith.constant 40 : index
    %c0_140 = arith.constant 0 : index
    %163 = vector.load %arg14[%c40_139, %c0_140] : memref<288x128xf32, #tpu.memory_space<vmem>>, vector<1x128xf32>
    %c41 = arith.constant 41 : index
    %c0_141 = arith.constant 0 : index
    %164 = vector.load %arg14[%c41, %c0_141] : memref<288x128xf32, #tpu.memory_space<vmem>>, vector<1x128xf32>
    %165 = arith.maximumf %163, %164 : vector<1x128xf32>
    %166 = arith.maximumf %162, %165 : vector<1x128xf32>
    %167 = vector.extract_strided_slice %166 {offsets = [0, 0], sizes = [1, 16], strides = [1, 1]} : vector<1x128xf32> to vector<1x16xf32>
    %c0_142 = arith.constant 0 : index
    %c96_143 = arith.constant 96 : index
    %168 = vector.load %arg15[%c0_142, %c96_143] : memref<8x256xf32, #tpu.memory_space<vmem>>, vector<1x16xf32>
    tpu.vector_store %arg15[%c0_142, %c96_143], %167 {strides = array<i32>} : memref<8x256xf32, #tpu.memory_space<vmem>>, vector<1x16xf32>,
    %c30 = arith.constant 30 : index
    %c0_144 = arith.constant 0 : index
    %169 = vector.load %arg14[%c30, %c0_144] : memref<288x128xf32, #tpu.memory_space<vmem>>, vector<1x128xf32>
    %c31 = arith.constant 31 : index
    %c0_145 = arith.constant 0 : index
    %170 = vector.load %arg14[%c31, %c0_145] : memref<288x128xf32, #tpu.memory_space<vmem>>, vector<1x128xf32>
    %171 = arith.maximumf %169, %170 : vector<1x128xf32>
    %c42 = arith.constant 42 : index
    %c0_146 = arith.constant 0 : index
    %172 = vector.load %arg14[%c42, %c0_146] : memref<288x128xf32, #tpu.memory_space<vmem>>, vector<1x128xf32>
    %c43 = arith.constant 43 : index
    %c0_147 = arith.constant 0 : index
    %173 = vector.load %arg14[%c43, %c0_147] : memref<288x128xf32, #tpu.memory_space<vmem>>, vector<1x128xf32>
    %174 = arith.maximumf %172, %173 : vector<1x128xf32>
    %175 = arith.maximumf %171, %174 : vector<1x128xf32>
    %176 = vector.extract_strided_slice %175 {offsets = [0, 0], sizes = [1, 16], strides = [1, 1]} : vector<1x128xf32> to vector<1x16xf32>
    %c0_148 = arith.constant 0 : index
    %c112_149 = arith.constant 112 : index
    %177 = vector.load %arg15[%c0_148, %c112_149] : memref<8x256xf32, #tpu.memory_space<vmem>>, vector<1x16xf32>
    tpu.vector_store %arg15[%c0_148, %c112_149], %176 {strides = array<i32>} : memref<8x256xf32, #tpu.memory_space<vmem>>, vector<1x16xf32>,
    %c48_150 = arith.constant 48 : index
    %c0_151 = arith.constant 0 : index
    %178 = vector.load %arg14[%c48_150, %c0_151] : memref<288x128xf32, #tpu.memory_space<vmem>>, vector<1x128xf32>
    %c49_152 = arith.constant 49 : index
    %c0_153 = arith.constant 0 : index
    %179 = vector.load %arg14[%c49_152, %c0_153] : memref<288x128xf32, #tpu.memory_space<vmem>>, vector<1x128xf32>
    %180 = arith.maximumf %178, %179 : vector<1x128xf32>
    %c60 = arith.constant 60 : index
    %c0_154 = arith.constant 0 : index
    %181 = vector.load %arg14[%c60, %c0_154] : memref<288x128xf32, #tpu.memory_space<vmem>>, vector<1x128xf32>
    %c61 = arith.constant 61 : index
    %c0_155 = arith.constant 0 : index
    %182 = vector.load %arg14[%c61, %c0_155] : memref<288x128xf32, #tpu.memory_space<vmem>>, vector<1x128xf32>
    %183 = arith.maximumf %181, %182 : vector<1x128xf32>
    %184 = arith.maximumf %180, %183 : vector<1x128xf32>
    %185 = vector.extract_strided_slice %184 {offsets = [0, 0], sizes = [1, 16], strides = [1, 1]} : vector<1x128xf32> to vector<1x16xf32>
    %c0_156 = arith.constant 0 : index
    %c128_157 = arith.constant 128 : index
    %186 = vector.load %arg15[%c0_156, %c128_157] : memref<8x256xf32, #tpu.memory_space<vmem>>, vector<1x16xf32>
    tpu.vector_store %arg15[%c0_156, %c128_157], %185 {strides = array<i32>} : memref<8x256xf32, #tpu.memory_space<vmem>>, vector<1x16xf32>,
    %c50_158 = arith.constant 50 : index
    %c0_159 = arith.constant 0 : index
    %187 = vector.load %arg14[%c50_158, %c0_159] : memref<288x128xf32, #tpu.memory_space<vmem>>, vector<1x128xf32>
    %c51_160 = arith.constant 51 : index
    %c0_161 = arith.constant 0 : index
    %188 = vector.load %arg14[%c51_160, %c0_161] : memref<288x128xf32, #tpu.memory_space<vmem>>, vector<1x128xf32>
    %189 = arith.maximumf %187, %188 : vector<1x128xf32>
    %c62 = arith.constant 62 : index
    %c0_162 = arith.constant 0 : index
    %190 = vector.load %arg14[%c62, %c0_162] : memref<288x128xf32, #tpu.memory_space<vmem>>, vector<1x128xf32>
    %c63 = arith.constant 63 : index
    %c0_163 = arith.constant 0 : index
    %191 = vector.load %arg14[%c63, %c0_163] : memref<288x128xf32, #tpu.memory_space<vmem>>, vector<1x128xf32>
    %192 = arith.maximumf %190, %191 : vector<1x128xf32>
    %193 = arith.maximumf %189, %192 : vector<1x128xf32>
    %194 = vector.extract_strided_slice %193 {offsets = [0, 0], sizes = [1, 16], strides = [1, 1]} : vector<1x128xf32> to vector<1x16xf32>
    %c0_164 = arith.constant 0 : index
    %c144_165 = arith.constant 144 : index
    %195 = vector.load %arg15[%c0_164, %c144_165] : memref<8x256xf32, #tpu.memory_space<vmem>>, vector<1x16xf32>
    tpu.vector_store %arg15[%c0_164, %c144_165], %194 {strides = array<i32>} : memref<8x256xf32, #tpu.memory_space<vmem>>, vector<1x16xf32>,
    %c52_166 = arith.constant 52 : index
    %c0_167 = arith.constant 0 : index
    %196 = vector.load %arg14[%c52_166, %c0_167] : memref<288x128xf32, #tpu.memory_space<vmem>>, vector<1x128xf32>
    %c53 = arith.constant 53 : index
    %c0_168 = arith.constant 0 : index
    %197 = vector.load %arg14[%c53, %c0_168] : memref<288x128xf32, #tpu.memory_space<vmem>>, vector<1x128xf32>
    %198 = arith.maximumf %196, %197 : vector<1x128xf32>
    %c64_169 = arith.constant 64 : index
    %c0_170 = arith.constant 0 : index
    %199 = vector.load %arg14[%c64_169, %c0_170] : memref<288x128xf32, #tpu.memory_space<vmem>>, vector<1x128xf32>
    %c65 = arith.constant 65 : index
    %c0_171 = arith.constant 0 : index
    %200 = vector.load %arg14[%c65, %c0_171] : memref<288x128xf32, #tpu.memory_space<vmem>>, vector<1x128xf32>
    %201 = arith.maximumf %199, %200 : vector<1x128xf32>
    %202 = arith.maximumf %198, %201 : vector<1x128xf32>
    %203 = vector.extract_strided_slice %202 {offsets = [0, 0], sizes = [1, 16], strides = [1, 1]} : vector<1x128xf32> to vector<1x16xf32>
    %c0_172 = arith.constant 0 : index
    %c160_173 = arith.constant 160 : index
    %204 = vector.load %arg15[%c0_172, %c160_173] : memref<8x256xf32, #tpu.memory_space<vmem>>, vector<1x16xf32>
    tpu.vector_store %arg15[%c0_172, %c160_173], %203 {strides = array<i32>} : memref<8x256xf32, #tpu.memory_space<vmem>>, vector<1x16xf32>,
    %c54 = arith.constant 54 : index
    %c0_174 = arith.constant 0 : index
    %205 = vector.load %arg14[%c54, %c0_174] : memref<288x128xf32, #tpu.memory_space<vmem>>, vector<1x128xf32>
    %c55 = arith.constant 55 : index
    %c0_175 = arith.constant 0 : index
    %206 = vector.load %arg14[%c55, %c0_175] : memref<288x128xf32, #tpu.memory_space<vmem>>, vector<1x128xf32>
    %207 = arith.maximumf %205, %206 : vector<1x128xf32>
    %c66 = arith.constant 66 : index
    %c0_176 = arith.constant 0 : index
    %208 = vector.load %arg14[%c66, %c0_176] : memref<288x128xf32, #tpu.memory_space<vmem>>, vector<1x128xf32>
    %c67 = arith.constant 67 : index
    %c0_177 = arith.constant 0 : index
    %209 = vector.load %arg14[%c67, %c0_177] : memref<288x128xf32, #tpu.memory_space<vmem>>, vector<1x128xf32>
    %210 = arith.maximumf %208, %209 : vector<1x128xf32>
    %211 = arith.maximumf %207, %210 : vector<1x128xf32>
    %212 = vector.extract_strided_slice %211 {offsets = [0, 0], sizes = [1, 16], strides = [1, 1]} : vector<1x128xf32> to vector<1x16xf32>
    %c0_178 = arith.constant 0 : index
    %c176_179 = arith.constant 176 : index
    %213 = vector.load %arg15[%c0_178, %c176_179] : memref<8x256xf32, #tpu.memory_space<vmem>>, vector<1x16xf32>
    tpu.vector_store %arg15[%c0_178, %c176_179], %212 {strides = array<i32>} : memref<8x256xf32, #tpu.memory_space<vmem>>, vector<1x16xf32>,
    %c72_180 = arith.constant 72 : index
    %c0_181 = arith.constant 0 : index
    %214 = vector.load %arg14[%c72_180, %c0_181] : memref<288x128xf32, #tpu.memory_space<vmem>>, vector<1x128xf32>
    %c73 = arith.constant 73 : index
    %c0_182 = arith.constant 0 : index
    %215 = vector.load %arg14[%c73, %c0_182] : memref<288x128xf32, #tpu.memory_space<vmem>>, vector<1x128xf32>
    %216 = arith.maximumf %214, %215 : vector<1x128xf32>
    %c84 = arith.constant 84 : index
    %c0_183 = arith.constant 0 : index
    %217 = vector.load %arg14[%c84, %c0_183] : memref<288x128xf32, #tpu.memory_space<vmem>>, vector<1x128xf32>
    %c85 = arith.constant 85 : index
    %c0_184 = arith.constant 0 : index
    %218 = vector.load %arg14[%c85, %c0_184] : memref<288x128xf32, #tpu.memory_space<vmem>>, vector<1x128xf32>
    %219 = arith.maximumf %217, %218 : vector<1x128xf32>
    %220 = arith.maximumf %216, %219 : vector<1x128xf32>
    %221 = vector.extract_strided_slice %220 {offsets = [0, 0], sizes = [1, 16], strides = [1, 1]} : vector<1x128xf32> to vector<1x16xf32>
    %c0_185 = arith.constant 0 : index
    %c192_186 = arith.constant 192 : index
    %222 = vector.load %arg15[%c0_185, %c192_186] : memref<8x256xf32, #tpu.memory_space<vmem>>, vector<1x16xf32>
    tpu.vector_store %arg15[%c0_185, %c192_186], %221 {strides = array<i32>} : memref<8x256xf32, #tpu.memory_space<vmem>>, vector<1x16xf32>,
    %c74 = arith.constant 74 : index
    %c0_187 = arith.constant 0 : index
    %223 = vector.load %arg14[%c74, %c0_187] : memref<288x128xf32, #tpu.memory_space<vmem>>, vector<1x128xf32>
    %c75 = arith.constant 75 : index
    %c0_188 = arith.constant 0 : index
    %224 = vector.load %arg14[%c75, %c0_188] : memref<288x128xf32, #tpu.memory_space<vmem>>, vector<1x128xf32>
    %225 = arith.maximumf %223, %224 : vector<1x128xf32>
    %c86 = arith.constant 86 : index
    %c0_189 = arith.constant 0 : index
    %226 = vector.load %arg14[%c86, %c0_189] : memref<288x128xf32, #tpu.memory_space<vmem>>, vector<1x128xf32>
    %c87 = arith.constant 87 : index
    %c0_190 = arith.constant 0 : index
    %227 = vector.load %arg14[%c87, %c0_190] : memref<288x128xf32, #tpu.memory_space<vmem>>, vector<1x128xf32>
    %228 = arith.maximumf %226, %227 : vector<1x128xf32>
    %229 = arith.maximumf %225, %228 : vector<1x128xf32>
    %230 = vector.extract_strided_slice %229 {offsets = [0, 0], sizes = [1, 16], strides = [1, 1]} : vector<1x128xf32> to vector<1x16xf32>
    %c0_191 = arith.constant 0 : index
    %c208 = arith.constant 208 : index
    %231 = vector.load %arg15[%c0_191, %c208] : memref<8x256xf32, #tpu.memory_space<vmem>>, vector<1x16xf32>
    tpu.vector_store %arg15[%c0_191, %c208], %230 {strides = array<i32>} : memref<8x256xf32, #tpu.memory_space<vmem>>, vector<1x16xf32>,
    %c76 = arith.constant 76 : index
    %c0_192 = arith.constant 0 : index
    %232 = vector.load %arg14[%c76, %c0_192] : memref<288x128xf32, #tpu.memory_space<vmem>>, vector<1x128xf32>
    %c77 = arith.constant 77 : index
    %c0_193 = arith.constant 0 : index
    %233 = vector.load %arg14[%c77, %c0_193] : memref<288x128xf32, #tpu.memory_space<vmem>>, vector<1x128xf32>
    %234 = arith.maximumf %232, %233 : vector<1x128xf32>
    %c88_194 = arith.constant 88 : index
    %c0_195 = arith.constant 0 : index
    %235 = vector.load %arg14[%c88_194, %c0_195] : memref<288x128xf32, #tpu.memory_space<vmem>>, vector<1x128xf32>
    %c89 = arith.constant 89 : index
    %c0_196 = arith.constant 0 : index
    %236 = vector.load %arg14[%c89, %c0_196] : memref<288x128xf32, #tpu.memory_space<vmem>>, vector<1x128xf32>
    %237 = arith.maximumf %235, %236 : vector<1x128xf32>
    %238 = arith.maximumf %234, %237 : vector<1x128xf32>
    %239 = vector.extract_strided_slice %238 {offsets = [0, 0], sizes = [1, 16], strides = [1, 1]} : vector<1x128xf32> to vector<1x16xf32>
    %c0_197 = arith.constant 0 : index
    %c224 = arith.constant 224 : index
    %240 = vector.load %arg15[%c0_197, %c224] : memref<8x256xf32, #tpu.memory_space<vmem>>, vector<1x16xf32>
    tpu.vector_store %arg15[%c0_197, %c224], %239 {strides = array<i32>} : memref<8x256xf32, #tpu.memory_space<vmem>>, vector<1x16xf32>,
    %c78 = arith.constant 78 : index
    %c0_198 = arith.constant 0 : index
    %241 = vector.load %arg14[%c78, %c0_198] : memref<288x128xf32, #tpu.memory_space<vmem>>, vector<1x128xf32>
    %c79 = arith.constant 79 : index
    %c0_199 = arith.constant 0 : index
    %242 = vector.load %arg14[%c79, %c0_199] : memref<288x128xf32, #tpu.memory_space<vmem>>, vector<1x128xf32>
    %243 = arith.maximumf %241, %242 : vector<1x128xf32>
    %c90 = arith.constant 90 : index
    %c0_200 = arith.constant 0 : index
    %244 = vector.load %arg14[%c90, %c0_200] : memref<288x128xf32, #tpu.memory_space<vmem>>, vector<1x128xf32>
    %c91 = arith.constant 91 : index
    %c0_201 = arith.constant 0 : index
    %245 = vector.load %arg14[%c91, %c0_201] : memref<288x128xf32, #tpu.memory_space<vmem>>, vector<1x128xf32>
    %246 = arith.maximumf %244, %245 : vector<1x128xf32>
    %247 = arith.maximumf %243, %246 : vector<1x128xf32>
    %248 = vector.extract_strided_slice %247 {offsets = [0, 0], sizes = [1, 16], strides = [1, 1]} : vector<1x128xf32> to vector<1x16xf32>
    %c0_202 = arith.constant 0 : index
    %c240 = arith.constant 240 : index
    %249 = vector.load %arg15[%c0_202, %c240] : memref<8x256xf32, #tpu.memory_space<vmem>>, vector<1x16xf32>
    tpu.vector_store %arg15[%c0_202, %c240], %248 {strides = array<i32>} : memref<8x256xf32, #tpu.memory_space<vmem>>, vector<1x16xf32>,
    %c144_203 = arith.constant 144 : index
    %c0_204 = arith.constant 0 : index
    %250 = vector.load %arg14[%c144_203, %c0_204] : memref<288x128xf32, #tpu.memory_space<vmem>>, vector<1x128xf32>
    %c145 = arith.constant 145 : index
    %c0_205 = arith.constant 0 : index
    %251 = vector.load %arg14[%c145, %c0_205] : memref<288x128xf32, #tpu.memory_space<vmem>>, vector<1x128xf32>
    %252 = arith.maximumf %250, %251 : vector<1x128xf32>
    %c156 = arith.constant 156 : index
    %c0_206 = arith.constant 0 : index
    %253 = vector.load %arg14[%c156, %c0_206] : memref<288x128xf32, #tpu.memory_space<vmem>>, vector<1x128xf32>
    %c157 = arith.constant 157 : index
    %c0_207 = arith.constant 0 : index
    %254 = vector.load %arg14[%c157, %c0_207] : memref<288x128xf32, #tpu.memory_space<vmem>>, vector<1x128xf32>
    %255 = arith.maximumf %253, %254 : vector<1x128xf32>
    %256 = arith.maximumf %252, %255 : vector<1x128xf32>
    %257 = vector.extract_strided_slice %256 {offsets = [0, 0], sizes = [1, 16], strides = [1, 1]} : vector<1x128xf32> to vector<1x16xf32>
    %c1_208 = arith.constant 1 : index
    %c0_209 = arith.constant 0 : index
    %258 = vector.load %arg15[%c1_208, %c0_209] : memref<8x256xf32, #tpu.memory_space<vmem>>, vector<1x16xf32>
    tpu.vector_store %arg15[%c1_208, %c0_209], %257 {strides = array<i32>} : memref<8x256xf32, #tpu.memory_space<vmem>>, vector<1x16xf32>,
    %c146 = arith.constant 146 : index
    %c0_210 = arith.constant 0 : index
    %259 = vector.load %arg14[%c146, %c0_210] : memref<288x128xf32, #tpu.memory_space<vmem>>, vector<1x128xf32>
    %c147 = arith.constant 147 : index
    %c0_211 = arith.constant 0 : index
    %260 = vector.load %arg14[%c147, %c0_211] : memref<288x128xf32, #tpu.memory_space<vmem>>, vector<1x128xf32>
    %261 = arith.maximumf %259, %260 : vector<1x128xf32>
    %c158 = arith.constant 158 : index
    %c0_212 = arith.constant 0 : index
    %262 = vector.load %arg14[%c158, %c0_212] : memref<288x128xf32, #tpu.memory_space<vmem>>, vector<1x128xf32>
    %c159 = arith.constant 159 : index
    %c0_213 = arith.constant 0 : index
    %263 = vector.load %arg14[%c159, %c0_213] : memref<288x128xf32, #tpu.memory_space<vmem>>, vector<1x128xf32>
    %264 = arith.maximumf %262, %263 : vector<1x128xf32>
    %265 = arith.maximumf %261, %264 : vector<1x128xf32>
    %266 = vector.extract_strided_slice %265 {offsets = [0, 0], sizes = [1, 16], strides = [1, 1]} : vector<1x128xf32> to vector<1x16xf32>
    %c1_214 = arith.constant 1 : index
    %c16_215 = arith.constant 16 : index
    %267 = vector.load %arg15[%c1_214, %c16_215] : memref<8x256xf32, #tpu.memory_space<vmem>>, vector<1x16xf32>
    tpu.vector_store %arg15[%c1_214, %c16_215], %266 {strides = array<i32>} : memref<8x256xf32, #tpu.memory_space<vmem>>, vector<1x16xf32>,
    %c148 = arith.constant 148 : index
    %c0_216 = arith.constant 0 : index
    %268 = vector.load %arg14[%c148, %c0_216] : memref<288x128xf32, #tpu.memory_space<vmem>>, vector<1x128xf32>
    %c149 = arith.constant 149 : index
    %c0_217 = arith.constant 0 : index
    %269 = vector.load %arg14[%c149, %c0_217] : memref<288x128xf32, #tpu.memory_space<vmem>>, vector<1x128xf32>
    %270 = arith.maximumf %268, %269 : vector<1x128xf32>
    %c160_218 = arith.constant 160 : index
    %c0_219 = arith.constant 0 : index
    %271 = vector.load %arg14[%c160_218, %c0_219] : memref<288x128xf32, #tpu.memory_space<vmem>>, vector<1x128xf32>
    %c161 = arith.constant 161 : index
    %c0_220 = arith.constant 0 : index
    %272 = vector.load %arg14[%c161, %c0_220] : memref<288x128xf32, #tpu.memory_space<vmem>>, vector<1x128xf32>
    %273 = arith.maximumf %271, %272 : vector<1x128xf32>
    %274 = arith.maximumf %270, %273 : vector<1x128xf32>
    %275 = vector.extract_strided_slice %274 {offsets = [0, 0], sizes = [1, 16], strides = [1, 1]} : vector<1x128xf32> to vector<1x16xf32>
    %c1_221 = arith.constant 1 : index
    %c32_222 = arith.constant 32 : index
    %276 = vector.load %arg15[%c1_221, %c32_222] : memref<8x256xf32, #tpu.memory_space<vmem>>, vector<1x16xf32>
    tpu.vector_store %arg15[%c1_221, %c32_222], %275 {strides = array<i32>} : memref<8x256xf32, #tpu.memory_space<vmem>>, vector<1x16xf32>,
    %c150 = arith.constant 150 : index
    %c0_223 = arith.constant 0 : index
    %277 = vector.load %arg14[%c150, %c0_223] : memref<288x128xf32, #tpu.memory_space<vmem>>, vector<1x128xf32>
    %c151 = arith.constant 151 : index
    %c0_224 = arith.constant 0 : index
    %278 = vector.load %arg14[%c151, %c0_224] : memref<288x128xf32, #tpu.memory_space<vmem>>, vector<1x128xf32>
    %279 = arith.maximumf %277, %278 : vector<1x128xf32>
    %c162 = arith.constant 162 : index
    %c0_225 = arith.constant 0 : index
    %280 = vector.load %arg14[%c162, %c0_225] : memref<288x128xf32, #tpu.memory_space<vmem>>, vector<1x128xf32>
    %c163 = arith.constant 163 : index
    %c0_226 = arith.constant 0 : index
    %281 = vector.load %arg14[%c163, %c0_226] : memref<288x128xf32, #tpu.memory_space<vmem>>, vector<1x128xf32>
    %282 = arith.maximumf %280, %281 : vector<1x128xf32>
    %283 = arith.maximumf %279, %282 : vector<1x128xf32>
    %284 = vector.extract_strided_slice %283 {offsets = [0, 0], sizes = [1, 16], strides = [1, 1]} : vector<1x128xf32> to vector<1x16xf32>
    %c1_227 = arith.constant 1 : index
    %c48_228 = arith.constant 48 : index
    %285 = vector.load %arg15[%c1_227, %c48_228] : memref<8x256xf32, #tpu.memory_space<vmem>>, vector<1x16xf32>
    tpu.vector_store %arg15[%c1_227, %c48_228], %284 {strides = array<i32>} : memref<8x256xf32, #tpu.memory_space<vmem>>, vector<1x16xf32>,
    %c168_229 = arith.constant 168 : index
    %c0_230 = arith.constant 0 : index
    %286 = vector.load %arg14[%c168_229, %c0_230] : memref<288x128xf32, #tpu.memory_space<vmem>>, vector<1x128xf32>
    %c169 = arith.constant 169 : index
    %c0_231 = arith.constant 0 : index
    %287 = vector.load %arg14[%c169, %c0_231] : memref<288x128xf32, #tpu.memory_space<vmem>>, vector<1x128xf32>
    %288 = arith.maximumf %286, %287 : vector<1x128xf32>
    %c180 = arith.constant 180 : index
    %c0_232 = arith.constant 0 : index
    %289 = vector.load %arg14[%c180, %c0_232] : memref<288x128xf32, #tpu.memory_space<vmem>>, vector<1x128xf32>
    %c181 = arith.constant 181 : index
    %c0_233 = arith.constant 0 : index
    %290 = vector.load %arg14[%c181, %c0_233] : memref<288x128xf32, #tpu.memory_space<vmem>>, vector<1x128xf32>
    %291 = arith.maximumf %289, %290 : vector<1x128xf32>
    %292 = arith.maximumf %288, %291 : vector<1x128xf32>
    %293 = vector.extract_strided_slice %292 {offsets = [0, 0], sizes = [1, 16], strides = [1, 1]} : vector<1x128xf32> to vector<1x16xf32>
    %c1_234 = arith.constant 1 : index
    %c64_235 = arith.constant 64 : index
    %294 = vector.load %arg15[%c1_234, %c64_235] : memref<8x256xf32, #tpu.memory_space<vmem>>, vector<1x16xf32>
    tpu.vector_store %arg15[%c1_234, %c64_235], %293 {strides = array<i32>} : memref<8x256xf32, #tpu.memory_space<vmem>>, vector<1x16xf32>,
    %c170 = arith.constant 170 : index
    %c0_236 = arith.constant 0 : index
    %295 = vector.load %arg14[%c170, %c0_236] : memref<288x128xf32, #tpu.memory_space<vmem>>, vector<1x128xf32>
    %c171 = arith.constant 171 : index
    %c0_237 = arith.constant 0 : index
    %296 = vector.load %arg14[%c171, %c0_237] : memref<288x128xf32, #tpu.memory_space<vmem>>, vector<1x128xf32>
    %297 = arith.maximumf %295, %296 : vector<1x128xf32>
    %c182 = arith.constant 182 : index
    %c0_238 = arith.constant 0 : index
    %298 = vector.load %arg14[%c182, %c0_238] : memref<288x128xf32, #tpu.memory_space<vmem>>, vector<1x128xf32>
    %c183 = arith.constant 183 : index
    %c0_239 = arith.constant 0 : index
    %299 = vector.load %arg14[%c183, %c0_239] : memref<288x128xf32, #tpu.memory_space<vmem>>, vector<1x128xf32>
    %300 = arith.maximumf %298, %299 : vector<1x128xf32>
    %301 = arith.maximumf %297, %300 : vector<1x128xf32>
    %302 = vector.extract_strided_slice %301 {offsets = [0, 0], sizes = [1, 16], strides = [1, 1]} : vector<1x128xf32> to vector<1x16xf32>
    %c1_240 = arith.constant 1 : index
    %c80_241 = arith.constant 80 : index
    %303 = vector.load %arg15[%c1_240, %c80_241] : memref<8x256xf32, #tpu.memory_space<vmem>>, vector<1x16xf32>
    tpu.vector_store %arg15[%c1_240, %c80_241], %302 {strides = array<i32>} : memref<8x256xf32, #tpu.memory_space<vmem>>, vector<1x16xf32>,
    %c172 = arith.constant 172 : index
    %c0_242 = arith.constant 0 : index
    %304 = vector.load %arg14[%c172, %c0_242] : memref<288x128xf32, #tpu.memory_space<vmem>>, vector<1x128xf32>
    %c173 = arith.constant 173 : index
    %c0_243 = arith.constant 0 : index
    %305 = vector.load %arg14[%c173, %c0_243] : memref<288x128xf32, #tpu.memory_space<vmem>>, vector<1x128xf32>
    %306 = arith.maximumf %304, %305 : vector<1x128xf32>
    %c184_244 = arith.constant 184 : index
    %c0_245 = arith.constant 0 : index
    %307 = vector.load %arg14[%c184_244, %c0_245] : memref<288x128xf32, #tpu.memory_space<vmem>>, vector<1x128xf32>
    %c185 = arith.constant 185 : index
    %c0_246 = arith.constant 0 : index
    %308 = vector.load %arg14[%c185, %c0_246] : memref<288x128xf32, #tpu.memory_space<vmem>>, vector<1x128xf32>
    %309 = arith.maximumf %307, %308 : vector<1x128xf32>
    %310 = arith.maximumf %306, %309 : vector<1x128xf32>
    %311 = vector.extract_strided_slice %310 {offsets = [0, 0], sizes = [1, 16], strides = [1, 1]} : vector<1x128xf32> to vector<1x16xf32>
    %c1_247 = arith.constant 1 : index
    %c96_248 = arith.constant 96 : index
    %312 = vector.load %arg15[%c1_247, %c96_248] : memref<8x256xf32, #tpu.memory_space<vmem>>, vector<1x16xf32>
    tpu.vector_store %arg15[%c1_247, %c96_248], %311 {strides = array<i32>} : memref<8x256xf32, #tpu.memory_space<vmem>>, vector<1x16xf32>,
    %c174 = arith.constant 174 : index
    %c0_249 = arith.constant 0 : index
    %313 = vector.load %arg14[%c174, %c0_249] : memref<288x128xf32, #tpu.memory_space<vmem>>, vector<1x128xf32>
    %c175 = arith.constant 175 : index
    %c0_250 = arith.constant 0 : index
    %314 = vector.load %arg14[%c175, %c0_250] : memref<288x128xf32, #tpu.memory_space<vmem>>, vector<1x128xf32>
    %315 = arith.maximumf %313, %314 : vector<1x128xf32>
    %c186 = arith.constant 186 : index
    %c0_251 = arith.constant 0 : index
    %316 = vector.load %arg14[%c186, %c0_251] : memref<288x128xf32, #tpu.memory_space<vmem>>, vector<1x128xf32>
    %c187 = arith.constant 187 : index
    %c0_252 = arith.constant 0 : index
    %317 = vector.load %arg14[%c187, %c0_252] : memref<288x128xf32, #tpu.memory_space<vmem>>, vector<1x128xf32>
    %318 = arith.maximumf %316, %317 : vector<1x128xf32>
    %319 = arith.maximumf %315, %318 : vector<1x128xf32>
    %320 = vector.extract_strided_slice %319 {offsets = [0, 0], sizes = [1, 16], strides = [1, 1]} : vector<1x128xf32> to vector<1x16xf32>
    %c1_253 = arith.constant 1 : index
    %c112_254 = arith.constant 112 : index
    %321 = vector.load %arg15[%c1_253, %c112_254] : memref<8x256xf32, #tpu.memory_space<vmem>>, vector<1x16xf32>
    tpu.vector_store %arg15[%c1_253, %c112_254], %320 {strides = array<i32>} : memref<8x256xf32, #tpu.memory_space<vmem>>, vector<1x16xf32>,
    %c192_255 = arith.constant 192 : index
    %c0_256 = arith.constant 0 : index
    %322 = vector.load %arg14[%c192_255, %c0_256] : memref<288x128xf32, #tpu.memory_space<vmem>>, vector<1x128xf32>
    %c193 = arith.constant 193 : index
    %c0_257 = arith.constant 0 : index
    %323 = vector.load %arg14[%c193, %c0_257] : memref<288x128xf32, #tpu.memory_space<vmem>>, vector<1x128xf32>
    %324 = arith.maximumf %322, %323 : vector<1x128xf32>
    %c204 = arith.constant 204 : index
    %c0_258 = arith.constant 0 : index
    %325 = vector.load %arg14[%c204, %c0_258] : memref<288x128xf32, #tpu.memory_space<vmem>>, vector<1x128xf32>
    %c205 = arith.constant 205 : index
    %c0_259 = arith.constant 0 : index
    %326 = vector.load %arg14[%c205, %c0_259] : memref<288x128xf32, #tpu.memory_space<vmem>>, vector<1x128xf32>
    %327 = arith.maximumf %325, %326 : vector<1x128xf32>
    %328 = arith.maximumf %324, %327 : vector<1x128xf32>
    %329 = vector.extract_strided_slice %328 {offsets = [0, 0], sizes = [1, 16], strides = [1, 1]} : vector<1x128xf32> to vector<1x16xf32>
    %c1_260 = arith.constant 1 : index
    %c128_261 = arith.constant 128 : index
    %330 = vector.load %arg15[%c1_260, %c128_261] : memref<8x256xf32, #tpu.memory_space<vmem>>, vector<1x16xf32>
    tpu.vector_store %arg15[%c1_260, %c128_261], %329 {strides = array<i32>} : memref<8x256xf32, #tpu.memory_space<vmem>>, vector<1x16xf32>,
    %c194 = arith.constant 194 : index
    %c0_262 = arith.constant 0 : index
    %331 = vector.load %arg14[%c194, %c0_262] : memref<288x128xf32, #tpu.memory_space<vmem>>, vector<1x128xf32>
    %c195 = arith.constant 195 : index
    %c0_263 = arith.constant 0 : index
    %332 = vector.load %arg14[%c195, %c0_263] : memref<288x128xf32, #tpu.memory_space<vmem>>, vector<1x128xf32>
    %333 = arith.maximumf %331, %332 : vector<1x128xf32>
    %c206 = arith.constant 206 : index
    %c0_264 = arith.constant 0 : index
    %334 = vector.load %arg14[%c206, %c0_264] : memref<288x128xf32, #tpu.memory_space<vmem>>, vector<1x128xf32>
    %c207 = arith.constant 207 : index
    %c0_265 = arith.constant 0 : index
    %335 = vector.load %arg14[%c207, %c0_265] : memref<288x128xf32, #tpu.memory_space<vmem>>, vector<1x128xf32>
    %336 = arith.maximumf %334, %335 : vector<1x128xf32>
    %337 = arith.maximumf %333, %336 : vector<1x128xf32>
    %338 = vector.extract_strided_slice %337 {offsets = [0, 0], sizes = [1, 16], strides = [1, 1]} : vector<1x128xf32> to vector<1x16xf32>
    %c1_266 = arith.constant 1 : index
    %c144_267 = arith.constant 144 : index
    %339 = vector.load %arg15[%c1_266, %c144_267] : memref<8x256xf32, #tpu.memory_space<vmem>>, vector<1x16xf32>
    tpu.vector_store %arg15[%c1_266, %c144_267], %338 {strides = array<i32>} : memref<8x256xf32, #tpu.memory_space<vmem>>, vector<1x16xf32>,
    %c196 = arith.constant 196 : index
    %c0_268 = arith.constant 0 : index
    %340 = vector.load %arg14[%c196, %c0_268] : memref<288x128xf32, #tpu.memory_space<vmem>>, vector<1x128xf32>
    %c197 = arith.constant 197 : index
    %c0_269 = arith.constant 0 : index
    %341 = vector.load %arg14[%c197, %c0_269] : memref<288x128xf32, #tpu.memory_space<vmem>>, vector<1x128xf32>
    %342 = arith.maximumf %340, %341 : vector<1x128xf32>
    %c208_270 = arith.constant 208 : index
    %c0_271 = arith.constant 0 : index
    %343 = vector.load %arg14[%c208_270, %c0_271] : memref<288x128xf32, #tpu.memory_space<vmem>>, vector<1x128xf32>
    %c209 = arith.constant 209 : index
    %c0_272 = arith.constant 0 : index
    %344 = vector.load %arg14[%c209, %c0_272] : memref<288x128xf32, #tpu.memory_space<vmem>>, vector<1x128xf32>
    %345 = arith.maximumf %343, %344 : vector<1x128xf32>
    %346 = arith.maximumf %342, %345 : vector<1x128xf32>
    %347 = vector.extract_strided_slice %346 {offsets = [0, 0], sizes = [1, 16], strides = [1, 1]} : vector<1x128xf32> to vector<1x16xf32>
    %c1_273 = arith.constant 1 : index
    %c160_274 = arith.constant 160 : index
    %348 = vector.load %arg15[%c1_273, %c160_274] : memref<8x256xf32, #tpu.memory_space<vmem>>, vector<1x16xf32>
    tpu.vector_store %arg15[%c1_273, %c160_274], %347 {strides = array<i32>} : memref<8x256xf32, #tpu.memory_space<vmem>>, vector<1x16xf32>,
    %c198 = arith.constant 198 : index
    %c0_275 = arith.constant 0 : index
    %349 = vector.load %arg14[%c198, %c0_275] : memref<288x128xf32, #tpu.memory_space<vmem>>, vector<1x128xf32>
    %c199 = arith.constant 199 : index
    %c0_276 = arith.constant 0 : index
    %350 = vector.load %arg14[%c199, %c0_276] : memref<288x128xf32, #tpu.memory_space<vmem>>, vector<1x128xf32>
    %351 = arith.maximumf %349, %350 : vector<1x128xf32>
    %c210 = arith.constant 210 : index
    %c0_277 = arith.constant 0 : index
    %352 = vector.load %arg14[%c210, %c0_277] : memref<288x128xf32, #tpu.memory_space<vmem>>, vector<1x128xf32>
    %c211 = arith.constant 211 : index
    %c0_278 = arith.constant 0 : index
    %353 = vector.load %arg14[%c211, %c0_278] : memref<288x128xf32, #tpu.memory_space<vmem>>, vector<1x128xf32>
    %354 = arith.maximumf %352, %353 : vector<1x128xf32>
    %355 = arith.maximumf %351, %354 : vector<1x128xf32>
    %356 = vector.extract_strided_slice %355 {offsets = [0, 0], sizes = [1, 16], strides = [1, 1]} : vector<1x128xf32> to vector<1x16xf32>
    %c1_279 = arith.constant 1 : index
    %c176_280 = arith.constant 176 : index
    %357 = vector.load %arg15[%c1_279, %c176_280] : memref<8x256xf32, #tpu.memory_space<vmem>>, vector<1x16xf32>
    tpu.vector_store %arg15[%c1_279, %c176_280], %356 {strides = array<i32>} : memref<8x256xf32, #tpu.memory_space<vmem>>, vector<1x16xf32>,
    %c216 = arith.constant 216 : index
    %c0_281 = arith.constant 0 : index
    %358 = vector.load %arg14[%c216, %c0_281] : memref<288x128xf32, #tpu.memory_space<vmem>>, vector<1x128xf32>
    %c217 = arith.constant 217 : index
    %c0_282 = arith.constant 0 : index
    %359 = vector.load %arg14[%c217, %c0_282] : memref<288x128xf32, #tpu.memory_space<vmem>>, vector<1x128xf32>
    %360 = arith.maximumf %358, %359 : vector<1x128xf32>
    %c228 = arith.constant 228 : index
    %c0_283 = arith.constant 0 : index
    %361 = vector.load %arg14[%c228, %c0_283] : memref<288x128xf32, #tpu.memory_space<vmem>>, vector<1x128xf32>
    %c229 = arith.constant 229 : index
    %c0_284 = arith.constant 0 : index
    %362 = vector.load %arg14[%c229, %c0_284] : memref<288x128xf32, #tpu.memory_space<vmem>>, vector<1x128xf32>
    %363 = arith.maximumf %361, %362 : vector<1x128xf32>
    %364 = arith.maximumf %360, %363 : vector<1x128xf32>
    %365 = vector.extract_strided_slice %364 {offsets = [0, 0], sizes = [1, 16], strides = [1, 1]} : vector<1x128xf32> to vector<1x16xf32>
    %c1_285 = arith.constant 1 : index
    %c192_286 = arith.constant 192 : index
    %366 = vector.load %arg15[%c1_285, %c192_286] : memref<8x256xf32, #tpu.memory_space<vmem>>, vector<1x16xf32>
    tpu.vector_store %arg15[%c1_285, %c192_286], %365 {strides = array<i32>} : memref<8x256xf32, #tpu.memory_space<vmem>>, vector<1x16xf32>,
    %c218 = arith.constant 218 : index
    %c0_287 = arith.constant 0 : index
    %367 = vector.load %arg14[%c218, %c0_287] : memref<288x128xf32, #tpu.memory_space<vmem>>, vector<1x128xf32>
    %c219 = arith.constant 219 : index
    %c0_288 = arith.constant 0 : index
    %368 = vector.load %arg14[%c219, %c0_288] : memref<288x128xf32, #tpu.memory_space<vmem>>, vector<1x128xf32>
    %369 = arith.maximumf %367, %368 : vector<1x128xf32>
    %c230 = arith.constant 230 : index
    %c0_289 = arith.constant 0 : index
    %370 = vector.load %arg14[%c230, %c0_289] : memref<288x128xf32, #tpu.memory_space<vmem>>, vector<1x128xf32>
    %c231 = arith.constant 231 : index
    %c0_290 = arith.constant 0 : index
    %371 = vector.load %arg14[%c231, %c0_290] : memref<288x128xf32, #tpu.memory_space<vmem>>, vector<1x128xf32>
    %372 = arith.maximumf %370, %371 : vector<1x128xf32>
    %373 = arith.maximumf %369, %372 : vector<1x128xf32>
    %374 = vector.extract_strided_slice %373 {offsets = [0, 0], sizes = [1, 16], strides = [1, 1]} : vector<1x128xf32> to vector<1x16xf32>
    %c1_291 = arith.constant 1 : index
    %c208_292 = arith.constant 208 : index
    %375 = vector.load %arg15[%c1_291, %c208_292] : memref<8x256xf32, #tpu.memory_space<vmem>>, vector<1x16xf32>
    tpu.vector_store %arg15[%c1_291, %c208_292], %374 {strides = array<i32>} : memref<8x256xf32, #tpu.memory_space<vmem>>, vector<1x16xf32>,
    %c220 = arith.constant 220 : index
    %c0_293 = arith.constant 0 : index
    %376 = vector.load %arg14[%c220, %c0_293] : memref<288x128xf32, #tpu.memory_space<vmem>>, vector<1x128xf32>
    %c221 = arith.constant 221 : index
    %c0_294 = arith.constant 0 : index
    %377 = vector.load %arg14[%c221, %c0_294] : memref<288x128xf32, #tpu.memory_space<vmem>>, vector<1x128xf32>
    %378 = arith.maximumf %376, %377 : vector<1x128xf32>
    %c232 = arith.constant 232 : index
    %c0_295 = arith.constant 0 : index
    %379 = vector.load %arg14[%c232, %c0_295] : memref<288x128xf32, #tpu.memory_space<vmem>>, vector<1x128xf32>
    %c233 = arith.constant 233 : index
    %c0_296 = arith.constant 0 : index
    %380 = vector.load %arg14[%c233, %c0_296] : memref<288x128xf32, #tpu.memory_space<vmem>>, vector<1x128xf32>
    %381 = arith.maximumf %379, %380 : vector<1x128xf32>
    %382 = arith.maximumf %378, %381 : vector<1x128xf32>
    %383 = vector.extract_strided_slice %382 {offsets = [0, 0], sizes = [1, 16], strides = [1, 1]} : vector<1x128xf32> to vector<1x16xf32>
    %c1_297 = arith.constant 1 : index
    %c224_298 = arith.constant 224 : index
    %384 = vector.load %arg15[%c1_297, %c224_298] : memref<8x256xf32, #tpu.memory_space<vmem>>, vector<1x16xf32>
    tpu.vector_store %arg15[%c1_297, %c224_298], %383 {strides = array<i32>} : memref<8x256xf32, #tpu.memory_space<vmem>>, vector<1x16xf32>,
    %c222 = arith.constant 222 : index
    %c0_299 = arith.constant 0 : index
    %385 = vector.load %arg14[%c222, %c0_299] : memref<288x128xf32, #tpu.memory_space<vmem>>, vector<1x128xf32>
    %c223 = arith.constant 223 : index
    %c0_300 = arith.constant 0 : index
    %386 = vector.load %arg14[%c223, %c0_300] : memref<288x128xf32, #tpu.memory_space<vmem>>, vector<1x128xf32>
    %387 = arith.maximumf %385, %386 : vector<1x128xf32>
    %c234 = arith.constant 234 : index
    %c0_301 = arith.constant 0 : index
    %388 = vector.load %arg14[%c234, %c0_301] : memref<288x128xf32, #tpu.memory_space<vmem>>, vector<1x128xf32>
    %c235 = arith.constant 235 : index
    %c0_302 = arith.constant 0 : index
    %389 = vector.load %arg14[%c235, %c0_302] : memref<288x128xf32, #tpu.memory_space<vmem>>, vector<1x128xf32>
    %390 = arith.maximumf %388, %389 : vector<1x128xf32>
    %391 = arith.maximumf %387, %390 : vector<1x128xf32>
    %392 = vector.extract_strided_slice %391 {offsets = [0, 0], sizes = [1, 16], strides = [1, 1]} : vector<1x128xf32> to vector<1x16xf32>
    %c1_303 = arith.constant 1 : index
    %c240_304 = arith.constant 240 : index
    %393 = vector.load %arg15[%c1_303, %c240_304] : memref<8x256xf32, #tpu.memory_space<vmem>>, vector<1x16xf32>
    tpu.vector_store %arg15[%c1_303, %c240_304], %392 {strides = array<i32>} : memref<8x256xf32, #tpu.memory_space<vmem>>, vector<1x16xf32>,
    %c0_305 = arith.constant 0 : index
    %c0_306 = arith.constant 0 : index
    %394 = vector.load %arg15[%c0_305, %c0_306] : memref<8x256xf32, #tpu.memory_space<vmem>>, vector<8x256xf32>
    %c0_307 = arith.constant 0 : index
    %c0_308 = arith.constant 0 : index
    %395 = vector.load %arg5[%c0_307, %c0_308] : memref<256x128xf32, #tpu.memory_space<vmem>>, vector<256x128xf32>
    %cst_309 = arith.constant dense<0.000000e+00> : vector<8x128xf32>
    %396 = tpu.matmul %394, %395, %cst_309 {dimension_numbers = #tpu.dot_dimension_numbers<[1], [0], [0], [1], [0, 0, 1, 1], [], []>} : vector<8x256xf32>, vector<256x128xf32>, vector<8x128xf32> -> vector<8x128xf32>
    %c0_310 = arith.constant 0 : index
    %c0_311 = arith.constant 0 : index
    %397 = vector.load %arg6[%c0_310, %c0_311] : memref<1x128xf32, #tpu.memory_space<vmem>>, vector<1x128xf32>
    %398 = vector.broadcast %397 : vector<1x128xf32> to vector<8x128xf32>
    %399 = arith.addf %396, %398 : vector<8x128xf32>
    %cst_312 = arith.constant 0.000000e+00 : f32
    %400 = vector.broadcast %cst_312 : f32 to vector<8x128xf32>
    %401 = arith.maximumf %399, %400 : vector<8x128xf32>
    %c0_313 = arith.constant 0 : index
    %c0_314 = arith.constant 0 : index
    %402 = vector.load %arg7[%c0_313, %c0_314] : memref<128x128xf32, #tpu.memory_space<vmem>>, vector<128x128xf32>
    %cst_315 = arith.constant dense<0.000000e+00> : vector<8x128xf32>
    %403 = tpu.matmul %401, %402, %cst_315 {dimension_numbers = #tpu.dot_dimension_numbers<[1], [0], [0], [1], [0, 0, 1, 1], [], []>} : vector<8x128xf32>, vector<128x128xf32>, vector<8x128xf32> -> vector<8x128xf32>
    %c0_316 = arith.constant 0 : index
    %c0_317 = arith.constant 0 : index
    %404 = vector.load %arg8[%c0_316, %c0_317] : memref<1x128xf32, #tpu.memory_space<vmem>>, vector<1x128xf32>
    %405 = vector.broadcast %404 : vector<1x128xf32> to vector<8x128xf32>
    %406 = arith.addf %403, %405 : vector<8x128xf32>
    %cst_318 = arith.constant 0.000000e+00 : f32
    %407 = vector.broadcast %cst_318 : f32 to vector<8x128xf32>
    %408 = arith.maximumf %406, %407 : vector<8x128xf32>
    %c0_319 = arith.constant 0 : index
    %c0_320 = arith.constant 0 : index
    %409 = vector.load %arg9[%c0_319, %c0_320] : memref<128x128xf32, #tpu.memory_space<vmem>>, vector<128x128xf32>
    %cst_321 = arith.constant dense<0.000000e+00> : vector<8x128xf32>
    %410 = tpu.matmul %408, %409, %cst_321 {dimension_numbers = #tpu.dot_dimension_numbers<[1], [0], [0], [1], [0, 0, 1, 1], [], []>} : vector<8x128xf32>, vector<128x128xf32>, vector<8x128xf32> -> vector<8x128xf32>
    %c0_322 = arith.constant 0 : index
    %c0_323 = arith.constant 0 : index
    %411 = vector.load %arg10[%c0_322, %c0_323] : memref<1x128xf32, #tpu.memory_space<vmem>>, vector<1x128xf32>
    %412 = vector.broadcast %411 : vector<1x128xf32> to vector<8x128xf32>
    %413 = arith.addf %410, %412 : vector<8x128xf32>
    %c0_324 = arith.constant 0 : index
    %c0_325 = arith.constant 0 : index
    %414 = vector.load %arg11[%c0_324, %c0_325] : memref<8x128xf32, #tpu.memory_space<vmem>>, vector<8x128xf32>
    tpu.vector_store %arg11[%c0_324, %c0_325], %413 {strides = array<i32>} : memref<8x128xf32, #tpu.memory_space<vmem>>, vector<8x128xf32>,
    return
  }
}

</mosaic_0001>

<llo_original>
// kernel: lenet_forward.1
$region0: #{lenet_forward.1}
  #allocation0 [shape = 'u32[]', space=smem, size = 0x4, offset = 0x4, fixed_abs, tag = 'smem constant byte address 0x4 - core index']
  #allocation1 [shape = 'u32[144,128]{1,0:T(1,128)}', space=vmem, size = 0x12000, scoped, tag = 'internal scratch']
  #allocation2 [shape = 'f32[352,128]{1,0:T(8,128)}', space=vmem, size = 0x2c000, scoped, tag = 'scratch operand']
  #allocation3 [shape = 'f32[288,256]{1,0:T(8,128)}', space=vmem, size = 0x48000, scoped, tag = 'scratch operand']
  #allocation4 [shape = 'f32[288,128]{1,0:T(8,128)}', space=vmem, size = 0x24000, scoped, tag = 'scratch operand']
  #allocation5 [shape = 'f32[8,256]{1,0:T(8,128)}', space=vmem, size = 0x2000, scoped, tag = 'scratch operand']
  %s0 = inlined_call_operand.vmem [shape: f32[1152,32], index: 0, kind: input, shape index: {}]
  %s1 = inlined_call_operand.vmem [shape: f32[32,128], index: 1, kind: input, shape index: {}]
  %s2 = inlined_call_operand.vmem [shape: f32[1,128], index: 2, kind: input, shape index: {}]
  %s3 = inlined_call_operand.vmem [shape: f32[256,128], index: 3, kind: input, shape index: {}]
  %s4 = inlined_call_operand.vmem [shape: f32[1,128], index: 4, kind: input, shape index: {}]
  %s5 = inlined_call_operand.vmem [shape: f32[256,128], index: 5, kind: input, shape index: {}]
  %s6 = inlined_call_operand.vmem [shape: f32[1,128], index: 6, kind: input, shape index: {}]
  %s7 = inlined_call_operand.vmem [shape: f32[128,128], index: 7, kind: input, shape index: {}]
  %s8 = inlined_call_operand.vmem [shape: f32[1,128], index: 8, kind: input, shape index: {}]
  %s9 = inlined_call_operand.vmem [shape: f32[128,128], index: 9, kind: input, shape index: {}]
  %s10 = inlined_call_operand.vmem [shape: f32[1,128], index: 10, kind: input, shape index: {}]
  %s11 = inlined_call_operand.vmem [shape: f32[8,128], index: 11, kind: output, shape index: {}]
  %s12 = sld [smem:[#allocation0]]
  $region54: #{lenet_forward.1} parent=0
    _
  %s14 = ssub.s32 1, %s12
  %s15 = scalar_select 0, %s14, %s12
  // Predicated region
  $region2: #{lenet_forward.1} parent=0 // pred_check
    _
  $region3: #{lenet_forward.1} parent=0 // pred_check_branch
    %17 = sbr.rel (0) target = $region5
  $region4: #{lenet_forward.1} parent=0 // pred_region
    _
  $region5: #{lenet_forward.1} parent=0 // pred_fallthru
    _
  // Predicated region
  $region6: #{lenet_forward.1} parent=0 // pred_check
    _
  $region7: #{lenet_forward.1} parent=0 // pred_check_branch
    %19 = sbr.rel (0) target = $region9
  $region8: #{lenet_forward.1} parent=0 // pred_region
    _
  $region9: #{lenet_forward.1} parent=0 // pred_fallthru
    _
  // Predicated region
  $region10: #{lenet_forward.1} parent=0 // pred_check
    _
  $region11: #{lenet_forward.1} parent=0 // pred_check_branch
    %21 = sbr.rel (0) target = $region13
  $region12: #{lenet_forward.1} parent=0 // pred_region
    _
  $region13: #{lenet_forward.1} parent=0 // pred_fallthru
    _
  // Predicated region
  $region14: #{lenet_forward.1} parent=0 // pred_check
    _
  $region15: #{lenet_forward.1} parent=0 // pred_check_branch
    %23 = sbr.rel (0) target = $region17
  $region16: #{lenet_forward.1} parent=0 // pred_region
    _
  $region17: #{lenet_forward.1} parent=0 // pred_fallthru
    _
  // Predicated region
  $region18: #{lenet_forward.1} parent=0 // pred_check
    _
  $region19: #{lenet_forward.1} parent=0 // pred_check_branch
    %25 = sbr.rel (0) target = $region21
  $region20: #{lenet_forward.1} parent=0 // pred_region
    _
  $region21: #{lenet_forward.1} parent=0 // pred_fallthru
    _
  // Predicated region
  $region22: #{lenet_forward.1} parent=0 // pred_check
    _
  $region23: #{lenet_forward.1} parent=0 // pred_check_branch
    %27 = sbr.rel (0) target = $region25
  $region24: #{lenet_forward.1} parent=0 // pred_region
    _
  $region25: #{lenet_forward.1} parent=0 // pred_fallthru
    _
  // Predicated region
  $region26: #{lenet_forward.1} parent=0 // pred_check
    _
  $region27: #{lenet_forward.1} parent=0 // pred_check_branch
    %29 = sbr.rel (0) target = $region29
  $region28: #{lenet_forward.1} parent=0 // pred_region
    _
  $region29: #{lenet_forward.1} parent=0 // pred_fallthru
    _
  // Predicated region
  $region30: #{lenet_forward.1} parent=0 // pred_check
    _
  $region31: #{lenet_forward.1} parent=0 // pred_check_branch
    %31 = sbr.rel (0) target = $region33
  $region32: #{lenet_forward.1} parent=0 // pred_region
    _
  $region33: #{lenet_forward.1} parent=0 // pred_fallthru
    _
  // Predicated region
  $region34: #{lenet_forward.1} parent=0 // pred_check
    _
  $region35: #{lenet_forward.1} parent=0 // pred_check_branch
    %33 = sbr.rel (0) target = $region37
  $region36: #{lenet_forward.1} parent=0 // pred_region
    _
  $region37: #{lenet_forward.1} parent=0 // pred_fallthru
    _
  // Predicated region
  $region38: #{lenet_forward.1} parent=0 // pred_check
    _
  $region39: #{lenet_forward.1} parent=0 // pred_check_branch
    %35 = sbr.rel (0) target = $region41
  $region40: #{lenet_forward.1} parent=0 // pred_region
    _
  $region41: #{lenet_forward.1} parent=0 // pred_fallthru
    _
  // Predicated region
  $region42: #{lenet_forward.1} parent=0 // pred_check
    _
  $region43: #{lenet_forward.1} parent=0 // pred_check_branch
    %37 = sbr.rel (0) target = $region45
  $region44: #{lenet_forward.1} parent=0 // pred_region
    _
  $region45: #{lenet_forward.1} parent=0 // pred_fallthru
    _
  %v38 = vld [vmem:[%s0] sm:$0xff]
  %v39 = vld [vmem:[%s0 + $0x8] sm:$0xff]
  %v40 = vld [vmem:[%s0 + $0x10] sm:$0xff]
  %v41 = vld [vmem:[%s0 + $0x18] sm:$0xff]
  %v42 = vld [vmem:[%s0 + $0x20] sm:$0xff]
  %v43 = vld [vmem:[%s0 + $0x28] sm:$0xff]
  %v44 = vld [vmem:[%s0 + $0x30] sm:$0xff]
  %v45 = vld [vmem:[%s0 + $0x38] sm:$0xff]
  %v46 = vld [vmem:[%s0 + $0x40] sm:$0xff]
  %v47 = vld [vmem:[%s0 + $0x48] sm:$0xff]
  %v48 = vld [vmem:[%s0 + $0x50] sm:$0xff]
  %v49 = vld [vmem:[%s0 + $0x58] sm:$0xff]
  %v50 = vld [vmem:[%s0 + $0x60] sm:$0xff]
  %v51 = vld [vmem:[%s0 + $0x68] sm:$0xff]
  %v52 = vld [vmem:[%s0 + $0x70] sm:$0xff]
  %v53 = vld [vmem:[%s0 + $0x78] sm:$0xff]
  %v54 = vld [vmem:[%s0 + $0x80] sm:$0xff]
  %v55 = vld [vmem:[%s0 + $0x88] sm:$0xff]
  %v56 = vld [vmem:[%s0 + $0x90] sm:$0xff]
  %v57 = vld [vmem:[%s0 + $0x98] sm:$0xff]
  %v58 = vld [vmem:[%s0 + $0xa0] sm:$0xff]
  %v59 = vld [vmem:[%s0 + $0xa8] sm:$0xff]
  %v60 = vld [vmem:[%s0 + $0xb0] sm:$0xff]
  %v61 = vld [vmem:[%s0 + $0xb8] sm:$0xff]
  %v62 = vld [vmem:[%s0 + $0xc0] sm:$0xff]
  %v63 = vld [vmem:[%s0 + $0xc8] sm:$0xff]
  %v64 = vld [vmem:[%s0 + $0xd0] sm:$0xff]
  %v65 = vld [vmem:[%s0 + $0xd8] sm:$0xff]
  %v66 = vld [vmem:[%s0 + $0xe0] sm:$0xff]
  %v67 = vld [vmem:[%s0 + $0xe8] sm:$0xff]
  %v68 = vld [vmem:[%s0 + $0xf0] sm:$0xff]
  %v69 = vld [vmem:[%s0 + $0xf8] sm:$0xff]
  %v70 = vld [vmem:[%s0 + $0x100] sm:$0xff]
  %v71 = vld [vmem:[%s0 + $0x108] sm:$0xff]
  %v72 = vld [vmem:[%s0 + $0x110] sm:$0xff]
  %v73 = vld [vmem:[%s0 + $0x118] sm:$0xff]
  %v74 = vld [vmem:[%s0 + $0x120] sm:$0xff]
  %v75 = vld [vmem:[%s0 + $0x128] sm:$0xff]
  %v76 = vld [vmem:[%s0 + $0x130] sm:$0xff]
  %v77 = vld [vmem:[%s0 + $0x138] sm:$0xff]
  %v78 = vld [vmem:[%s0 + $0x140] sm:$0xff]
  %v79 = vld [vmem:[%s0 + $0x148] sm:$0xff]
  %v80 = vld [vmem:[%s0 + $0x150] sm:$0xff]
  %v81 = vld [vmem:[%s0 + $0x158] sm:$0xff]
  %v82 = vld [vmem:[%s0 + $0x160] sm:$0xff]
  %v83 = vld [vmem:[%s0 + $0x168] sm:$0xff]
  %v84 = vld [vmem:[%s0 + $0x170] sm:$0xff]
  %v85 = vld [vmem:[%s0 + $0x178] sm:$0xff]
  %v86 = vld [vmem:[%s0 + $0x180] sm:$0xff]
  %v87 = vld [vmem:[%s0 + $0x188] sm:$0xff]
  %v88 = vld [vmem:[%s0 + $0x190] sm:$0xff]
  %v89 = vld [vmem:[%s0 + $0x198] sm:$0xff]
  %v90 = vld [vmem:[%s0 + $0x1a0] sm:$0xff]
  %v91 = vld [vmem:[%s0 + $0x1a8] sm:$0xff]
  %v92 = vld [vmem:[%s0 + $0x1b0] sm:$0xff]
  %v93 = vld [vmem:[%s0 + $0x1b8] sm:$0xff]
  %v94 = vld [vmem:[%s0 + $0x1c0] sm:$0xff]
  %v95 = vld [vmem:[%s0 + $0x1c8] sm:$0xff]
  %v96 = vld [vmem:[%s0 + $0x1d0] sm:$0xff]
  %v97 = vld [vmem:[%s0 + $0x1d8] sm:$0xff]
  %v98 = vld [vmem:[%s0 + $0x1e0] sm:$0xff]
  %v99 = vld [vmem:[%s0 + $0x1e8] sm:$0xff]
  %v100 = vld [vmem:[%s0 + $0x1f0] sm:$0xff]
  %v101 = vld [vmem:[%s0 + $0x1f8] sm:$0xff]
  %v102 = vld [vmem:[%s0 + $0x200] sm:$0xff]
  %v103 = vld [vmem:[%s0 + $0x208] sm:$0xff]
  %v104 = vld [vmem:[%s0 + $0x210] sm:$0xff]
  %v105 = vld [vmem:[%s0 + $0x218] sm:$0xff]
  %v106 = vld [vmem:[%s0 + $0x220] sm:$0xff]
  %v107 = vld [vmem:[%s0 + $0x228] sm:$0xff]
  %v108 = vld [vmem:[%s0 + $0x230] sm:$0xff]
  %v109 = vld [vmem:[%s0 + $0x238] sm:$0xff]
  %v110 = vld [vmem:[%s0 + $0x240] sm:$0xff]
  %v111 = vld [vmem:[%s0 + $0x248] sm:$0xff]
  %v112 = vld [vmem:[%s0 + $0x250] sm:$0xff]
  %v113 = vld [vmem:[%s0 + $0x258] sm:$0xff]
  %v114 = vld [vmem:[%s0 + $0x260] sm:$0xff]
  %v115 = vld [vmem:[%s0 + $0x268] sm:$0xff]
  %v116 = vld [vmem:[%s0 + $0x270] sm:$0xff]
  %v117 = vld [vmem:[%s0 + $0x278] sm:$0xff]
  %v118 = vld [vmem:[%s0 + $0x280] sm:$0xff]
  %v119 = vld [vmem:[%s0 + $0x288] sm:$0xff]
  %v120 = vld [vmem:[%s0 + $0x290] sm:$0xff]
  %v121 = vld [vmem:[%s0 + $0x298] sm:$0xff]
  %v122 = vld [vmem:[%s0 + $0x2a0] sm:$0xff]
  %v123 = vld [vmem:[%s0 + $0x2a8] sm:$0xff]
  %v124 = vld [vmem:[%s0 + $0x2b0] sm:$0xff]
  %v125 = vld [vmem:[%s0 + $0x2b8] sm:$0xff]
  %v126 = vld [vmem:[%s0 + $0x2c0] sm:$0xff]
  %v127 = vld [vmem:[%s0 + $0x2c8] sm:$0xff]
  %v128 = vld [vmem:[%s0 + $0x2d0] sm:$0xff]
  %v129 = vld [vmem:[%s0 + $0x2d8] sm:$0xff]
  %v130 = vld [vmem:[%s0 + $0x2e0] sm:$0xff]
  %v131 = vld [vmem:[%s0 + $0x2e8] sm:$0xff]
  %v132 = vld [vmem:[%s0 + $0x2f0] sm:$0xff]
  %v133 = vld [vmem:[%s0 + $0x2f8] sm:$0xff]
  %v134 = vld [vmem:[%s0 + $0x300] sm:$0xff]
  %v135 = vld [vmem:[%s0 + $0x308] sm:$0xff]
  %v136 = vld [vmem:[%s0 + $0x310] sm:$0xff]
  %v137 = vld [vmem:[%s0 + $0x318] sm:$0xff]
  %v138 = vld [vmem:[%s0 + $0x320] sm:$0xff]
  %v139 = vld [vmem:[%s0 + $0x328] sm:$0xff]
  %v140 = vld [vmem:[%s0 + $0x330] sm:$0xff]
  %v141 = vld [vmem:[%s0 + $0x338] sm:$0xff]
  %v142 = vld [vmem:[%s0 + $0x340] sm:$0xff]
  %v143 = vld [vmem:[%s0 + $0x348] sm:$0xff]
  %v144 = vld [vmem:[%s0 + $0x350] sm:$0xff]
  %v145 = vld [vmem:[%s0 + $0x358] sm:$0xff]
  %v146 = vld [vmem:[%s0 + $0x360] sm:$0xff]
  %v147 = vld [vmem:[%s0 + $0x368] sm:$0xff]
  %v148 = vld [vmem:[%s0 + $0x370] sm:$0xff]
  %v149 = vld [vmem:[%s0 + $0x378] sm:$0xff]
  %v150 = vld [vmem:[%s0 + $0x380] sm:$0xff]
  %v151 = vld [vmem:[%s0 + $0x388] sm:$0xff]
  %v152 = vld [vmem:[%s0 + $0x390] sm:$0xff]
  %v153 = vld [vmem:[%s0 + $0x398] sm:$0xff]
  %v154 = vld [vmem:[%s0 + $0x3a0] sm:$0xff]
  %v155 = vld [vmem:[%s0 + $0x3a8] sm:$0xff]
  %v156 = vld [vmem:[%s0 + $0x3b0] sm:$0xff]
  %v157 = vld [vmem:[%s0 + $0x3b8] sm:$0xff]
  %v158 = vld [vmem:[%s0 + $0x3c0] sm:$0xff]
  %v159 = vld [vmem:[%s0 + $0x3c8] sm:$0xff]
  %v160 = vld [vmem:[%s0 + $0x3d0] sm:$0xff]
  %v161 = vld [vmem:[%s0 + $0x3d8] sm:$0xff]
  %v162 = vld [vmem:[%s0 + $0x3e0] sm:$0xff]
  %v163 = vld [vmem:[%s0 + $0x3e8] sm:$0xff]
  %v164 = vld [vmem:[%s0 + $0x3f0] sm:$0xff]
  %v165 = vld [vmem:[%s0 + $0x3f8] sm:$0xff]
  %v166 = vld [vmem:[%s0 + $0x400] sm:$0xff]
  %v167 = vld [vmem:[%s0 + $0x408] sm:$0xff]
  %v168 = vld [vmem:[%s0 + $0x410] sm:$0xff]
  %v169 = vld [vmem:[%s0 + $0x418] sm:$0xff]
  %v170 = vld [vmem:[%s0 + $0x420] sm:$0xff]
  %v171 = vld [vmem:[%s0 + $0x428] sm:$0xff]
  %v172 = vld [vmem:[%s0 + $0x430] sm:$0xff]
  %v173 = vld [vmem:[%s0 + $0x438] sm:$0xff]
  %v174 = vld [vmem:[%s0 + $0x440] sm:$0xff]
  %v175 = vld [vmem:[%s0 + $0x448] sm:$0xff]
  %v176 = vld [vmem:[%s0 + $0x450] sm:$0xff]
  %v177 = vld [vmem:[%s0 + $0x458] sm:$0xff]
  %v178 = vld [vmem:[%s0 + $0x460] sm:$0xff]
  %v179 = vld [vmem:[%s0 + $0x468] sm:$0xff]
  %v180 = vld [vmem:[%s0 + $0x470] sm:$0xff]
  %v181 = vld [vmem:[%s0 + $0x478] sm:$0xff]
  %v182 = vld [vmem:[%s1] sm:$0xff]
  %v183 = vld [vmem:[%s1 + $0x8] sm:$0xff]
  %v184 = vld [vmem:[%s1 + $0x10] sm:$0xff]
  %v185 = vld [vmem:[%s1 + $0x18] sm:$0xff]
  %vm186 = vcmask 261120
  %v188 = vsel %vm186, %v38, 0
  %v191 = vsel %vm186, %v39, 0
  %v194 = vsel %vm186, %v40, 0
  %v197 = vsel %vm186, %v41, 0
  %v200 = vsel %vm186, %v42, 0
  %v203 = vsel %vm186, %v43, 0
  %v206 = vsel %vm186, %v44, 0
  %v209 = vsel %vm186, %v45, 0
  %v212 = vsel %vm186, %v46, 0
  %v215 = vsel %vm186, %v47, 0
  %v218 = vsel %vm186, %v48, 0
  %v221 = vsel %vm186, %v49, 0
  %v224 = vsel %vm186, %v50, 0
  %v227 = vsel %vm186, %v51, 0
  %v230 = vsel %vm186, %v52, 0
  %v233 = vsel %vm186, %v53, 0
  %v236 = vsel %vm186, %v54, 0
  %v239 = vsel %vm186, %v55, 0
  %v242 = vsel %vm186, %v56, 0
  %v245 = vsel %vm186, %v57, 0
  %v248 = vsel %vm186, %v58, 0
  %v251 = vsel %vm186, %v59, 0
  %v254 = vsel %vm186, %v60, 0
  %v257 = vsel %vm186, %v61, 0
  %v260 = vsel %vm186, %v62, 0
  %v263 = vsel %vm186, %v63, 0
  %v266 = vsel %vm186, %v64, 0
  %v269 = vsel %vm186, %v65, 0
  %v272 = vsel %vm186, %v66, 0
  %v275 = vsel %vm186, %v67, 0
  %v278 = vsel %vm186, %v68, 0
  %v281 = vsel %vm186, %v69, 0
  %v284 = vsel %vm186, %v70, 0
  %v287 = vsel %vm186, %v71, 0
  %v290 = vsel %vm186, %v72, 0
  %v293 = vsel %vm186, %v73, 0
  %v296 = vsel %vm186, %v74, 0
  %v299 = vsel %vm186, %v75, 0
  %v302 = vsel %vm186, %v76, 0
  %v305 = vsel %vm186, %v77, 0
  %v308 = vsel %vm186, %v78, 0
  %v311 = vsel %vm186, %v79, 0
  %v314 = vsel %vm186, %v80, 0
  %v317 = vsel %vm186, %v81, 0
  %v320 = vsel %vm186, %v82, 0
  %v323 = vsel %vm186, %v83, 0
  %v326 = vsel %vm186, %v84, 0
  %v329 = vsel %vm186, %v85, 0
  %v332 = vsel %vm186, %v86, 0
  %v335 = vsel %vm186, %v87, 0
  %v338 = vsel %vm186, %v88, 0
  %v341 = vsel %vm186, %v89, 0
  %v344 = vsel %vm186, %v90, 0
  %v347 = vsel %vm186, %v91, 0
  %v350 = vsel %vm186, %v92, 0
  %v353 = vsel %vm186, %v93, 0
  %v356 = vsel %vm186, %v94, 0
  %v359 = vsel %vm186, %v95, 0
  %v362 = vsel %vm186, %v96, 0
  %v365 = vsel %vm186, %v97, 0
  %v368 = vsel %vm186, %v98, 0
  %v371 = vsel %vm186, %v99, 0
  %v374 = vsel %vm186, %v100, 0
  %v377 = vsel %vm186, %v101, 0
  %v380 = vsel %vm186, %v102, 0
  %v383 = vsel %vm186, %v103, 0
  %v386 = vsel %vm186, %v104, 0
  %v389 = vsel %vm186, %v105, 0
  %v392 = vsel %vm186, %v106, 0
  %v395 = vsel %vm186, %v107, 0
  %v398 = vsel %vm186, %v108, 0
  %v401 = vsel %vm186, %v109, 0
  %v404 = vsel %vm186, %v110, 0
  %v407 = vsel %vm186, %v111, 0
  %v410 = vsel %vm186, %v112, 0
  %v413 = vsel %vm186, %v113, 0
  %v416 = vsel %vm186, %v114, 0
  %v419 = vsel %vm186, %v115, 0
  %v422 = vsel %vm186, %v116, 0
  %v425 = vsel %vm186, %v117, 0
  %v428 = vsel %vm186, %v118, 0
  %v431 = vsel %vm186, %v119, 0
  %v434 = vsel %vm186, %v120, 0
  %v437 = vsel %vm186, %v121, 0
  %v440 = vsel %vm186, %v122, 0
  %v443 = vsel %vm186, %v123, 0
  %v446 = vsel %vm186, %v124, 0
  %v449 = vsel %vm186, %v125, 0
  %v452 = vsel %vm186, %v126, 0
  %v455 = vsel %vm186, %v127, 0
  %v458 = vsel %vm186, %v128, 0
  %v461 = vsel %vm186, %v129, 0
  %v464 = vsel %vm186, %v130, 0
  %v467 = vsel %vm186, %v131, 0
  %v470 = vsel %vm186, %v132, 0
  %v473 = vsel %vm186, %v133, 0
  %v476 = vsel %vm186, %v134, 0
  %v479 = vsel %vm186, %v135, 0
  %v482 = vsel %vm186, %v136, 0
  %v485 = vsel %vm186, %v137, 0
  %v488 = vsel %vm186, %v138, 0
  %v491 = vsel %vm186, %v139, 0
  %v494 = vsel %vm186, %v140, 0
  %v497 = vsel %vm186, %v141, 0
  %v500 = vsel %vm186, %v142, 0
  %v503 = vsel %vm186, %v143, 0
  %v506 = vsel %vm186, %v144, 0
  %v509 = vsel %vm186, %v145, 0
  %v512 = vsel %vm186, %v146, 0
  %v515 = vsel %vm186, %v147, 0
  %v518 = vsel %vm186, %v148, 0
  %v521 = vsel %vm186, %v149, 0
  %v524 = vsel %vm186, %v150, 0
  %v527 = vsel %vm186, %v151, 0
  %v530 = vsel %vm186, %v152, 0
  %v533 = vsel %vm186, %v153, 0
  %v536 = vsel %vm186, %v154, 0
  %v539 = vsel %vm186, %v155, 0
  %v542 = vsel %vm186, %v156, 0
  %v545 = vsel %vm186, %v157, 0
  %v548 = vsel %vm186, %v158, 0
  %v551 = vsel %vm186, %v159, 0
  %v554 = vsel %vm186, %v160, 0
  %v557 = vsel %vm186, %v161, 0
  %v560 = vsel %vm186, %v162, 0
  %v563 = vsel %vm186, %v163, 0
  %v566 = vsel %vm186, %v164, 0
  %v569 = vsel %vm186, %v165, 0
  %v572 = vsel %vm186, %v166, 0
  %v575 = vsel %vm186, %v167, 0
  %v578 = vsel %vm186, %v168, 0
  %v581 = vsel %vm186, %v169, 0
  %v584 = vsel %vm186, %v170, 0
  %v587 = vsel %vm186, %v171, 0
  %v590 = vsel %vm186, %v172, 0
  %v593 = vsel %vm186, %v173, 0
  %v596 = vsel %vm186, %v174, 0
  %v599 = vsel %vm186, %v175, 0
  %v602 = vsel %vm186, %v176, 0
  %v605 = vsel %vm186, %v177, 0
  %v608 = vsel %vm186, %v178, 0
  %v611 = vsel %vm186, %v179, 0
  %v614 = vsel %vm186, %v180, 0
  %v617 = vsel %vm186, %v181, 0
  %619 = vmatprep.subr.mxu0 0.0
  %620 = vmatpush1.msra.mxu0 %v182
  %621 = vmatprep.subr.mxu0 0.0
  %622 = vmatpush1.msra.mxu0 %v183
  %623 = vmatprep.subr.mxu0 0.0
  %624 = vmatpush1.msra.mxu0 %v184
  %625 = vmatprep.subr.mxu0 0.0
  %626 = vmatpush1.msra.mxu0 %v185
  %627 = vmatprep.subr.mxu0 0.0
  %628 = vmatpush1.msra.mxu0 0.0
  %629 = vmatprep.subr.mxu0 0.0
  %630 = vmatpush1.msra.mxu0 0.0
  %631 = vmatprep.subr.mxu0 0.0
  %632 = vmatpush1.msra.mxu0 0.0
  %633 = vmatprep.subr.mxu0 0.0
  %634 = vmatpush1.msra.mxu0 0.0
  %635 = vmatprep.subr.mxu0 0.0
  %636 = vmatpush1.msra.mxu0 0.0
  %637 = vmatprep.subr.mxu0 0.0
  %638 = vmatpush1.msra.mxu0 0.0
  %639 = vmatprep.subr.mxu0 0.0
  %640 = vmatpush1.msra.mxu0 0.0
  %641 = vmatprep.subr.mxu0 0.0
  %642 = vmatpush1.msra.mxu0 0.0
  %643 = vmatprep.subr.mxu0 0.0
  %644 = vmatpush1.msra.mxu0 0.0
  %645 = vmatprep.subr.mxu0 0.0
  %646 = vmatpush1.msra.mxu0 0.0
  %647 = vmatprep.subr.mxu0 0.0
  %648 = vmatpush1.msra.mxu0 0.0
  %649 = vmatprep.subr.mxu0 0.0
  %650 = vmatpush1.msra.mxu0 0.0
  %651 = vmatprep.subr.mxu0 0.0
  %652 = vmatpush1.msra.mxu0 0.0
  %653 = vmatprep.subr.mxu0 0.0
  %654 = vmatpush1.msra.mxu0 0.0
  %655 = vmatprep.subr.mxu0 0.0
  %656 = vmatpush1.msra.mxu0 0.0
  %657 = vmatprep.subr.mxu0 0.0
  %658 = vmatpush1.msra.mxu0 0.0
  %659 = vmatprep.subr.mxu0 0.0
  %660 = vmatpush1.msra.mxu0 0.0
  %661 = vmatprep.subr.mxu0 0.0
  %662 = vmatpush1.msra.mxu0 0.0
  %663 = vmatprep.subr.mxu0 0.0
  %664 = vmatpush1.msra.mxu0 0.0
  %665 = vmatprep.subr.mxu0 0.0
  %666 = vmatpush1.msra.mxu0 0.0
  %667 = vmatprep.subr.mxu0 0.0
  %668 = vmatpush1.msra.mxu0 0.0
  %669 = vmatprep.subr.mxu0 0.0
  %670 = vmatpush1.msra.mxu0 0.0
  %671 = vmatprep.subr.mxu0 0.0
  %672 = vmatpush1.msra.mxu0 0.0
  %673 = vmatprep.subr.mxu0 0.0
  %674 = vmatpush1.msra.mxu0 0.0
  %675 = vmatprep.subr.mxu0 0.0
  %676 = vmatpush1.msra.mxu0 0.0
  %677 = vmatprep.subr.mxu0 0.0
  %678 = vmatpush1.msra.mxu0 0.0
  %679 = vmatprep.subr.mxu0 0.0
  %680 = vmatpush1.msra.mxu0 0.0
  %681 = vmatprep.subr.mxu0 0.0
  %682 = vmatpush1.msra.mxu0 0.0
  %683 = vmatprep.mubr.f32.mxu0 0.0
  %684 = vmatmul.mubr.f32.gmra.mrb[0].mxu0 %v188
  %v685 = vpop.f32.mrb[0].mxu0
  %v686 = vadd.f32 0.0, %v685
  %v687 = vpop.f32.mrb[0].mxu0
  %688 = vmatprep.mubr.f32.mxu0 0.0
  %689 = vmatmul.mubr.f32.gmra.mrb[0].mxu0 %v191
  %v690 = vpop.f32.mrb[0].mxu0
  %v691 = vadd.f32 0.0, %v690
  %v692 = vpop.f32.mrb[0].mxu0
  %693 = vmatprep.mubr.f32.mxu0 0.0
  %694 = vmatmul.mubr.f32.gmra.mrb[0].mxu0 %v194
  %v695 = vpop.f32.mrb[0].mxu0
  %v696 = vadd.f32 0.0, %v695
  %v697 = vpop.f32.mrb[0].mxu0
  %698 = vmatprep.mubr.f32.mxu0 0.0
  %699 = vmatmul.mubr.f32.gmra.mrb[0].mxu0 %v197
  %v700 = vpop.f32.mrb[0].mxu0
  %v701 = vadd.f32 0.0, %v700
  %v702 = vpop.f32.mrb[0].mxu0
  %703 = vmatprep.mubr.f32.mxu0 0.0
  %704 = vmatmul.mubr.f32.gmra.mrb[0].mxu0 %v200
  %v705 = vpop.f32.mrb[0].mxu0
  %v706 = vadd.f32 0.0, %v705
  %v707 = vpop.f32.mrb[0].mxu0
  %708 = vmatprep.mubr.f32.mxu0 0.0
  %709 = vmatmul.mubr.f32.gmra.mrb[0].mxu0 %v203
  %v710 = vpop.f32.mrb[0].mxu0
  %v711 = vadd.f32 0.0, %v710
  %v712 = vpop.f32.mrb[0].mxu0
  %713 = vmatprep.mubr.f32.mxu0 0.0
  %714 = vmatmul.mubr.f32.gmra.mrb[0].mxu0 %v206
  %v715 = vpop.f32.mrb[0].mxu0
  %v716 = vadd.f32 0.0, %v715
  %v717 = vpop.f32.mrb[0].mxu0
  %718 = vmatprep.mubr.f32.mxu0 0.0
  %719 = vmatmul.mubr.f32.gmra.mrb[0].mxu0 %v209
  %v720 = vpop.f32.mrb[0].mxu0
  %v721 = vadd.f32 0.0, %v720
  %v722 = vpop.f32.mrb[0].mxu0
  %723 = vmatprep.mubr.f32.mxu0 0.0
  %724 = vmatmul.mubr.f32.gmra.mrb[0].mxu0 %v212
  %v725 = vpop.f32.mrb[0].mxu0
  %v726 = vadd.f32 0.0, %v725
  %v727 = vpop.f32.mrb[0].mxu0
  %728 = vmatprep.mubr.f32.mxu0 0.0
  %729 = vmatmul.mubr.f32.gmra.mrb[0].mxu0 %v215
  %v730 = vpop.f32.mrb[0].mxu0
  %v731 = vadd.f32 0.0, %v730
  %v732 = vpop.f32.mrb[0].mxu0
  %733 = vmatprep.mubr.f32.mxu0 0.0
  %734 = vmatmul.mubr.f32.gmra.mrb[0].mxu0 %v218
  %v735 = vpop.f32.mrb[0].mxu0
  %v736 = vadd.f32 0.0, %v735
  %v737 = vpop.f32.mrb[0].mxu0
  %738 = vmatprep.mubr.f32.mxu0 0.0
  %739 = vmatmul.mubr.f32.gmra.mrb[0].mxu0 %v221
  %v740 = vpop.f32.mrb[0].mxu0
  %v741 = vadd.f32 0.0, %v740
  %v742 = vpop.f32.mrb[0].mxu0
  %743 = vmatprep.mubr.f32.mxu0 0.0
  %744 = vmatmul.mubr.f32.gmra.mrb[0].mxu0 %v224
  %v745 = vpop.f32.mrb[0].mxu0
  %v746 = vadd.f32 0.0, %v745
  %v747 = vpop.f32.mrb[0].mxu0
  %748 = vmatprep.mubr.f32.mxu0 0.0
  %749 = vmatmul.mubr.f32.gmra.mrb[0].mxu0 %v227
  %v750 = vpop.f32.mrb[0].mxu0
  %v751 = vadd.f32 0.0, %v750
  %v752 = vpop.f32.mrb[0].mxu0
  %753 = vmatprep.mubr.f32.mxu0 0.0
  %754 = vmatmul.mubr.f32.gmra.mrb[0].mxu0 %v230
  %v755 = vpop.f32.mrb[0].mxu0
  %v756 = vadd.f32 0.0, %v755
  %v757 = vpop.f32.mrb[0].mxu0
  %758 = vmatprep.mubr.f32.mxu0 0.0
  %759 = vmatmul.mubr.f32.gmra.mrb[0].mxu0 %v233
  %v760 = vpop.f32.mrb[0].mxu0
  %v761 = vadd.f32 0.0, %v760
  %v762 = vpop.f32.mrb[0].mxu0
  %763 = vmatprep.mubr.f32.mxu0 0.0
  %764 = vmatmul.mubr.f32.gmra.mrb[0].mxu0 %v236
  %v765 = vpop.f32.mrb[0].mxu0
  %v766 = vadd.f32 0.0, %v765
  %v767 = vpop.f32.mrb[0].mxu0
  %768 = vmatprep.mubr.f32.mxu0 0.0
  %769 = vmatmul.mubr.f32.gmra.mrb[0].mxu0 %v239
  %v770 = vpop.f32.mrb[0].mxu0
  %v771 = vadd.f32 0.0, %v770
  %v772 = vpop.f32.mrb[0].mxu0
  %773 = vmatprep.mubr.f32.mxu0 0.0
  %774 = vmatmul.mubr.f32.gmra.mrb[0].mxu0 %v242
  %v775 = vpop.f32.mrb[0].mxu0
  %v776 = vadd.f32 0.0, %v775
  %v777 = vpop.f32.mrb[0].mxu0
  %778 = vmatprep.mubr.f32.mxu0 0.0
  %779 = vmatmul.mubr.f32.gmra.mrb[0].mxu0 %v245
  %v780 = vpop.f32.mrb[0].mxu0
  %v781 = vadd.f32 0.0, %v780
  %v782 = vpop.f32.mrb[0].mxu0
  %783 = vmatprep.mubr.f32.mxu0 0.0
  %784 = vmatmul.mubr.f32.gmra.mrb[0].mxu0 %v248
  %v785 = vpop.f32.mrb[0].mxu0
  %v786 = vadd.f32 0.0, %v785
  %v787 = vpop.f32.mrb[0].mxu0
  %788 = vmatprep.mubr.f32.mxu0 0.0
  %789 = vmatmul.mubr.f32.gmra.mrb[0].mxu0 %v251
  %v790 = vpop.f32.mrb[0].mxu0
  %v791 = vadd.f32 0.0, %v790
  %v792 = vpop.f32.mrb[0].mxu0
  %793 = vmatprep.mubr.f32.mxu0 0.0
  %794 = vmatmul.mubr.f32.gmra.mrb[0].mxu0 %v254
  %v795 = vpop.f32.mrb[0].mxu0
  %v796 = vadd.f32 0.0, %v795
  %v797 = vpop.f32.mrb[0].mxu0
  %798 = vmatprep.mubr.f32.mxu0 0.0
  %799 = vmatmul.mubr.f32.gmra.mrb[0].mxu0 %v257
  %v800 = vpop.f32.mrb[0].mxu0
  %v801 = vadd.f32 0.0, %v800
  %v802 = vpop.f32.mrb[0].mxu0
  %803 = vmatprep.mubr.f32.mxu0 0.0
  %804 = vmatmul.mubr.f32.gmra.mrb[0].mxu0 %v260
  %v805 = vpop.f32.mrb[0].mxu0
  %v806 = vadd.f32 0.0, %v805
  %v807 = vpop.f32.mrb[0].mxu0
  %808 = vmatprep.mubr.f32.mxu0 0.0
  %809 = vmatmul.mubr.f32.gmra.mrb[0].mxu0 %v263
  %v810 = vpop.f32.mrb[0].mxu0
  %v811 = vadd.f32 0.0, %v810
  %v812 = vpop.f32.mrb[0].mxu0
  %813 = vmatprep.mubr.f32.mxu0 0.0
  %814 = vmatmul.mubr.f32.gmra.mrb[0].mxu0 %v266
  %v815 = vpop.f32.mrb[0].mxu0
  %v816 = vadd.f32 0.0, %v815
  %v817 = vpop.f32.mrb[0].mxu0
  %818 = vmatprep.mubr.f32.mxu0 0.0
  %819 = vmatmul.mubr.f32.gmra.mrb[0].mxu0 %v269
  %v820 = vpop.f32.mrb[0].mxu0
  %v821 = vadd.f32 0.0, %v820
  %v822 = vpop.f32.mrb[0].mxu0
  %823 = vmatprep.mubr.f32.mxu0 0.0
  %824 = vmatmul.mubr.f32.gmra.mrb[0].mxu0 %v272
  %v825 = vpop.f32.mrb[0].mxu0
  %v826 = vadd.f32 0.0, %v825
  %v827 = vpop.f32.mrb[0].mxu0
  %828 = vmatprep.mubr.f32.mxu0 0.0
  %829 = vmatmul.mubr.f32.gmra.mrb[0].mxu0 %v275
  %v830 = vpop.f32.mrb[0].mxu0
  %v831 = vadd.f32 0.0, %v830
  %v832 = vpop.f32.mrb[0].mxu0
  %833 = vmatprep.mubr.f32.mxu0 0.0
  %834 = vmatmul.mubr.f32.gmra.mrb[0].mxu0 %v278
  %v835 = vpop.f32.mrb[0].mxu0
  %v836 = vadd.f32 0.0, %v835
  %v837 = vpop.f32.mrb[0].mxu0
  %838 = vmatprep.mubr.f32.mxu0 0.0
  %839 = vmatmul.mubr.f32.gmra.mrb[0].mxu0 %v281
  %v840 = vpop.f32.mrb[0].mxu0
  %v841 = vadd.f32 0.0, %v840
  %v842 = vpop.f32.mrb[0].mxu0
  %843 = vmatprep.mubr.f32.mxu0 0.0
  %844 = vmatmul.mubr.f32.gmra.mrb[0].mxu0 %v284
  %v845 = vpop.f32.mrb[0].mxu0
  %v846 = vadd.f32 0.0, %v845
  %v847 = vpop.f32.mrb[0].mxu0
  %848 = vmatprep.mubr.f32.mxu0 0.0
  %849 = vmatmul.mubr.f32.gmra.mrb[0].mxu0 %v287
  %v850 = vpop.f32.mrb[0].mxu0
  %v851 = vadd.f32 0.0, %v850
  %v852 = vpop.f32.mrb[0].mxu0
  %853 = vmatprep.mubr.f32.mxu0 0.0
  %854 = vmatmul.mubr.f32.gmra.mrb[0].mxu0 %v290
  %v855 = vpop.f32.mrb[0].mxu0
  %v856 = vadd.f32 0.0, %v855
  %v857 = vpop.f32.mrb[0].mxu0
  %858 = vmatprep.mubr.f32.mxu0 0.0
  %859 = vmatmul.mubr.f32.gmra.mrb[0].mxu0 %v293
  %v860 = vpop.f32.mrb[0].mxu0
  %v861 = vadd.f32 0.0, %v860
  %v862 = vpop.f32.mrb[0].mxu0
  %863 = vmatprep.mubr.f32.mxu0 0.0
  %864 = vmatmul.mubr.f32.gmra.mrb[0].mxu0 %v296
  %v865 = vpop.f32.mrb[0].mxu0
  %v866 = vadd.f32 0.0, %v865
  %v867 = vpop.f32.mrb[0].mxu0
  %868 = vmatprep.mubr.f32.mxu0 0.0
  %869 = vmatmul.mubr.f32.gmra.mrb[0].mxu0 %v299
  %v870 = vpop.f32.mrb[0].mxu0
  %v871 = vadd.f32 0.0, %v870
  %v872 = vpop.f32.mrb[0].mxu0
  %873 = vmatprep.mubr.f32.mxu0 0.0
  %874 = vmatmul.mubr.f32.gmra.mrb[0].mxu0 %v302
  %v875 = vpop.f32.mrb[0].mxu0
  %v876 = vadd.f32 0.0, %v875
  %v877 = vpop.f32.mrb[0].mxu0
  %878 = vmatprep.mubr.f32.mxu0 0.0
  %879 = vmatmul.mubr.f32.gmra.mrb[0].mxu0 %v305
  %v880 = vpop.f32.mrb[0].mxu0
  %v881 = vadd.f32 0.0, %v880
  %v882 = vpop.f32.mrb[0].mxu0
  %883 = vmatprep.mubr.f32.mxu0 0.0
  %884 = vmatmul.mubr.f32.gmra.mrb[0].mxu0 %v308
  %v885 = vpop.f32.mrb[0].mxu0
  %v886 = vadd.f32 0.0, %v885
  %v887 = vpop.f32.mrb[0].mxu0
  %888 = vmatprep.mubr.f32.mxu0 0.0
  %889 = vmatmul.mubr.f32.gmra.mrb[0].mxu0 %v311
  %v890 = vpop.f32.mrb[0].mxu0
  %v891 = vadd.f32 0.0, %v890
  %v892 = vpop.f32.mrb[0].mxu0
  %893 = vmatprep.mubr.f32.mxu0 0.0
  %894 = vmatmul.mubr.f32.gmra.mrb[0].mxu0 %v314
  %v895 = vpop.f32.mrb[0].mxu0
  %v896 = vadd.f32 0.0, %v895
  %v897 = vpop.f32.mrb[0].mxu0
  %898 = vmatprep.mubr.f32.mxu0 0.0
  %899 = vmatmul.mubr.f32.gmra.mrb[0].mxu0 %v317
  %v900 = vpop.f32.mrb[0].mxu0
  %v901 = vadd.f32 0.0, %v900
  %v902 = vpop.f32.mrb[0].mxu0
  %903 = vmatprep.mubr.f32.mxu0 0.0
  %904 = vmatmul.mubr.f32.gmra.mrb[0].mxu0 %v320
  %v905 = vpop.f32.mrb[0].mxu0
  %v906 = vadd.f32 0.0, %v905
  %v907 = vpop.f32.mrb[0].mxu0
  %908 = vmatprep.mubr.f32.mxu0 0.0
  %909 = vmatmul.mubr.f32.gmra.mrb[0].mxu0 %v323
  %v910 = vpop.f32.mrb[0].mxu0
  %v911 = vadd.f32 0.0, %v910
  %v912 = vpop.f32.mrb[0].mxu0
  %913 = vmatprep.mubr.f32.mxu0 0.0
  %914 = vmatmul.mubr.f32.gmra.mrb[0].mxu0 %v326
  %v915 = vpop.f32.mrb[0].mxu0
  %v916 = vadd.f32 0.0, %v915
  %v917 = vpop.f32.mrb[0].mxu0
  %918 = vmatprep.mubr.f32.mxu0 0.0
  %919 = vmatmul.mubr.f32.gmra.mrb[0].mxu0 %v329
  %v920 = vpop.f32.mrb[0].mxu0
  %v921 = vadd.f32 0.0, %v920
  %v922 = vpop.f32.mrb[0].mxu0
  %923 = vmatprep.mubr.f32.mxu0 0.0
  %924 = vmatmul.mubr.f32.gmra.mrb[0].mxu0 %v332
  %v925 = vpop.f32.mrb[0].mxu0
  %v926 = vadd.f32 0.0, %v925
  %v927 = vpop.f32.mrb[0].mxu0
  %928 = vmatprep.mubr.f32.mxu0 0.0
  %929 = vmatmul.mubr.f32.gmra.mrb[0].mxu0 %v335
  %v930 = vpop.f32.mrb[0].mxu0
  %v931 = vadd.f32 0.0, %v930
  %v932 = vpop.f32.mrb[0].mxu0
  %933 = vmatprep.mubr.f32.mxu0 0.0
  %934 = vmatmul.mubr.f32.gmra.mrb[0].mxu0 %v338
  %v935 = vpop.f32.mrb[0].mxu0
  %v936 = vadd.f32 0.0, %v935
  %v937 = vpop.f32.mrb[0].mxu0
  %938 = vmatprep.mubr.f32.mxu0 0.0
  %939 = vmatmul.mubr.f32.gmra.mrb[0].mxu0 %v341
  %v940 = vpop.f32.mrb[0].mxu0
  %v941 = vadd.f32 0.0, %v940
  %v942 = vpop.f32.mrb[0].mxu0
  %943 = vmatprep.mubr.f32.mxu0 0.0
  %944 = vmatmul.mubr.f32.gmra.mrb[0].mxu0 %v344
  %v945 = vpop.f32.mrb[0].mxu0
  %v946 = vadd.f32 0.0, %v945
  %v947 = vpop.f32.mrb[0].mxu0
  %948 = vmatprep.mubr.f32.mxu0 0.0
  %949 = vmatmul.mubr.f32.gmra.mrb[0].mxu0 %v347
  %v950 = vpop.f32.mrb[0].mxu0
  %v951 = vadd.f32 0.0, %v950
  %v952 = vpop.f32.mrb[0].mxu0
  %953 = vmatprep.mubr.f32.mxu0 0.0
  %954 = vmatmul.mubr.f32.gmra.mrb[0].mxu0 %v350
  %v955 = vpop.f32.mrb[0].mxu0
  %v956 = vadd.f32 0.0, %v955
  %v957 = vpop.f32.mrb[0].mxu0
  %958 = vmatprep.mubr.f32.mxu0 0.0
  %959 = vmatmul.mubr.f32.gmra.mrb[0].mxu0 %v353
  %v960 = vpop.f32.mrb[0].mxu0
  %v961 = vadd.f32 0.0, %v960
  %v962 = vpop.f32.mrb[0].mxu0
  %963 = vmatprep.mubr.f32.mxu0 0.0
  %964 = vmatmul.mubr.f32.gmra.mrb[0].mxu0 %v356
  %v965 = vpop.f32.mrb[0].mxu0
  %v966 = vadd.f32 0.0, %v965
  %v967 = vpop.f32.mrb[0].mxu0
  %968 = vmatprep.mubr.f32.mxu0 0.0
  %969 = vmatmul.mubr.f32.gmra.mrb[0].mxu0 %v359
  %v970 = vpop.f32.mrb[0].mxu0
  %v971 = vadd.f32 0.0, %v970
  %v972 = vpop.f32.mrb[0].mxu0
  %973 = vmatprep.mubr.f32.mxu0 0.0
  %974 = vmatmul.mubr.f32.gmra.mrb[0].mxu0 %v362
  %v975 = vpop.f32.mrb[0].mxu0
  %v976 = vadd.f32 0.0, %v975
  %v977 = vpop.f32.mrb[0].mxu0
  %978 = vmatprep.mubr.f32.mxu0 0.0
  %979 = vmatmul.mubr.f32.gmra.mrb[0].mxu0 %v365
  %v980 = vpop.f32.mrb[0].mxu0
  %v981 = vadd.f32 0.0, %v980
  %v982 = vpop.f32.mrb[0].mxu0
  %983 = vmatprep.mubr.f32.mxu0 0.0
  %984 = vmatmul.mubr.f32.gmra.mrb[0].mxu0 %v368
  %v985 = vpop.f32.mrb[0].mxu0
  %v986 = vadd.f32 0.0, %v985
  %v987 = vpop.f32.mrb[0].mxu0
  %988 = vmatprep.mubr.f32.mxu0 0.0
  %989 = vmatmul.mubr.f32.gmra.mrb[0].mxu0 %v371
  %v990 = vpop.f32.mrb[0].mxu0
  %v991 = vadd.f32 0.0, %v990
  %v992 = vpop.f32.mrb[0].mxu0
  %993 = vmatprep.mubr.f32.mxu0 0.0
  %994 = vmatmul.mubr.f32.gmra.mrb[0].mxu0 %v374
  %v995 = vpop.f32.mrb[0].mxu0
  %v996 = vadd.f32 0.0, %v995
  %v997 = vpop.f32.mrb[0].mxu0
  %998 = vmatprep.mubr.f32.mxu0 0.0
  %999 = vmatmul.mubr.f32.gmra.mrb[0].mxu0 %v377
  %v1000 = vpop.f32.mrb[0].mxu0
  %v1001 = vadd.f32 0.0, %v1000
  %v1002 = vpop.f32.mrb[0].mxu0
  %1003 = vmatprep.mubr.f32.mxu0 0.0
  %1004 = vmatmul.mubr.f32.gmra.mrb[0].mxu0 %v380
  %v1005 = vpop.f32.mrb[0].mxu0
  %v1006 = vadd.f32 0.0, %v1005
  %v1007 = vpop.f32.mrb[0].mxu0
  %1008 = vmatprep.mubr.f32.mxu0 0.0
  %1009 = vmatmul.mubr.f32.gmra.mrb[0].mxu0 %v383
  %v1010 = vpop.f32.mrb[0].mxu0
  %v1011 = vadd.f32 0.0, %v1010
  %v1012 = vpop.f32.mrb[0].mxu0
  %1013 = vmatprep.mubr.f32.mxu0 0.0
  %1014 = vmatmul.mubr.f32.gmra.mrb[0].mxu0 %v386
  %v1015 = vpop.f32.mrb[0].mxu0
  %v1016 = vadd.f32 0.0, %v1015
  %v1017 = vpop.f32.mrb[0].mxu0
  %1018 = vmatprep.mubr.f32.mxu0 0.0
  %1019 = vmatmul.mubr.f32.gmra.mrb[0].mxu0 %v389
  %v1020 = vpop.f32.mrb[0].mxu0
  %v1021 = vadd.f32 0.0, %v1020
  %v1022 = vpop.f32.mrb[0].mxu0
  %1023 = vmatprep.mubr.f32.mxu0 0.0
  %1024 = vmatmul.mubr.f32.gmra.mrb[0].mxu0 %v392
  %v1025 = vpop.f32.mrb[0].mxu0
  %v1026 = vadd.f32 0.0, %v1025
  %v1027 = vpop.f32.mrb[0].mxu0
  %1028 = vmatprep.mubr.f32.mxu0 0.0
  %1029 = vmatmul.mubr.f32.gmra.mrb[0].mxu0 %v395
  %v1030 = vpop.f32.mrb[0].mxu0
  %v1031 = vadd.f32 0.0, %v1030
  %v1032 = vpop.f32.mrb[0].mxu0
  %1033 = vmatprep.mubr.f32.mxu0 0.0
  %1034 = vmatmul.mubr.f32.gmra.mrb[0].mxu0 %v398
  %v1035 = vpop.f32.mrb[0].mxu0
  %v1036 = vadd.f32 0.0, %v1035
  %v1037 = vpop.f32.mrb[0].mxu0
  %1038 = vmatprep.mubr.f32.mxu0 0.0
  %1039 = vmatmul.mubr.f32.gmra.mrb[0].mxu0 %v401
  %v1040 = vpop.f32.mrb[0].mxu0
  %v1041 = vadd.f32 0.0, %v1040
  %v1042 = vpop.f32.mrb[0].mxu0
  %1043 = vmatprep.mubr.f32.mxu0 0.0
  %1044 = vmatmul.mubr.f32.gmra.mrb[0].mxu0 %v404
  %v1045 = vpop.f32.mrb[0].mxu0
  %v1046 = vadd.f32 0.0, %v1045
  %v1047 = vpop.f32.mrb[0].mxu0
  %1048 = vmatprep.mubr.f32.mxu0 0.0
  %1049 = vmatmul.mubr.f32.gmra.mrb[0].mxu0 %v407
  %v1050 = vpop.f32.mrb[0].mxu0
  %v1051 = vadd.f32 0.0, %v1050
  %v1052 = vpop.f32.mrb[0].mxu0
  %1053 = vmatprep.mubr.f32.mxu0 0.0
  %1054 = vmatmul.mubr.f32.gmra.mrb[0].mxu0 %v410
  %v1055 = vpop.f32.mrb[0].mxu0
  %v1056 = vadd.f32 0.0, %v1055
  %v1057 = vpop.f32.mrb[0].mxu0
  %1058 = vmatprep.mubr.f32.mxu0 0.0
  %1059 = vmatmul.mubr.f32.gmra.mrb[0].mxu0 %v413
  %v1060 = vpop.f32.mrb[0].mxu0
  %v1061 = vadd.f32 0.0, %v1060
  %v1062 = vpop.f32.mrb[0].mxu0
  %1063 = vmatprep.mubr.f32.mxu0 0.0
  %1064 = vmatmul.mubr.f32.gmra.mrb[0].mxu0 %v416
  %v1065 = vpop.f32.mrb[0].mxu0
  %v1066 = vadd.f32 0.0, %v1065
  %v1067 = vpop.f32.mrb[0].mxu0
  %1068 = vmatprep.mubr.f32.mxu0 0.0
  %1069 = vmatmul.mubr.f32.gmra.mrb[0].mxu0 %v419
  %v1070 = vpop.f32.mrb[0].mxu0
  %v1071 = vadd.f32 0.0, %v1070
  %v1072 = vpop.f32.mrb[0].mxu0
  %1073 = vmatprep.mubr.f32.mxu0 0.0
  %1074 = vmatmul.mubr.f32.gmra.mrb[0].mxu0 %v422
  %v1075 = vpop.f32.mrb[0].mxu0
  %v1076 = vadd.f32 0.0, %v1075
  %v1077 = vpop.f32.mrb[0].mxu0
  %1078 = vmatprep.mubr.f32.mxu0 0.0
  %1079 = vmatmul.mubr.f32.gmra.mrb[0].mxu0 %v425
  %v1080 = vpop.f32.mrb[0].mxu0
  %v1081 = vadd.f32 0.0, %v1080
  %v1082 = vpop.f32.mrb[0].mxu0
  %1083 = vmatprep.mubr.f32.mxu0 0.0
  %1084 = vmatmul.mubr.f32.gmra.mrb[0].mxu0 %v428
  %v1085 = vpop.f32.mrb[0].mxu0
  %v1086 = vadd.f32 0.0, %v1085
  %v1087 = vpop.f32.mrb[0].mxu0
  %1088 = vmatprep.mubr.f32.mxu0 0.0
  %1089 = vmatmul.mubr.f32.gmra.mrb[0].mxu0 %v431
  %v1090 = vpop.f32.mrb[0].mxu0
  %v1091 = vadd.f32 0.0, %v1090
  %v1092 = vpop.f32.mrb[0].mxu0
  %1093 = vmatprep.mubr.f32.mxu0 0.0
  %1094 = vmatmul.mubr.f32.gmra.mrb[0].mxu0 %v434
  %v1095 = vpop.f32.mrb[0].mxu0
  %v1096 = vadd.f32 0.0, %v1095
  %v1097 = vpop.f32.mrb[0].mxu0
  %1098 = vmatprep.mubr.f32.mxu0 0.0
  %1099 = vmatmul.mubr.f32.gmra.mrb[0].mxu0 %v437
  %v1100 = vpop.f32.mrb[0].mxu0
  %v1101 = vadd.f32 0.0, %v1100
  %v1102 = vpop.f32.mrb[0].mxu0
  %1103 = vmatprep.mubr.f32.mxu0 0.0
  %1104 = vmatmul.mubr.f32.gmra.mrb[0].mxu0 %v440
  %v1105 = vpop.f32.mrb[0].mxu0
  %v1106 = vadd.f32 0.0, %v1105
  %v1107 = vpop.f32.mrb[0].mxu0
  %1108 = vmatprep.mubr.f32.mxu0 0.0
  %1109 = vmatmul.mubr.f32.gmra.mrb[0].mxu0 %v443
  %v1110 = vpop.f32.mrb[0].mxu0
  %v1111 = vadd.f32 0.0, %v1110
  %v1112 = vpop.f32.mrb[0].mxu0
  %1113 = vmatprep.mubr.f32.mxu0 0.0
  %1114 = vmatmul.mubr.f32.gmra.mrb[0].mxu0 %v446
  %v1115 = vpop.f32.mrb[0].mxu0
  %v1116 = vadd.f32 0.0, %v1115
  %v1117 = vpop.f32.mrb[0].mxu0
  %1118 = vmatprep.mubr.f32.mxu0 0.0
  %1119 = vmatmul.mubr.f32.gmra.mrb[0].mxu0 %v449
  %v1120 = vpop.f32.mrb[0].mxu0
  %v1121 = vadd.f32 0.0, %v1120
  %v1122 = vpop.f32.mrb[0].mxu0
  %1123 = vmatprep.mubr.f32.mxu0 0.0
  %1124 = vmatmul.mubr.f32.gmra.mrb[0].mxu0 %v452
  %v1125 = vpop.f32.mrb[0].mxu0
  %v1126 = vadd.f32 0.0, %v1125
  %v1127 = vpop.f32.mrb[0].mxu0
  %1128 = vmatprep.mubr.f32.mxu0 0.0
  %1129 = vmatmul.mubr.f32.gmra.mrb[0].mxu0 %v455
  %v1130 = vpop.f32.mrb[0].mxu0
  %v1131 = vadd.f32 0.0, %v1130
  %v1132 = vpop.f32.mrb[0].mxu0
  %1133 = vmatprep.mubr.f32.mxu0 0.0
  %1134 = vmatmul.mubr.f32.gmra.mrb[0].mxu0 %v458
  %v1135 = vpop.f32.mrb[0].mxu0
  %v1136 = vadd.f32 0.0, %v1135
  %v1137 = vpop.f32.mrb[0].mxu0
  %1138 = vmatprep.mubr.f32.mxu0 0.0
  %1139 = vmatmul.mubr.f32.gmra.mrb[0].mxu0 %v461
  %v1140 = vpop.f32.mrb[0].mxu0
  %v1141 = vadd.f32 0.0, %v1140
  %v1142 = vpop.f32.mrb[0].mxu0
  %1143 = vmatprep.mubr.f32.mxu0 0.0
  %1144 = vmatmul.mubr.f32.gmra.mrb[0].mxu0 %v464
  %v1145 = vpop.f32.mrb[0].mxu0
  %v1146 = vadd.f32 0.0, %v1145
  %v1147 = vpop.f32.mrb[0].mxu0
  %1148 = vmatprep.mubr.f32.mxu0 0.0
  %1149 = vmatmul.mubr.f32.gmra.mrb[0].mxu0 %v467
  %v1150 = vpop.f32.mrb[0].mxu0
  %v1151 = vadd.f32 0.0, %v1150
  %v1152 = vpop.f32.mrb[0].mxu0
  %1153 = vmatprep.mubr.f32.mxu0 0.0
  %1154 = vmatmul.mubr.f32.gmra.mrb[0].mxu0 %v470
  %v1155 = vpop.f32.mrb[0].mxu0
  %v1156 = vadd.f32 0.0, %v1155
  %v1157 = vpop.f32.mrb[0].mxu0
  %1158 = vmatprep.mubr.f32.mxu0 0.0
  %1159 = vmatmul.mubr.f32.gmra.mrb[0].mxu0 %v473
  %v1160 = vpop.f32.mrb[0].mxu0
  %v1161 = vadd.f32 0.0, %v1160
  %v1162 = vpop.f32.mrb[0].mxu0
  %1163 = vmatprep.mubr.f32.mxu0 0.0
  %1164 = vmatmul.mubr.f32.gmra.mrb[0].mxu0 %v476
  %v1165 = vpop.f32.mrb[0].mxu0
  %v1166 = vadd.f32 0.0, %v1165
  %v1167 = vpop.f32.mrb[0].mxu0
  %1168 = vmatprep.mubr.f32.mxu0 0.0
  %1169 = vmatmul.mubr.f32.gmra.mrb[0].mxu0 %v479
  %v1170 = vpop.f32.mrb[0].mxu0
  %v1171 = vadd.f32 0.0, %v1170
  %v1172 = vpop.f32.mrb[0].mxu0
  %1173 = vmatprep.mubr.f32.mxu0 0.0
  %1174 = vmatmul.mubr.f32.gmra.mrb[0].mxu0 %v482
  %v1175 = vpop.f32.mrb[0].mxu0
  %v1176 = vadd.f32 0.0, %v1175
  %v1177 = vpop.f32.mrb[0].mxu0
  %1178 = vmatprep.mubr.f32.mxu0 0.0
  %1179 = vmatmul.mubr.f32.gmra.mrb[0].mxu0 %v485
  %v1180 = vpop.f32.mrb[0].mxu0
  %v1181 = vadd.f32 0.0, %v1180
  %v1182 = vpop.f32.mrb[0].mxu0
  %1183 = vmatprep.mubr.f32.mxu0 0.0
  %1184 = vmatmul.mubr.f32.gmra.mrb[0].mxu0 %v488
  %v1185 = vpop.f32.mrb[0].mxu0
  %v1186 = vadd.f32 0.0, %v1185
  %v1187 = vpop.f32.mrb[0].mxu0
  %1188 = vmatprep.mubr.f32.mxu0 0.0
  %1189 = vmatmul.mubr.f32.gmra.mrb[0].mxu0 %v491
  %v1190 = vpop.f32.mrb[0].mxu0
  %v1191 = vadd.f32 0.0, %v1190
  %v1192 = vpop.f32.mrb[0].mxu0
  %1193 = vmatprep.mubr.f32.mxu0 0.0
  %1194 = vmatmul.mubr.f32.gmra.mrb[0].mxu0 %v494
  %v1195 = vpop.f32.mrb[0].mxu0
  %v1196 = vadd.f32 0.0, %v1195
  %v1197 = vpop.f32.mrb[0].mxu0
  %1198 = vmatprep.mubr.f32.mxu0 0.0
  %1199 = vmatmul.mubr.f32.gmra.mrb[0].mxu0 %v497
  %v1200 = vpop.f32.mrb[0].mxu0
  %v1201 = vadd.f32 0.0, %v1200
  %v1202 = vpop.f32.mrb[0].mxu0
  %1203 = vmatprep.mubr.f32.mxu0 0.0
  %1204 = vmatmul.mubr.f32.gmra.mrb[0].mxu0 %v500
  %v1205 = vpop.f32.mrb[0].mxu0
  %v1206 = vadd.f32 0.0, %v1205
  %v1207 = vpop.f32.mrb[0].mxu0
  %1208 = vmatprep.mubr.f32.mxu0 0.0
  %1209 = vmatmul.mubr.f32.gmra.mrb[0].mxu0 %v503
  %v1210 = vpop.f32.mrb[0].mxu0
  %v1211 = vadd.f32 0.0, %v1210
  %v1212 = vpop.f32.mrb[0].mxu0
  %1213 = vmatprep.mubr.f32.mxu0 0.0
  %1214 = vmatmul.mubr.f32.gmra.mrb[0].mxu0 %v506
  %v1215 = vpop.f32.mrb[0].mxu0
  %v1216 = vadd.f32 0.0, %v1215
  %v1217 = vpop.f32.mrb[0].mxu0
  %1218 = vmatprep.mubr.f32.mxu0 0.0
  %1219 = vmatmul.mubr.f32.gmra.mrb[0].mxu0 %v509
  %v1220 = vpop.f32.mrb[0].mxu0
  %v1221 = vadd.f32 0.0, %v1220
  %v1222 = vpop.f32.mrb[0].mxu0
  %1223 = vmatprep.mubr.f32.mxu0 0.0
  %1224 = vmatmul.mubr.f32.gmra.mrb[0].mxu0 %v512
  %v1225 = vpop.f32.mrb[0].mxu0
  %v1226 = vadd.f32 0.0, %v1225
  %v1227 = vpop.f32.mrb[0].mxu0
  %1228 = vmatprep.mubr.f32.mxu0 0.0
  %1229 = vmatmul.mubr.f32.gmra.mrb[0].mxu0 %v515
  %v1230 = vpop.f32.mrb[0].mxu0
  %v1231 = vadd.f32 0.0, %v1230
  %v1232 = vpop.f32.mrb[0].mxu0
  %1233 = vmatprep.mubr.f32.mxu0 0.0
  %1234 = vmatmul.mubr.f32.gmra.mrb[0].mxu0 %v518
  %v1235 = vpop.f32.mrb[0].mxu0
  %v1236 = vadd.f32 0.0, %v1235
  %v1237 = vpop.f32.mrb[0].mxu0
  %1238 = vmatprep.mubr.f32.mxu0 0.0
  %1239 = vmatmul.mubr.f32.gmra.mrb[0].mxu0 %v521
  %v1240 = vpop.f32.mrb[0].mxu0
  %v1241 = vadd.f32 0.0, %v1240
  %v1242 = vpop.f32.mrb[0].mxu0
  %1243 = vmatprep.mubr.f32.mxu0 0.0
  %1244 = vmatmul.mubr.f32.gmra.mrb[0].mxu0 %v524
  %v1245 = vpop.f32.mrb[0].mxu0
  %v1246 = vadd.f32 0.0, %v1245
  %v1247 = vpop.f32.mrb[0].mxu0
  %1248 = vmatprep.mubr.f32.mxu0 0.0
  %1249 = vmatmul.mubr.f32.gmra.mrb[0].mxu0 %v527
  %v1250 = vpop.f32.mrb[0].mxu0
  %v1251 = vadd.f32 0.0, %v1250
  %v1252 = vpop.f32.mrb[0].mxu0
  %1253 = vmatprep.mubr.f32.mxu0 0.0
  %1254 = vmatmul.mubr.f32.gmra.mrb[0].mxu0 %v530
  %v1255 = vpop.f32.mrb[0].mxu0
  %v1256 = vadd.f32 0.0, %v1255
  %v1257 = vpop.f32.mrb[0].mxu0
  %1258 = vmatprep.mubr.f32.mxu0 0.0
  %1259 = vmatmul.mubr.f32.gmra.mrb[0].mxu0 %v533
  %v1260 = vpop.f32.mrb[0].mxu0
  %v1261 = vadd.f32 0.0, %v1260
  %v1262 = vpop.f32.mrb[0].mxu0
  %1263 = vmatprep.mubr.f32.mxu0 0.0
  %1264 = vmatmul.mubr.f32.gmra.mrb[0].mxu0 %v536
  %v1265 = vpop.f32.mrb[0].mxu0
  %v1266 = vadd.f32 0.0, %v1265
  %v1267 = vpop.f32.mrb[0].mxu0
  %1268 = vmatprep.mubr.f32.mxu0 0.0
  %1269 = vmatmul.mubr.f32.gmra.mrb[0].mxu0 %v539
  %v1270 = vpop.f32.mrb[0].mxu0
  %v1271 = vadd.f32 0.0, %v1270
  %v1272 = vpop.f32.mrb[0].mxu0
  %1273 = vmatprep.mubr.f32.mxu0 0.0
  %1274 = vmatmul.mubr.f32.gmra.mrb[0].mxu0 %v542
  %v1275 = vpop.f32.mrb[0].mxu0
  %v1276 = vadd.f32 0.0, %v1275
  %v1277 = vpop.f32.mrb[0].mxu0
  %1278 = vmatprep.mubr.f32.mxu0 0.0
  %1279 = vmatmul.mubr.f32.gmra.mrb[0].mxu0 %v545
  %v1280 = vpop.f32.mrb[0].mxu0
  %v1281 = vadd.f32 0.0, %v1280
  %v1282 = vpop.f32.mrb[0].mxu0
  %1283 = vmatprep.mubr.f32.mxu0 0.0
  %1284 = vmatmul.mubr.f32.gmra.mrb[0].mxu0 %v548
  %v1285 = vpop.f32.mrb[0].mxu0
  %v1286 = vadd.f32 0.0, %v1285
  %v1287 = vpop.f32.mrb[0].mxu0
  %1288 = vmatprep.mubr.f32.mxu0 0.0
  %1289 = vmatmul.mubr.f32.gmra.mrb[0].mxu0 %v551
  %v1290 = vpop.f32.mrb[0].mxu0
  %v1291 = vadd.f32 0.0, %v1290
  %v1292 = vpop.f32.mrb[0].mxu0
  %1293 = vmatprep.mubr.f32.mxu0 0.0
  %1294 = vmatmul.mubr.f32.gmra.mrb[0].mxu0 %v554
  %v1295 = vpop.f32.mrb[0].mxu0
  %v1296 = vadd.f32 0.0, %v1295
  %v1297 = vpop.f32.mrb[0].mxu0
  %1298 = vmatprep.mubr.f32.mxu0 0.0
  %1299 = vmatmul.mubr.f32.gmra.mrb[0].mxu0 %v557
  %v1300 = vpop.f32.mrb[0].mxu0
  %v1301 = vadd.f32 0.0, %v1300
  %v1302 = vpop.f32.mrb[0].mxu0
  %1303 = vmatprep.mubr.f32.mxu0 0.0
  %1304 = vmatmul.mubr.f32.gmra.mrb[0].mxu0 %v560
  %v1305 = vpop.f32.mrb[0].mxu0
  %v1306 = vadd.f32 0.0, %v1305
  %v1307 = vpop.f32.mrb[0].mxu0
  %1308 = vmatprep.mubr.f32.mxu0 0.0
  %1309 = vmatmul.mubr.f32.gmra.mrb[0].mxu0 %v563
  %v1310 = vpop.f32.mrb[0].mxu0
  %v1311 = vadd.f32 0.0, %v1310
  %v1312 = vpop.f32.mrb[0].mxu0
  %1313 = vmatprep.mubr.f32.mxu0 0.0
  %1314 = vmatmul.mubr.f32.gmra.mrb[0].mxu0 %v566
  %v1315 = vpop.f32.mrb[0].mxu0
  %v1316 = vadd.f32 0.0, %v1315
  %v1317 = vpop.f32.mrb[0].mxu0
  %1318 = vmatprep.mubr.f32.mxu0 0.0
  %1319 = vmatmul.mubr.f32.gmra.mrb[0].mxu0 %v569
  %v1320 = vpop.f32.mrb[0].mxu0
  %v1321 = vadd.f32 0.0, %v1320
  %v1322 = vpop.f32.mrb[0].mxu0
  %1323 = vmatprep.mubr.f32.mxu0 0.0
  %1324 = vmatmul.mubr.f32.gmra.mrb[0].mxu0 %v572
  %v1325 = vpop.f32.mrb[0].mxu0
  %v1326 = vadd.f32 0.0, %v1325
  %v1327 = vpop.f32.mrb[0].mxu0
  %1328 = vmatprep.mubr.f32.mxu0 0.0
  %1329 = vmatmul.mubr.f32.gmra.mrb[0].mxu0 %v575
  %v1330 = vpop.f32.mrb[0].mxu0
  %v1331 = vadd.f32 0.0, %v1330
  %v1332 = vpop.f32.mrb[0].mxu0
  %1333 = vmatprep.mubr.f32.mxu0 0.0
  %1334 = vmatmul.mubr.f32.gmra.mrb[0].mxu0 %v578
  %v1335 = vpop.f32.mrb[0].mxu0
  %v1336 = vadd.f32 0.0, %v1335
  %v1337 = vpop.f32.mrb[0].mxu0
  %1338 = vmatprep.mubr.f32.mxu0 0.0
  %1339 = vmatmul.mubr.f32.gmra.mrb[0].mxu0 %v581
  %v1340 = vpop.f32.mrb[0].mxu0
  %v1341 = vadd.f32 0.0, %v1340
  %v1342 = vpop.f32.mrb[0].mxu0
  %1343 = vmatprep.mubr.f32.mxu0 0.0
  %1344 = vmatmul.mubr.f32.gmra.mrb[0].mxu0 %v584
  %v1345 = vpop.f32.mrb[0].mxu0
  %v1346 = vadd.f32 0.0, %v1345
  %v1347 = vpop.f32.mrb[0].mxu0
  %1348 = vmatprep.mubr.f32.mxu0 0.0
  %1349 = vmatmul.mubr.f32.gmra.mrb[0].mxu0 %v587
  %v1350 = vpop.f32.mrb[0].mxu0
  %v1351 = vadd.f32 0.0, %v1350
  %v1352 = vpop.f32.mrb[0].mxu0
  %1353 = vmatprep.mubr.f32.mxu0 0.0
  %1354 = vmatmul.mubr.f32.gmra.mrb[0].mxu0 %v590
  %v1355 = vpop.f32.mrb[0].mxu0
  %v1356 = vadd.f32 0.0, %v1355
  %v1357 = vpop.f32.mrb[0].mxu0
  %1358 = vmatprep.mubr.f32.mxu0 0.0
  %1359 = vmatmul.mubr.f32.gmra.mrb[0].mxu0 %v593
  %v1360 = vpop.f32.mrb[0].mxu0
  %v1361 = vadd.f32 0.0, %v1360
  %v1362 = vpop.f32.mrb[0].mxu0
  %1363 = vmatprep.mubr.f32.mxu0 0.0
  %1364 = vmatmul.mubr.f32.gmra.mrb[0].mxu0 %v596
  %v1365 = vpop.f32.mrb[0].mxu0
  %v1366 = vadd.f32 0.0, %v1365
  %v1367 = vpop.f32.mrb[0].mxu0
  %1368 = vmatprep.mubr.f32.mxu0 0.0
  %1369 = vmatmul.mubr.f32.gmra.mrb[0].mxu0 %v599
  %v1370 = vpop.f32.mrb[0].mxu0
  %v1371 = vadd.f32 0.0, %v1370
  %v1372 = vpop.f32.mrb[0].mxu0
  %1373 = vmatprep.mubr.f32.mxu0 0.0
  %1374 = vmatmul.mubr.f32.gmra.mrb[0].mxu0 %v602
  %v1375 = vpop.f32.mrb[0].mxu0
  %v1376 = vadd.f32 0.0, %v1375
  %v1377 = vpop.f32.mrb[0].mxu0
  %1378 = vmatprep.mubr.f32.mxu0 0.0
  %1379 = vmatmul.mubr.f32.gmra.mrb[0].mxu0 %v605
  %v1380 = vpop.f32.mrb[0].mxu0
  %v1381 = vadd.f32 0.0, %v1380
  %v1382 = vpop.f32.mrb[0].mxu0
  %1383 = vmatprep.mubr.f32.mxu0 0.0
  %1384 = vmatmul.mubr.f32.gmra.mrb[0].mxu0 %v608
  %v1385 = vpop.f32.mrb[0].mxu0
  %v1386 = vadd.f32 0.0, %v1385
  %v1387 = vpop.f32.mrb[0].mxu0
  %1388 = vmatprep.mubr.f32.mxu0 0.0
  %1389 = vmatmul.mubr.f32.gmra.mrb[0].mxu0 %v611
  %v1390 = vpop.f32.mrb[0].mxu0
  %v1391 = vadd.f32 0.0, %v1390
  %v1392 = vpop.f32.mrb[0].mxu0
  %1393 = vmatprep.mubr.f32.mxu0 0.0
  %1394 = vmatmul.mubr.f32.gmra.mrb[0].mxu0 %v614
  %v1395 = vpop.f32.mrb[0].mxu0
  %v1396 = vadd.f32 0.0, %v1395
  %v1397 = vpop.f32.mrb[0].mxu0
  %1398 = vmatprep.mubr.f32.mxu0 0.0
  %1399 = vmatmul.mubr.f32.gmra.mrb[0].mxu0 %v617
  %v1400 = vpop.f32.mrb[0].mxu0
  %v1401 = vadd.f32 0.0, %v1400
  %v1402 = vpop.f32.mrb[0].mxu0
  %1403 = vdwg.mxu0
  %v1404 = vmax.f32 %v686, %v866
  %v1405 = vmax.f32 %v691, %v871
  %v1406 = vmax.f32 %v696, %v876
  %v1407 = vmax.f32 %v701, %v881
  %v1408 = vmax.f32 %v706, %v886
  %v1409 = vmax.f32 %v711, %v891
  %v1410 = vmax.f32 %v716, %v896
  %v1411 = vmax.f32 %v721, %v901
  %v1412 = vmax.f32 %v726, %v906
  %v1413 = vmax.f32 %v731, %v911
  %v1414 = vmax.f32 %v736, %v916
  %v1415 = vmax.f32 %v741, %v921
  %v1416 = vmax.f32 %v746, %v926
  %v1417 = vmax.f32 %v751, %v931
  %v1418 = vmax.f32 %v756, %v936
  %v1419 = vmax.f32 %v761, %v941
  %v1420 = vmax.f32 %v766, %v946
  %v1421 = vmax.f32 %v771, %v951
  %v1422 = vmax.f32 %v776, %v956
  %v1423 = vmax.f32 %v781, %v961
  %v1424 = vmax.f32 %v786, %v966
  %v1425 = vmax.f32 %v791, %v971
  %v1426 = vmax.f32 %v796, %v976
  %v1427 = vmax.f32 %v801, %v981
  %v1428 = vmax.f32 %v806, %v986
  %v1429 = vmax.f32 %v811, %v991
  %v1430 = vmax.f32 %v816, %v996
  %v1431 = vmax.f32 %v821, %v1001
  %v1432 = vmax.f32 %v826, %v1006
  %v1433 = vmax.f32 %v831, %v1011
  %v1434 = vmax.f32 %v836, %v1016
  %v1435 = vmax.f32 %v841, %v1021
  %v1436 = vmax.f32 %v846, %v1026
  %v1437 = vmax.f32 %v851, %v1031
  %v1438 = vmax.f32 %v856, %v1036
  %v1439 = vmax.f32 %v861, %v1041
  %v1440 = vmax.f32 %v1046, %v1226
  %v1441 = vmax.f32 %v1051, %v1231
  %v1442 = vmax.f32 %v1056, %v1236
  %v1443 = vmax.f32 %v1061, %v1241
  %v1444 = vmax.f32 %v1066, %v1246
  %v1445 = vmax.f32 %v1071, %v1251
  %v1446 = vmax.f32 %v1076, %v1256
  %v1447 = vmax.f32 %v1081, %v1261
  %v1448 = vmax.f32 %v1086, %v1266
  %v1449 = vmax.f32 %v1091, %v1271
  %v1450 = vmax.f32 %v1096, %v1276
  %v1451 = vmax.f32 %v1101, %v1281
  %v1452 = vmax.f32 %v1106, %v1286
  %v1453 = vmax.f32 %v1111, %v1291
  %v1454 = vmax.f32 %v1116, %v1296
  %v1455 = vmax.f32 %v1121, %v1301
  %v1456 = vmax.f32 %v1126, %v1306
  %v1457 = vmax.f32 %v1131, %v1311
  %v1458 = vmax.f32 %v1136, %v1316
  %v1459 = vmax.f32 %v1141, %v1321
  %v1460 = vmax.f32 %v1146, %v1326
  %v1461 = vmax.f32 %v1151, %v1331
  %v1462 = vmax.f32 %v1156, %v1336
  %v1463 = vmax.f32 %v1161, %v1341
  %v1464 = vmax.f32 %v1166, %v1346
  %v1465 = vmax.f32 %v1171, %v1351
  %v1466 = vmax.f32 %v1176, %v1356
  %v1467 = vmax.f32 %v1181, %v1361
  %v1468 = vmax.f32 %v1186, %v1366
  %v1469 = vmax.f32 %v1191, %v1371
  %v1470 = vmax.f32 %v1196, %v1376
  %v1471 = vmax.f32 %v1201, %v1381
  %v1472 = vmax.f32 %v1206, %v1386
  %v1473 = vmax.f32 %v1211, %v1391
  %v1474 = vmax.f32 %v1216, %v1396
  %v1475 = vmax.f32 %v1221, %v1401
  %v1476 = vmax.f32 %v1404, %v1440
  %v1477 = vmax.f32 %v1405, %v1441
  %v1478 = vmax.f32 %v1406, %v1442
  %v1479 = vmax.f32 %v1407, %v1443
  %v1480 = vmax.f32 %v1408, %v1444
  %v1481 = vmax.f32 %v1409, %v1445
  %v1482 = vmax.f32 %v1410, %v1446
  %v1483 = vmax.f32 %v1411, %v1447
  %v1484 = vmax.f32 %v1412, %v1448
  %v1485 = vmax.f32 %v1413, %v1449
  %v1486 = vmax.f32 %v1414, %v1450
  %v1487 = vmax.f32 %v1415, %v1451
  %v1488 = vmax.f32 %v1416, %v1452
  %v1489 = vmax.f32 %v1417, %v1453
  %v1490 = vmax.f32 %v1418, %v1454
  %v1491 = vmax.f32 %v1419, %v1455
  %v1492 = vmax.f32 %v1420, %v1456
  %v1493 = vmax.f32 %v1421, %v1457
  %v1494 = vmax.f32 %v1422, %v1458
  %v1495 = vmax.f32 %v1423, %v1459
  %v1496 = vmax.f32 %v1424, %v1460
  %v1497 = vmax.f32 %v1425, %v1461
  %v1498 = vmax.f32 %v1426, %v1462
  %v1499 = vmax.f32 %v1427, %v1463
  %v1500 = vmax.f32 %v1428, %v1464
  %v1501 = vmax.f32 %v1429, %v1465
  %v1502 = vmax.f32 %v1430, %v1466
  %v1503 = vmax.f32 %v1431, %v1467
  %v1504 = vmax.f32 %v1432, %v1468
  %v1505 = vmax.f32 %v1433, %v1469
  %v1506 = vmax.f32 %v1434, %v1470
  %v1507 = vmax.f32 %v1435, %v1471
  %v1508 = vmax.f32 %v1436, %v1472
  %v1509 = vmax.f32 %v1437, %v1473
  %v1510 = vmax.f32 %v1438, %v1474
  %v1511 = vmax.f32 %v1439, %v1475
  %v1512 = vld [vmem:[%s2] sm:$0x1]
  %v1514 = vlaneseq
  %v1515 = vshrl.u32 %v1514, 7
  %v1516 = vsub.s32 0, %v1515
  %v1517 = vrot.slane %v1512, %v1516
  %v1519 = vadd.f32 %v1476, %v1517
  %v1520 = vadd.f32 %v1477, %v1517
  %v1521 = vadd.f32 %v1478, %v1517
  %v1522 = vadd.f32 %v1479, %v1517
  %v1523 = vadd.f32 %v1480, %v1517
  %v1524 = vadd.f32 %v1481, %v1517
  %v1525 = vadd.f32 %v1482, %v1517
  %v1526 = vadd.f32 %v1483, %v1517
  %v1527 = vadd.f32 %v1484, %v1517
  %v1528 = vadd.f32 %v1485, %v1517
  %v1529 = vadd.f32 %v1486, %v1517
  %v1530 = vadd.f32 %v1487, %v1517
  %v1531 = vadd.f32 %v1488, %v1517
  %v1532 = vadd.f32 %v1489, %v1517
  %v1533 = vadd.f32 %v1490, %v1517
  %v1534 = vadd.f32 %v1491, %v1517
  %v1535 = vadd.f32 %v1492, %v1517
  %v1536 = vadd.f32 %v1493, %v1517
  %v1537 = vadd.f32 %v1494, %v1517
  %v1538 = vadd.f32 %v1495, %v1517
  %v1539 = vadd.f32 %v1496, %v1517
  %v1540 = vadd.f32 %v1497, %v1517
  %v1541 = vadd.f32 %v1498, %v1517
  %v1542 = vadd.f32 %v1499, %v1517
  %v1543 = vadd.f32 %v1500, %v1517
  %v1544 = vadd.f32 %v1501, %v1517
  %v1545 = vadd.f32 %v1502, %v1517
  %v1546 = vadd.f32 %v1503, %v1517
  %v1547 = vadd.f32 %v1504, %v1517
  %v1548 = vadd.f32 %v1505, %v1517
  %v1549 = vadd.f32 %v1506, %v1517
  %v1550 = vadd.f32 %v1507, %v1517
  %v1551 = vadd.f32 %v1508, %v1517
  %v1552 = vadd.f32 %v1509, %v1517
  %v1553 = vadd.f32 %v1510, %v1517
  %v1554 = vadd.f32 %v1511, %v1517
  %v1555 = vmax.f32 %v1519, 0.0
  %v1556 = vmax.f32 %v1520, 0.0
  %v1557 = vmax.f32 %v1521, 0.0
  %v1558 = vmax.f32 %v1522, 0.0
  %v1559 = vmax.f32 %v1523, 0.0
  %v1560 = vmax.f32 %v1524, 0.0
  %v1561 = vmax.f32 %v1525, 0.0
  %v1562 = vmax.f32 %v1526, 0.0
  %v1563 = vmax.f32 %v1527, 0.0
  %v1564 = vmax.f32 %v1528, 0.0
  %v1565 = vmax.f32 %v1529, 0.0
  %v1566 = vmax.f32 %v1530, 0.0
  %v1567 = vmax.f32 %v1531, 0.0
  %v1568 = vmax.f32 %v1532, 0.0
  %v1569 = vmax.f32 %v1533, 0.0
  %v1570 = vmax.f32 %v1534, 0.0
  %v1571 = vmax.f32 %v1535, 0.0
  %v1572 = vmax.f32 %v1536, 0.0
  %v1573 = vmax.f32 %v1537, 0.0
  %v1574 = vmax.f32 %v1538, 0.0
  %v1575 = vmax.f32 %v1539, 0.0
  %v1576 = vmax.f32 %v1540, 0.0
  %v1577 = vmax.f32 %v1541, 0.0
  %v1578 = vmax.f32 %v1542, 0.0
  %v1579 = vmax.f32 %v1543, 0.0
  %v1580 = vmax.f32 %v1544, 0.0
  %v1581 = vmax.f32 %v1545, 0.0
  %v1582 = vmax.f32 %v1546, 0.0
  %v1583 = vmax.f32 %v1547, 0.0
  %v1584 = vmax.f32 %v1548, 0.0
  %v1585 = vmax.f32 %v1549, 0.0
  %v1586 = vmax.f32 %v1550, 0.0
  %v1587 = vmax.f32 %v1551, 0.0
  %v1588 = vmax.f32 %v1552, 0.0
  %v1589 = vmax.f32 %v1553, 0.0
  %v1590 = vmax.f32 %v1554, 0.0
  %1591 = vst [vmem:[#allocation2] sm:$0xff] %v1555
  %1592 = vst [vmem:[#allocation2 + $0x8] sm:$0xff] %v1556
  %1593 = vst [vmem:[#allocation2 + $0x10] sm:$0xff] %v1557
  %1594 = vst [vmem:[#allocation2 + $0x18] sm:$0xff] %v1558
  %1595 = vst [vmem:[#allocation2 + $0x20] sm:$0xff] %v1559
  %1596 = vst [vmem:[#allocation2 + $0x28] sm:$0xff] %v1560
  %1597 = vst [vmem:[#allocation2 + $0x30] sm:$0xff] %v1561
  %1598 = vst [vmem:[#allocation2 + $0x38] sm:$0xff] %v1562
  %1599 = vst [vmem:[#allocation2 + $0x40] sm:$0xff] %v1563
  %1600 = vst [vmem:[#allocation2 + $0x48] sm:$0xff] %v1564
  %1601 = vst [vmem:[#allocation2 + $0x50] sm:$0xff] %v1565
  %1602 = vst [vmem:[#allocation2 + $0x58] sm:$0xff] %v1566
  %1603 = vst [vmem:[#allocation2 + $0x60] sm:$0xff] %v1567
  %1604 = vst [vmem:[#allocation2 + $0x68] sm:$0xff] %v1568
  %1605 = vst [vmem:[#allocation2 + $0x70] sm:$0xff] %v1569
  %1606 = vst [vmem:[#allocation2 + $0x78] sm:$0xff] %v1570
  %1607 = vst [vmem:[#allocation2 + $0x80] sm:$0xff] %v1571
  %1608 = vst [vmem:[#allocation2 + $0x88] sm:$0xff] %v1572
  %1609 = vst [vmem:[#allocation2 + $0x90] sm:$0xff] %v1573
  %1610 = vst [vmem:[#allocation2 + $0x98] sm:$0xff] %v1574
  %1611 = vst [vmem:[#allocation2 + $0xa0] sm:$0xff] %v1575
  %1612 = vst [vmem:[#allocation2 + $0xa8] sm:$0xff] %v1576
  %1613 = vst [vmem:[#allocation2 + $0xb0] sm:$0xff] %v1577
  %1614 = vst [vmem:[#allocation2 + $0xb8] sm:$0xff] %v1578
  %1615 = vst [vmem:[#allocation2 + $0xc0] sm:$0xff] %v1579
  %1616 = vst [vmem:[#allocation2 + $0xc8] sm:$0xff] %v1580
  %1617 = vst [vmem:[#allocation2 + $0xd0] sm:$0xff] %v1581
  %1618 = vst [vmem:[#allocation2 + $0xd8] sm:$0xff] %v1582
  %1619 = vst [vmem:[#allocation2 + $0xe0] sm:$0xff] %v1583
  %1620 = vst [vmem:[#allocation2 + $0xe8] sm:$0xff] %v1584
  %1621 = vst [vmem:[#allocation2 + $0xf0] sm:$0xff] %v1585
  %1622 = vst [vmem:[#allocation2 + $0xf8] sm:$0xff] %v1586
  %1623 = vst [vmem:[#allocation2 + $0x100] sm:$0xff] %v1587
  %1624 = vst [vmem:[#allocation2 + $0x108] sm:$0xff] %v1588
  %1625 = vst [vmem:[#allocation2 + $0x110] sm:$0xff] %v1589
  %1626 = vst [vmem:[#allocation2 + $0x118] sm:$0xff] %v1590
  %1627 = vst [vmem:[#allocation2 + $0x120] sm:$0xff] 0.0
  %1628 = vst [vmem:[#allocation2 + $0x128] sm:$0xff] 0.0
  %1629 = vst [vmem:[#allocation2 + $0x130] sm:$0xff] 0.0
  %1630 = vst [vmem:[#allocation2 + $0x138] sm:$0xff] 0.0
  %1631 = vst [vmem:[#allocation2 + $0x140] sm:$0xff] 0.0
  %1632 = vst [vmem:[#allocation2 + $0x148] sm:$0xff] 0.0
  %1633 = vst [vmem:[#allocation2 + $0x150] sm:$0xff] 0.0
  %1634 = vst [vmem:[#allocation2 + $0x158] sm:$0xff] 0.0
  %1635 = vst [vmem:[#allocation3] sm:$0xff] 0.0
  %1636 = vst [vmem:[#allocation3 + $0x8] sm:$0xff] 0.0
  %1637 = vst [vmem:[#allocation3 + $0x10] sm:$0xff] 0.0
  %1638 = vst [vmem:[#allocation3 + $0x18] sm:$0xff] 0.0
  %1639 = vst [vmem:[#allocation3 + $0x20] sm:$0xff] 0.0
  %1640 = vst [vmem:[#allocation3 + $0x28] sm:$0xff] 0.0
  %1641 = vst [vmem:[#allocation3 + $0x30] sm:$0xff] 0.0
  %1642 = vst [vmem:[#allocation3 + $0x38] sm:$0xff] 0.0
  %1643 = vst [vmem:[#allocation3 + $0x40] sm:$0xff] 0.0
  %1644 = vst [vmem:[#allocation3 + $0x48] sm:$0xff] 0.0
  %1645 = vst [vmem:[#allocation3 + $0x50] sm:$0xff] 0.0
  %1646 = vst [vmem:[#allocation3 + $0x58] sm:$0xff] 0.0
  %1647 = vst [vmem:[#allocation3 + $0x60] sm:$0xff] 0.0
  %1648 = vst [vmem:[#allocation3 + $0x68] sm:$0xff] 0.0
  %1649 = vst [vmem:[#allocation3 + $0x70] sm:$0xff] 0.0
  %1650 = vst [vmem:[#allocation3 + $0x78] sm:$0xff] 0.0
  %1651 = vst [vmem:[#allocation3 + $0x80] sm:$0xff] 0.0
  %1652 = vst [vmem:[#allocation3 + $0x88] sm:$0xff] 0.0
  %1653 = vst [vmem:[#allocation3 + $0x90] sm:$0xff] 0.0
  %1654 = vst [vmem:[#allocation3 + $0x98] sm:$0xff] 0.0
  %1655 = vst [vmem:[#allocation3 + $0xa0] sm:$0xff] 0.0
  %1656 = vst [vmem:[#allocation3 + $0xa8] sm:$0xff] 0.0
  %1657 = vst [vmem:[#allocation3 + $0xb0] sm:$0xff] 0.0
  %1658 = vst [vmem:[#allocation3 + $0xb8] sm:$0xff] 0.0
  %1659 = vst [vmem:[#allocation3 + $0xc0] sm:$0xff] 0.0
  %1660 = vst [vmem:[#allocation3 + $0xc8] sm:$0xff] 0.0
  %1661 = vst [vmem:[#allocation3 + $0xd0] sm:$0xff] 0.0
  %1662 = vst [vmem:[#allocation3 + $0xd8] sm:$0xff] 0.0
  %1663 = vst [vmem:[#allocation3 + $0xe0] sm:$0xff] 0.0
  %1664 = vst [vmem:[#allocation3 + $0xe8] sm:$0xff] 0.0
  %1665 = vst [vmem:[#allocation3 + $0xf0] sm:$0xff] 0.0
  %1666 = vst [vmem:[#allocation3 + $0xf8] sm:$0xff] 0.0
  %1667 = vst [vmem:[#allocation3 + $0x100] sm:$0xff] 0.0
  %1668 = vst [vmem:[#allocation3 + $0x108] sm:$0xff] 0.0
  %1669 = vst [vmem:[#allocation3 + $0x110] sm:$0xff] 0.0
  %1670 = vst [vmem:[#allocation3 + $0x118] sm:$0xff] 0.0
  %1671 = vst [vmem:[#allocation3 + $0x120] sm:$0xff] 0.0
  %1672 = vst [vmem:[#allocation3 + $0x128] sm:$0xff] 0.0
  %1673 = vst [vmem:[#allocation3 + $0x130] sm:$0xff] 0.0
  %1674 = vst [vmem:[#allocation3 + $0x138] sm:$0xff] 0.0
  %1675 = vst [vmem:[#allocation3 + $0x140] sm:$0xff] 0.0
  %1676 = vst [vmem:[#allocation3 + $0x148] sm:$0xff] 0.0
  %1677 = vst [vmem:[#allocation3 + $0x150] sm:$0xff] 0.0
  %1678 = vst [vmem:[#allocation3 + $0x158] sm:$0xff] 0.0
  %1679 = vst [vmem:[#allocation3 + $0x160] sm:$0xff] 0.0
  %1680 = vst [vmem:[#allocation3 + $0x168] sm:$0xff] 0.0
  %1681 = vst [vmem:[#allocation3 + $0x170] sm:$0xff] 0.0
  %1682 = vst [vmem:[#allocation3 + $0x178] sm:$0xff] 0.0
  %1683 = vst [vmem:[#allocation3 + $0x180] sm:$0xff] 0.0
  %1684 = vst [vmem:[#allocation3 + $0x188] sm:$0xff] 0.0
  %1685 = vst [vmem:[#allocation3 + $0x190] sm:$0xff] 0.0
  %1686 = vst [vmem:[#allocation3 + $0x198] sm:$0xff] 0.0
  %1687 = vst [vmem:[#allocation3 + $0x1a0] sm:$0xff] 0.0
  %1688 = vst [vmem:[#allocation3 + $0x1a8] sm:$0xff] 0.0
  %1689 = vst [vmem:[#allocation3 + $0x1b0] sm:$0xff] 0.0
  %1690 = vst [vmem:[#allocation3 + $0x1b8] sm:$0xff] 0.0
  %1691 = vst [vmem:[#allocation3 + $0x1c0] sm:$0xff] 0.0
  %1692 = vst [vmem:[#allocation3 + $0x1c8] sm:$0xff] 0.0
  %1693 = vst [vmem:[#allocation3 + $0x1d0] sm:$0xff] 0.0
  %1694 = vst [vmem:[#allocation3 + $0x1d8] sm:$0xff] 0.0
  %1695 = vst [vmem:[#allocation3 + $0x1e0] sm:$0xff] 0.0
  %1696 = vst [vmem:[#allocation3 + $0x1e8] sm:$0xff] 0.0
  %1697 = vst [vmem:[#allocation3 + $0x1f0] sm:$0xff] 0.0
  %1698 = vst [vmem:[#allocation3 + $0x1f8] sm:$0xff] 0.0
  %1699 = vst [vmem:[#allocation3 + $0x200] sm:$0xff] 0.0
  %1700 = vst [vmem:[#allocation3 + $0x208] sm:$0xff] 0.0
  %1701 = vst [vmem:[#allocation3 + $0x210] sm:$0xff] 0.0
  %1702 = vst [vmem:[#allocation3 + $0x218] sm:$0xff] 0.0
  %1703 = vst [vmem:[#allocation3 + $0x220] sm:$0xff] 0.0
  %1704 = vst [vmem:[#allocation3 + $0x228] sm:$0xff] 0.0
  %1705 = vst [vmem:[#allocation3 + $0x230] sm:$0xff] 0.0
  %1706 = vst [vmem:[#allocation3 + $0x238] sm:$0xff] 0.0
  %v1707 = vld [vmem:[#allocation2] sm:$0xff]
  %v1708 = vld [vmem:[#allocation2 + $0x8] sm:$0xff]
  %v1709 = vld [vmem:[#allocation2 + $0x10] sm:$0xff]
  %v1710 = vld [vmem:[#allocation2 + $0x18] sm:$0xff]
  %v1711 = vld [vmem:[#allocation2 + $0x20] sm:$0xff]
  %v1712 = vld [vmem:[#allocation2 + $0x28] sm:$0xff]
  %v1713 = vld [vmem:[#allocation2 + $0x30] sm:$0xff]
  %v1714 = vld [vmem:[#allocation2 + $0x38] sm:$0xff]
  %v1715 = vld [vmem:[#allocation2 + $0x40] sm:$0xff]
  %v1716 = vld [vmem:[#allocation2 + $0x48] sm:$0xff]
  %v1717 = vld [vmem:[#allocation2 + $0x50] sm:$0xff]
  %v1718 = vld [vmem:[#allocation2 + $0x58] sm:$0xff]
  %v1719 = vld [vmem:[#allocation2 + $0x60] sm:$0xff]
  %v1720 = vld [vmem:[#allocation2 + $0x68] sm:$0xff]
  %v1721 = vld [vmem:[#allocation2 + $0x70] sm:$0xff]
  %v1722 = vld [vmem:[#allocation2 + $0x78] sm:$0xff]
  %v1723 = vld [vmem:[#allocation2 + $0x80] sm:$0xff]
  %v1724 = vld [vmem:[#allocation2 + $0x88] sm:$0xff]
  %v1725 = vld [vmem:[#allocation2 + $0x90] sm:$0xff]
  %v1726 = vld [vmem:[#allocation2 + $0x98] sm:$0xff]
  %v1727 = vld [vmem:[#allocation2 + $0xa0] sm:$0xff]
  %v1728 = vld [vmem:[#allocation2 + $0xa8] sm:$0xff]
  %v1729 = vld [vmem:[#allocation2 + $0xb0] sm:$0xff]
  %v1730 = vld [vmem:[#allocation2 + $0xb8] sm:$0xff]
  %v1731 = vld [vmem:[#allocation2 + $0xc0] sm:$0xff]
  %v1732 = vld [vmem:[#allocation2 + $0xc8] sm:$0xff]
  %v1733 = vld [vmem:[#allocation2 + $0xd0] sm:$0xff]
  %v1734 = vld [vmem:[#allocation2 + $0xd8] sm:$0xff]
  %v1735 = vld [vmem:[#allocation2 + $0xe0] sm:$0xff]
  %v1736 = vld [vmem:[#allocation2 + $0xe8] sm:$0xff]
  %v1737 = vld [vmem:[#allocation2 + $0xf0] sm:$0xff]
  %v1738 = vld [vmem:[#allocation2 + $0xf8] sm:$0xff]
  %v1739 = vld [vmem:[#allocation2 + $0x100] sm:$0xff]
  %v1740 = vld [vmem:[#allocation2 + $0x108] sm:$0xff]
  %v1741 = vld [vmem:[#allocation2 + $0x110] sm:$0xff]
  %v1742 = vld [vmem:[#allocation2 + $0x118] sm:$0xff]
  %vm1743 = vcmask 64512
  %1744 = vst.msk [vmem:[#allocation3] sm:$0xff] %vm1743, %v1707
  %1745 = vst.msk [vmem:[#allocation3 + $0x10] sm:$0xff] %vm1743, %v1708
  %1746 = vst.msk [vmem:[#allocation3 + $0x20] sm:$0xff] %vm1743, %v1709
  %1747 = vst.msk [vmem:[#allocation3 + $0x30] sm:$0xff] %vm1743, %v1710
  %1748 = vst.msk [vmem:[#allocation3 + $0x40] sm:$0xff] %vm1743, %v1711
  %1749 = vst.msk [vmem:[#allocation3 + $0x50] sm:$0xff] %vm1743, %v1712
  %1750 = vst.msk [vmem:[#allocation3 + $0x60] sm:$0xff] %vm1743, %v1713
  %1751 = vst.msk [vmem:[#allocation3 + $0x70] sm:$0xff] %vm1743, %v1714
  %1752 = vst.msk [vmem:[#allocation3 + $0x80] sm:$0xff] %vm1743, %v1715
  %1753 = vst.msk [vmem:[#allocation3 + $0x90] sm:$0xff] %vm1743, %v1716
  %1754 = vst.msk [vmem:[#allocation3 + $0xa0] sm:$0xff] %vm1743, %v1717
  %1755 = vst.msk [vmem:[#allocation3 + $0xb0] sm:$0xff] %vm1743, %v1718
  %1756 = vst.msk [vmem:[#allocation3 + $0xc0] sm:$0xff] %vm1743, %v1719
  %1757 = vst.msk [vmem:[#allocation3 + $0xd0] sm:$0xff] %vm1743, %v1720
  %1758 = vst.msk [vmem:[#allocation3 + $0xe0] sm:$0xff] %vm1743, %v1721
  %1759 = vst.msk [vmem:[#allocation3 + $0xf0] sm:$0xff] %vm1743, %v1722
  %1760 = vst.msk [vmem:[#allocation3 + $0x100] sm:$0xff] %vm1743, %v1723
  %1761 = vst.msk [vmem:[#allocation3 + $0x110] sm:$0xff] %vm1743, %v1724
  %1762 = vst.msk [vmem:[#allocation3 + $0x120] sm:$0xff] %vm1743, %v1725
  %1763 = vst.msk [vmem:[#allocation3 + $0x130] sm:$0xff] %vm1743, %v1726
  %1764 = vst.msk [vmem:[#allocation3 + $0x140] sm:$0xff] %vm1743, %v1727
  %1765 = vst.msk [vmem:[#allocation3 + $0x150] sm:$0xff] %vm1743, %v1728
  %1766 = vst.msk [vmem:[#allocation3 + $0x160] sm:$0xff] %vm1743, %v1729
  %1767 = vst.msk [vmem:[#allocation3 + $0x170] sm:$0xff] %vm1743, %v1730
  %1768 = vst.msk [vmem:[#allocation3 + $0x180] sm:$0xff] %vm1743, %v1731
  %1769 = vst.msk [vmem:[#allocation3 + $0x190] sm:$0xff] %vm1743, %v1732
  %1770 = vst.msk [vmem:[#allocation3 + $0x1a0] sm:$0xff] %vm1743, %v1733
  %1771 = vst.msk [vmem:[#allocation3 + $0x1b0] sm:$0xff] %vm1743, %v1734
  %1772 = vst.msk [vmem:[#allocation3 + $0x1c0] sm:$0xff] %vm1743, %v1735
  %1773 = vst.msk [vmem:[#allocation3 + $0x1d0] sm:$0xff] %vm1743, %v1736
  %1774 = vst.msk [vmem:[#allocation3 + $0x1e0] sm:$0xff] %vm1743, %v1737
  %1775 = vst.msk [vmem:[#allocation3 + $0x1f0] sm:$0xff] %vm1743, %v1738
  %1776 = vst.msk [vmem:[#allocation3 + $0x200] sm:$0xff] %vm1743, %v1739
  %1777 = vst.msk [vmem:[#allocation3 + $0x210] sm:$0xff] %vm1743, %v1740
  %1778 = vst.msk [vmem:[#allocation3 + $0x220] sm:$0xff] %vm1743, %v1741
  %1779 = vst.msk [vmem:[#allocation3 + $0x230] sm:$0xff] %vm1743, %v1742
  %v1780 = vld [vmem:[#allocation2 + $0x1] sm:$0xff]
  %v1781 = vld [vmem:[#allocation2 + $0x9] sm:$0xff]
  %v1782 = vld [vmem:[#allocation2 + $0x11] sm:$0xff]
  %v1783 = vld [vmem:[#allocation2 + $0x19] sm:$0xff]
  %v1784 = vld [vmem:[#allocation2 + $0x21] sm:$0xff]
  %v1785 = vld [vmem:[#allocation2 + $0x29] sm:$0xff]
  %v1786 = vld [vmem:[#allocation2 + $0x31] sm:$0xff]
  %v1787 = vld [vmem:[#allocation2 + $0x39] sm:$0xff]
  %v1788 = vld [vmem:[#allocation2 + $0x41] sm:$0xff]
  %v1789 = vld [vmem:[#allocation2 + $0x49] sm:$0xff]
  %v1790 = vld [vmem:[#allocation2 + $0x51] sm:$0xff]
  %v1791 = vld [vmem:[#allocation2 + $0x59] sm:$0xff]
  %v1792 = vld [vmem:[#allocation2 + $0x61] sm:$0xff]
  %v1793 = vld [vmem:[#allocation2 + $0x69] sm:$0xff]
  %v1794 = vld [vmem:[#allocation2 + $0x71] sm:$0xff]
  %v1795 = vld [vmem:[#allocation2 + $0x79] sm:$0xff]
  %v1796 = vld [vmem:[#allocation2 + $0x81] sm:$0xff]
  %v1797 = vld [vmem:[#allocation2 + $0x89] sm:$0xff]
  %v1798 = vld [vmem:[#allocation2 + $0x91] sm:$0xff]
  %v1799 = vld [vmem:[#allocation2 + $0x99] sm:$0xff]
  %v1800 = vld [vmem:[#allocation2 + $0xa1] sm:$0xff]
  %v1801 = vld [vmem:[#allocation2 + $0xa9] sm:$0xff]
  %v1802 = vld [vmem:[#allocation2 + $0xb1] sm:$0xff]
  %v1803 = vld [vmem:[#allocation2 + $0xb9] sm:$0xff]
  %v1804 = vld [vmem:[#allocation2 + $0xc1] sm:$0xff]
  %v1805 = vld [vmem:[#allocation2 + $0xc9] sm:$0xff]
  %v1806 = vld [vmem:[#allocation2 + $0xd1] sm:$0xff]
  %v1807 = vld [vmem:[#allocation2 + $0xd9] sm:$0xff]
  %v1808 = vld [vmem:[#allocation2 + $0xe1] sm:$0xff]
  %v1809 = vld [vmem:[#allocation2 + $0xe9] sm:$0xff]
  %v1810 = vld [vmem:[#allocation2 + $0xf1] sm:$0xff]
  %v1811 = vld [vmem:[#allocation2 + $0xf9] sm:$0xff]
  %v1812 = vld [vmem:[#allocation2 + $0x101] sm:$0xff]
  %v1813 = vld [vmem:[#allocation2 + $0x109] sm:$0xff]
  %v1814 = vld [vmem:[#allocation2 + $0x111] sm:$0xff]
  %v1815 = vld [vmem:[#allocation2 + $0x119] sm:$0xff]
  %1852 = vrot.lane.b32.xlu0 %v1780, 8
  %v1853 = vpop.permute.xlu0 %1852
  %1854 = vrot.lane.b32.xlu0 %v1781, 8
  %v1855 = vpop.permute.xlu0 %1854
  %1856 = vrot.lane.b32.xlu0 %v1782, 8
  %v1857 = vpop.permute.xlu0 %1856
  %1858 = vrot.lane.b32.xlu0 %v1783, 8
  %v1859 = vpop.permute.xlu0 %1858
  %1860 = vrot.lane.b32.xlu0 %v1784, 8
  %v1861 = vpop.permute.xlu0 %1860
  %1862 = vrot.lane.b32.xlu0 %v1785, 8
  %v1863 = vpop.permute.xlu0 %1862
  %1864 = vrot.lane.b32.xlu0 %v1786, 8
  %v1865 = vpop.permute.xlu0 %1864
  %1866 = vrot.lane.b32.xlu0 %v1787, 8
  %v1867 = vpop.permute.xlu0 %1866
  %1868 = vrot.lane.b32.xlu0 %v1788, 8
  %v1869 = vpop.permute.xlu0 %1868
  %1870 = vrot.lane.b32.xlu0 %v1789, 8
  %v1871 = vpop.permute.xlu0 %1870
  %1872 = vrot.lane.b32.xlu0 %v1790, 8
  %v1873 = vpop.permute.xlu0 %1872
  %1874 = vrot.lane.b32.xlu0 %v1791, 8
  %v1875 = vpop.permute.xlu0 %1874
  %1876 = vrot.lane.b32.xlu0 %v1792, 8
  %v1877 = vpop.permute.xlu0 %1876
  %1878 = vrot.lane.b32.xlu0 %v1793, 8
  %v1879 = vpop.permute.xlu0 %1878
  %1880 = vrot.lane.b32.xlu0 %v1794, 8
  %v1881 = vpop.permute.xlu0 %1880
  %1882 = vrot.lane.b32.xlu0 %v1795, 8
  %v1883 = vpop.permute.xlu0 %1882
  %1884 = vrot.lane.b32.xlu0 %v1796, 8
  %v1885 = vpop.permute.xlu0 %1884
  %1886 = vrot.lane.b32.xlu0 %v1797, 8
  %v1887 = vpop.permute.xlu0 %1886
  %1888 = vrot.lane.b32.xlu0 %v1798, 8
  %v1889 = vpop.permute.xlu0 %1888
  %1890 = vrot.lane.b32.xlu0 %v1799, 8
  %v1891 = vpop.permute.xlu0 %1890
  %1892 = vrot.lane.b32.xlu0 %v1800, 8
  %v1893 = vpop.permute.xlu0 %1892
  %1894 = vrot.lane.b32.xlu0 %v1801, 8
  %v1895 = vpop.permute.xlu0 %1894
  %1896 = vrot.lane.b32.xlu0 %v1802, 8
  %v1897 = vpop.permute.xlu0 %1896
  %1898 = vrot.lane.b32.xlu0 %v1803, 8
  %v1899 = vpop.permute.xlu0 %1898
  %1900 = vrot.lane.b32.xlu0 %v1804, 8
  %v1901 = vpop.permute.xlu0 %1900
  %1902 = vrot.lane.b32.xlu0 %v1805, 8
  %v1903 = vpop.permute.xlu0 %1902
  %1904 = vrot.lane.b32.xlu0 %v1806, 8
  %v1905 = vpop.permute.xlu0 %1904
  %1906 = vrot.lane.b32.xlu0 %v1807, 8
  %v1907 = vpop.permute.xlu0 %1906
  %1908 = vrot.lane.b32.xlu0 %v1808, 8
  %v1909 = vpop.permute.xlu0 %1908
  %1910 = vrot.lane.b32.xlu0 %v1809, 8
  %v1911 = vpop.permute.xlu0 %1910
  %1912 = vrot.lane.b32.xlu0 %v1810, 8
  %v1913 = vpop.permute.xlu0 %1912
  %1914 = vrot.lane.b32.xlu0 %v1811, 8
  %v1915 = vpop.permute.xlu0 %1914
  %1916 = vrot.lane.b32.xlu0 %v1812, 8
  %v1917 = vpop.permute.xlu0 %1916
  %1918 = vrot.lane.b32.xlu0 %v1813, 8
  %v1919 = vpop.permute.xlu0 %1918
  %1920 = vrot.lane.b32.xlu0 %v1814, 8
  %v1921 = vpop.permute.xlu0 %1920
  %1922 = vrot.lane.b32.xlu0 %v1815, 8
  %v1923 = vpop.permute.xlu0 %1922
  %vm1960 = vcmask 130112
  %1961 = vst.msk [vmem:[#allocation3] sm:$0xff] %vm1960, %v1853
  %1962 = vst.msk [vmem:[#allocation3 + $0x10] sm:$0xff] %vm1960, %v1855
  %1963 = vst.msk [vmem:[#allocation3 + $0x20] sm:$0xff] %vm1960, %v1857
  %1964 = vst.msk [vmem:[#allocation3 + $0x30] sm:$0xff] %vm1960, %v1859
  %1965 = vst.msk [vmem:[#allocation3 + $0x40] sm:$0xff] %vm1960, %v1861
  %1966 = vst.msk [vmem:[#allocation3 + $0x50] sm:$0xff] %vm1960, %v1863
  %1967 = vst.msk [vmem:[#allocation3 + $0x60] sm:$0xff] %vm1960, %v1865
  %1968 = vst.msk [vmem:[#allocation3 + $0x70] sm:$0xff] %vm1960, %v1867
  %1969 = vst.msk [vmem:[#allocation3 + $0x80] sm:$0xff] %vm1960, %v1869
  %1970 = vst.msk [vmem:[#allocation3 + $0x90] sm:$0xff] %vm1960, %v1871
  %1971 = vst.msk [vmem:[#allocation3 + $0xa0] sm:$0xff] %vm1960, %v1873
  %1972 = vst.msk [vmem:[#allocation3 + $0xb0] sm:$0xff] %vm1960, %v1875
  %1973 = vst.msk [vmem:[#allocation3 + $0xc0] sm:$0xff] %vm1960, %v1877
  %1974 = vst.msk [vmem:[#allocation3 + $0xd0] sm:$0xff] %vm1960, %v1879
  %1975 = vst.msk [vmem:[#allocation3 + $0xe0] sm:$0xff] %vm1960, %v1881
  %1976 = vst.msk [vmem:[#allocation3 + $0xf0] sm:$0xff] %vm1960, %v1883
  %1977 = vst.msk [vmem:[#allocation3 + $0x100] sm:$0xff] %vm1960, %v1885
  %1978 = vst.msk [vmem:[#allocation3 + $0x110] sm:$0xff] %vm1960, %v1887
  %1979 = vst.msk [vmem:[#allocation3 + $0x120] sm:$0xff] %vm1960, %v1889
  %1980 = vst.msk [vmem:[#allocation3 + $0x130] sm:$0xff] %vm1960, %v1891
  %1981 = vst.msk [vmem:[#allocation3 + $0x140] sm:$0xff] %vm1960, %v1893
  %1982 = vst.msk [vmem:[#allocation3 + $0x150] sm:$0xff] %vm1960, %v1895
  %1983 = vst.msk [vmem:[#allocation3 + $0x160] sm:$0xff] %vm1960, %v1897
  %1984 = vst.msk [vmem:[#allocation3 + $0x170] sm:$0xff] %vm1960, %v1899
  %1985 = vst.msk [vmem:[#allocation3 + $0x180] sm:$0xff] %vm1960, %v1901
  %1986 = vst.msk [vmem:[#allocation3 + $0x190] sm:$0xff] %vm1960, %v1903
  %1987 = vst.msk [vmem:[#allocation3 + $0x1a0] sm:$0xff] %vm1960, %v1905
  %1988 = vst.msk [vmem:[#allocation3 + $0x1b0] sm:$0xff] %vm1960, %v1907
  %1989 = vst.msk [vmem:[#allocation3 + $0x1c0] sm:$0xff] %vm1960, %v1909
  %1990 = vst.msk [vmem:[#allocation3 + $0x1d0] sm:$0xff] %vm1960, %v1911
  %1991 = vst.msk [vmem:[#allocation3 + $0x1e0] sm:$0xff] %vm1960, %v1913
  %1992 = vst.msk [vmem:[#allocation3 + $0x1f0] sm:$0xff] %vm1960, %v1915
  %1993 = vst.msk [vmem:[#allocation3 + $0x200] sm:$0xff] %vm1960, %v1917
  %1994 = vst.msk [vmem:[#allocation3 + $0x210] sm:$0xff] %vm1960, %v1919
  %1995 = vst.msk [vmem:[#allocation3 + $0x220] sm:$0xff] %vm1960, %v1921
  %1996 = vst.msk [vmem:[#allocation3 + $0x230] sm:$0xff] %vm1960, %v1923
  %v1997 = vld [vmem:[#allocation2 + $0x2] sm:$0xff]
  %v1998 = vld [vmem:[#allocation2 + $0xa] sm:$0xff]
  %v1999 = vld [vmem:[#allocation2 + $0x12] sm:$0xff]
  %v2000 = vld [vmem:[#allocation2 + $0x1a] sm:$0xff]
  %v2001 = vld [vmem:[#allocation2 + $0x22] sm:$0xff]
  %v2002 = vld [vmem:[#allocation2 + $0x2a] sm:$0xff]
  %v2003 = vld [vmem:[#allocation2 + $0x32] sm:$0xff]
  %v2004 = vld [vmem:[#allocation2 + $0x3a] sm:$0xff]
  %v2005 = vld [vmem:[#allocation2 + $0x42] sm:$0xff]
  %v2006 = vld [vmem:[#allocation2 + $0x4a] sm:$0xff]
  %v2007 = vld [vmem:[#allocation2 + $0x52] sm:$0xff]
  %v2008 = vld [vmem:[#allocation2 + $0x5a] sm:$0xff]
  %v2009 = vld [vmem:[#allocation2 + $0x62] sm:$0xff]
  %v2010 = vld [vmem:[#allocation2 + $0x6a] sm:$0xff]
  %v2011 = vld [vmem:[#allocation2 + $0x72] sm:$0xff]
  %v2012 = vld [vmem:[#allocation2 + $0x7a] sm:$0xff]
  %v2013 = vld [vmem:[#allocation2 + $0x82] sm:$0xff]
  %v2014 = vld [vmem:[#allocation2 + $0x8a] sm:$0xff]
  %v2015 = vld [vmem:[#allocation2 + $0x92] sm:$0xff]
  %v2016 = vld [vmem:[#allocation2 + $0x9a] sm:$0xff]
  %v2017 = vld [vmem:[#allocation2 + $0xa2] sm:$0xff]
  %v2018 = vld [vmem:[#allocation2 + $0xaa] sm:$0xff]
  %v2019 = vld [vmem:[#allocation2 + $0xb2] sm:$0xff]
  %v2020 = vld [vmem:[#allocation2 + $0xba] sm:$0xff]
  %v2021 = vld [vmem:[#allocation2 + $0xc2] sm:$0xff]
  %v2022 = vld [vmem:[#allocation2 + $0xca] sm:$0xff]
  %v2023 = vld [vmem:[#allocation2 + $0xd2] sm:$0xff]
  %v2024 = vld [vmem:[#allocation2 + $0xda] sm:$0xff]
  %v2025 = vld [vmem:[#allocation2 + $0xe2] sm:$0xff]
  %v2026 = vld [vmem:[#allocation2 + $0xea] sm:$0xff]
  %v2027 = vld [vmem:[#allocation2 + $0xf2] sm:$0xff]
  %v2028 = vld [vmem:[#allocation2 + $0xfa] sm:$0xff]
  %v2029 = vld [vmem:[#allocation2 + $0x102] sm:$0xff]
  %v2030 = vld [vmem:[#allocation2 + $0x10a] sm:$0xff]
  %v2031 = vld [vmem:[#allocation2 + $0x112] sm:$0xff]
  %v2032 = vld [vmem:[#allocation2 + $0x11a] sm:$0xff]
  %2069 = vrot.lane.b32.xlu0 %v1997, 16
  %v2070 = vpop.permute.xlu0 %2069
  %2071 = vrot.lane.b32.xlu0 %v1998, 16
  %v2072 = vpop.permute.xlu0 %2071
  %2073 = vrot.lane.b32.xlu0 %v1999, 16
  %v2074 = vpop.permute.xlu0 %2073
  %2075 = vrot.lane.b32.xlu0 %v2000, 16
  %v2076 = vpop.permute.xlu0 %2075
  %2077 = vrot.lane.b32.xlu0 %v2001, 16
  %v2078 = vpop.permute.xlu0 %2077
  %2079 = vrot.lane.b32.xlu0 %v2002, 16
  %v2080 = vpop.permute.xlu0 %2079
  %2081 = vrot.lane.b32.xlu0 %v2003, 16
  %v2082 = vpop.permute.xlu0 %2081
  %2083 = vrot.lane.b32.xlu0 %v2004, 16
  %v2084 = vpop.permute.xlu0 %2083
  %2085 = vrot.lane.b32.xlu0 %v2005, 16
  %v2086 = vpop.permute.xlu0 %2085
  %2087 = vrot.lane.b32.xlu0 %v2006, 16
  %v2088 = vpop.permute.xlu0 %2087
  %2089 = vrot.lane.b32.xlu0 %v2007, 16
  %v2090 = vpop.permute.xlu0 %2089
  %2091 = vrot.lane.b32.xlu0 %v2008, 16
  %v2092 = vpop.permute.xlu0 %2091
  %2093 = vrot.lane.b32.xlu0 %v2009, 16
  %v2094 = vpop.permute.xlu0 %2093
  %2095 = vrot.lane.b32.xlu0 %v2010, 16
  %v2096 = vpop.permute.xlu0 %2095
  %2097 = vrot.lane.b32.xlu0 %v2011, 16
  %v2098 = vpop.permute.xlu0 %2097
  %2099 = vrot.lane.b32.xlu0 %v2012, 16
  %v2100 = vpop.permute.xlu0 %2099
  %2101 = vrot.lane.b32.xlu0 %v2013, 16
  %v2102 = vpop.permute.xlu0 %2101
  %2103 = vrot.lane.b32.xlu0 %v2014, 16
  %v2104 = vpop.permute.xlu0 %2103
  %2105 = vrot.lane.b32.xlu0 %v2015, 16
  %v2106 = vpop.permute.xlu0 %2105
  %2107 = vrot.lane.b32.xlu0 %v2016, 16
  %v2108 = vpop.permute.xlu0 %2107
  %2109 = vrot.lane.b32.xlu0 %v2017, 16
  %v2110 = vpop.permute.xlu0 %2109
  %2111 = vrot.lane.b32.xlu0 %v2018, 16
  %v2112 = vpop.permute.xlu0 %2111
  %2113 = vrot.lane.b32.xlu0 %v2019, 16
  %v2114 = vpop.permute.xlu0 %2113
  %2115 = vrot.lane.b32.xlu0 %v2020, 16
  %v2116 = vpop.permute.xlu0 %2115
  %2117 = vrot.lane.b32.xlu0 %v2021, 16
  %v2118 = vpop.permute.xlu0 %2117
  %2119 = vrot.lane.b32.xlu0 %v2022, 16
  %v2120 = vpop.permute.xlu0 %2119
  %2121 = vrot.lane.b32.xlu0 %v2023, 16
  %v2122 = vpop.permute.xlu0 %2121
  %2123 = vrot.lane.b32.xlu0 %v2024, 16
  %v2124 = vpop.permute.xlu0 %2123
  %2125 = vrot.lane.b32.xlu0 %v2025, 16
  %v2126 = vpop.permute.xlu0 %2125
  %2127 = vrot.lane.b32.xlu0 %v2026, 16
  %v2128 = vpop.permute.xlu0 %2127
  %2129 = vrot.lane.b32.xlu0 %v2027, 16
  %v2130 = vpop.permute.xlu0 %2129
  %2131 = vrot.lane.b32.xlu0 %v2028, 16
  %v2132 = vpop.permute.xlu0 %2131
  %2133 = vrot.lane.b32.xlu0 %v2029, 16
  %v2134 = vpop.permute.xlu0 %2133
  %2135 = vrot.lane.b32.xlu0 %v2030, 16
  %v2136 = vpop.permute.xlu0 %2135
  %2137 = vrot.lane.b32.xlu0 %v2031, 16
  %v2138 = vpop.permute.xlu0 %2137
  %2139 = vrot.lane.b32.xlu0 %v2032, 16
  %v2140 = vpop.permute.xlu0 %2139
  %vm2177 = vcmask 195712
  %2178 = vst.msk [vmem:[#allocation3] sm:$0xff] %vm2177, %v2070
  %2179 = vst.msk [vmem:[#allocation3 + $0x10] sm:$0xff] %vm2177, %v2072
  %2180 = vst.msk [vmem:[#allocation3 + $0x20] sm:$0xff] %vm2177, %v2074
  %2181 = vst.msk [vmem:[#allocation3 + $0x30] sm:$0xff] %vm2177, %v2076
  %2182 = vst.msk [vmem:[#allocation3 + $0x40] sm:$0xff] %vm2177, %v2078
  %2183 = vst.msk [vmem:[#allocation3 + $0x50] sm:$0xff] %vm2177, %v2080
  %2184 = vst.msk [vmem:[#allocation3 + $0x60] sm:$0xff] %vm2177, %v2082
  %2185 = vst.msk [vmem:[#allocation3 + $0x70] sm:$0xff] %vm2177, %v2084
  %2186 = vst.msk [vmem:[#allocation3 + $0x80] sm:$0xff] %vm2177, %v2086
  %2187 = vst.msk [vmem:[#allocation3 + $0x90] sm:$0xff] %vm2177, %v2088
  %2188 = vst.msk [vmem:[#allocation3 + $0xa0] sm:$0xff] %vm2177, %v2090
  %2189 = vst.msk [vmem:[#allocation3 + $0xb0] sm:$0xff] %vm2177, %v2092
  %2190 = vst.msk [vmem:[#allocation3 + $0xc0] sm:$0xff] %vm2177, %v2094
  %2191 = vst.msk [vmem:[#allocation3 + $0xd0] sm:$0xff] %vm2177, %v2096
  %2192 = vst.msk [vmem:[#allocation3 + $0xe0] sm:$0xff] %vm2177, %v2098
  %2193 = vst.msk [vmem:[#allocation3 + $0xf0] sm:$0xff] %vm2177, %v2100
  %2194 = vst.msk [vmem:[#allocation3 + $0x100] sm:$0xff] %vm2177, %v2102
  %2195 = vst.msk [vmem:[#allocation3 + $0x110] sm:$0xff] %vm2177, %v2104
  %2196 = vst.msk [vmem:[#allocation3 + $0x120] sm:$0xff] %vm2177, %v2106
  %2197 = vst.msk [vmem:[#allocation3 + $0x130] sm:$0xff] %vm2177, %v2108
  %2198 = vst.msk [vmem:[#allocation3 + $0x140] sm:$0xff] %vm2177, %v2110
  %2199 = vst.msk [vmem:[#allocation3 + $0x150] sm:$0xff] %vm2177, %v2112
  %2200 = vst.msk [vmem:[#allocation3 + $0x160] sm:$0xff] %vm2177, %v2114
  %2201 = vst.msk [vmem:[#allocation3 + $0x170] sm:$0xff] %vm2177, %v2116
  %2202 = vst.msk [vmem:[#allocation3 + $0x180] sm:$0xff] %vm2177, %v2118
  %2203 = vst.msk [vmem:[#allocation3 + $0x190] sm:$0xff] %vm2177, %v2120
  %2204 = vst.msk [vmem:[#allocation3 + $0x1a0] sm:$0xff] %vm2177, %v2122
  %2205 = vst.msk [vmem:[#allocation3 + $0x1b0] sm:$0xff] %vm2177, %v2124
  %2206 = vst.msk [vmem:[#allocation3 + $0x1c0] sm:$0xff] %vm2177, %v2126
  %2207 = vst.msk [vmem:[#allocation3 + $0x1d0] sm:$0xff] %vm2177, %v2128
  %2208 = vst.msk [vmem:[#allocation3 + $0x1e0] sm:$0xff] %vm2177, %v2130
  %2209 = vst.msk [vmem:[#allocation3 + $0x1f0] sm:$0xff] %vm2177, %v2132
  %2210 = vst.msk [vmem:[#allocation3 + $0x200] sm:$0xff] %vm2177, %v2134
  %2211 = vst.msk [vmem:[#allocation3 + $0x210] sm:$0xff] %vm2177, %v2136
  %2212 = vst.msk [vmem:[#allocation3 + $0x220] sm:$0xff] %vm2177, %v2138
  %2213 = vst.msk [vmem:[#allocation3 + $0x230] sm:$0xff] %vm2177, %v2140
  %v2214 = vld [vmem:[#allocation2 + $0x3] sm:$0xff]
  %v2215 = vld [vmem:[#allocation2 + $0xb] sm:$0xff]
  %v2216 = vld [vmem:[#allocation2 + $0x13] sm:$0xff]
  %v2217 = vld [vmem:[#allocation2 + $0x1b] sm:$0xff]
  %v2218 = vld [vmem:[#allocation2 + $0x23] sm:$0xff]
  %v2219 = vld [vmem:[#allocation2 + $0x2b] sm:$0xff]
  %v2220 = vld [vmem:[#allocation2 + $0x33] sm:$0xff]
  %v2221 = vld [vmem:[#allocation2 + $0x3b] sm:$0xff]
  %v2222 = vld [vmem:[#allocation2 + $0x43] sm:$0xff]
  %v2223 = vld [vmem:[#allocation2 + $0x4b] sm:$0xff]
  %v2224 = vld [vmem:[#allocation2 + $0x53] sm:$0xff]
  %v2225 = vld [vmem:[#allocation2 + $0x5b] sm:$0xff]
  %v2226 = vld [vmem:[#allocation2 + $0x63] sm:$0xff]
  %v2227 = vld [vmem:[#allocation2 + $0x6b] sm:$0xff]
  %v2228 = vld [vmem:[#allocation2 + $0x73] sm:$0xff]
  %v2229 = vld [vmem:[#allocation2 + $0x7b] sm:$0xff]
  %v2230 = vld [vmem:[#allocation2 + $0x83] sm:$0xff]
  %v2231 = vld [vmem:[#allocation2 + $0x8b] sm:$0xff]
  %v2232 = vld [vmem:[#allocation2 + $0x93] sm:$0xff]
  %v2233 = vld [vmem:[#allocation2 + $0x9b] sm:$0xff]
  %v2234 = vld [vmem:[#allocation2 + $0xa3] sm:$0xff]
  %v2235 = vld [vmem:[#allocation2 + $0xab] sm:$0xff]
  %v2236 = vld [vmem:[#allocation2 + $0xb3] sm:$0xff]
  %v2237 = vld [vmem:[#allocation2 + $0xbb] sm:$0xff]
  %v2238 = vld [vmem:[#allocation2 + $0xc3] sm:$0xff]
  %v2239 = vld [vmem:[#allocation2 + $0xcb] sm:$0xff]
  %v2240 = vld [vmem:[#allocation2 + $0xd3] sm:$0xff]
  %v2241 = vld [vmem:[#allocation2 + $0xdb] sm:$0xff]
  %v2242 = vld [vmem:[#allocation2 + $0xe3] sm:$0xff]
  %v2243 = vld [vmem:[#allocation2 + $0xeb] sm:$0xff]
  %v2244 = vld [vmem:[#allocation2 + $0xf3] sm:$0xff]
  %v2245 = vld [vmem:[#allocation2 + $0xfb] sm:$0xff]
  %v2246 = vld [vmem:[#allocation2 + $0x103] sm:$0xff]
  %v2247 = vld [vmem:[#allocation2 + $0x10b] sm:$0xff]
  %v2248 = vld [vmem:[#allocation2 + $0x113] sm:$0xff]
  %v2249 = vld [vmem:[#allocation2 + $0x11b] sm:$0xff]
  %2286 = vrot.lane.b32.xlu0 %v2214, 24
  %v2287 = vpop.permute.xlu0 %2286
  %2288 = vrot.lane.b32.xlu0 %v2215, 24
  %v2289 = vpop.permute.xlu0 %2288
  %2290 = vrot.lane.b32.xlu0 %v2216, 24
  %v2291 = vpop.permute.xlu0 %2290
  %2292 = vrot.lane.b32.xlu0 %v2217, 24
  %v2293 = vpop.permute.xlu0 %2292
  %2294 = vrot.lane.b32.xlu0 %v2218, 24
  %v2295 = vpop.permute.xlu0 %2294
  %2296 = vrot.lane.b32.xlu0 %v2219, 24
  %v2297 = vpop.permute.xlu0 %2296
  %2298 = vrot.lane.b32.xlu0 %v2220, 24
  %v2299 = vpop.permute.xlu0 %2298
  %2300 = vrot.lane.b32.xlu0 %v2221, 24
  %v2301 = vpop.permute.xlu0 %2300
  %2302 = vrot.lane.b32.xlu0 %v2222, 24
  %v2303 = vpop.permute.xlu0 %2302
  %2304 = vrot.lane.b32.xlu0 %v2223, 24
  %v2305 = vpop.permute.xlu0 %2304
  %2306 = vrot.lane.b32.xlu0 %v2224, 24
  %v2307 = vpop.permute.xlu0 %2306
  %2308 = vrot.lane.b32.xlu0 %v2225, 24
  %v2309 = vpop.permute.xlu0 %2308
  %2310 = vrot.lane.b32.xlu0 %v2226, 24
  %v2311 = vpop.permute.xlu0 %2310
  %2312 = vrot.lane.b32.xlu0 %v2227, 24
  %v2313 = vpop.permute.xlu0 %2312
  %2314 = vrot.lane.b32.xlu0 %v2228, 24
  %v2315 = vpop.permute.xlu0 %2314
  %2316 = vrot.lane.b32.xlu0 %v2229, 24
  %v2317 = vpop.permute.xlu0 %2316
  %2318 = vrot.lane.b32.xlu0 %v2230, 24
  %v2319 = vpop.permute.xlu0 %2318
  %2320 = vrot.lane.b32.xlu0 %v2231, 24
  %v2321 = vpop.permute.xlu0 %2320
  %2322 = vrot.lane.b32.xlu0 %v2232, 24
  %v2323 = vpop.permute.xlu0 %2322
  %2324 = vrot.lane.b32.xlu0 %v2233, 24
  %v2325 = vpop.permute.xlu0 %2324
  %2326 = vrot.lane.b32.xlu0 %v2234, 24
  %v2327 = vpop.permute.xlu0 %2326
  %2328 = vrot.lane.b32.xlu0 %v2235, 24
  %v2329 = vpop.permute.xlu0 %2328
  %2330 = vrot.lane.b32.xlu0 %v2236, 24
  %v2331 = vpop.permute.xlu0 %2330
  %2332 = vrot.lane.b32.xlu0 %v2237, 24
  %v2333 = vpop.permute.xlu0 %2332
  %2334 = vrot.lane.b32.xlu0 %v2238, 24
  %v2335 = vpop.permute.xlu0 %2334
  %2336 = vrot.lane.b32.xlu0 %v2239, 24
  %v2337 = vpop.permute.xlu0 %2336
  %2338 = vrot.lane.b32.xlu0 %v2240, 24
  %v2339 = vpop.permute.xlu0 %2338
  %2340 = vrot.lane.b32.xlu0 %v2241, 24
  %v2341 = vpop.permute.xlu0 %2340
  %2342 = vrot.lane.b32.xlu0 %v2242, 24
  %v2343 = vpop.permute.xlu0 %2342
  %2344 = vrot.lane.b32.xlu0 %v2243, 24
  %v2345 = vpop.permute.xlu0 %2344
  %2346 = vrot.lane.b32.xlu0 %v2244, 24
  %v2347 = vpop.permute.xlu0 %2346
  %2348 = vrot.lane.b32.xlu0 %v2245, 24
  %v2349 = vpop.permute.xlu0 %2348
  %2350 = vrot.lane.b32.xlu0 %v2246, 24
  %v2351 = vpop.permute.xlu0 %2350
  %2352 = vrot.lane.b32.xlu0 %v2247, 24
  %v2353 = vpop.permute.xlu0 %2352
  %2354 = vrot.lane.b32.xlu0 %v2248, 24
  %v2355 = vpop.permute.xlu0 %2354
  %2356 = vrot.lane.b32.xlu0 %v2249, 24
  %v2357 = vpop.permute.xlu0 %2356
  %vm2394 = vcmask 261312
  %2395 = vst.msk [vmem:[#allocation3] sm:$0xff] %vm2394, %v2287
  %2396 = vst.msk [vmem:[#allocation3 + $0x10] sm:$0xff] %vm2394, %v2289
  %2397 = vst.msk [vmem:[#allocation3 + $0x20] sm:$0xff] %vm2394, %v2291
  %2398 = vst.msk [vmem:[#allocation3 + $0x30] sm:$0xff] %vm2394, %v2293
  %2399 = vst.msk [vmem:[#allocation3 + $0x40] sm:$0xff] %vm2394, %v2295
  %2400 = vst.msk [vmem:[#allocation3 + $0x50] sm:$0xff] %vm2394, %v2297
  %2401 = vst.msk [vmem:[#allocation3 + $0x60] sm:$0xff] %vm2394, %v2299
  %2402 = vst.msk [vmem:[#allocation3 + $0x70] sm:$0xff] %vm2394, %v2301
  %2403 = vst.msk [vmem:[#allocation3 + $0x80] sm:$0xff] %vm2394, %v2303
  %2404 = vst.msk [vmem:[#allocation3 + $0x90] sm:$0xff] %vm2394, %v2305
  %2405 = vst.msk [vmem:[#allocation3 + $0xa0] sm:$0xff] %vm2394, %v2307
  %2406 = vst.msk [vmem:[#allocation3 + $0xb0] sm:$0xff] %vm2394, %v2309
  %2407 = vst.msk [vmem:[#allocation3 + $0xc0] sm:$0xff] %vm2394, %v2311
  %2408 = vst.msk [vmem:[#allocation3 + $0xd0] sm:$0xff] %vm2394, %v2313
  %2409 = vst.msk [vmem:[#allocation3 + $0xe0] sm:$0xff] %vm2394, %v2315
  %2410 = vst.msk [vmem:[#allocation3 + $0xf0] sm:$0xff] %vm2394, %v2317
  %2411 = vst.msk [vmem:[#allocation3 + $0x100] sm:$0xff] %vm2394, %v2319
  %2412 = vst.msk [vmem:[#allocation3 + $0x110] sm:$0xff] %vm2394, %v2321
  %2413 = vst.msk [vmem:[#allocation3 + $0x120] sm:$0xff] %vm2394, %v2323
  %2414 = vst.msk [vmem:[#allocation3 + $0x130] sm:$0xff] %vm2394, %v2325
  %2415 = vst.msk [vmem:[#allocation3 + $0x140] sm:$0xff] %vm2394, %v2327
  %2416 = vst.msk [vmem:[#allocation3 + $0x150] sm:$0xff] %vm2394, %v2329
  %2417 = vst.msk [vmem:[#allocation3 + $0x160] sm:$0xff] %vm2394, %v2331
  %2418 = vst.msk [vmem:[#allocation3 + $0x170] sm:$0xff] %vm2394, %v2333
  %2419 = vst.msk [vmem:[#allocation3 + $0x180] sm:$0xff] %vm2394, %v2335
  %2420 = vst.msk [vmem:[#allocation3 + $0x190] sm:$0xff] %vm2394, %v2337
  %2421 = vst.msk [vmem:[#allocation3 + $0x1a0] sm:$0xff] %vm2394, %v2339
  %2422 = vst.msk [vmem:[#allocation3 + $0x1b0] sm:$0xff] %vm2394, %v2341
  %2423 = vst.msk [vmem:[#allocation3 + $0x1c0] sm:$0xff] %vm2394, %v2343
  %2424 = vst.msk [vmem:[#allocation3 + $0x1d0] sm:$0xff] %vm2394, %v2345
  %2425 = vst.msk [vmem:[#allocation3 + $0x1e0] sm:$0xff] %vm2394, %v2347
  %2426 = vst.msk [vmem:[#allocation3 + $0x1f0] sm:$0xff] %vm2394, %v2349
  %2427 = vst.msk [vmem:[#allocation3 + $0x200] sm:$0xff] %vm2394, %v2351
  %2428 = vst.msk [vmem:[#allocation3 + $0x210] sm:$0xff] %vm2394, %v2353
  %2429 = vst.msk [vmem:[#allocation3 + $0x220] sm:$0xff] %vm2394, %v2355
  %2430 = vst.msk [vmem:[#allocation3 + $0x230] sm:$0xff] %vm2394, %v2357
  %v2431 = vld [vmem:[#allocation2 + $0x4] sm:$0xff]
  %v2432 = vld [vmem:[#allocation2 + $0xc] sm:$0xff]
  %v2433 = vld [vmem:[#allocation2 + $0x14] sm:$0xff]
  %v2434 = vld [vmem:[#allocation2 + $0x1c] sm:$0xff]
  %v2435 = vld [vmem:[#allocation2 + $0x24] sm:$0xff]
  %v2436 = vld [vmem:[#allocation2 + $0x2c] sm:$0xff]
  %v2437 = vld [vmem:[#allocation2 + $0x34] sm:$0xff]
  %v2438 = vld [vmem:[#allocation2 + $0x3c] sm:$0xff]
  %v2439 = vld [vmem:[#allocation2 + $0x44] sm:$0xff]
  %v2440 = vld [vmem:[#allocation2 + $0x4c] sm:$0xff]
  %v2441 = vld [vmem:[#allocation2 + $0x54] sm:$0xff]
  %v2442 = vld [vmem:[#allocation2 + $0x5c] sm:$0xff]
  %v2443 = vld [vmem:[#allocation2 + $0x64] sm:$0xff]
  %v2444 = vld [vmem:[#allocation2 + $0x6c] sm:$0xff]
  %v2445 = vld [vmem:[#allocation2 + $0x74] sm:$0xff]
  %v2446 = vld [vmem:[#allocation2 + $0x7c] sm:$0xff]
  %v2447 = vld [vmem:[#allocation2 + $0x84] sm:$0xff]
  %v2448 = vld [vmem:[#allocation2 + $0x8c] sm:$0xff]
  %v2449 = vld [vmem:[#allocation2 + $0x94] sm:$0xff]
  %v2450 = vld [vmem:[#allocation2 + $0x9c] sm:$0xff]
  %v2451 = vld [vmem:[#allocation2 + $0xa4] sm:$0xff]
  %v2452 = vld [vmem:[#allocation2 + $0xac] sm:$0xff]
  %v2453 = vld [vmem:[#allocation2 + $0xb4] sm:$0xff]
  %v2454 = vld [vmem:[#allocation2 + $0xbc] sm:$0xff]
  %v2455 = vld [vmem:[#allocation2 + $0xc4] sm:$0xff]
  %v2456 = vld [vmem:[#allocation2 + $0xcc] sm:$0xff]
  %v2457 = vld [vmem:[#allocation2 + $0xd4] sm:$0xff]
  %v2458 = vld [vmem:[#allocation2 + $0xdc] sm:$0xff]
  %v2459 = vld [vmem:[#allocation2 + $0xe4] sm:$0xff]
  %v2460 = vld [vmem:[#allocation2 + $0xec] sm:$0xff]
  %v2461 = vld [vmem:[#allocation2 + $0xf4] sm:$0xff]
  %v2462 = vld [vmem:[#allocation2 + $0xfc] sm:$0xff]
  %v2463 = vld [vmem:[#allocation2 + $0x104] sm:$0xff]
  %v2464 = vld [vmem:[#allocation2 + $0x10c] sm:$0xff]
  %v2465 = vld [vmem:[#allocation2 + $0x114] sm:$0xff]
  %v2466 = vld [vmem:[#allocation2 + $0x11c] sm:$0xff]
  %2503 = vrot.lane.b32.xlu0 %v2431, 32
  %v2504 = vpop.permute.xlu0 %2503
  %2505 = vrot.lane.b32.xlu0 %v2432, 32
  %v2506 = vpop.permute.xlu0 %2505
  %2507 = vrot.lane.b32.xlu0 %v2433, 32
  %v2508 = vpop.permute.xlu0 %2507
  %2509 = vrot.lane.b32.xlu0 %v2434, 32
  %v2510 = vpop.permute.xlu0 %2509
  %2511 = vrot.lane.b32.xlu0 %v2435, 32
  %v2512 = vpop.permute.xlu0 %2511
  %2513 = vrot.lane.b32.xlu0 %v2436, 32
  %v2514 = vpop.permute.xlu0 %2513
  %2515 = vrot.lane.b32.xlu0 %v2437, 32
  %v2516 = vpop.permute.xlu0 %2515
  %2517 = vrot.lane.b32.xlu0 %v2438, 32
  %v2518 = vpop.permute.xlu0 %2517
  %2519 = vrot.lane.b32.xlu0 %v2439, 32
  %v2520 = vpop.permute.xlu0 %2519
  %2521 = vrot.lane.b32.xlu0 %v2440, 32
  %v2522 = vpop.permute.xlu0 %2521
  %2523 = vrot.lane.b32.xlu0 %v2441, 32
  %v2524 = vpop.permute.xlu0 %2523
  %2525 = vrot.lane.b32.xlu0 %v2442, 32
  %v2526 = vpop.permute.xlu0 %2525
  %2527 = vrot.lane.b32.xlu0 %v2443, 32
  %v2528 = vpop.permute.xlu0 %2527
  %2529 = vrot.lane.b32.xlu0 %v2444, 32
  %v2530 = vpop.permute.xlu0 %2529
  %2531 = vrot.lane.b32.xlu0 %v2445, 32
  %v2532 = vpop.permute.xlu0 %2531
  %2533 = vrot.lane.b32.xlu0 %v2446, 32
  %v2534 = vpop.permute.xlu0 %2533
  %2535 = vrot.lane.b32.xlu0 %v2447, 32
  %v2536 = vpop.permute.xlu0 %2535
  %2537 = vrot.lane.b32.xlu0 %v2448, 32
  %v2538 = vpop.permute.xlu0 %2537
  %2539 = vrot.lane.b32.xlu0 %v2449, 32
  %v2540 = vpop.permute.xlu0 %2539
  %2541 = vrot.lane.b32.xlu0 %v2450, 32
  %v2542 = vpop.permute.xlu0 %2541
  %2543 = vrot.lane.b32.xlu0 %v2451, 32
  %v2544 = vpop.permute.xlu0 %2543
  %2545 = vrot.lane.b32.xlu0 %v2452, 32
  %v2546 = vpop.permute.xlu0 %2545
  %2547 = vrot.lane.b32.xlu0 %v2453, 32
  %v2548 = vpop.permute.xlu0 %2547
  %2549 = vrot.lane.b32.xlu0 %v2454, 32
  %v2550 = vpop.permute.xlu0 %2549
  %2551 = vrot.lane.b32.xlu0 %v2455, 32
  %v2552 = vpop.permute.xlu0 %2551
  %2553 = vrot.lane.b32.xlu0 %v2456, 32
  %v2554 = vpop.permute.xlu0 %2553
  %2555 = vrot.lane.b32.xlu0 %v2457, 32
  %v2556 = vpop.permute.xlu0 %2555
  %2557 = vrot.lane.b32.xlu0 %v2458, 32
  %v2558 = vpop.permute.xlu0 %2557
  %2559 = vrot.lane.b32.xlu0 %v2459, 32
  %v2560 = vpop.permute.xlu0 %2559
  %2561 = vrot.lane.b32.xlu0 %v2460, 32
  %v2562 = vpop.permute.xlu0 %2561
  %2563 = vrot.lane.b32.xlu0 %v2461, 32
  %v2564 = vpop.permute.xlu0 %2563
  %2565 = vrot.lane.b32.xlu0 %v2462, 32
  %v2566 = vpop.permute.xlu0 %2565
  %2567 = vrot.lane.b32.xlu0 %v2463, 32
  %v2568 = vpop.permute.xlu0 %2567
  %2569 = vrot.lane.b32.xlu0 %v2464, 32
  %v2570 = vpop.permute.xlu0 %2569
  %2571 = vrot.lane.b32.xlu0 %v2465, 32
  %v2572 = vpop.permute.xlu0 %2571
  %2573 = vrot.lane.b32.xlu0 %v2466, 32
  %v2574 = vpop.permute.xlu0 %2573
  %vm2611 = vcmask 326912
  %2612 = vst.msk [vmem:[#allocation3] sm:$0xff] %vm2611, %v2504
  %2613 = vst.msk [vmem:[#allocation3 + $0x10] sm:$0xff] %vm2611, %v2506
  %2614 = vst.msk [vmem:[#allocation3 + $0x20] sm:$0xff] %vm2611, %v2508
  %2615 = vst.msk [vmem:[#allocation3 + $0x30] sm:$0xff] %vm2611, %v2510
  %2616 = vst.msk [vmem:[#allocation3 + $0x40] sm:$0xff] %vm2611, %v2512
  %2617 = vst.msk [vmem:[#allocation3 + $0x50] sm:$0xff] %vm2611, %v2514
  %2618 = vst.msk [vmem:[#allocation3 + $0x60] sm:$0xff] %vm2611, %v2516
  %2619 = vst.msk [vmem:[#allocation3 + $0x70] sm:$0xff] %vm2611, %v2518
  %2620 = vst.msk [vmem:[#allocation3 + $0x80] sm:$0xff] %vm2611, %v2520
  %2621 = vst.msk [vmem:[#allocation3 + $0x90] sm:$0xff] %vm2611, %v2522
  %2622 = vst.msk [vmem:[#allocation3 + $0xa0] sm:$0xff] %vm2611, %v2524
  %2623 = vst.msk [vmem:[#allocation3 + $0xb0] sm:$0xff] %vm2611, %v2526
  %2624 = vst.msk [vmem:[#allocation3 + $0xc0] sm:$0xff] %vm2611, %v2528
  %2625 = vst.msk [vmem:[#allocation3 + $0xd0] sm:$0xff] %vm2611, %v2530
  %2626 = vst.msk [vmem:[#allocation3 + $0xe0] sm:$0xff] %vm2611, %v2532
  %2627 = vst.msk [vmem:[#allocation3 + $0xf0] sm:$0xff] %vm2611, %v2534
  %2628 = vst.msk [vmem:[#allocation3 + $0x100] sm:$0xff] %vm2611, %v2536
  %2629 = vst.msk [vmem:[#allocation3 + $0x110] sm:$0xff] %vm2611, %v2538
  %2630 = vst.msk [vmem:[#allocation3 + $0x120] sm:$0xff] %vm2611, %v2540
  %2631 = vst.msk [vmem:[#allocation3 + $0x130] sm:$0xff] %vm2611, %v2542
  %2632 = vst.msk [vmem:[#allocation3 + $0x140] sm:$0xff] %vm2611, %v2544
  %2633 = vst.msk [vmem:[#allocation3 + $0x150] sm:$0xff] %vm2611, %v2546
  %2634 = vst.msk [vmem:[#allocation3 + $0x160] sm:$0xff] %vm2611, %v2548
  %2635 = vst.msk [vmem:[#allocation3 + $0x170] sm:$0xff] %vm2611, %v2550
  %2636 = vst.msk [vmem:[#allocation3 + $0x180] sm:$0xff] %vm2611, %v2552
  %2637 = vst.msk [vmem:[#allocation3 + $0x190] sm:$0xff] %vm2611, %v2554
  %2638 = vst.msk [vmem:[#allocation3 + $0x1a0] sm:$0xff] %vm2611, %v2556
  %2639 = vst.msk [vmem:[#allocation3 + $0x1b0] sm:$0xff] %vm2611, %v2558
  %2640 = vst.msk [vmem:[#allocation3 + $0x1c0] sm:$0xff] %vm2611, %v2560
  %2641 = vst.msk [vmem:[#allocation3 + $0x1d0] sm:$0xff] %vm2611, %v2562
  %2642 = vst.msk [vmem:[#allocation3 + $0x1e0] sm:$0xff] %vm2611, %v2564
  %2643 = vst.msk [vmem:[#allocation3 + $0x1f0] sm:$0xff] %vm2611, %v2566
  %2644 = vst.msk [vmem:[#allocation3 + $0x200] sm:$0xff] %vm2611, %v2568
  %2645 = vst.msk [vmem:[#allocation3 + $0x210] sm:$0xff] %vm2611, %v2570
  %2646 = vst.msk [vmem:[#allocation3 + $0x220] sm:$0xff] %vm2611, %v2572
  %2647 = vst.msk [vmem:[#allocation3 + $0x230] sm:$0xff] %vm2611, %v2574
  %v2648 = vld [vmem:[#allocation2 + $0xc] sm:$0xff]
  %v2649 = vld [vmem:[#allocation2 + $0x14] sm:$0xff]
  %v2650 = vld [vmem:[#allocation2 + $0x1c] sm:$0xff]
  %v2651 = vld [vmem:[#allocation2 + $0x24] sm:$0xff]
  %v2652 = vld [vmem:[#allocation2 + $0x2c] sm:$0xff]
  %v2653 = vld [vmem:[#allocation2 + $0x34] sm:$0xff]
  %v2654 = vld [vmem:[#allocation2 + $0x3c] sm:$0xff]
  %v2655 = vld [vmem:[#allocation2 + $0x44] sm:$0xff]
  %v2656 = vld [vmem:[#allocation2 + $0x4c] sm:$0xff]
  %v2657 = vld [vmem:[#allocation2 + $0x54] sm:$0xff]
  %v2658 = vld [vmem:[#allocation2 + $0x5c] sm:$0xff]
  %v2659 = vld [vmem:[#allocation2 + $0x64] sm:$0xff]
  %v2660 = vld [vmem:[#allocation2 + $0x6c] sm:$0xff]
  %v2661 = vld [vmem:[#allocation2 + $0x74] sm:$0xff]
  %v2662 = vld [vmem:[#allocation2 + $0x7c] sm:$0xff]
  %v2663 = vld [vmem:[#allocation2 + $0x84] sm:$0xff]
  %v2664 = vld [vmem:[#allocation2 + $0x8c] sm:$0xff]
  %v2665 = vld [vmem:[#allocation2 + $0x94] sm:$0xff]
  %v2666 = vld [vmem:[#allocation2 + $0x9c] sm:$0xff]
  %v2667 = vld [vmem:[#allocation2 + $0xa4] sm:$0xff]
  %v2668 = vld [vmem:[#allocation2 + $0xac] sm:$0xff]
  %v2669 = vld [vmem:[#allocation2 + $0xb4] sm:$0xff]
  %v2670 = vld [vmem:[#allocation2 + $0xbc] sm:$0xff]
  %v2671 = vld [vmem:[#allocation2 + $0xc4] sm:$0xff]
  %v2672 = vld [vmem:[#allocation2 + $0xcc] sm:$0xff]
  %v2673 = vld [vmem:[#allocation2 + $0xd4] sm:$0xff]
  %v2674 = vld [vmem:[#allocation2 + $0xdc] sm:$0xff]
  %v2675 = vld [vmem:[#allocation2 + $0xe4] sm:$0xff]
  %v2676 = vld [vmem:[#allocation2 + $0xec] sm:$0xff]
  %v2677 = vld [vmem:[#allocation2 + $0xf4] sm:$0xff]
  %v2678 = vld [vmem:[#allocation2 + $0xfc] sm:$0xff]
  %v2679 = vld [vmem:[#allocation2 + $0x104] sm:$0xff]
  %v2680 = vld [vmem:[#allocation2 + $0x10c] sm:$0xff]
  %v2681 = vld [vmem:[#allocation2 + $0x114] sm:$0xff]
  %v2682 = vld [vmem:[#allocation2 + $0x11c] sm:$0xff]
  %v2683 = vld [vmem:[#allocation2 + $0x124] sm:$0xff]
  %2720 = vrot.lane.b32.xlu0 %v2648, 40
  %v2721 = vpop.permute.xlu0 %2720
  %2722 = vrot.lane.b32.xlu0 %v2649, 40
  %v2723 = vpop.permute.xlu0 %2722
  %2724 = vrot.lane.b32.xlu0 %v2650, 40
  %v2725 = vpop.permute.xlu0 %2724
  %2726 = vrot.lane.b32.xlu0 %v2651, 40
  %v2727 = vpop.permute.xlu0 %2726
  %2728 = vrot.lane.b32.xlu0 %v2652, 40
  %v2729 = vpop.permute.xlu0 %2728
  %2730 = vrot.lane.b32.xlu0 %v2653, 40
  %v2731 = vpop.permute.xlu0 %2730
  %2732 = vrot.lane.b32.xlu0 %v2654, 40
  %v2733 = vpop.permute.xlu0 %2732
  %2734 = vrot.lane.b32.xlu0 %v2655, 40
  %v2735 = vpop.permute.xlu0 %2734
  %2736 = vrot.lane.b32.xlu0 %v2656, 40
  %v2737 = vpop.permute.xlu0 %2736
  %2738 = vrot.lane.b32.xlu0 %v2657, 40
  %v2739 = vpop.permute.xlu0 %2738
  %2740 = vrot.lane.b32.xlu0 %v2658, 40
  %v2741 = vpop.permute.xlu0 %2740
  %2742 = vrot.lane.b32.xlu0 %v2659, 40
  %v2743 = vpop.permute.xlu0 %2742
  %2744 = vrot.lane.b32.xlu0 %v2660, 40
  %v2745 = vpop.permute.xlu0 %2744
  %2746 = vrot.lane.b32.xlu0 %v2661, 40
  %v2747 = vpop.permute.xlu0 %2746
  %2748 = vrot.lane.b32.xlu0 %v2662, 40
  %v2749 = vpop.permute.xlu0 %2748
  %2750 = vrot.lane.b32.xlu0 %v2663, 40
  %v2751 = vpop.permute.xlu0 %2750
  %2752 = vrot.lane.b32.xlu0 %v2664, 40
  %v2753 = vpop.permute.xlu0 %2752
  %2754 = vrot.lane.b32.xlu0 %v2665, 40
  %v2755 = vpop.permute.xlu0 %2754
  %2756 = vrot.lane.b32.xlu0 %v2666, 40
  %v2757 = vpop.permute.xlu0 %2756
  %2758 = vrot.lane.b32.xlu0 %v2667, 40
  %v2759 = vpop.permute.xlu0 %2758
  %2760 = vrot.lane.b32.xlu0 %v2668, 40
  %v2761 = vpop.permute.xlu0 %2760
  %2762 = vrot.lane.b32.xlu0 %v2669, 40
  %v2763 = vpop.permute.xlu0 %2762
  %2764 = vrot.lane.b32.xlu0 %v2670, 40
  %v2765 = vpop.permute.xlu0 %2764
  %2766 = vrot.lane.b32.xlu0 %v2671, 40
  %v2767 = vpop.permute.xlu0 %2766
  %2768 = vrot.lane.b32.xlu0 %v2672, 40
  %v2769 = vpop.permute.xlu0 %2768
  %2770 = vrot.lane.b32.xlu0 %v2673, 40
  %v2771 = vpop.permute.xlu0 %2770
  %2772 = vrot.lane.b32.xlu0 %v2674, 40
  %v2773 = vpop.permute.xlu0 %2772
  %2774 = vrot.lane.b32.xlu0 %v2675, 40
  %v2775 = vpop.permute.xlu0 %2774
  %2776 = vrot.lane.b32.xlu0 %v2676, 40
  %v2777 = vpop.permute.xlu0 %2776
  %2778 = vrot.lane.b32.xlu0 %v2677, 40
  %v2779 = vpop.permute.xlu0 %2778
  %2780 = vrot.lane.b32.xlu0 %v2678, 40
  %v2781 = vpop.permute.xlu0 %2780
  %2782 = vrot.lane.b32.xlu0 %v2679, 40
  %v2783 = vpop.permute.xlu0 %2782
  %2784 = vrot.lane.b32.xlu0 %v2680, 40
  %v2785 = vpop.permute.xlu0 %2784
  %2786 = vrot.lane.b32.xlu0 %v2681, 40
  %v2787 = vpop.permute.xlu0 %2786
  %2788 = vrot.lane.b32.xlu0 %v2682, 40
  %v2789 = vpop.permute.xlu0 %2788
  %2790 = vrot.lane.b32.xlu0 %v2683, 40
  %v2791 = vpop.permute.xlu0 %2790
  %vm2828 = vcmask 392512
  %2829 = vst.msk [vmem:[#allocation3] sm:$0xff] %vm2828, %v2721
  %2830 = vst.msk [vmem:[#allocation3 + $0x10] sm:$0xff] %vm2828, %v2723
  %2831 = vst.msk [vmem:[#allocation3 + $0x20] sm:$0xff] %vm2828, %v2725
  %2832 = vst.msk [vmem:[#allocation3 + $0x30] sm:$0xff] %vm2828, %v2727
  %2833 = vst.msk [vmem:[#allocation3 + $0x40] sm:$0xff] %vm2828, %v2729
  %2834 = vst.msk [vmem:[#allocation3 + $0x50] sm:$0xff] %vm2828, %v2731
  %2835 = vst.msk [vmem:[#allocation3 + $0x60] sm:$0xff] %vm2828, %v2733
  %2836 = vst.msk [vmem:[#allocation3 + $0x70] sm:$0xff] %vm2828, %v2735
  %2837 = vst.msk [vmem:[#allocation3 + $0x80] sm:$0xff] %vm2828, %v2737
  %2838 = vst.msk [vmem:[#allocation3 + $0x90] sm:$0xff] %vm2828, %v2739
  %2839 = vst.msk [vmem:[#allocation3 + $0xa0] sm:$0xff] %vm2828, %v2741
  %2840 = vst.msk [vmem:[#allocation3 + $0xb0] sm:$0xff] %vm2828, %v2743
  %2841 = vst.msk [vmem:[#allocation3 + $0xc0] sm:$0xff] %vm2828, %v2745
  %2842 = vst.msk [vmem:[#allocation3 + $0xd0] sm:$0xff] %vm2828, %v2747
  %2843 = vst.msk [vmem:[#allocation3 + $0xe0] sm:$0xff] %vm2828, %v2749
  %2844 = vst.msk [vmem:[#allocation3 + $0xf0] sm:$0xff] %vm2828, %v2751
  %2845 = vst.msk [vmem:[#allocation3 + $0x100] sm:$0xff] %vm2828, %v2753
  %2846 = vst.msk [vmem:[#allocation3 + $0x110] sm:$0xff] %vm2828, %v2755
  %2847 = vst.msk [vmem:[#allocation3 + $0x120] sm:$0xff] %vm2828, %v2757
  %2848 = vst.msk [vmem:[#allocation3 + $0x130] sm:$0xff] %vm2828, %v2759
  %2849 = vst.msk [vmem:[#allocation3 + $0x140] sm:$0xff] %vm2828, %v2761
  %2850 = vst.msk [vmem:[#allocation3 + $0x150] sm:$0xff] %vm2828, %v2763
  %2851 = vst.msk [vmem:[#allocation3 + $0x160] sm:$0xff] %vm2828, %v2765
  %2852 = vst.msk [vmem:[#allocation3 + $0x170] sm:$0xff] %vm2828, %v2767
  %2853 = vst.msk [vmem:[#allocation3 + $0x180] sm:$0xff] %vm2828, %v2769
  %2854 = vst.msk [vmem:[#allocation3 + $0x190] sm:$0xff] %vm2828, %v2771
  %2855 = vst.msk [vmem:[#allocation3 + $0x1a0] sm:$0xff] %vm2828, %v2773
  %2856 = vst.msk [vmem:[#allocation3 + $0x1b0] sm:$0xff] %vm2828, %v2775
  %2857 = vst.msk [vmem:[#allocation3 + $0x1c0] sm:$0xff] %vm2828, %v2777
  %2858 = vst.msk [vmem:[#allocation3 + $0x1d0] sm:$0xff] %vm2828, %v2779
  %2859 = vst.msk [vmem:[#allocation3 + $0x1e0] sm:$0xff] %vm2828, %v2781
  %2860 = vst.msk [vmem:[#allocation3 + $0x1f0] sm:$0xff] %vm2828, %v2783
  %2861 = vst.msk [vmem:[#allocation3 + $0x200] sm:$0xff] %vm2828, %v2785
  %2862 = vst.msk [vmem:[#allocation3 + $0x210] sm:$0xff] %vm2828, %v2787
  %2863 = vst.msk [vmem:[#allocation3 + $0x220] sm:$0xff] %vm2828, %v2789
  %2864 = vst.msk [vmem:[#allocation3 + $0x230] sm:$0xff] %vm2828, %v2791
  %v2865 = vld [vmem:[#allocation2 + $0xd] sm:$0xff]
  %v2866 = vld [vmem:[#allocation2 + $0x15] sm:$0xff]
  %v2867 = vld [vmem:[#allocation2 + $0x1d] sm:$0xff]
  %v2868 = vld [vmem:[#allocation2 + $0x25] sm:$0xff]
  %v2869 = vld [vmem:[#allocation2 + $0x2d] sm:$0xff]
  %v2870 = vld [vmem:[#allocation2 + $0x35] sm:$0xff]
  %v2871 = vld [vmem:[#allocation2 + $0x3d] sm:$0xff]
  %v2872 = vld [vmem:[#allocation2 + $0x45] sm:$0xff]
  %v2873 = vld [vmem:[#allocation2 + $0x4d] sm:$0xff]
  %v2874 = vld [vmem:[#allocation2 + $0x55] sm:$0xff]
  %v2875 = vld [vmem:[#allocation2 + $0x5d] sm:$0xff]
  %v2876 = vld [vmem:[#allocation2 + $0x65] sm:$0xff]
  %v2877 = vld [vmem:[#allocation2 + $0x6d] sm:$0xff]
  %v2878 = vld [vmem:[#allocation2 + $0x75] sm:$0xff]
  %v2879 = vld [vmem:[#allocation2 + $0x7d] sm:$0xff]
  %v2880 = vld [vmem:[#allocation2 + $0x85] sm:$0xff]
  %v2881 = vld [vmem:[#allocation2 + $0x8d] sm:$0xff]
  %v2882 = vld [vmem:[#allocation2 + $0x95] sm:$0xff]
  %v2883 = vld [vmem:[#allocation2 + $0x9d] sm:$0xff]
  %v2884 = vld [vmem:[#allocation2 + $0xa5] sm:$0xff]
  %v2885 = vld [vmem:[#allocation2 + $0xad] sm:$0xff]
  %v2886 = vld [vmem:[#allocation2 + $0xb5] sm:$0xff]
  %v2887 = vld [vmem:[#allocation2 + $0xbd] sm:$0xff]
  %v2888 = vld [vmem:[#allocation2 + $0xc5] sm:$0xff]
  %v2889 = vld [vmem:[#allocation2 + $0xcd] sm:$0xff]
  %v2890 = vld [vmem:[#allocation2 + $0xd5] sm:$0xff]
  %v2891 = vld [vmem:[#allocation2 + $0xdd] sm:$0xff]
  %v2892 = vld [vmem:[#allocation2 + $0xe5] sm:$0xff]
  %v2893 = vld [vmem:[#allocation2 + $0xed] sm:$0xff]
  %v2894 = vld [vmem:[#allocation2 + $0xf5] sm:$0xff]
  %v2895 = vld [vmem:[#allocation2 + $0xfd] sm:$0xff]
  %v2896 = vld [vmem:[#allocation2 + $0x105] sm:$0xff]
  %v2897 = vld [vmem:[#allocation2 + $0x10d] sm:$0xff]
  %v2898 = vld [vmem:[#allocation2 + $0x115] sm:$0xff]
  %v2899 = vld [vmem:[#allocation2 + $0x11d] sm:$0xff]
  %v2900 = vld [vmem:[#allocation2 + $0x125] sm:$0xff]
  %2937 = vrot.lane.b32.xlu0 %v2865, 48
  %v2938 = vpop.permute.xlu0 %2937
  %2939 = vrot.lane.b32.xlu0 %v2866, 48
  %v2940 = vpop.permute.xlu0 %2939
  %2941 = vrot.lane.b32.xlu0 %v2867, 48
  %v2942 = vpop.permute.xlu0 %2941
  %2943 = vrot.lane.b32.xlu0 %v2868, 48
  %v2944 = vpop.permute.xlu0 %2943
  %2945 = vrot.lane.b32.xlu0 %v2869, 48
  %v2946 = vpop.permute.xlu0 %2945
  %2947 = vrot.lane.b32.xlu0 %v2870, 48
  %v2948 = vpop.permute.xlu0 %2947
  %2949 = vrot.lane.b32.xlu0 %v2871, 48
  %v2950 = vpop.permute.xlu0 %2949
  %2951 = vrot.lane.b32.xlu0 %v2872, 48
  %v2952 = vpop.permute.xlu0 %2951
  %2953 = vrot.lane.b32.xlu0 %v2873, 48
  %v2954 = vpop.permute.xlu0 %2953
  %2955 = vrot.lane.b32.xlu0 %v2874, 48
  %v2956 = vpop.permute.xlu0 %2955
  %2957 = vrot.lane.b32.xlu0 %v2875, 48
  %v2958 = vpop.permute.xlu0 %2957
  %2959 = vrot.lane.b32.xlu0 %v2876, 48
  %v2960 = vpop.permute.xlu0 %2959
  %2961 = vrot.lane.b32.xlu0 %v2877, 48
  %v2962 = vpop.permute.xlu0 %2961
  %2963 = vrot.lane.b32.xlu0 %v2878, 48
  %v2964 = vpop.permute.xlu0 %2963
  %2965 = vrot.lane.b32.xlu0 %v2879, 48
  %v2966 = vpop.permute.xlu0 %2965
  %2967 = vrot.lane.b32.xlu0 %v2880, 48
  %v2968 = vpop.permute.xlu0 %2967
  %2969 = vrot.lane.b32.xlu0 %v2881, 48
  %v2970 = vpop.permute.xlu0 %2969
  %2971 = vrot.lane.b32.xlu0 %v2882, 48
  %v2972 = vpop.permute.xlu0 %2971
  %2973 = vrot.lane.b32.xlu0 %v2883, 48
  %v2974 = vpop.permute.xlu0 %2973
  %2975 = vrot.lane.b32.xlu0 %v2884, 48
  %v2976 = vpop.permute.xlu0 %2975
  %2977 = vrot.lane.b32.xlu0 %v2885, 48
  %v2978 = vpop.permute.xlu0 %2977
  %2979 = vrot.lane.b32.xlu0 %v2886, 48
  %v2980 = vpop.permute.xlu0 %2979
  %2981 = vrot.lane.b32.xlu0 %v2887, 48
  %v2982 = vpop.permute.xlu0 %2981
  %2983 = vrot.lane.b32.xlu0 %v2888, 48
  %v2984 = vpop.permute.xlu0 %2983
  %2985 = vrot.lane.b32.xlu0 %v2889, 48
  %v2986 = vpop.permute.xlu0 %2985
  %2987 = vrot.lane.b32.xlu0 %v2890, 48
  %v2988 = vpop.permute.xlu0 %2987
  %2989 = vrot.lane.b32.xlu0 %v2891, 48
  %v2990 = vpop.permute.xlu0 %2989
  %2991 = vrot.lane.b32.xlu0 %v2892, 48
  %v2992 = vpop.permute.xlu0 %2991
  %2993 = vrot.lane.b32.xlu0 %v2893, 48
  %v2994 = vpop.permute.xlu0 %2993
  %2995 = vrot.lane.b32.xlu0 %v2894, 48
  %v2996 = vpop.permute.xlu0 %2995
  %2997 = vrot.lane.b32.xlu0 %v2895, 48
  %v2998 = vpop.permute.xlu0 %2997
  %2999 = vrot.lane.b32.xlu0 %v2896, 48
  %v3000 = vpop.permute.xlu0 %2999
  %3001 = vrot.lane.b32.xlu0 %v2897, 48
  %v3002 = vpop.permute.xlu0 %3001
  %3003 = vrot.lane.b32.xlu0 %v2898, 48
  %v3004 = vpop.permute.xlu0 %3003
  %3005 = vrot.lane.b32.xlu0 %v2899, 48
  %v3006 = vpop.permute.xlu0 %3005
  %3007 = vrot.lane.b32.xlu0 %v2900, 48
  %v3008 = vpop.permute.xlu0 %3007
  %vm3045 = vcmask 458112
  %3046 = vst.msk [vmem:[#allocation3] sm:$0xff] %vm3045, %v2938
  %3047 = vst.msk [vmem:[#allocation3 + $0x10] sm:$0xff] %vm3045, %v2940
  %3048 = vst.msk [vmem:[#allocation3 + $0x20] sm:$0xff] %vm3045, %v2942
  %3049 = vst.msk [vmem:[#allocation3 + $0x30] sm:$0xff] %vm3045, %v2944
  %3050 = vst.msk [vmem:[#allocation3 + $0x40] sm:$0xff] %vm3045, %v2946
  %3051 = vst.msk [vmem:[#allocation3 + $0x50] sm:$0xff] %vm3045, %v2948
  %3052 = vst.msk [vmem:[#allocation3 + $0x60] sm:$0xff] %vm3045, %v2950
  %3053 = vst.msk [vmem:[#allocation3 + $0x70] sm:$0xff] %vm3045, %v2952
  %3054 = vst.msk [vmem:[#allocation3 + $0x80] sm:$0xff] %vm3045, %v2954
  %3055 = vst.msk [vmem:[#allocation3 + $0x90] sm:$0xff] %vm3045, %v2956
  %3056 = vst.msk [vmem:[#allocation3 + $0xa0] sm:$0xff] %vm3045, %v2958
  %3057 = vst.msk [vmem:[#allocation3 + $0xb0] sm:$0xff] %vm3045, %v2960
  %3058 = vst.msk [vmem:[#allocation3 + $0xc0] sm:$0xff] %vm3045, %v2962
  %3059 = vst.msk [vmem:[#allocation3 + $0xd0] sm:$0xff] %vm3045, %v2964
  %3060 = vst.msk [vmem:[#allocation3 + $0xe0] sm:$0xff] %vm3045, %v2966
  %3061 = vst.msk [vmem:[#allocation3 + $0xf0] sm:$0xff] %vm3045, %v2968
  %3062 = vst.msk [vmem:[#allocation3 + $0x100] sm:$0xff] %vm3045, %v2970
  %3063 = vst.msk [vmem:[#allocation3 + $0x110] sm:$0xff] %vm3045, %v2972
  %3064 = vst.msk [vmem:[#allocation3 + $0x120] sm:$0xff] %vm3045, %v2974
  %3065 = vst.msk [vmem:[#allocation3 + $0x130] sm:$0xff] %vm3045, %v2976
  %3066 = vst.msk [vmem:[#allocation3 + $0x140] sm:$0xff] %vm3045, %v2978
  %3067 = vst.msk [vmem:[#allocation3 + $0x150] sm:$0xff] %vm3045, %v2980
  %3068 = vst.msk [vmem:[#allocation3 + $0x160] sm:$0xff] %vm3045, %v2982
  %3069 = vst.msk [vmem:[#allocation3 + $0x170] sm:$0xff] %vm3045, %v2984
  %3070 = vst.msk [vmem:[#allocation3 + $0x180] sm:$0xff] %vm3045, %v2986
  %3071 = vst.msk [vmem:[#allocation3 + $0x190] sm:$0xff] %vm3045, %v2988
  %3072 = vst.msk [vmem:[#allocation3 + $0x1a0] sm:$0xff] %vm3045, %v2990
  %3073 = vst.msk [vmem:[#allocation3 + $0x1b0] sm:$0xff] %vm3045, %v2992
  %3074 = vst.msk [vmem:[#allocation3 + $0x1c0] sm:$0xff] %vm3045, %v2994
  %3075 = vst.msk [vmem:[#allocation3 + $0x1d0] sm:$0xff] %vm3045, %v2996
  %3076 = vst.msk [vmem:[#allocation3 + $0x1e0] sm:$0xff] %vm3045, %v2998
  %3077 = vst.msk [vmem:[#allocation3 + $0x1f0] sm:$0xff] %vm3045, %v3000
  %3078 = vst.msk [vmem:[#allocation3 + $0x200] sm:$0xff] %vm3045, %v3002
  %3079 = vst.msk [vmem:[#allocation3 + $0x210] sm:$0xff] %vm3045, %v3004
  %3080 = vst.msk [vmem:[#allocation3 + $0x220] sm:$0xff] %vm3045, %v3006
  %3081 = vst.msk [vmem:[#allocation3 + $0x230] sm:$0xff] %vm3045, %v3008
  %v3082 = vld [vmem:[#allocation2 + $0xe] sm:$0xff]
  %v3083 = vld [vmem:[#allocation2 + $0x16] sm:$0xff]
  %v3084 = vld [vmem:[#allocation2 + $0x1e] sm:$0xff]
  %v3085 = vld [vmem:[#allocation2 + $0x26] sm:$0xff]
  %v3086 = vld [vmem:[#allocation2 + $0x2e] sm:$0xff]
  %v3087 = vld [vmem:[#allocation2 + $0x36] sm:$0xff]
  %v3088 = vld [vmem:[#allocation2 + $0x3e] sm:$0xff]
  %v3089 = vld [vmem:[#allocation2 + $0x46] sm:$0xff]
  %v3090 = vld [vmem:[#allocation2 + $0x4e] sm:$0xff]
  %v3091 = vld [vmem:[#allocation2 + $0x56] sm:$0xff]
  %v3092 = vld [vmem:[#allocation2 + $0x5e] sm:$0xff]
  %v3093 = vld [vmem:[#allocation2 + $0x66] sm:$0xff]
  %v3094 = vld [vmem:[#allocation2 + $0x6e] sm:$0xff]
  %v3095 = vld [vmem:[#allocation2 + $0x76] sm:$0xff]
  %v3096 = vld [vmem:[#allocation2 + $0x7e] sm:$0xff]
  %v3097 = vld [vmem:[#allocation2 + $0x86] sm:$0xff]
  %v3098 = vld [vmem:[#allocation2 + $0x8e] sm:$0xff]
  %v3099 = vld [vmem:[#allocation2 + $0x96] sm:$0xff]
  %v3100 = vld [vmem:[#allocation2 + $0x9e] sm:$0xff]
  %v3101 = vld [vmem:[#allocation2 + $0xa6] sm:$0xff]
  %v3102 = vld [vmem:[#allocation2 + $0xae] sm:$0xff]
  %v3103 = vld [vmem:[#allocation2 + $0xb6] sm:$0xff]
  %v3104 = vld [vmem:[#allocation2 + $0xbe] sm:$0xff]
  %v3105 = vld [vmem:[#allocation2 + $0xc6] sm:$0xff]
  %v3106 = vld [vmem:[#allocation2 + $0xce] sm:$0xff]
  %v3107 = vld [vmem:[#allocation2 + $0xd6] sm:$0xff]
  %v3108 = vld [vmem:[#allocation2 + $0xde] sm:$0xff]
  %v3109 = vld [vmem:[#allocation2 + $0xe6] sm:$0xff]
  %v3110 = vld [vmem:[#allocation2 + $0xee] sm:$0xff]
  %v3111 = vld [vmem:[#allocation2 + $0xf6] sm:$0xff]
  %v3112 = vld [vmem:[#allocation2 + $0xfe] sm:$0xff]
  %v3113 = vld [vmem:[#allocation2 + $0x106] sm:$0xff]
  %v3114 = vld [vmem:[#allocation2 + $0x10e] sm:$0xff]
  %v3115 = vld [vmem:[#allocation2 + $0x116] sm:$0xff]
  %v3116 = vld [vmem:[#allocation2 + $0x11e] sm:$0xff]
  %v3117 = vld [vmem:[#allocation2 + $0x126] sm:$0xff]
  %3154 = vrot.lane.b32.xlu0 %v3082, 56
  %v3155 = vpop.permute.xlu0 %3154
  %3156 = vrot.lane.b32.xlu0 %v3083, 56
  %v3157 = vpop.permute.xlu0 %3156
  %3158 = vrot.lane.b32.xlu0 %v3084, 56
  %v3159 = vpop.permute.xlu0 %3158
  %3160 = vrot.lane.b32.xlu0 %v3085, 56
  %v3161 = vpop.permute.xlu0 %3160
  %3162 = vrot.lane.b32.xlu0 %v3086, 56
  %v3163 = vpop.permute.xlu0 %3162
  %3164 = vrot.lane.b32.xlu0 %v3087, 56
  %v3165 = vpop.permute.xlu0 %3164
  %3166 = vrot.lane.b32.xlu0 %v3088, 56
  %v3167 = vpop.permute.xlu0 %3166
  %3168 = vrot.lane.b32.xlu0 %v3089, 56
  %v3169 = vpop.permute.xlu0 %3168
  %3170 = vrot.lane.b32.xlu0 %v3090, 56
  %v3171 = vpop.permute.xlu0 %3170
  %3172 = vrot.lane.b32.xlu0 %v3091, 56
  %v3173 = vpop.permute.xlu0 %3172
  %3174 = vrot.lane.b32.xlu0 %v3092, 56
  %v3175 = vpop.permute.xlu0 %3174
  %3176 = vrot.lane.b32.xlu0 %v3093, 56
  %v3177 = vpop.permute.xlu0 %3176
  %3178 = vrot.lane.b32.xlu0 %v3094, 56
  %v3179 = vpop.permute.xlu0 %3178
  %3180 = vrot.lane.b32.xlu0 %v3095, 56
  %v3181 = vpop.permute.xlu0 %3180
  %3182 = vrot.lane.b32.xlu0 %v3096, 56
  %v3183 = vpop.permute.xlu0 %3182
  %3184 = vrot.lane.b32.xlu0 %v3097, 56
  %v3185 = vpop.permute.xlu0 %3184
  %3186 = vrot.lane.b32.xlu0 %v3098, 56
  %v3187 = vpop.permute.xlu0 %3186
  %3188 = vrot.lane.b32.xlu0 %v3099, 56
  %v3189 = vpop.permute.xlu0 %3188
  %3190 = vrot.lane.b32.xlu0 %v3100, 56
  %v3191 = vpop.permute.xlu0 %3190
  %3192 = vrot.lane.b32.xlu0 %v3101, 56
  %v3193 = vpop.permute.xlu0 %3192
  %3194 = vrot.lane.b32.xlu0 %v3102, 56
  %v3195 = vpop.permute.xlu0 %3194
  %3196 = vrot.lane.b32.xlu0 %v3103, 56
  %v3197 = vpop.permute.xlu0 %3196
  %3198 = vrot.lane.b32.xlu0 %v3104, 56
  %v3199 = vpop.permute.xlu0 %3198
  %3200 = vrot.lane.b32.xlu0 %v3105, 56
  %v3201 = vpop.permute.xlu0 %3200
  %3202 = vrot.lane.b32.xlu0 %v3106, 56
  %v3203 = vpop.permute.xlu0 %3202
  %3204 = vrot.lane.b32.xlu0 %v3107, 56
  %v3205 = vpop.permute.xlu0 %3204
  %3206 = vrot.lane.b32.xlu0 %v3108, 56
  %v3207 = vpop.permute.xlu0 %3206
  %3208 = vrot.lane.b32.xlu0 %v3109, 56
  %v3209 = vpop.permute.xlu0 %3208
  %3210 = vrot.lane.b32.xlu0 %v3110, 56
  %v3211 = vpop.permute.xlu0 %3210
  %3212 = vrot.lane.b32.xlu0 %v3111, 56
  %v3213 = vpop.permute.xlu0 %3212
  %3214 = vrot.lane.b32.xlu0 %v3112, 56
  %v3215 = vpop.permute.xlu0 %3214
  %3216 = vrot.lane.b32.xlu0 %v3113, 56
  %v3217 = vpop.permute.xlu0 %3216
  %3218 = vrot.lane.b32.xlu0 %v3114, 56
  %v3219 = vpop.permute.xlu0 %3218
  %3220 = vrot.lane.b32.xlu0 %v3115, 56
  %v3221 = vpop.permute.xlu0 %3220
  %3222 = vrot.lane.b32.xlu0 %v3116, 56
  %v3223 = vpop.permute.xlu0 %3222
  %3224 = vrot.lane.b32.xlu0 %v3117, 56
  %v3225 = vpop.permute.xlu0 %3224
  %vm3262 = vcmask 523712
  %3263 = vst.msk [vmem:[#allocation3] sm:$0xff] %vm3262, %v3155
  %3264 = vst.msk [vmem:[#allocation3 + $0x10] sm:$0xff] %vm3262, %v3157
  %3265 = vst.msk [vmem:[#allocation3 + $0x20] sm:$0xff] %vm3262, %v3159
  %3266 = vst.msk [vmem:[#allocation3 + $0x30] sm:$0xff] %vm3262, %v3161
  %3267 = vst.msk [vmem:[#allocation3 + $0x40] sm:$0xff] %vm3262, %v3163
  %3268 = vst.msk [vmem:[#allocation3 + $0x50] sm:$0xff] %vm3262, %v3165
  %3269 = vst.msk [vmem:[#allocation3 + $0x60] sm:$0xff] %vm3262, %v3167
  %3270 = vst.msk [vmem:[#allocation3 + $0x70] sm:$0xff] %vm3262, %v3169
  %3271 = vst.msk [vmem:[#allocation3 + $0x80] sm:$0xff] %vm3262, %v3171
  %3272 = vst.msk [vmem:[#allocation3 + $0x90] sm:$0xff] %vm3262, %v3173
  %3273 = vst.msk [vmem:[#allocation3 + $0xa0] sm:$0xff] %vm3262, %v3175
  %3274 = vst.msk [vmem:[#allocation3 + $0xb0] sm:$0xff] %vm3262, %v3177
  %3275 = vst.msk [vmem:[#allocation3 + $0xc0] sm:$0xff] %vm3262, %v3179
  %3276 = vst.msk [vmem:[#allocation3 + $0xd0] sm:$0xff] %vm3262, %v3181
  %3277 = vst.msk [vmem:[#allocation3 + $0xe0] sm:$0xff] %vm3262, %v3183
  %3278 = vst.msk [vmem:[#allocation3 + $0xf0] sm:$0xff] %vm3262, %v3185
  %3279 = vst.msk [vmem:[#allocation3 + $0x100] sm:$0xff] %vm3262, %v3187
  %3280 = vst.msk [vmem:[#allocation3 + $0x110] sm:$0xff] %vm3262, %v3189
  %3281 = vst.msk [vmem:[#allocation3 + $0x120] sm:$0xff] %vm3262, %v3191
  %3282 = vst.msk [vmem:[#allocation3 + $0x130] sm:$0xff] %vm3262, %v3193
  %3283 = vst.msk [vmem:[#allocation3 + $0x140] sm:$0xff] %vm3262, %v3195
  %3284 = vst.msk [vmem:[#allocation3 + $0x150] sm:$0xff] %vm3262, %v3197
  %3285 = vst.msk [vmem:[#allocation3 + $0x160] sm:$0xff] %vm3262, %v3199
  %3286 = vst.msk [vmem:[#allocation3 + $0x170] sm:$0xff] %vm3262, %v3201
  %3287 = vst.msk [vmem:[#allocation3 + $0x180] sm:$0xff] %vm3262, %v3203
  %3288 = vst.msk [vmem:[#allocation3 + $0x190] sm:$0xff] %vm3262, %v3205
  %3289 = vst.msk [vmem:[#allocation3 + $0x1a0] sm:$0xff] %vm3262, %v3207
  %3290 = vst.msk [vmem:[#allocation3 + $0x1b0] sm:$0xff] %vm3262, %v3209
  %3291 = vst.msk [vmem:[#allocation3 + $0x1c0] sm:$0xff] %vm3262, %v3211
  %3292 = vst.msk [vmem:[#allocation3 + $0x1d0] sm:$0xff] %vm3262, %v3213
  %3293 = vst.msk [vmem:[#allocation3 + $0x1e0] sm:$0xff] %vm3262, %v3215
  %3294 = vst.msk [vmem:[#allocation3 + $0x1f0] sm:$0xff] %vm3262, %v3217
  %3295 = vst.msk [vmem:[#allocation3 + $0x200] sm:$0xff] %vm3262, %v3219
  %3296 = vst.msk [vmem:[#allocation3 + $0x210] sm:$0xff] %vm3262, %v3221
  %3297 = vst.msk [vmem:[#allocation3 + $0x220] sm:$0xff] %vm3262, %v3223
  %3298 = vst.msk [vmem:[#allocation3 + $0x230] sm:$0xff] %vm3262, %v3225
  %v3299 = vld [vmem:[#allocation2 + $0xf] sm:$0xff]
  %v3300 = vld [vmem:[#allocation2 + $0x17] sm:$0xff]
  %v3301 = vld [vmem:[#allocation2 + $0x1f] sm:$0xff]
  %v3302 = vld [vmem:[#allocation2 + $0x27] sm:$0xff]
  %v3303 = vld [vmem:[#allocation2 + $0x2f] sm:$0xff]
  %v3304 = vld [vmem:[#allocation2 + $0x37] sm:$0xff]
  %v3305 = vld [vmem:[#allocation2 + $0x3f] sm:$0xff]
  %v3306 = vld [vmem:[#allocation2 + $0x47] sm:$0xff]
  %v3307 = vld [vmem:[#allocation2 + $0x4f] sm:$0xff]
  %v3308 = vld [vmem:[#allocation2 + $0x57] sm:$0xff]
  %v3309 = vld [vmem:[#allocation2 + $0x5f] sm:$0xff]
  %v3310 = vld [vmem:[#allocation2 + $0x67] sm:$0xff]
  %v3311 = vld [vmem:[#allocation2 + $0x6f] sm:$0xff]
  %v3312 = vld [vmem:[#allocation2 + $0x77] sm:$0xff]
  %v3313 = vld [vmem:[#allocation2 + $0x7f] sm:$0xff]
  %v3314 = vld [vmem:[#allocation2 + $0x87] sm:$0xff]
  %v3315 = vld [vmem:[#allocation2 + $0x8f] sm:$0xff]
  %v3316 = vld [vmem:[#allocation2 + $0x97] sm:$0xff]
  %v3317 = vld [vmem:[#allocation2 + $0x9f] sm:$0xff]
  %v3318 = vld [vmem:[#allocation2 + $0xa7] sm:$0xff]
  %v3319 = vld [vmem:[#allocation2 + $0xaf] sm:$0xff]
  %v3320 = vld [vmem:[#allocation2 + $0xb7] sm:$0xff]
  %v3321 = vld [vmem:[#allocation2 + $0xbf] sm:$0xff]
  %v3322 = vld [vmem:[#allocation2 + $0xc7] sm:$0xff]
  %v3323 = vld [vmem:[#allocation2 + $0xcf] sm:$0xff]
  %v3324 = vld [vmem:[#allocation2 + $0xd7] sm:$0xff]
  %v3325 = vld [vmem:[#allocation2 + $0xdf] sm:$0xff]
  %v3326 = vld [vmem:[#allocation2 + $0xe7] sm:$0xff]
  %v3327 = vld [vmem:[#allocation2 + $0xef] sm:$0xff]
  %v3328 = vld [vmem:[#allocation2 + $0xf7] sm:$0xff]
  %v3329 = vld [vmem:[#allocation2 + $0xff] sm:$0xff]
  %v3330 = vld [vmem:[#allocation2 + $0x107] sm:$0xff]
  %v3331 = vld [vmem:[#allocation2 + $0x10f] sm:$0xff]
  %v3332 = vld [vmem:[#allocation2 + $0x117] sm:$0xff]
  %v3333 = vld [vmem:[#allocation2 + $0x11f] sm:$0xff]
  %v3334 = vld [vmem:[#allocation2 + $0x127] sm:$0xff]
  %3371 = vrot.lane.b32.xlu0 %v3299, 64
  %v3372 = vpop.permute.xlu0 %3371
  %3373 = vrot.lane.b32.xlu0 %v3300, 64
  %v3374 = vpop.permute.xlu0 %3373
  %3375 = vrot.lane.b32.xlu0 %v3301, 64
  %v3376 = vpop.permute.xlu0 %3375
  %3377 = vrot.lane.b32.xlu0 %v3302, 64
  %v3378 = vpop.permute.xlu0 %3377
  %3379 = vrot.lane.b32.xlu0 %v3303, 64
  %v3380 = vpop.permute.xlu0 %3379
  %3381 = vrot.lane.b32.xlu0 %v3304, 64
  %v3382 = vpop.permute.xlu0 %3381
  %3383 = vrot.lane.b32.xlu0 %v3305, 64
  %v3384 = vpop.permute.xlu0 %3383
  %3385 = vrot.lane.b32.xlu0 %v3306, 64
  %v3386 = vpop.permute.xlu0 %3385
  %3387 = vrot.lane.b32.xlu0 %v3307, 64
  %v3388 = vpop.permute.xlu0 %3387
  %3389 = vrot.lane.b32.xlu0 %v3308, 64
  %v3390 = vpop.permute.xlu0 %3389
  %3391 = vrot.lane.b32.xlu0 %v3309, 64
  %v3392 = vpop.permute.xlu0 %3391
  %3393 = vrot.lane.b32.xlu0 %v3310, 64
  %v3394 = vpop.permute.xlu0 %3393
  %3395 = vrot.lane.b32.xlu0 %v3311, 64
  %v3396 = vpop.permute.xlu0 %3395
  %3397 = vrot.lane.b32.xlu0 %v3312, 64
  %v3398 = vpop.permute.xlu0 %3397
  %3399 = vrot.lane.b32.xlu0 %v3313, 64
  %v3400 = vpop.permute.xlu0 %3399
  %3401 = vrot.lane.b32.xlu0 %v3314, 64
  %v3402 = vpop.permute.xlu0 %3401
  %3403 = vrot.lane.b32.xlu0 %v3315, 64
  %v3404 = vpop.permute.xlu0 %3403
  %3405 = vrot.lane.b32.xlu0 %v3316, 64
  %v3406 = vpop.permute.xlu0 %3405
  %3407 = vrot.lane.b32.xlu0 %v3317, 64
  %v3408 = vpop.permute.xlu0 %3407
  %3409 = vrot.lane.b32.xlu0 %v3318, 64
  %v3410 = vpop.permute.xlu0 %3409
  %3411 = vrot.lane.b32.xlu0 %v3319, 64
  %v3412 = vpop.permute.xlu0 %3411
  %3413 = vrot.lane.b32.xlu0 %v3320, 64
  %v3414 = vpop.permute.xlu0 %3413
  %3415 = vrot.lane.b32.xlu0 %v3321, 64
  %v3416 = vpop.permute.xlu0 %3415
  %3417 = vrot.lane.b32.xlu0 %v3322, 64
  %v3418 = vpop.permute.xlu0 %3417
  %3419 = vrot.lane.b32.xlu0 %v3323, 64
  %v3420 = vpop.permute.xlu0 %3419
  %3421 = vrot.lane.b32.xlu0 %v3324, 64
  %v3422 = vpop.permute.xlu0 %3421
  %3423 = vrot.lane.b32.xlu0 %v3325, 64
  %v3424 = vpop.permute.xlu0 %3423
  %3425 = vrot.lane.b32.xlu0 %v3326, 64
  %v3426 = vpop.permute.xlu0 %3425
  %3427 = vrot.lane.b32.xlu0 %v3327, 64
  %v3428 = vpop.permute.xlu0 %3427
  %3429 = vrot.lane.b32.xlu0 %v3328, 64
  %v3430 = vpop.permute.xlu0 %3429
  %3431 = vrot.lane.b32.xlu0 %v3329, 64
  %v3432 = vpop.permute.xlu0 %3431
  %3433 = vrot.lane.b32.xlu0 %v3330, 64
  %v3434 = vpop.permute.xlu0 %3433
  %3435 = vrot.lane.b32.xlu0 %v3331, 64
  %v3436 = vpop.permute.xlu0 %3435
  %3437 = vrot.lane.b32.xlu0 %v3332, 64
  %v3438 = vpop.permute.xlu0 %3437
  %3439 = vrot.lane.b32.xlu0 %v3333, 64
  %v3440 = vpop.permute.xlu0 %3439
  %3441 = vrot.lane.b32.xlu0 %v3334, 64
  %v3442 = vpop.permute.xlu0 %3441
  %vm3479 = vcmask 589312
  %3480 = vst.msk [vmem:[#allocation3] sm:$0xff] %vm3479, %v3372
  %3481 = vst.msk [vmem:[#allocation3 + $0x10] sm:$0xff] %vm3479, %v3374
  %3482 = vst.msk [vmem:[#allocation3 + $0x20] sm:$0xff] %vm3479, %v3376
  %3483 = vst.msk [vmem:[#allocation3 + $0x30] sm:$0xff] %vm3479, %v3378
  %3484 = vst.msk [vmem:[#allocation3 + $0x40] sm:$0xff] %vm3479, %v3380
  %3485 = vst.msk [vmem:[#allocation3 + $0x50] sm:$0xff] %vm3479, %v3382
  %3486 = vst.msk [vmem:[#allocation3 + $0x60] sm:$0xff] %vm3479, %v3384
  %3487 = vst.msk [vmem:[#allocation3 + $0x70] sm:$0xff] %vm3479, %v3386
  %3488 = vst.msk [vmem:[#allocation3 + $0x80] sm:$0xff] %vm3479, %v3388
  %3489 = vst.msk [vmem:[#allocation3 + $0x90] sm:$0xff] %vm3479, %v3390
  %3490 = vst.msk [vmem:[#allocation3 + $0xa0] sm:$0xff] %vm3479, %v3392
  %3491 = vst.msk [vmem:[#allocation3 + $0xb0] sm:$0xff] %vm3479, %v3394
  %3492 = vst.msk [vmem:[#allocation3 + $0xc0] sm:$0xff] %vm3479, %v3396
  %3493 = vst.msk [vmem:[#allocation3 + $0xd0] sm:$0xff] %vm3479, %v3398
  %3494 = vst.msk [vmem:[#allocation3 + $0xe0] sm:$0xff] %vm3479, %v3400
  %3495 = vst.msk [vmem:[#allocation3 + $0xf0] sm:$0xff] %vm3479, %v3402
  %3496 = vst.msk [vmem:[#allocation3 + $0x100] sm:$0xff] %vm3479, %v3404
  %3497 = vst.msk [vmem:[#allocation3 + $0x110] sm:$0xff] %vm3479, %v3406
  %3498 = vst.msk [vmem:[#allocation3 + $0x120] sm:$0xff] %vm3479, %v3408
  %3499 = vst.msk [vmem:[#allocation3 + $0x130] sm:$0xff] %vm3479, %v3410
  %3500 = vst.msk [vmem:[#allocation3 + $0x140] sm:$0xff] %vm3479, %v3412
  %3501 = vst.msk [vmem:[#allocation3 + $0x150] sm:$0xff] %vm3479, %v3414
  %3502 = vst.msk [vmem:[#allocation3 + $0x160] sm:$0xff] %vm3479, %v3416
  %3503 = vst.msk [vmem:[#allocation3 + $0x170] sm:$0xff] %vm3479, %v3418
  %3504 = vst.msk [vmem:[#allocation3 + $0x180] sm:$0xff] %vm3479, %v3420
  %3505 = vst.msk [vmem:[#allocation3 + $0x190] sm:$0xff] %vm3479, %v3422
  %3506 = vst.msk [vmem:[#allocation3 + $0x1a0] sm:$0xff] %vm3479, %v3424
  %3507 = vst.msk [vmem:[#allocation3 + $0x1b0] sm:$0xff] %vm3479, %v3426
  %3508 = vst.msk [vmem:[#allocation3 + $0x1c0] sm:$0xff] %vm3479, %v3428
  %3509 = vst.msk [vmem:[#allocation3 + $0x1d0] sm:$0xff] %vm3479, %v3430
  %3510 = vst.msk [vmem:[#allocation3 + $0x1e0] sm:$0xff] %vm3479, %v3432
  %3511 = vst.msk [vmem:[#allocation3 + $0x1f0] sm:$0xff] %vm3479, %v3434
  %3512 = vst.msk [vmem:[#allocation3 + $0x200] sm:$0xff] %vm3479, %v3436
  %3513 = vst.msk [vmem:[#allocation3 + $0x210] sm:$0xff] %vm3479, %v3438
  %3514 = vst.msk [vmem:[#allocation3 + $0x220] sm:$0xff] %vm3479, %v3440
  %3515 = vst.msk [vmem:[#allocation3 + $0x230] sm:$0xff] %vm3479, %v3442
  %v3516 = vld [vmem:[#allocation2 + $0x10] sm:$0xff]
  %v3517 = vld [vmem:[#allocation2 + $0x18] sm:$0xff]
  %v3518 = vld [vmem:[#allocation2 + $0x20] sm:$0xff]
  %v3519 = vld [vmem:[#allocation2 + $0x28] sm:$0xff]
  %v3520 = vld [vmem:[#allocation2 + $0x30] sm:$0xff]
  %v3521 = vld [vmem:[#allocation2 + $0x38] sm:$0xff]
  %v3522 = vld [vmem:[#allocation2 + $0x40] sm:$0xff]
  %v3523 = vld [vmem:[#allocation2 + $0x48] sm:$0xff]
  %v3524 = vld [vmem:[#allocation2 + $0x50] sm:$0xff]
  %v3525 = vld [vmem:[#allocation2 + $0x58] sm:$0xff]
  %v3526 = vld [vmem:[#allocation2 + $0x60] sm:$0xff]
  %v3527 = vld [vmem:[#allocation2 + $0x68] sm:$0xff]
  %v3528 = vld [vmem:[#allocation2 + $0x70] sm:$0xff]
  %v3529 = vld [vmem:[#allocation2 + $0x78] sm:$0xff]
  %v3530 = vld [vmem:[#allocation2 + $0x80] sm:$0xff]
  %v3531 = vld [vmem:[#allocation2 + $0x88] sm:$0xff]
  %v3532 = vld [vmem:[#allocation2 + $0x90] sm:$0xff]
  %v3533 = vld [vmem:[#allocation2 + $0x98] sm:$0xff]
  %v3534 = vld [vmem:[#allocation2 + $0xa0] sm:$0xff]
  %v3535 = vld [vmem:[#allocation2 + $0xa8] sm:$0xff]
  %v3536 = vld [vmem:[#allocation2 + $0xb0] sm:$0xff]
  %v3537 = vld [vmem:[#allocation2 + $0xb8] sm:$0xff]
  %v3538 = vld [vmem:[#allocation2 + $0xc0] sm:$0xff]
  %v3539 = vld [vmem:[#allocation2 + $0xc8] sm:$0xff]
  %v3540 = vld [vmem:[#allocation2 + $0xd0] sm:$0xff]
  %v3541 = vld [vmem:[#allocation2 + $0xd8] sm:$0xff]
  %v3542 = vld [vmem:[#allocation2 + $0xe0] sm:$0xff]
  %v3543 = vld [vmem:[#allocation2 + $0xe8] sm:$0xff]
  %v3544 = vld [vmem:[#allocation2 + $0xf0] sm:$0xff]
  %v3545 = vld [vmem:[#allocation2 + $0xf8] sm:$0xff]
  %v3546 = vld [vmem:[#allocation2 + $0x100] sm:$0xff]
  %v3547 = vld [vmem:[#allocation2 + $0x108] sm:$0xff]
  %v3548 = vld [vmem:[#allocation2 + $0x110] sm:$0xff]
  %v3549 = vld [vmem:[#allocation2 + $0x118] sm:$0xff]
  %v3550 = vld [vmem:[#allocation2 + $0x120] sm:$0xff]
  %v3551 = vld [vmem:[#allocation2 + $0x128] sm:$0xff]
  %3588 = vrot.lane.b32.xlu0 %v3516, 72
  %v3589 = vpop.permute.xlu0 %3588
  %3590 = vrot.lane.b32.xlu0 %v3517, 72
  %v3591 = vpop.permute.xlu0 %3590
  %3592 = vrot.lane.b32.xlu0 %v3518, 72
  %v3593 = vpop.permute.xlu0 %3592
  %3594 = vrot.lane.b32.xlu0 %v3519, 72
  %v3595 = vpop.permute.xlu0 %3594
  %3596 = vrot.lane.b32.xlu0 %v3520, 72
  %v3597 = vpop.permute.xlu0 %3596
  %3598 = vrot.lane.b32.xlu0 %v3521, 72
  %v3599 = vpop.permute.xlu0 %3598
  %3600 = vrot.lane.b32.xlu0 %v3522, 72
  %v3601 = vpop.permute.xlu0 %3600
  %3602 = vrot.lane.b32.xlu0 %v3523, 72
  %v3603 = vpop.permute.xlu0 %3602
  %3604 = vrot.lane.b32.xlu0 %v3524, 72
  %v3605 = vpop.permute.xlu0 %3604
  %3606 = vrot.lane.b32.xlu0 %v3525, 72
  %v3607 = vpop.permute.xlu0 %3606
  %3608 = vrot.lane.b32.xlu0 %v3526, 72
  %v3609 = vpop.permute.xlu0 %3608
  %3610 = vrot.lane.b32.xlu0 %v3527, 72
  %v3611 = vpop.permute.xlu0 %3610
  %3612 = vrot.lane.b32.xlu0 %v3528, 72
  %v3613 = vpop.permute.xlu0 %3612
  %3614 = vrot.lane.b32.xlu0 %v3529, 72
  %v3615 = vpop.permute.xlu0 %3614
  %3616 = vrot.lane.b32.xlu0 %v3530, 72
  %v3617 = vpop.permute.xlu0 %3616
  %3618 = vrot.lane.b32.xlu0 %v3531, 72
  %v3619 = vpop.permute.xlu0 %3618
  %3620 = vrot.lane.b32.xlu0 %v3532, 72
  %v3621 = vpop.permute.xlu0 %3620
  %3622 = vrot.lane.b32.xlu0 %v3533, 72
  %v3623 = vpop.permute.xlu0 %3622
  %3624 = vrot.lane.b32.xlu0 %v3534, 72
  %v3625 = vpop.permute.xlu0 %3624
  %3626 = vrot.lane.b32.xlu0 %v3535, 72
  %v3627 = vpop.permute.xlu0 %3626
  %3628 = vrot.lane.b32.xlu0 %v3536, 72
  %v3629 = vpop.permute.xlu0 %3628
  %3630 = vrot.lane.b32.xlu0 %v3537, 72
  %v3631 = vpop.permute.xlu0 %3630
  %3632 = vrot.lane.b32.xlu0 %v3538, 72
  %v3633 = vpop.permute.xlu0 %3632
  %3634 = vrot.lane.b32.xlu0 %v3539, 72
  %v3635 = vpop.permute.xlu0 %3634
  %3636 = vrot.lane.b32.xlu0 %v3540, 72
  %v3637 = vpop.permute.xlu0 %3636
  %3638 = vrot.lane.b32.xlu0 %v3541, 72
  %v3639 = vpop.permute.xlu0 %3638
  %3640 = vrot.lane.b32.xlu0 %v3542, 72
  %v3641 = vpop.permute.xlu0 %3640
  %3642 = vrot.lane.b32.xlu0 %v3543, 72
  %v3643 = vpop.permute.xlu0 %3642
  %3644 = vrot.lane.b32.xlu0 %v3544, 72
  %v3645 = vpop.permute.xlu0 %3644
  %3646 = vrot.lane.b32.xlu0 %v3545, 72
  %v3647 = vpop.permute.xlu0 %3646
  %3648 = vrot.lane.b32.xlu0 %v3546, 72
  %v3649 = vpop.permute.xlu0 %3648
  %3650 = vrot.lane.b32.xlu0 %v3547, 72
  %v3651 = vpop.permute.xlu0 %3650
  %3652 = vrot.lane.b32.xlu0 %v3548, 72
  %v3653 = vpop.permute.xlu0 %3652
  %3654 = vrot.lane.b32.xlu0 %v3549, 72
  %v3655 = vpop.permute.xlu0 %3654
  %3656 = vrot.lane.b32.xlu0 %v3550, 72
  %v3657 = vpop.permute.xlu0 %3656
  %3658 = vrot.lane.b32.xlu0 %v3551, 72
  %v3659 = vpop.permute.xlu0 %3658
  %vm3696 = vcmask 654912
  %3697 = vst.msk [vmem:[#allocation3] sm:$0xff] %vm3696, %v3589
  %3698 = vst.msk [vmem:[#allocation3 + $0x10] sm:$0xff] %vm3696, %v3591
  %3699 = vst.msk [vmem:[#allocation3 + $0x20] sm:$0xff] %vm3696, %v3593
  %3700 = vst.msk [vmem:[#allocation3 + $0x30] sm:$0xff] %vm3696, %v3595
  %3701 = vst.msk [vmem:[#allocation3 + $0x40] sm:$0xff] %vm3696, %v3597
  %3702 = vst.msk [vmem:[#allocation3 + $0x50] sm:$0xff] %vm3696, %v3599
  %3703 = vst.msk [vmem:[#allocation3 + $0x60] sm:$0xff] %vm3696, %v3601
  %3704 = vst.msk [vmem:[#allocation3 + $0x70] sm:$0xff] %vm3696, %v3603
  %3705 = vst.msk [vmem:[#allocation3 + $0x80] sm:$0xff] %vm3696, %v3605
  %3706 = vst.msk [vmem:[#allocation3 + $0x90] sm:$0xff] %vm3696, %v3607
  %3707 = vst.msk [vmem:[#allocation3 + $0xa0] sm:$0xff] %vm3696, %v3609
  %3708 = vst.msk [vmem:[#allocation3 + $0xb0] sm:$0xff] %vm3696, %v3611
  %3709 = vst.msk [vmem:[#allocation3 + $0xc0] sm:$0xff] %vm3696, %v3613
  %3710 = vst.msk [vmem:[#allocation3 + $0xd0] sm:$0xff] %vm3696, %v3615
  %3711 = vst.msk [vmem:[#allocation3 + $0xe0] sm:$0xff] %vm3696, %v3617
  %3712 = vst.msk [vmem:[#allocation3 + $0xf0] sm:$0xff] %vm3696, %v3619
  %3713 = vst.msk [vmem:[#allocation3 + $0x100] sm:$0xff] %vm3696, %v3621
  %3714 = vst.msk [vmem:[#allocation3 + $0x110] sm:$0xff] %vm3696, %v3623
  %3715 = vst.msk [vmem:[#allocation3 + $0x120] sm:$0xff] %vm3696, %v3625
  %3716 = vst.msk [vmem:[#allocation3 + $0x130] sm:$0xff] %vm3696, %v3627
  %3717 = vst.msk [vmem:[#allocation3 + $0x140] sm:$0xff] %vm3696, %v3629
  %3718 = vst.msk [vmem:[#allocation3 + $0x150] sm:$0xff] %vm3696, %v3631
  %3719 = vst.msk [vmem:[#allocation3 + $0x160] sm:$0xff] %vm3696, %v3633
  %3720 = vst.msk [vmem:[#allocation3 + $0x170] sm:$0xff] %vm3696, %v3635
  %3721 = vst.msk [vmem:[#allocation3 + $0x180] sm:$0xff] %vm3696, %v3637
  %3722 = vst.msk [vmem:[#allocation3 + $0x190] sm:$0xff] %vm3696, %v3639
  %3723 = vst.msk [vmem:[#allocation3 + $0x1a0] sm:$0xff] %vm3696, %v3641
  %3724 = vst.msk [vmem:[#allocation3 + $0x1b0] sm:$0xff] %vm3696, %v3643
  %3725 = vst.msk [vmem:[#allocation3 + $0x1c0] sm:$0xff] %vm3696, %v3645
  %3726 = vst.msk [vmem:[#allocation3 + $0x1d0] sm:$0xff] %vm3696, %v3647
  %3727 = vst.msk [vmem:[#allocation3 + $0x1e0] sm:$0xff] %vm3696, %v3649
  %3728 = vst.msk [vmem:[#allocation3 + $0x1f0] sm:$0xff] %vm3696, %v3651
  %3729 = vst.msk [vmem:[#allocation3 + $0x200] sm:$0xff] %vm3696, %v3653
  %3730 = vst.msk [vmem:[#allocation3 + $0x210] sm:$0xff] %vm3696, %v3655
  %3731 = vst.msk [vmem:[#allocation3 + $0x220] sm:$0xff] %vm3696, %v3657
  %3732 = vst.msk [vmem:[#allocation3 + $0x230] sm:$0xff] %vm3696, %v3659
  %v3733 = vld [vmem:[#allocation2 + $0x18] sm:$0xff]
  %v3734 = vld [vmem:[#allocation2 + $0x20] sm:$0xff]
  %v3735 = vld [vmem:[#allocation2 + $0x28] sm:$0xff]
  %v3736 = vld [vmem:[#allocation2 + $0x30] sm:$0xff]
  %v3737 = vld [vmem:[#allocation2 + $0x38] sm:$0xff]
  %v3738 = vld [vmem:[#allocation2 + $0x40] sm:$0xff]
  %v3739 = vld [vmem:[#allocation2 + $0x48] sm:$0xff]
  %v3740 = vld [vmem:[#allocation2 + $0x50] sm:$0xff]
  %v3741 = vld [vmem:[#allocation2 + $0x58] sm:$0xff]
  %v3742 = vld [vmem:[#allocation2 + $0x60] sm:$0xff]
  %v3743 = vld [vmem:[#allocation2 + $0x68] sm:$0xff]
  %v3744 = vld [vmem:[#allocation2 + $0x70] sm:$0xff]
  %v3745 = vld [vmem:[#allocation2 + $0x78] sm:$0xff]
  %v3746 = vld [vmem:[#allocation2 + $0x80] sm:$0xff]
  %v3747 = vld [vmem:[#allocation2 + $0x88] sm:$0xff]
  %v3748 = vld [vmem:[#allocation2 + $0x90] sm:$0xff]
  %v3749 = vld [vmem:[#allocation2 + $0x98] sm:$0xff]
  %v3750 = vld [vmem:[#allocation2 + $0xa0] sm:$0xff]
  %v3751 = vld [vmem:[#allocation2 + $0xa8] sm:$0xff]
  %v3752 = vld [vmem:[#allocation2 + $0xb0] sm:$0xff]
  %v3753 = vld [vmem:[#allocation2 + $0xb8] sm:$0xff]
  %v3754 = vld [vmem:[#allocation2 + $0xc0] sm:$0xff]
  %v3755 = vld [vmem:[#allocation2 + $0xc8] sm:$0xff]
  %v3756 = vld [vmem:[#allocation2 + $0xd0] sm:$0xff]
  %v3757 = vld [vmem:[#allocation2 + $0xd8] sm:$0xff]
  %v3758 = vld [vmem:[#allocation2 + $0xe0] sm:$0xff]
  %v3759 = vld [vmem:[#allocation2 + $0xe8] sm:$0xff]
  %v3760 = vld [vmem:[#allocation2 + $0xf0] sm:$0xff]
  %v3761 = vld [vmem:[#allocation2 + $0xf8] sm:$0xff]
  %v3762 = vld [vmem:[#allocation2 + $0x100] sm:$0xff]
  %v3763 = vld [vmem:[#allocation2 + $0x108] sm:$0xff]
  %v3764 = vld [vmem:[#allocation2 + $0x110] sm:$0xff]
  %v3765 = vld [vmem:[#allocation2 + $0x118] sm:$0xff]
  %v3766 = vld [vmem:[#allocation2 + $0x120] sm:$0xff]
  %v3767 = vld [vmem:[#allocation2 + $0x128] sm:$0xff]
  %v3768 = vld [vmem:[#allocation2 + $0x130] sm:$0xff]
  %3805 = vrot.lane.b32.xlu0 %v3733, 80
  %v3806 = vpop.permute.xlu0 %3805
  %3807 = vrot.lane.b32.xlu0 %v3734, 80
  %v3808 = vpop.permute.xlu0 %3807
  %3809 = vrot.lane.b32.xlu0 %v3735, 80
  %v3810 = vpop.permute.xlu0 %3809
  %3811 = vrot.lane.b32.xlu0 %v3736, 80
  %v3812 = vpop.permute.xlu0 %3811
  %3813 = vrot.lane.b32.xlu0 %v3737, 80
  %v3814 = vpop.permute.xlu0 %3813
  %3815 = vrot.lane.b32.xlu0 %v3738, 80
  %v3816 = vpop.permute.xlu0 %3815
  %3817 = vrot.lane.b32.xlu0 %v3739, 80
  %v3818 = vpop.permute.xlu0 %3817
  %3819 = vrot.lane.b32.xlu0 %v3740, 80
  %v3820 = vpop.permute.xlu0 %3819
  %3821 = vrot.lane.b32.xlu0 %v3741, 80
  %v3822 = vpop.permute.xlu0 %3821
  %3823 = vrot.lane.b32.xlu0 %v3742, 80
  %v3824 = vpop.permute.xlu0 %3823
  %3825 = vrot.lane.b32.xlu0 %v3743, 80
  %v3826 = vpop.permute.xlu0 %3825
  %3827 = vrot.lane.b32.xlu0 %v3744, 80
  %v3828 = vpop.permute.xlu0 %3827
  %3829 = vrot.lane.b32.xlu0 %v3745, 80
  %v3830 = vpop.permute.xlu0 %3829
  %3831 = vrot.lane.b32.xlu0 %v3746, 80
  %v3832 = vpop.permute.xlu0 %3831
  %3833 = vrot.lane.b32.xlu0 %v3747, 80
  %v3834 = vpop.permute.xlu0 %3833
  %3835 = vrot.lane.b32.xlu0 %v3748, 80
  %v3836 = vpop.permute.xlu0 %3835
  %3837 = vrot.lane.b32.xlu0 %v3749, 80
  %v3838 = vpop.permute.xlu0 %3837
  %3839 = vrot.lane.b32.xlu0 %v3750, 80
  %v3840 = vpop.permute.xlu0 %3839
  %3841 = vrot.lane.b32.xlu0 %v3751, 80
  %v3842 = vpop.permute.xlu0 %3841
  %3843 = vrot.lane.b32.xlu0 %v3752, 80
  %v3844 = vpop.permute.xlu0 %3843
  %3845 = vrot.lane.b32.xlu0 %v3753, 80
  %v3846 = vpop.permute.xlu0 %3845
  %3847 = vrot.lane.b32.xlu0 %v3754, 80
  %v3848 = vpop.permute.xlu0 %3847
  %3849 = vrot.lane.b32.xlu0 %v3755, 80
  %v3850 = vpop.permute.xlu0 %3849
  %3851 = vrot.lane.b32.xlu0 %v3756, 80
  %v3852 = vpop.permute.xlu0 %3851
  %3853 = vrot.lane.b32.xlu0 %v3757, 80
  %v3854 = vpop.permute.xlu0 %3853
  %3855 = vrot.lane.b32.xlu0 %v3758, 80
  %v3856 = vpop.permute.xlu0 %3855
  %3857 = vrot.lane.b32.xlu0 %v3759, 80
  %v3858 = vpop.permute.xlu0 %3857
  %3859 = vrot.lane.b32.xlu0 %v3760, 80
  %v3860 = vpop.permute.xlu0 %3859
  %3861 = vrot.lane.b32.xlu0 %v3761, 80
  %v3862 = vpop.permute.xlu0 %3861
  %3863 = vrot.lane.b32.xlu0 %v3762, 80
  %v3864 = vpop.permute.xlu0 %3863
  %3865 = vrot.lane.b32.xlu0 %v3763, 80
  %v3866 = vpop.permute.xlu0 %3865
  %3867 = vrot.lane.b32.xlu0 %v3764, 80
  %v3868 = vpop.permute.xlu0 %3867
  %3869 = vrot.lane.b32.xlu0 %v3765, 80
  %v3870 = vpop.permute.xlu0 %3869
  %3871 = vrot.lane.b32.xlu0 %v3766, 80
  %v3872 = vpop.permute.xlu0 %3871
  %3873 = vrot.lane.b32.xlu0 %v3767, 80
  %v3874 = vpop.permute.xlu0 %3873
  %3875 = vrot.lane.b32.xlu0 %v3768, 80
  %v3876 = vpop.permute.xlu0 %3875
  %vm3913 = vcmask 720512
  %3914 = vst.msk [vmem:[#allocation3] sm:$0xff] %vm3913, %v3806
  %3915 = vst.msk [vmem:[#allocation3 + $0x10] sm:$0xff] %vm3913, %v3808
  %3916 = vst.msk [vmem:[#allocation3 + $0x20] sm:$0xff] %vm3913, %v3810
  %3917 = vst.msk [vmem:[#allocation3 + $0x30] sm:$0xff] %vm3913, %v3812
  %3918 = vst.msk [vmem:[#allocation3 + $0x40] sm:$0xff] %vm3913, %v3814
  %3919 = vst.msk [vmem:[#allocation3 + $0x50] sm:$0xff] %vm3913, %v3816
  %3920 = vst.msk [vmem:[#allocation3 + $0x60] sm:$0xff] %vm3913, %v3818
  %3921 = vst.msk [vmem:[#allocation3 + $0x70] sm:$0xff] %vm3913, %v3820
  %3922 = vst.msk [vmem:[#allocation3 + $0x80] sm:$0xff] %vm3913, %v3822
  %3923 = vst.msk [vmem:[#allocation3 + $0x90] sm:$0xff] %vm3913, %v3824
  %3924 = vst.msk [vmem:[#allocation3 + $0xa0] sm:$0xff] %vm3913, %v3826
  %3925 = vst.msk [vmem:[#allocation3 + $0xb0] sm:$0xff] %vm3913, %v3828
  %3926 = vst.msk [vmem:[#allocation3 + $0xc0] sm:$0xff] %vm3913, %v3830
  %3927 = vst.msk [vmem:[#allocation3 + $0xd0] sm:$0xff] %vm3913, %v3832
  %3928 = vst.msk [vmem:[#allocation3 + $0xe0] sm:$0xff] %vm3913, %v3834
  %3929 = vst.msk [vmem:[#allocation3 + $0xf0] sm:$0xff] %vm3913, %v3836
  %3930 = vst.msk [vmem:[#allocation3 + $0x100] sm:$0xff] %vm3913, %v3838
  %3931 = vst.msk [vmem:[#allocation3 + $0x110] sm:$0xff] %vm3913, %v3840
  %3932 = vst.msk [vmem:[#allocation3 + $0x120] sm:$0xff] %vm3913, %v3842
  %3933 = vst.msk [vmem:[#allocation3 + $0x130] sm:$0xff] %vm3913, %v3844
  %3934 = vst.msk [vmem:[#allocation3 + $0x140] sm:$0xff] %vm3913, %v3846
  %3935 = vst.msk [vmem:[#allocation3 + $0x150] sm:$0xff] %vm3913, %v3848
  %3936 = vst.msk [vmem:[#allocation3 + $0x160] sm:$0xff] %vm3913, %v3850
  %3937 = vst.msk [vmem:[#allocation3 + $0x170] sm:$0xff] %vm3913, %v3852
  %3938 = vst.msk [vmem:[#allocation3 + $0x180] sm:$0xff] %vm3913, %v3854
  %3939 = vst.msk [vmem:[#allocation3 + $0x190] sm:$0xff] %vm3913, %v3856
  %3940 = vst.msk [vmem:[#allocation3 + $0x1a0] sm:$0xff] %vm3913, %v3858
  %3941 = vst.msk [vmem:[#allocation3 + $0x1b0] sm:$0xff] %vm3913, %v3860
  %3942 = vst.msk [vmem:[#allocation3 + $0x1c0] sm:$0xff] %vm3913, %v3862
  %3943 = vst.msk [vmem:[#allocation3 + $0x1d0] sm:$0xff] %vm3913, %v3864
  %3944 = vst.msk [vmem:[#allocation3 + $0x1e0] sm:$0xff] %vm3913, %v3866
  %3945 = vst.msk [vmem:[#allocation3 + $0x1f0] sm:$0xff] %vm3913, %v3868
  %3946 = vst.msk [vmem:[#allocation3 + $0x200] sm:$0xff] %vm3913, %v3870
  %3947 = vst.msk [vmem:[#allocation3 + $0x210] sm:$0xff] %vm3913, %v3872
  %3948 = vst.msk [vmem:[#allocation3 + $0x220] sm:$0xff] %vm3913, %v3874
  %3949 = vst.msk [vmem:[#allocation3 + $0x230] sm:$0xff] %vm3913, %v3876
  %v3950 = vld [vmem:[#allocation2 + $0x19] sm:$0xff]
  %v3951 = vld [vmem:[#allocation2 + $0x21] sm:$0xff]
  %v3952 = vld [vmem:[#allocation2 + $0x29] sm:$0xff]
  %v3953 = vld [vmem:[#allocation2 + $0x31] sm:$0xff]
  %v3954 = vld [vmem:[#allocation2 + $0x39] sm:$0xff]
  %v3955 = vld [vmem:[#allocation2 + $0x41] sm:$0xff]
  %v3956 = vld [vmem:[#allocation2 + $0x49] sm:$0xff]
  %v3957 = vld [vmem:[#allocation2 + $0x51] sm:$0xff]
  %v3958 = vld [vmem:[#allocation2 + $0x59] sm:$0xff]
  %v3959 = vld [vmem:[#allocation2 + $0x61] sm:$0xff]
  %v3960 = vld [vmem:[#allocation2 + $0x69] sm:$0xff]
  %v3961 = vld [vmem:[#allocation2 + $0x71] sm:$0xff]
  %v3962 = vld [vmem:[#allocation2 + $0x79] sm:$0xff]
  %v3963 = vld [vmem:[#allocation2 + $0x81] sm:$0xff]
  %v3964 = vld [vmem:[#allocation2 + $0x89] sm:$0xff]
  %v3965 = vld [vmem:[#allocation2 + $0x91] sm:$0xff]
  %v3966 = vld [vmem:[#allocation2 + $0x99] sm:$0xff]
  %v3967 = vld [vmem:[#allocation2 + $0xa1] sm:$0xff]
  %v3968 = vld [vmem:[#allocation2 + $0xa9] sm:$0xff]
  %v3969 = vld [vmem:[#allocation2 + $0xb1] sm:$0xff]
  %v3970 = vld [vmem:[#allocation2 + $0xb9] sm:$0xff]
  %v3971 = vld [vmem:[#allocation2 + $0xc1] sm:$0xff]
  %v3972 = vld [vmem:[#allocation2 + $0xc9] sm:$0xff]
  %v3973 = vld [vmem:[#allocation2 + $0xd1] sm:$0xff]
  %v3974 = vld [vmem:[#allocation2 + $0xd9] sm:$0xff]
  %v3975 = vld [vmem:[#allocation2 + $0xe1] sm:$0xff]
  %v3976 = vld [vmem:[#allocation2 + $0xe9] sm:$0xff]
  %v3977 = vld [vmem:[#allocation2 + $0xf1] sm:$0xff]
  %v3978 = vld [vmem:[#allocation2 + $0xf9] sm:$0xff]
  %v3979 = vld [vmem:[#allocation2 + $0x101] sm:$0xff]
  %v3980 = vld [vmem:[#allocation2 + $0x109] sm:$0xff]
  %v3981 = vld [vmem:[#allocation2 + $0x111] sm:$0xff]
  %v3982 = vld [vmem:[#allocation2 + $0x119] sm:$0xff]
  %v3983 = vld [vmem:[#allocation2 + $0x121] sm:$0xff]
  %v3984 = vld [vmem:[#allocation2 + $0x129] sm:$0xff]
  %v3985 = vld [vmem:[#allocation2 + $0x131] sm:$0xff]
  %4022 = vrot.lane.b32.xlu0 %v3950, 88
  %v4023 = vpop.permute.xlu0 %4022
  %4024 = vrot.lane.b32.xlu0 %v3951, 88
  %v4025 = vpop.permute.xlu0 %4024
  %4026 = vrot.lane.b32.xlu0 %v3952, 88
  %v4027 = vpop.permute.xlu0 %4026
  %4028 = vrot.lane.b32.xlu0 %v3953, 88
  %v4029 = vpop.permute.xlu0 %4028
  %4030 = vrot.lane.b32.xlu0 %v3954, 88
  %v4031 = vpop.permute.xlu0 %4030
  %4032 = vrot.lane.b32.xlu0 %v3955, 88
  %v4033 = vpop.permute.xlu0 %4032
  %4034 = vrot.lane.b32.xlu0 %v3956, 88
  %v4035 = vpop.permute.xlu0 %4034
  %4036 = vrot.lane.b32.xlu0 %v3957, 88
  %v4037 = vpop.permute.xlu0 %4036
  %4038 = vrot.lane.b32.xlu0 %v3958, 88
  %v4039 = vpop.permute.xlu0 %4038
  %4040 = vrot.lane.b32.xlu0 %v3959, 88
  %v4041 = vpop.permute.xlu0 %4040
  %4042 = vrot.lane.b32.xlu0 %v3960, 88
  %v4043 = vpop.permute.xlu0 %4042
  %4044 = vrot.lane.b32.xlu0 %v3961, 88
  %v4045 = vpop.permute.xlu0 %4044
  %4046 = vrot.lane.b32.xlu0 %v3962, 88
  %v4047 = vpop.permute.xlu0 %4046
  %4048 = vrot.lane.b32.xlu0 %v3963, 88
  %v4049 = vpop.permute.xlu0 %4048
  %4050 = vrot.lane.b32.xlu0 %v3964, 88
  %v4051 = vpop.permute.xlu0 %4050
  %4052 = vrot.lane.b32.xlu0 %v3965, 88
  %v4053 = vpop.permute.xlu0 %4052
  %4054 = vrot.lane.b32.xlu0 %v3966, 88
  %v4055 = vpop.permute.xlu0 %4054
  %4056 = vrot.lane.b32.xlu0 %v3967, 88
  %v4057 = vpop.permute.xlu0 %4056
  %4058 = vrot.lane.b32.xlu0 %v3968, 88
  %v4059 = vpop.permute.xlu0 %4058
  %4060 = vrot.lane.b32.xlu0 %v3969, 88
  %v4061 = vpop.permute.xlu0 %4060
  %4062 = vrot.lane.b32.xlu0 %v3970, 88
  %v4063 = vpop.permute.xlu0 %4062
  %4064 = vrot.lane.b32.xlu0 %v3971, 88
  %v4065 = vpop.permute.xlu0 %4064
  %4066 = vrot.lane.b32.xlu0 %v3972, 88
  %v4067 = vpop.permute.xlu0 %4066
  %4068 = vrot.lane.b32.xlu0 %v3973, 88
  %v4069 = vpop.permute.xlu0 %4068
  %4070 = vrot.lane.b32.xlu0 %v3974, 88
  %v4071 = vpop.permute.xlu0 %4070
  %4072 = vrot.lane.b32.xlu0 %v3975, 88
  %v4073 = vpop.permute.xlu0 %4072
  %4074 = vrot.lane.b32.xlu0 %v3976, 88
  %v4075 = vpop.permute.xlu0 %4074
  %4076 = vrot.lane.b32.xlu0 %v3977, 88
  %v4077 = vpop.permute.xlu0 %4076
  %4078 = vrot.lane.b32.xlu0 %v3978, 88
  %v4079 = vpop.permute.xlu0 %4078
  %4080 = vrot.lane.b32.xlu0 %v3979, 88
  %v4081 = vpop.permute.xlu0 %4080
  %4082 = vrot.lane.b32.xlu0 %v3980, 88
  %v4083 = vpop.permute.xlu0 %4082
  %4084 = vrot.lane.b32.xlu0 %v3981, 88
  %v4085 = vpop.permute.xlu0 %4084
  %4086 = vrot.lane.b32.xlu0 %v3982, 88
  %v4087 = vpop.permute.xlu0 %4086
  %4088 = vrot.lane.b32.xlu0 %v3983, 88
  %v4089 = vpop.permute.xlu0 %4088
  %4090 = vrot.lane.b32.xlu0 %v3984, 88
  %v4091 = vpop.permute.xlu0 %4090
  %4092 = vrot.lane.b32.xlu0 %v3985, 88
  %v4093 = vpop.permute.xlu0 %4092
  %vm4130 = vcmask 786112
  %4131 = vst.msk [vmem:[#allocation3] sm:$0xff] %vm4130, %v4023
  %4132 = vst.msk [vmem:[#allocation3 + $0x10] sm:$0xff] %vm4130, %v4025
  %4133 = vst.msk [vmem:[#allocation3 + $0x20] sm:$0xff] %vm4130, %v4027
  %4134 = vst.msk [vmem:[#allocation3 + $0x30] sm:$0xff] %vm4130, %v4029
  %4135 = vst.msk [vmem:[#allocation3 + $0x40] sm:$0xff] %vm4130, %v4031
  %4136 = vst.msk [vmem:[#allocation3 + $0x50] sm:$0xff] %vm4130, %v4033
  %4137 = vst.msk [vmem:[#allocation3 + $0x60] sm:$0xff] %vm4130, %v4035
  %4138 = vst.msk [vmem:[#allocation3 + $0x70] sm:$0xff] %vm4130, %v4037
  %4139 = vst.msk [vmem:[#allocation3 + $0x80] sm:$0xff] %vm4130, %v4039
  %4140 = vst.msk [vmem:[#allocation3 + $0x90] sm:$0xff] %vm4130, %v4041
  %4141 = vst.msk [vmem:[#allocation3 + $0xa0] sm:$0xff] %vm4130, %v4043
  %4142 = vst.msk [vmem:[#allocation3 + $0xb0] sm:$0xff] %vm4130, %v4045
  %4143 = vst.msk [vmem:[#allocation3 + $0xc0] sm:$0xff] %vm4130, %v4047
  %4144 = vst.msk [vmem:[#allocation3 + $0xd0] sm:$0xff] %vm4130, %v4049
  %4145 = vst.msk [vmem:[#allocation3 + $0xe0] sm:$0xff] %vm4130, %v4051
  %4146 = vst.msk [vmem:[#allocation3 + $0xf0] sm:$0xff] %vm4130, %v4053
  %4147 = vst.msk [vmem:[#allocation3 + $0x100] sm:$0xff] %vm4130, %v4055
  %4148 = vst.msk [vmem:[#allocation3 + $0x110] sm:$0xff] %vm4130, %v4057
  %4149 = vst.msk [vmem:[#allocation3 + $0x120] sm:$0xff] %vm4130, %v4059
  %4150 = vst.msk [vmem:[#allocation3 + $0x130] sm:$0xff] %vm4130, %v4061
  %4151 = vst.msk [vmem:[#allocation3 + $0x140] sm:$0xff] %vm4130, %v4063
  %4152 = vst.msk [vmem:[#allocation3 + $0x150] sm:$0xff] %vm4130, %v4065
  %4153 = vst.msk [vmem:[#allocation3 + $0x160] sm:$0xff] %vm4130, %v4067
  %4154 = vst.msk [vmem:[#allocation3 + $0x170] sm:$0xff] %vm4130, %v4069
  %4155 = vst.msk [vmem:[#allocation3 + $0x180] sm:$0xff] %vm4130, %v4071
  %4156 = vst.msk [vmem:[#allocation3 + $0x190] sm:$0xff] %vm4130, %v4073
  %4157 = vst.msk [vmem:[#allocation3 + $0x1a0] sm:$0xff] %vm4130, %v4075
  %4158 = vst.msk [vmem:[#allocation3 + $0x1b0] sm:$0xff] %vm4130, %v4077
  %4159 = vst.msk [vmem:[#allocation3 + $0x1c0] sm:$0xff] %vm4130, %v4079
  %4160 = vst.msk [vmem:[#allocation3 + $0x1d0] sm:$0xff] %vm4130, %v4081
  %4161 = vst.msk [vmem:[#allocation3 + $0x1e0] sm:$0xff] %vm4130, %v4083
  %4162 = vst.msk [vmem:[#allocation3 + $0x1f0] sm:$0xff] %vm4130, %v4085
  %4163 = vst.msk [vmem:[#allocation3 + $0x200] sm:$0xff] %vm4130, %v4087
  %4164 = vst.msk [vmem:[#allocation3 + $0x210] sm:$0xff] %vm4130, %v4089
  %4165 = vst.msk [vmem:[#allocation3 + $0x220] sm:$0xff] %vm4130, %v4091
  %4166 = vst.msk [vmem:[#allocation3 + $0x230] sm:$0xff] %vm4130, %v4093
  %v4167 = vld [vmem:[#allocation2 + $0x1a] sm:$0xff]
  %v4168 = vld [vmem:[#allocation2 + $0x22] sm:$0xff]
  %v4169 = vld [vmem:[#allocation2 + $0x2a] sm:$0xff]
  %v4170 = vld [vmem:[#allocation2 + $0x32] sm:$0xff]
  %v4171 = vld [vmem:[#allocation2 + $0x3a] sm:$0xff]
  %v4172 = vld [vmem:[#allocation2 + $0x42] sm:$0xff]
  %v4173 = vld [vmem:[#allocation2 + $0x4a] sm:$0xff]
  %v4174 = vld [vmem:[#allocation2 + $0x52] sm:$0xff]
  %v4175 = vld [vmem:[#allocation2 + $0x5a] sm:$0xff]
  %v4176 = vld [vmem:[#allocation2 + $0x62] sm:$0xff]
  %v4177 = vld [vmem:[#allocation2 + $0x6a] sm:$0xff]
  %v4178 = vld [vmem:[#allocation2 + $0x72] sm:$0xff]
  %v4179 = vld [vmem:[#allocation2 + $0x7a] sm:$0xff]
  %v4180 = vld [vmem:[#allocation2 + $0x82] sm:$0xff]
  %v4181 = vld [vmem:[#allocation2 + $0x8a] sm:$0xff]
  %v4182 = vld [vmem:[#allocation2 + $0x92] sm:$0xff]
  %v4183 = vld [vmem:[#allocation2 + $0x9a] sm:$0xff]
  %v4184 = vld [vmem:[#allocation2 + $0xa2] sm:$0xff]
  %v4185 = vld [vmem:[#allocation2 + $0xaa] sm:$0xff]
  %v4186 = vld [vmem:[#allocation2 + $0xb2] sm:$0xff]
  %v4187 = vld [vmem:[#allocation2 + $0xba] sm:$0xff]
  %v4188 = vld [vmem:[#allocation2 + $0xc2] sm:$0xff]
  %v4189 = vld [vmem:[#allocation2 + $0xca] sm:$0xff]
  %v4190 = vld [vmem:[#allocation2 + $0xd2] sm:$0xff]
  %v4191 = vld [vmem:[#allocation2 + $0xda] sm:$0xff]
  %v4192 = vld [vmem:[#allocation2 + $0xe2] sm:$0xff]
  %v4193 = vld [vmem:[#allocation2 + $0xea] sm:$0xff]
  %v4194 = vld [vmem:[#allocation2 + $0xf2] sm:$0xff]
  %v4195 = vld [vmem:[#allocation2 + $0xfa] sm:$0xff]
  %v4196 = vld [vmem:[#allocation2 + $0x102] sm:$0xff]
  %v4197 = vld [vmem:[#allocation2 + $0x10a] sm:$0xff]
  %v4198 = vld [vmem:[#allocation2 + $0x112] sm:$0xff]
  %v4199 = vld [vmem:[#allocation2 + $0x11a] sm:$0xff]
  %v4200 = vld [vmem:[#allocation2 + $0x122] sm:$0xff]
  %v4201 = vld [vmem:[#allocation2 + $0x12a] sm:$0xff]
  %v4202 = vld [vmem:[#allocation2 + $0x132] sm:$0xff]
  %4239 = vrot.lane.b32.xlu0 %v4167, 96
  %v4240 = vpop.permute.xlu0 %4239
  %4241 = vrot.lane.b32.xlu0 %v4168, 96
  %v4242 = vpop.permute.xlu0 %4241
  %4243 = vrot.lane.b32.xlu0 %v4169, 96
  %v4244 = vpop.permute.xlu0 %4243
  %4245 = vrot.lane.b32.xlu0 %v4170, 96
  %v4246 = vpop.permute.xlu0 %4245
  %4247 = vrot.lane.b32.xlu0 %v4171, 96
  %v4248 = vpop.permute.xlu0 %4247
  %4249 = vrot.lane.b32.xlu0 %v4172, 96
  %v4250 = vpop.permute.xlu0 %4249
  %4251 = vrot.lane.b32.xlu0 %v4173, 96
  %v4252 = vpop.permute.xlu0 %4251
  %4253 = vrot.lane.b32.xlu0 %v4174, 96
  %v4254 = vpop.permute.xlu0 %4253
  %4255 = vrot.lane.b32.xlu0 %v4175, 96
  %v4256 = vpop.permute.xlu0 %4255
  %4257 = vrot.lane.b32.xlu0 %v4176, 96
  %v4258 = vpop.permute.xlu0 %4257
  %4259 = vrot.lane.b32.xlu0 %v4177, 96
  %v4260 = vpop.permute.xlu0 %4259
  %4261 = vrot.lane.b32.xlu0 %v4178, 96
  %v4262 = vpop.permute.xlu0 %4261
  %4263 = vrot.lane.b32.xlu0 %v4179, 96
  %v4264 = vpop.permute.xlu0 %4263
  %4265 = vrot.lane.b32.xlu0 %v4180, 96
  %v4266 = vpop.permute.xlu0 %4265
  %4267 = vrot.lane.b32.xlu0 %v4181, 96
  %v4268 = vpop.permute.xlu0 %4267
  %4269 = vrot.lane.b32.xlu0 %v4182, 96
  %v4270 = vpop.permute.xlu0 %4269
  %4271 = vrot.lane.b32.xlu0 %v4183, 96
  %v4272 = vpop.permute.xlu0 %4271
  %4273 = vrot.lane.b32.xlu0 %v4184, 96
  %v4274 = vpop.permute.xlu0 %4273
  %4275 = vrot.lane.b32.xlu0 %v4185, 96
  %v4276 = vpop.permute.xlu0 %4275
  %4277 = vrot.lane.b32.xlu0 %v4186, 96
  %v4278 = vpop.permute.xlu0 %4277
  %4279 = vrot.lane.b32.xlu0 %v4187, 96
  %v4280 = vpop.permute.xlu0 %4279
  %4281 = vrot.lane.b32.xlu0 %v4188, 96
  %v4282 = vpop.permute.xlu0 %4281
  %4283 = vrot.lane.b32.xlu0 %v4189, 96
  %v4284 = vpop.permute.xlu0 %4283
  %4285 = vrot.lane.b32.xlu0 %v4190, 96
  %v4286 = vpop.permute.xlu0 %4285
  %4287 = vrot.lane.b32.xlu0 %v4191, 96
  %v4288 = vpop.permute.xlu0 %4287
  %4289 = vrot.lane.b32.xlu0 %v4192, 96
  %v4290 = vpop.permute.xlu0 %4289
  %4291 = vrot.lane.b32.xlu0 %v4193, 96
  %v4292 = vpop.permute.xlu0 %4291
  %4293 = vrot.lane.b32.xlu0 %v4194, 96
  %v4294 = vpop.permute.xlu0 %4293
  %4295 = vrot.lane.b32.xlu0 %v4195, 96
  %v4296 = vpop.permute.xlu0 %4295
  %4297 = vrot.lane.b32.xlu0 %v4196, 96
  %v4298 = vpop.permute.xlu0 %4297
  %4299 = vrot.lane.b32.xlu0 %v4197, 96
  %v4300 = vpop.permute.xlu0 %4299
  %4301 = vrot.lane.b32.xlu0 %v4198, 96
  %v4302 = vpop.permute.xlu0 %4301
  %4303 = vrot.lane.b32.xlu0 %v4199, 96
  %v4304 = vpop.permute.xlu0 %4303
  %4305 = vrot.lane.b32.xlu0 %v4200, 96
  %v4306 = vpop.permute.xlu0 %4305
  %4307 = vrot.lane.b32.xlu0 %v4201, 96
  %v4308 = vpop.permute.xlu0 %4307
  %4309 = vrot.lane.b32.xlu0 %v4202, 96
  %v4310 = vpop.permute.xlu0 %4309
  %vm4347 = vcmask 851712
  %4348 = vst.msk [vmem:[#allocation3] sm:$0xff] %vm4347, %v4240
  %4349 = vst.msk [vmem:[#allocation3 + $0x10] sm:$0xff] %vm4347, %v4242
  %4350 = vst.msk [vmem:[#allocation3 + $0x20] sm:$0xff] %vm4347, %v4244
  %4351 = vst.msk [vmem:[#allocation3 + $0x30] sm:$0xff] %vm4347, %v4246
  %4352 = vst.msk [vmem:[#allocation3 + $0x40] sm:$0xff] %vm4347, %v4248
  %4353 = vst.msk [vmem:[#allocation3 + $0x50] sm:$0xff] %vm4347, %v4250
  %4354 = vst.msk [vmem:[#allocation3 + $0x60] sm:$0xff] %vm4347, %v4252
  %4355 = vst.msk [vmem:[#allocation3 + $0x70] sm:$0xff] %vm4347, %v4254
  %4356 = vst.msk [vmem:[#allocation3 + $0x80] sm:$0xff] %vm4347, %v4256
  %4357 = vst.msk [vmem:[#allocation3 + $0x90] sm:$0xff] %vm4347, %v4258
  %4358 = vst.msk [vmem:[#allocation3 + $0xa0] sm:$0xff] %vm4347, %v4260
  %4359 = vst.msk [vmem:[#allocation3 + $0xb0] sm:$0xff] %vm4347, %v4262
  %4360 = vst.msk [vmem:[#allocation3 + $0xc0] sm:$0xff] %vm4347, %v4264
  %4361 = vst.msk [vmem:[#allocation3 + $0xd0] sm:$0xff] %vm4347, %v4266
  %4362 = vst.msk [vmem:[#allocation3 + $0xe0] sm:$0xff] %vm4347, %v4268
  %4363 = vst.msk [vmem:[#allocation3 + $0xf0] sm:$0xff] %vm4347, %v4270
  %4364 = vst.msk [vmem:[#allocation3 + $0x100] sm:$0xff] %vm4347, %v4272
  %4365 = vst.msk [vmem:[#allocation3 + $0x110] sm:$0xff] %vm4347, %v4274
  %4366 = vst.msk [vmem:[#allocation3 + $0x120] sm:$0xff] %vm4347, %v4276
  %4367 = vst.msk [vmem:[#allocation3 + $0x130] sm:$0xff] %vm4347, %v4278
  %4368 = vst.msk [vmem:[#allocation3 + $0x140] sm:$0xff] %vm4347, %v4280
  %4369 = vst.msk [vmem:[#allocation3 + $0x150] sm:$0xff] %vm4347, %v4282
  %4370 = vst.msk [vmem:[#allocation3 + $0x160] sm:$0xff] %vm4347, %v4284
  %4371 = vst.msk [vmem:[#allocation3 + $0x170] sm:$0xff] %vm4347, %v4286
  %4372 = vst.msk [vmem:[#allocation3 + $0x180] sm:$0xff] %vm4347, %v4288
  %4373 = vst.msk [vmem:[#allocation3 + $0x190] sm:$0xff] %vm4347, %v4290
  %4374 = vst.msk [vmem:[#allocation3 + $0x1a0] sm:$0xff] %vm4347, %v4292
  %4375 = vst.msk [vmem:[#allocation3 + $0x1b0] sm:$0xff] %vm4347, %v4294
  %4376 = vst.msk [vmem:[#allocation3 + $0x1c0] sm:$0xff] %vm4347, %v4296
  %4377 = vst.msk [vmem:[#allocation3 + $0x1d0] sm:$0xff] %vm4347, %v4298
  %4378 = vst.msk [vmem:[#allocation3 + $0x1e0] sm:$0xff] %vm4347, %v4300
  %4379 = vst.msk [vmem:[#allocation3 + $0x1f0] sm:$0xff] %vm4347, %v4302
  %4380 = vst.msk [vmem:[#allocation3 + $0x200] sm:$0xff] %vm4347, %v4304
  %4381 = vst.msk [vmem:[#allocation3 + $0x210] sm:$0xff] %vm4347, %v4306
  %4382 = vst.msk [vmem:[#allocation3 + $0x220] sm:$0xff] %vm4347, %v4308
  %4383 = vst.msk [vmem:[#allocation3 + $0x230] sm:$0xff] %vm4347, %v4310
  %v4384 = vld [vmem:[#allocation2 + $0x1b] sm:$0xff]
  %v4385 = vld [vmem:[#allocation2 + $0x23] sm:$0xff]
  %v4386 = vld [vmem:[#allocation2 + $0x2b] sm:$0xff]
  %v4387 = vld [vmem:[#allocation2 + $0x33] sm:$0xff]
  %v4388 = vld [vmem:[#allocation2 + $0x3b] sm:$0xff]
  %v4389 = vld [vmem:[#allocation2 + $0x43] sm:$0xff]
  %v4390 = vld [vmem:[#allocation2 + $0x4b] sm:$0xff]
  %v4391 = vld [vmem:[#allocation2 + $0x53] sm:$0xff]
  %v4392 = vld [vmem:[#allocation2 + $0x5b] sm:$0xff]
  %v4393 = vld [vmem:[#allocation2 + $0x63] sm:$0xff]
  %v4394 = vld [vmem:[#allocation2 + $0x6b] sm:$0xff]
  %v4395 = vld [vmem:[#allocation2 + $0x73] sm:$0xff]
  %v4396 = vld [vmem:[#allocation2 + $0x7b] sm:$0xff]
  %v4397 = vld [vmem:[#allocation2 + $0x83] sm:$0xff]
  %v4398 = vld [vmem:[#allocation2 + $0x8b] sm:$0xff]
  %v4399 = vld [vmem:[#allocation2 + $0x93] sm:$0xff]
  %v4400 = vld [vmem:[#allocation2 + $0x9b] sm:$0xff]
  %v4401 = vld [vmem:[#allocation2 + $0xa3] sm:$0xff]
  %v4402 = vld [vmem:[#allocation2 + $0xab] sm:$0xff]
  %v4403 = vld [vmem:[#allocation2 + $0xb3] sm:$0xff]
  %v4404 = vld [vmem:[#allocation2 + $0xbb] sm:$0xff]
  %v4405 = vld [vmem:[#allocation2 + $0xc3] sm:$0xff]
  %v4406 = vld [vmem:[#allocation2 + $0xcb] sm:$0xff]
  %v4407 = vld [vmem:[#allocation2 + $0xd3] sm:$0xff]
  %v4408 = vld [vmem:[#allocation2 + $0xdb] sm:$0xff]
  %v4409 = vld [vmem:[#allocation2 + $0xe3] sm:$0xff]
  %v4410 = vld [vmem:[#allocation2 + $0xeb] sm:$0xff]
  %v4411 = vld [vmem:[#allocation2 + $0xf3] sm:$0xff]
  %v4412 = vld [vmem:[#allocation2 + $0xfb] sm:$0xff]
  %v4413 = vld [vmem:[#allocation2 + $0x103] sm:$0xff]
  %v4414 = vld [vmem:[#allocation2 + $0x10b] sm:$0xff]
  %v4415 = vld [vmem:[#allocation2 + $0x113] sm:$0xff]
  %v4416 = vld [vmem:[#allocation2 + $0x11b] sm:$0xff]
  %v4417 = vld [vmem:[#allocation2 + $0x123] sm:$0xff]
  %v4418 = vld [vmem:[#allocation2 + $0x12b] sm:$0xff]
  %v4419 = vld [vmem:[#allocation2 + $0x133] sm:$0xff]
  %4456 = vrot.lane.b32.xlu0 %v4384, 104
  %v4457 = vpop.permute.xlu0 %4456
  %4458 = vrot.lane.b32.xlu0 %v4385, 104
  %v4459 = vpop.permute.xlu0 %4458
  %4460 = vrot.lane.b32.xlu0 %v4386, 104
  %v4461 = vpop.permute.xlu0 %4460
  %4462 = vrot.lane.b32.xlu0 %v4387, 104
  %v4463 = vpop.permute.xlu0 %4462
  %4464 = vrot.lane.b32.xlu0 %v4388, 104
  %v4465 = vpop.permute.xlu0 %4464
  %4466 = vrot.lane.b32.xlu0 %v4389, 104
  %v4467 = vpop.permute.xlu0 %4466
  %4468 = vrot.lane.b32.xlu0 %v4390, 104
  %v4469 = vpop.permute.xlu0 %4468
  %4470 = vrot.lane.b32.xlu0 %v4391, 104
  %v4471 = vpop.permute.xlu0 %4470
  %4472 = vrot.lane.b32.xlu0 %v4392, 104
  %v4473 = vpop.permute.xlu0 %4472
  %4474 = vrot.lane.b32.xlu0 %v4393, 104
  %v4475 = vpop.permute.xlu0 %4474
  %4476 = vrot.lane.b32.xlu0 %v4394, 104
  %v4477 = vpop.permute.xlu0 %4476
  %4478 = vrot.lane.b32.xlu0 %v4395, 104
  %v4479 = vpop.permute.xlu0 %4478
  %4480 = vrot.lane.b32.xlu0 %v4396, 104
  %v4481 = vpop.permute.xlu0 %4480
  %4482 = vrot.lane.b32.xlu0 %v4397, 104
  %v4483 = vpop.permute.xlu0 %4482
  %4484 = vrot.lane.b32.xlu0 %v4398, 104
  %v4485 = vpop.permute.xlu0 %4484
  %4486 = vrot.lane.b32.xlu0 %v4399, 104
  %v4487 = vpop.permute.xlu0 %4486
  %4488 = vrot.lane.b32.xlu0 %v4400, 104
  %v4489 = vpop.permute.xlu0 %4488
  %4490 = vrot.lane.b32.xlu0 %v4401, 104
  %v4491 = vpop.permute.xlu0 %4490
  %4492 = vrot.lane.b32.xlu0 %v4402, 104
  %v4493 = vpop.permute.xlu0 %4492
  %4494 = vrot.lane.b32.xlu0 %v4403, 104
  %v4495 = vpop.permute.xlu0 %4494
  %4496 = vrot.lane.b32.xlu0 %v4404, 104
  %v4497 = vpop.permute.xlu0 %4496
  %4498 = vrot.lane.b32.xlu0 %v4405, 104
  %v4499 = vpop.permute.xlu0 %4498
  %4500 = vrot.lane.b32.xlu0 %v4406, 104
  %v4501 = vpop.permute.xlu0 %4500
  %4502 = vrot.lane.b32.xlu0 %v4407, 104
  %v4503 = vpop.permute.xlu0 %4502
  %4504 = vrot.lane.b32.xlu0 %v4408, 104
  %v4505 = vpop.permute.xlu0 %4504
  %4506 = vrot.lane.b32.xlu0 %v4409, 104
  %v4507 = vpop.permute.xlu0 %4506
  %4508 = vrot.lane.b32.xlu0 %v4410, 104
  %v4509 = vpop.permute.xlu0 %4508
  %4510 = vrot.lane.b32.xlu0 %v4411, 104
  %v4511 = vpop.permute.xlu0 %4510
  %4512 = vrot.lane.b32.xlu0 %v4412, 104
  %v4513 = vpop.permute.xlu0 %4512
  %4514 = vrot.lane.b32.xlu0 %v4413, 104
  %v4515 = vpop.permute.xlu0 %4514
  %4516 = vrot.lane.b32.xlu0 %v4414, 104
  %v4517 = vpop.permute.xlu0 %4516
  %4518 = vrot.lane.b32.xlu0 %v4415, 104
  %v4519 = vpop.permute.xlu0 %4518
  %4520 = vrot.lane.b32.xlu0 %v4416, 104
  %v4521 = vpop.permute.xlu0 %4520
  %4522 = vrot.lane.b32.xlu0 %v4417, 104
  %v4523 = vpop.permute.xlu0 %4522
  %4524 = vrot.lane.b32.xlu0 %v4418, 104
  %v4525 = vpop.permute.xlu0 %4524
  %4526 = vrot.lane.b32.xlu0 %v4419, 104
  %v4527 = vpop.permute.xlu0 %4526
  %vm4564 = vcmask 917312
  %4565 = vst.msk [vmem:[#allocation3] sm:$0xff] %vm4564, %v4457
  %4566 = vst.msk [vmem:[#allocation3 + $0x10] sm:$0xff] %vm4564, %v4459
  %4567 = vst.msk [vmem:[#allocation3 + $0x20] sm:$0xff] %vm4564, %v4461
  %4568 = vst.msk [vmem:[#allocation3 + $0x30] sm:$0xff] %vm4564, %v4463
  %4569 = vst.msk [vmem:[#allocation3 + $0x40] sm:$0xff] %vm4564, %v4465
  %4570 = vst.msk [vmem:[#allocation3 + $0x50] sm:$0xff] %vm4564, %v4467
  %4571 = vst.msk [vmem:[#allocation3 + $0x60] sm:$0xff] %vm4564, %v4469
  %4572 = vst.msk [vmem:[#allocation3 + $0x70] sm:$0xff] %vm4564, %v4471
  %4573 = vst.msk [vmem:[#allocation3 + $0x80] sm:$0xff] %vm4564, %v4473
  %4574 = vst.msk [vmem:[#allocation3 + $0x90] sm:$0xff] %vm4564, %v4475
  %4575 = vst.msk [vmem:[#allocation3 + $0xa0] sm:$0xff] %vm4564, %v4477
  %4576 = vst.msk [vmem:[#allocation3 + $0xb0] sm:$0xff] %vm4564, %v4479
  %4577 = vst.msk [vmem:[#allocation3 + $0xc0] sm:$0xff] %vm4564, %v4481
  %4578 = vst.msk [vmem:[#allocation3 + $0xd0] sm:$0xff] %vm4564, %v4483
  %4579 = vst.msk [vmem:[#allocation3 + $0xe0] sm:$0xff] %vm4564, %v4485
  %4580 = vst.msk [vmem:[#allocation3 + $0xf0] sm:$0xff] %vm4564, %v4487
  %4581 = vst.msk [vmem:[#allocation3 + $0x100] sm:$0xff] %vm4564, %v4489
  %4582 = vst.msk [vmem:[#allocation3 + $0x110] sm:$0xff] %vm4564, %v4491
  %4583 = vst.msk [vmem:[#allocation3 + $0x120] sm:$0xff] %vm4564, %v4493
  %4584 = vst.msk [vmem:[#allocation3 + $0x130] sm:$0xff] %vm4564, %v4495
  %4585 = vst.msk [vmem:[#allocation3 + $0x140] sm:$0xff] %vm4564, %v4497
  %4586 = vst.msk [vmem:[#allocation3 + $0x150] sm:$0xff] %vm4564, %v4499
  %4587 = vst.msk [vmem:[#allocation3 + $0x160] sm:$0xff] %vm4564, %v4501
  %4588 = vst.msk [vmem:[#allocation3 + $0x170] sm:$0xff] %vm4564, %v4503
  %4589 = vst.msk [vmem:[#allocation3 + $0x180] sm:$0xff] %vm4564, %v4505
  %4590 = vst.msk [vmem:[#allocation3 + $0x190] sm:$0xff] %vm4564, %v4507
  %4591 = vst.msk [vmem:[#allocation3 + $0x1a0] sm:$0xff] %vm4564, %v4509
  %4592 = vst.msk [vmem:[#allocation3 + $0x1b0] sm:$0xff] %vm4564, %v4511
  %4593 = vst.msk [vmem:[#allocation3 + $0x1c0] sm:$0xff] %vm4564, %v4513
  %4594 = vst.msk [vmem:[#allocation3 + $0x1d0] sm:$0xff] %vm4564, %v4515
  %4595 = vst.msk [vmem:[#allocation3 + $0x1e0] sm:$0xff] %vm4564, %v4517
  %4596 = vst.msk [vmem:[#allocation3 + $0x1f0] sm:$0xff] %vm4564, %v4519
  %4597 = vst.msk [vmem:[#allocation3 + $0x200] sm:$0xff] %vm4564, %v4521
  %4598 = vst.msk [vmem:[#allocation3 + $0x210] sm:$0xff] %vm4564, %v4523
  %4599 = vst.msk [vmem:[#allocation3 + $0x220] sm:$0xff] %vm4564, %v4525
  %4600 = vst.msk [vmem:[#allocation3 + $0x230] sm:$0xff] %vm4564, %v4527
  %v4601 = vld [vmem:[#allocation2 + $0x1c] sm:$0xff]
  %v4602 = vld [vmem:[#allocation2 + $0x24] sm:$0xff]
  %v4603 = vld [vmem:[#allocation2 + $0x2c] sm:$0xff]
  %v4604 = vld [vmem:[#allocation2 + $0x34] sm:$0xff]
  %v4605 = vld [vmem:[#allocation2 + $0x3c] sm:$0xff]
  %v4606 = vld [vmem:[#allocation2 + $0x44] sm:$0xff]
  %v4607 = vld [vmem:[#allocation2 + $0x4c] sm:$0xff]
  %v4608 = vld [vmem:[#allocation2 + $0x54] sm:$0xff]
  %v4609 = vld [vmem:[#allocation2 + $0x5c] sm:$0xff]
  %v4610 = vld [vmem:[#allocation2 + $0x64] sm:$0xff]
  %v4611 = vld [vmem:[#allocation2 + $0x6c] sm:$0xff]
  %v4612 = vld [vmem:[#allocation2 + $0x74] sm:$0xff]
  %v4613 = vld [vmem:[#allocation2 + $0x7c] sm:$0xff]
  %v4614 = vld [vmem:[#allocation2 + $0x84] sm:$0xff]
  %v4615 = vld [vmem:[#allocation2 + $0x8c] sm:$0xff]
  %v4616 = vld [vmem:[#allocation2 + $0x94] sm:$0xff]
  %v4617 = vld [vmem:[#allocation2 + $0x9c] sm:$0xff]
  %v4618 = vld [vmem:[#allocation2 + $0xa4] sm:$0xff]
  %v4619 = vld [vmem:[#allocation2 + $0xac] sm:$0xff]
  %v4620 = vld [vmem:[#allocation2 + $0xb4] sm:$0xff]
  %v4621 = vld [vmem:[#allocation2 + $0xbc] sm:$0xff]
  %v4622 = vld [vmem:[#allocation2 + $0xc4] sm:$0xff]
  %v4623 = vld [vmem:[#allocation2 + $0xcc] sm:$0xff]
  %v4624 = vld [vmem:[#allocation2 + $0xd4] sm:$0xff]
  %v4625 = vld [vmem:[#allocation2 + $0xdc] sm:$0xff]
  %v4626 = vld [vmem:[#allocation2 + $0xe4] sm:$0xff]
  %v4627 = vld [vmem:[#allocation2 + $0xec] sm:$0xff]
  %v4628 = vld [vmem:[#allocation2 + $0xf4] sm:$0xff]
  %v4629 = vld [vmem:[#allocation2 + $0xfc] sm:$0xff]
  %v4630 = vld [vmem:[#allocation2 + $0x104] sm:$0xff]
  %v4631 = vld [vmem:[#allocation2 + $0x10c] sm:$0xff]
  %v4632 = vld [vmem:[#allocation2 + $0x114] sm:$0xff]
  %v4633 = vld [vmem:[#allocation2 + $0x11c] sm:$0xff]
  %v4634 = vld [vmem:[#allocation2 + $0x124] sm:$0xff]
  %v4635 = vld [vmem:[#allocation2 + $0x12c] sm:$0xff]
  %v4636 = vld [vmem:[#allocation2 + $0x134] sm:$0xff]
  %4673 = vrot.lane.b32.xlu0 %v4601, 112
  %v4674 = vpop.permute.xlu0 %4673
  %4675 = vrot.lane.b32.xlu0 %v4602, 112
  %v4676 = vpop.permute.xlu0 %4675
  %4677 = vrot.lane.b32.xlu0 %v4603, 112
  %v4678 = vpop.permute.xlu0 %4677
  %4679 = vrot.lane.b32.xlu0 %v4604, 112
  %v4680 = vpop.permute.xlu0 %4679
  %4681 = vrot.lane.b32.xlu0 %v4605, 112
  %v4682 = vpop.permute.xlu0 %4681
  %4683 = vrot.lane.b32.xlu0 %v4606, 112
  %v4684 = vpop.permute.xlu0 %4683
  %4685 = vrot.lane.b32.xlu0 %v4607, 112
  %v4686 = vpop.permute.xlu0 %4685
  %4687 = vrot.lane.b32.xlu0 %v4608, 112
  %v4688 = vpop.permute.xlu0 %4687
  %4689 = vrot.lane.b32.xlu0 %v4609, 112
  %v4690 = vpop.permute.xlu0 %4689
  %4691 = vrot.lane.b32.xlu0 %v4610, 112
  %v4692 = vpop.permute.xlu0 %4691
  %4693 = vrot.lane.b32.xlu0 %v4611, 112
  %v4694 = vpop.permute.xlu0 %4693
  %4695 = vrot.lane.b32.xlu0 %v4612, 112
  %v4696 = vpop.permute.xlu0 %4695
  %4697 = vrot.lane.b32.xlu0 %v4613, 112
  %v4698 = vpop.permute.xlu0 %4697
  %4699 = vrot.lane.b32.xlu0 %v4614, 112
  %v4700 = vpop.permute.xlu0 %4699
  %4701 = vrot.lane.b32.xlu0 %v4615, 112
  %v4702 = vpop.permute.xlu0 %4701
  %4703 = vrot.lane.b32.xlu0 %v4616, 112
  %v4704 = vpop.permute.xlu0 %4703
  %4705 = vrot.lane.b32.xlu0 %v4617, 112
  %v4706 = vpop.permute.xlu0 %4705
  %4707 = vrot.lane.b32.xlu0 %v4618, 112
  %v4708 = vpop.permute.xlu0 %4707
  %4709 = vrot.lane.b32.xlu0 %v4619, 112
  %v4710 = vpop.permute.xlu0 %4709
  %4711 = vrot.lane.b32.xlu0 %v4620, 112
  %v4712 = vpop.permute.xlu0 %4711
  %4713 = vrot.lane.b32.xlu0 %v4621, 112
  %v4714 = vpop.permute.xlu0 %4713
  %4715 = vrot.lane.b32.xlu0 %v4622, 112
  %v4716 = vpop.permute.xlu0 %4715
  %4717 = vrot.lane.b32.xlu0 %v4623, 112
  %v4718 = vpop.permute.xlu0 %4717
  %4719 = vrot.lane.b32.xlu0 %v4624, 112
  %v4720 = vpop.permute.xlu0 %4719
  %4721 = vrot.lane.b32.xlu0 %v4625, 112
  %v4722 = vpop.permute.xlu0 %4721
  %4723 = vrot.lane.b32.xlu0 %v4626, 112
  %v4724 = vpop.permute.xlu0 %4723
  %4725 = vrot.lane.b32.xlu0 %v4627, 112
  %v4726 = vpop.permute.xlu0 %4725
  %4727 = vrot.lane.b32.xlu0 %v4628, 112
  %v4728 = vpop.permute.xlu0 %4727
  %4729 = vrot.lane.b32.xlu0 %v4629, 112
  %v4730 = vpop.permute.xlu0 %4729
  %4731 = vrot.lane.b32.xlu0 %v4630, 112
  %v4732 = vpop.permute.xlu0 %4731
  %4733 = vrot.lane.b32.xlu0 %v4631, 112
  %v4734 = vpop.permute.xlu0 %4733
  %4735 = vrot.lane.b32.xlu0 %v4632, 112
  %v4736 = vpop.permute.xlu0 %4735
  %4737 = vrot.lane.b32.xlu0 %v4633, 112
  %v4738 = vpop.permute.xlu0 %4737
  %4739 = vrot.lane.b32.xlu0 %v4634, 112
  %v4740 = vpop.permute.xlu0 %4739
  %4741 = vrot.lane.b32.xlu0 %v4635, 112
  %v4742 = vpop.permute.xlu0 %4741
  %4743 = vrot.lane.b32.xlu0 %v4636, 112
  %v4744 = vpop.permute.xlu0 %4743
  %vm4781 = vcmask 982912
  %4782 = vst.msk [vmem:[#allocation3] sm:$0xff] %vm4781, %v4674
  %4783 = vst.msk [vmem:[#allocation3 + $0x10] sm:$0xff] %vm4781, %v4676
  %4784 = vst.msk [vmem:[#allocation3 + $0x20] sm:$0xff] %vm4781, %v4678
  %4785 = vst.msk [vmem:[#allocation3 + $0x30] sm:$0xff] %vm4781, %v4680
  %4786 = vst.msk [vmem:[#allocation3 + $0x40] sm:$0xff] %vm4781, %v4682
  %4787 = vst.msk [vmem:[#allocation3 + $0x50] sm:$0xff] %vm4781, %v4684
  %4788 = vst.msk [vmem:[#allocation3 + $0x60] sm:$0xff] %vm4781, %v4686
  %4789 = vst.msk [vmem:[#allocation3 + $0x70] sm:$0xff] %vm4781, %v4688
  %4790 = vst.msk [vmem:[#allocation3 + $0x80] sm:$0xff] %vm4781, %v4690
  %4791 = vst.msk [vmem:[#allocation3 + $0x90] sm:$0xff] %vm4781, %v4692
  %4792 = vst.msk [vmem:[#allocation3 + $0xa0] sm:$0xff] %vm4781, %v4694
  %4793 = vst.msk [vmem:[#allocation3 + $0xb0] sm:$0xff] %vm4781, %v4696
  %4794 = vst.msk [vmem:[#allocation3 + $0xc0] sm:$0xff] %vm4781, %v4698
  %4795 = vst.msk [vmem:[#allocation3 + $0xd0] sm:$0xff] %vm4781, %v4700
  %4796 = vst.msk [vmem:[#allocation3 + $0xe0] sm:$0xff] %vm4781, %v4702
  %4797 = vst.msk [vmem:[#allocation3 + $0xf0] sm:$0xff] %vm4781, %v4704
  %4798 = vst.msk [vmem:[#allocation3 + $0x100] sm:$0xff] %vm4781, %v4706
  %4799 = vst.msk [vmem:[#allocation3 + $0x110] sm:$0xff] %vm4781, %v4708
  %4800 = vst.msk [vmem:[#allocation3 + $0x120] sm:$0xff] %vm4781, %v4710
  %4801 = vst.msk [vmem:[#allocation3 + $0x130] sm:$0xff] %vm4781, %v4712
  %4802 = vst.msk [vmem:[#allocation3 + $0x140] sm:$0xff] %vm4781, %v4714
  %4803 = vst.msk [vmem:[#allocation3 + $0x150] sm:$0xff] %vm4781, %v4716
  %4804 = vst.msk [vmem:[#allocation3 + $0x160] sm:$0xff] %vm4781, %v4718
  %4805 = vst.msk [vmem:[#allocation3 + $0x170] sm:$0xff] %vm4781, %v4720
  %4806 = vst.msk [vmem:[#allocation3 + $0x180] sm:$0xff] %vm4781, %v4722
  %4807 = vst.msk [vmem:[#allocation3 + $0x190] sm:$0xff] %vm4781, %v4724
  %4808 = vst.msk [vmem:[#allocation3 + $0x1a0] sm:$0xff] %vm4781, %v4726
  %4809 = vst.msk [vmem:[#allocation3 + $0x1b0] sm:$0xff] %vm4781, %v4728
  %4810 = vst.msk [vmem:[#allocation3 + $0x1c0] sm:$0xff] %vm4781, %v4730
  %4811 = vst.msk [vmem:[#allocation3 + $0x1d0] sm:$0xff] %vm4781, %v4732
  %4812 = vst.msk [vmem:[#allocation3 + $0x1e0] sm:$0xff] %vm4781, %v4734
  %4813 = vst.msk [vmem:[#allocation3 + $0x1f0] sm:$0xff] %vm4781, %v4736
  %4814 = vst.msk [vmem:[#allocation3 + $0x200] sm:$0xff] %vm4781, %v4738
  %4815 = vst.msk [vmem:[#allocation3 + $0x210] sm:$0xff] %vm4781, %v4740
  %4816 = vst.msk [vmem:[#allocation3 + $0x220] sm:$0xff] %vm4781, %v4742
  %4817 = vst.msk [vmem:[#allocation3 + $0x230] sm:$0xff] %vm4781, %v4744
  %v4818 = vld [vmem:[#allocation2 + $0x24] sm:$0xff]
  %v4819 = vld [vmem:[#allocation2 + $0x2c] sm:$0xff]
  %v4820 = vld [vmem:[#allocation2 + $0x34] sm:$0xff]
  %v4821 = vld [vmem:[#allocation2 + $0x3c] sm:$0xff]
  %v4822 = vld [vmem:[#allocation2 + $0x44] sm:$0xff]
  %v4823 = vld [vmem:[#allocation2 + $0x4c] sm:$0xff]
  %v4824 = vld [vmem:[#allocation2 + $0x54] sm:$0xff]
  %v4825 = vld [vmem:[#allocation2 + $0x5c] sm:$0xff]
  %v4826 = vld [vmem:[#allocation2 + $0x64] sm:$0xff]
  %v4827 = vld [vmem:[#allocation2 + $0x6c] sm:$0xff]
  %v4828 = vld [vmem:[#allocation2 + $0x74] sm:$0xff]
  %v4829 = vld [vmem:[#allocation2 + $0x7c] sm:$0xff]
  %v4830 = vld [vmem:[#allocation2 + $0x84] sm:$0xff]
  %v4831 = vld [vmem:[#allocation2 + $0x8c] sm:$0xff]
  %v4832 = vld [vmem:[#allocation2 + $0x94] sm:$0xff]
  %v4833 = vld [vmem:[#allocation2 + $0x9c] sm:$0xff]
  %v4834 = vld [vmem:[#allocation2 + $0xa4] sm:$0xff]
  %v4835 = vld [vmem:[#allocation2 + $0xac] sm:$0xff]
  %v4836 = vld [vmem:[#allocation2 + $0xb4] sm:$0xff]
  %v4837 = vld [vmem:[#allocation2 + $0xbc] sm:$0xff]
  %v4838 = vld [vmem:[#allocation2 + $0xc4] sm:$0xff]
  %v4839 = vld [vmem:[#allocation2 + $0xcc] sm:$0xff]
  %v4840 = vld [vmem:[#allocation2 + $0xd4] sm:$0xff]
  %v4841 = vld [vmem:[#allocation2 + $0xdc] sm:$0xff]
  %v4842 = vld [vmem:[#allocation2 + $0xe4] sm:$0xff]
  %v4843 = vld [vmem:[#allocation2 + $0xec] sm:$0xff]
  %v4844 = vld [vmem:[#allocation2 + $0xf4] sm:$0xff]
  %v4845 = vld [vmem:[#allocation2 + $0xfc] sm:$0xff]
  %v4846 = vld [vmem:[#allocation2 + $0x104] sm:$0xff]
  %v4847 = vld [vmem:[#allocation2 + $0x10c] sm:$0xff]
  %v4848 = vld [vmem:[#allocation2 + $0x114] sm:$0xff]
  %v4849 = vld [vmem:[#allocation2 + $0x11c] sm:$0xff]
  %v4850 = vld [vmem:[#allocation2 + $0x124] sm:$0xff]
  %v4851 = vld [vmem:[#allocation2 + $0x12c] sm:$0xff]
  %v4852 = vld [vmem:[#allocation2 + $0x134] sm:$0xff]
  %v4853 = vld [vmem:[#allocation2 + $0x13c] sm:$0xff]
  %4890 = vrot.lane.b32.xlu0 %v4818, 120
  %v4891 = vpop.permute.xlu0 %4890
  %4892 = vrot.lane.b32.xlu0 %v4819, 120
  %v4893 = vpop.permute.xlu0 %4892
  %4894 = vrot.lane.b32.xlu0 %v4820, 120
  %v4895 = vpop.permute.xlu0 %4894
  %4896 = vrot.lane.b32.xlu0 %v4821, 120
  %v4897 = vpop.permute.xlu0 %4896
  %4898 = vrot.lane.b32.xlu0 %v4822, 120
  %v4899 = vpop.permute.xlu0 %4898
  %4900 = vrot.lane.b32.xlu0 %v4823, 120
  %v4901 = vpop.permute.xlu0 %4900
  %4902 = vrot.lane.b32.xlu0 %v4824, 120
  %v4903 = vpop.permute.xlu0 %4902
  %4904 = vrot.lane.b32.xlu0 %v4825, 120
  %v4905 = vpop.permute.xlu0 %4904
  %4906 = vrot.lane.b32.xlu0 %v4826, 120
  %v4907 = vpop.permute.xlu0 %4906
  %4908 = vrot.lane.b32.xlu0 %v4827, 120
  %v4909 = vpop.permute.xlu0 %4908
  %4910 = vrot.lane.b32.xlu0 %v4828, 120
  %v4911 = vpop.permute.xlu0 %4910
  %4912 = vrot.lane.b32.xlu0 %v4829, 120
  %v4913 = vpop.permute.xlu0 %4912
  %4914 = vrot.lane.b32.xlu0 %v4830, 120
  %v4915 = vpop.permute.xlu0 %4914
  %4916 = vrot.lane.b32.xlu0 %v4831, 120
  %v4917 = vpop.permute.xlu0 %4916
  %4918 = vrot.lane.b32.xlu0 %v4832, 120
  %v4919 = vpop.permute.xlu0 %4918
  %4920 = vrot.lane.b32.xlu0 %v4833, 120
  %v4921 = vpop.permute.xlu0 %4920
  %4922 = vrot.lane.b32.xlu0 %v4834, 120
  %v4923 = vpop.permute.xlu0 %4922
  %4924 = vrot.lane.b32.xlu0 %v4835, 120
  %v4925 = vpop.permute.xlu0 %4924
  %4926 = vrot.lane.b32.xlu0 %v4836, 120
  %v4927 = vpop.permute.xlu0 %4926
  %4928 = vrot.lane.b32.xlu0 %v4837, 120
  %v4929 = vpop.permute.xlu0 %4928
  %4930 = vrot.lane.b32.xlu0 %v4838, 120
  %v4931 = vpop.permute.xlu0 %4930
  %4932 = vrot.lane.b32.xlu0 %v4839, 120
  %v4933 = vpop.permute.xlu0 %4932
  %4934 = vrot.lane.b32.xlu0 %v4840, 120
  %v4935 = vpop.permute.xlu0 %4934
  %4936 = vrot.lane.b32.xlu0 %v4841, 120
  %v4937 = vpop.permute.xlu0 %4936
  %4938 = vrot.lane.b32.xlu0 %v4842, 120
  %v4939 = vpop.permute.xlu0 %4938
  %4940 = vrot.lane.b32.xlu0 %v4843, 120
  %v4941 = vpop.permute.xlu0 %4940
  %4942 = vrot.lane.b32.xlu0 %v4844, 120
  %v4943 = vpop.permute.xlu0 %4942
  %4944 = vrot.lane.b32.xlu0 %v4845, 120
  %v4945 = vpop.permute.xlu0 %4944
  %4946 = vrot.lane.b32.xlu0 %v4846, 120
  %v4947 = vpop.permute.xlu0 %4946
  %4948 = vrot.lane.b32.xlu0 %v4847, 120
  %v4949 = vpop.permute.xlu0 %4948
  %4950 = vrot.lane.b32.xlu0 %v4848, 120
  %v4951 = vpop.permute.xlu0 %4950
  %4952 = vrot.lane.b32.xlu0 %v4849, 120
  %v4953 = vpop.permute.xlu0 %4952
  %4954 = vrot.lane.b32.xlu0 %v4850, 120
  %v4955 = vpop.permute.xlu0 %4954
  %4956 = vrot.lane.b32.xlu0 %v4851, 120
  %v4957 = vpop.permute.xlu0 %4956
  %4958 = vrot.lane.b32.xlu0 %v4852, 120
  %v4959 = vpop.permute.xlu0 %4958
  %4960 = vrot.lane.b32.xlu0 %v4853, 120
  %v4961 = vpop.permute.xlu0 %4960
  %vm4998 = vcmask 1048512
  %4999 = vst.msk [vmem:[#allocation3] sm:$0xff] %vm4998, %v4891
  %5000 = vst.msk [vmem:[#allocation3 + $0x10] sm:$0xff] %vm4998, %v4893
  %5001 = vst.msk [vmem:[#allocation3 + $0x20] sm:$0xff] %vm4998, %v4895
  %5002 = vst.msk [vmem:[#allocation3 + $0x30] sm:$0xff] %vm4998, %v4897
  %5003 = vst.msk [vmem:[#allocation3 + $0x40] sm:$0xff] %vm4998, %v4899
  %5004 = vst.msk [vmem:[#allocation3 + $0x50] sm:$0xff] %vm4998, %v4901
  %5005 = vst.msk [vmem:[#allocation3 + $0x60] sm:$0xff] %vm4998, %v4903
  %5006 = vst.msk [vmem:[#allocation3 + $0x70] sm:$0xff] %vm4998, %v4905
  %5007 = vst.msk [vmem:[#allocation3 + $0x80] sm:$0xff] %vm4998, %v4907
  %5008 = vst.msk [vmem:[#allocation3 + $0x90] sm:$0xff] %vm4998, %v4909
  %5009 = vst.msk [vmem:[#allocation3 + $0xa0] sm:$0xff] %vm4998, %v4911
  %5010 = vst.msk [vmem:[#allocation3 + $0xb0] sm:$0xff] %vm4998, %v4913
  %5011 = vst.msk [vmem:[#allocation3 + $0xc0] sm:$0xff] %vm4998, %v4915
  %5012 = vst.msk [vmem:[#allocation3 + $0xd0] sm:$0xff] %vm4998, %v4917
  %5013 = vst.msk [vmem:[#allocation3 + $0xe0] sm:$0xff] %vm4998, %v4919
  %5014 = vst.msk [vmem:[#allocation3 + $0xf0] sm:$0xff] %vm4998, %v4921
  %5015 = vst.msk [vmem:[#allocation3 + $0x100] sm:$0xff] %vm4998, %v4923
  %5016 = vst.msk [vmem:[#allocation3 + $0x110] sm:$0xff] %vm4998, %v4925
  %5017 = vst.msk [vmem:[#allocation3 + $0x120] sm:$0xff] %vm4998, %v4927
  %5018 = vst.msk [vmem:[#allocation3 + $0x130] sm:$0xff] %vm4998, %v4929
  %5019 = vst.msk [vmem:[#allocation3 + $0x140] sm:$0xff] %vm4998, %v4931
  %5020 = vst.msk [vmem:[#allocation3 + $0x150] sm:$0xff] %vm4998, %v4933
  %5021 = vst.msk [vmem:[#allocation3 + $0x160] sm:$0xff] %vm4998, %v4935
  %5022 = vst.msk [vmem:[#allocation3 + $0x170] sm:$0xff] %vm4998, %v4937
  %5023 = vst.msk [vmem:[#allocation3 + $0x180] sm:$0xff] %vm4998, %v4939
  %5024 = vst.msk [vmem:[#allocation3 + $0x190] sm:$0xff] %vm4998, %v4941
  %5025 = vst.msk [vmem:[#allocation3 + $0x1a0] sm:$0xff] %vm4998, %v4943
  %5026 = vst.msk [vmem:[#allocation3 + $0x1b0] sm:$0xff] %vm4998, %v4945
  %5027 = vst.msk [vmem:[#allocation3 + $0x1c0] sm:$0xff] %vm4998, %v4947
  %5028 = vst.msk [vmem:[#allocation3 + $0x1d0] sm:$0xff] %vm4998, %v4949
  %5029 = vst.msk [vmem:[#allocation3 + $0x1e0] sm:$0xff] %vm4998, %v4951
  %5030 = vst.msk [vmem:[#allocation3 + $0x1f0] sm:$0xff] %vm4998, %v4953
  %5031 = vst.msk [vmem:[#allocation3 + $0x200] sm:$0xff] %vm4998, %v4955
  %5032 = vst.msk [vmem:[#allocation3 + $0x210] sm:$0xff] %vm4998, %v4957
  %5033 = vst.msk [vmem:[#allocation3 + $0x220] sm:$0xff] %vm4998, %v4959
  %5034 = vst.msk [vmem:[#allocation3 + $0x230] sm:$0xff] %vm4998, %v4961
  %v5035 = vld [vmem:[#allocation2 + $0x25] sm:$0xff]
  %v5036 = vld [vmem:[#allocation2 + $0x2d] sm:$0xff]
  %v5037 = vld [vmem:[#allocation2 + $0x35] sm:$0xff]
  %v5038 = vld [vmem:[#allocation2 + $0x3d] sm:$0xff]
  %v5039 = vld [vmem:[#allocation2 + $0x45] sm:$0xff]
  %v5040 = vld [vmem:[#allocation2 + $0x4d] sm:$0xff]
  %v5041 = vld [vmem:[#allocation2 + $0x55] sm:$0xff]
  %v5042 = vld [vmem:[#allocation2 + $0x5d] sm:$0xff]
  %v5043 = vld [vmem:[#allocation2 + $0x65] sm:$0xff]
  %v5044 = vld [vmem:[#allocation2 + $0x6d] sm:$0xff]
  %v5045 = vld [vmem:[#allocation2 + $0x75] sm:$0xff]
  %v5046 = vld [vmem:[#allocation2 + $0x7d] sm:$0xff]
  %v5047 = vld [vmem:[#allocation2 + $0x85] sm:$0xff]
  %v5048 = vld [vmem:[#allocation2 + $0x8d] sm:$0xff]
  %v5049 = vld [vmem:[#allocation2 + $0x95] sm:$0xff]
  %v5050 = vld [vmem:[#allocation2 + $0x9d] sm:$0xff]
  %v5051 = vld [vmem:[#allocation2 + $0xa5] sm:$0xff]
  %v5052 = vld [vmem:[#allocation2 + $0xad] sm:$0xff]
  %v5053 = vld [vmem:[#allocation2 + $0xb5] sm:$0xff]
  %v5054 = vld [vmem:[#allocation2 + $0xbd] sm:$0xff]
  %v5055 = vld [vmem:[#allocation2 + $0xc5] sm:$0xff]
  %v5056 = vld [vmem:[#allocation2 + $0xcd] sm:$0xff]
  %v5057 = vld [vmem:[#allocation2 + $0xd5] sm:$0xff]
  %v5058 = vld [vmem:[#allocation2 + $0xdd] sm:$0xff]
  %v5059 = vld [vmem:[#allocation2 + $0xe5] sm:$0xff]
  %v5060 = vld [vmem:[#allocation2 + $0xed] sm:$0xff]
  %v5061 = vld [vmem:[#allocation2 + $0xf5] sm:$0xff]
  %v5062 = vld [vmem:[#allocation2 + $0xfd] sm:$0xff]
  %v5063 = vld [vmem:[#allocation2 + $0x105] sm:$0xff]
  %v5064 = vld [vmem:[#allocation2 + $0x10d] sm:$0xff]
  %v5065 = vld [vmem:[#allocation2 + $0x115] sm:$0xff]
  %v5066 = vld [vmem:[#allocation2 + $0x11d] sm:$0xff]
  %v5067 = vld [vmem:[#allocation2 + $0x125] sm:$0xff]
  %v5068 = vld [vmem:[#allocation2 + $0x12d] sm:$0xff]
  %v5069 = vld [vmem:[#allocation2 + $0x135] sm:$0xff]
  %v5070 = vld [vmem:[#allocation2 + $0x13d] sm:$0xff]
  %5071 = vst.msk [vmem:[#allocation3 + $0x8] sm:$0xff] %vm1743, %v5035
  %5072 = vst.msk [vmem:[#allocation3 + $0x18] sm:$0xff] %vm1743, %v5036
  %5073 = vst.msk [vmem:[#allocation3 + $0x28] sm:$0xff] %vm1743, %v5037
  %5074 = vst.msk [vmem:[#allocation3 + $0x38] sm:$0xff] %vm1743, %v5038
  %5075 = vst.msk [vmem:[#allocation3 + $0x48] sm:$0xff] %vm1743, %v5039
  %5076 = vst.msk [vmem:[#allocation3 + $0x58] sm:$0xff] %vm1743, %v5040
  %5077 = vst.msk [vmem:[#allocation3 + $0x68] sm:$0xff] %vm1743, %v5041
  %5078 = vst.msk [vmem:[#allocation3 + $0x78] sm:$0xff] %vm1743, %v5042
  %5079 = vst.msk [vmem:[#allocation3 + $0x88] sm:$0xff] %vm1743, %v5043
  %5080 = vst.msk [vmem:[#allocation3 + $0x98] sm:$0xff] %vm1743, %v5044
  %5081 = vst.msk [vmem:[#allocation3 + $0xa8] sm:$0xff] %vm1743, %v5045
  %5082 = vst.msk [vmem:[#allocation3 + $0xb8] sm:$0xff] %vm1743, %v5046
  %5083 = vst.msk [vmem:[#allocation3 + $0xc8] sm:$0xff] %vm1743, %v5047
  %5084 = vst.msk [vmem:[#allocation3 + $0xd8] sm:$0xff] %vm1743, %v5048
  %5085 = vst.msk [vmem:[#allocation3 + $0xe8] sm:$0xff] %vm1743, %v5049
  %5086 = vst.msk [vmem:[#allocation3 + $0xf8] sm:$0xff] %vm1743, %v5050
  %5087 = vst.msk [vmem:[#allocation3 + $0x108] sm:$0xff] %vm1743, %v5051
  %5088 = vst.msk [vmem:[#allocation3 + $0x118] sm:$0xff] %vm1743, %v5052
  %5089 = vst.msk [vmem:[#allocation3 + $0x128] sm:$0xff] %vm1743, %v5053
  %5090 = vst.msk [vmem:[#allocation3 + $0x138] sm:$0xff] %vm1743, %v5054
  %5091 = vst.msk [vmem:[#allocation3 + $0x148] sm:$0xff] %vm1743, %v5055
  %5092 = vst.msk [vmem:[#allocation3 + $0x158] sm:$0xff] %vm1743, %v5056
  %5093 = vst.msk [vmem:[#allocation3 + $0x168] sm:$0xff] %vm1743, %v5057
  %5094 = vst.msk [vmem:[#allocation3 + $0x178] sm:$0xff] %vm1743, %v5058
  %5095 = vst.msk [vmem:[#allocation3 + $0x188] sm:$0xff] %vm1743, %v5059
  %5096 = vst.msk [vmem:[#allocation3 + $0x198] sm:$0xff] %vm1743, %v5060
  %5097 = vst.msk [vmem:[#allocation3 + $0x1a8] sm:$0xff] %vm1743, %v5061
  %5098 = vst.msk [vmem:[#allocation3 + $0x1b8] sm:$0xff] %vm1743, %v5062
  %5099 = vst.msk [vmem:[#allocation3 + $0x1c8] sm:$0xff] %vm1743, %v5063
  %5100 = vst.msk [vmem:[#allocation3 + $0x1d8] sm:$0xff] %vm1743, %v5064
  %5101 = vst.msk [vmem:[#allocation3 + $0x1e8] sm:$0xff] %vm1743, %v5065
  %5102 = vst.msk [vmem:[#allocation3 + $0x1f8] sm:$0xff] %vm1743, %v5066
  %5103 = vst.msk [vmem:[#allocation3 + $0x208] sm:$0xff] %vm1743, %v5067
  %5104 = vst.msk [vmem:[#allocation3 + $0x218] sm:$0xff] %vm1743, %v5068
  %5105 = vst.msk [vmem:[#allocation3 + $0x228] sm:$0xff] %vm1743, %v5069
  %5106 = vst.msk [vmem:[#allocation3 + $0x238] sm:$0xff] %vm1743, %v5070
  %v5107 = vld [vmem:[#allocation2 + $0x26] sm:$0xff]
  %v5108 = vld [vmem:[#allocation2 + $0x2e] sm:$0xff]
  %v5109 = vld [vmem:[#allocation2 + $0x36] sm:$0xff]
  %v5110 = vld [vmem:[#allocation2 + $0x3e] sm:$0xff]
  %v5111 = vld [vmem:[#allocation2 + $0x46] sm:$0xff]
  %v5112 = vld [vmem:[#allocation2 + $0x4e] sm:$0xff]
  %v5113 = vld [vmem:[#allocation2 + $0x56] sm:$0xff]
  %v5114 = vld [vmem:[#allocation2 + $0x5e] sm:$0xff]
  %v5115 = vld [vmem:[#allocation2 + $0x66] sm:$0xff]
  %v5116 = vld [vmem:[#allocation2 + $0x6e] sm:$0xff]
  %v5117 = vld [vmem:[#allocation2 + $0x76] sm:$0xff]
  %v5118 = vld [vmem:[#allocation2 + $0x7e] sm:$0xff]
  %v5119 = vld [vmem:[#allocation2 + $0x86] sm:$0xff]
  %v5120 = vld [vmem:[#allocation2 + $0x8e] sm:$0xff]
  %v5121 = vld [vmem:[#allocation2 + $0x96] sm:$0xff]
  %v5122 = vld [vmem:[#allocation2 + $0x9e] sm:$0xff]
  %v5123 = vld [vmem:[#allocation2 + $0xa6] sm:$0xff]
  %v5124 = vld [vmem:[#allocation2 + $0xae] sm:$0xff]
  %v5125 = vld [vmem:[#allocation2 + $0xb6] sm:$0xff]
  %v5126 = vld [vmem:[#allocation2 + $0xbe] sm:$0xff]
  %v5127 = vld [vmem:[#allocation2 + $0xc6] sm:$0xff]
  %v5128 = vld [vmem:[#allocation2 + $0xce] sm:$0xff]
  %v5129 = vld [vmem:[#allocation2 + $0xd6] sm:$0xff]
  %v5130 = vld [vmem:[#allocation2 + $0xde] sm:$0xff]
  %v5131 = vld [vmem:[#allocation2 + $0xe6] sm:$0xff]
  %v5132 = vld [vmem:[#allocation2 + $0xee] sm:$0xff]
  %v5133 = vld [vmem:[#allocation2 + $0xf6] sm:$0xff]
  %v5134 = vld [vmem:[#allocation2 + $0xfe] sm:$0xff]
  %v5135 = vld [vmem:[#allocation2 + $0x106] sm:$0xff]
  %v5136 = vld [vmem:[#allocation2 + $0x10e] sm:$0xff]
  %v5137 = vld [vmem:[#allocation2 + $0x116] sm:$0xff]
  %v5138 = vld [vmem:[#allocation2 + $0x11e] sm:$0xff]
  %v5139 = vld [vmem:[#allocation2 + $0x126] sm:$0xff]
  %v5140 = vld [vmem:[#allocation2 + $0x12e] sm:$0xff]
  %v5141 = vld [vmem:[#allocation2 + $0x136] sm:$0xff]
  %v5142 = vld [vmem:[#allocation2 + $0x13e] sm:$0xff]
  %5179 = vrot.lane.b32.xlu0 %v5107, 8
  %v5180 = vpop.permute.xlu0 %5179
  %5181 = vrot.lane.b32.xlu0 %v5108, 8
  %v5182 = vpop.permute.xlu0 %5181
  %5183 = vrot.lane.b32.xlu0 %v5109, 8
  %v5184 = vpop.permute.xlu0 %5183
  %5185 = vrot.lane.b32.xlu0 %v5110, 8
  %v5186 = vpop.permute.xlu0 %5185
  %5187 = vrot.lane.b32.xlu0 %v5111, 8
  %v5188 = vpop.permute.xlu0 %5187
  %5189 = vrot.lane.b32.xlu0 %v5112, 8
  %v5190 = vpop.permute.xlu0 %5189
  %5191 = vrot.lane.b32.xlu0 %v5113, 8
  %v5192 = vpop.permute.xlu0 %5191
  %5193 = vrot.lane.b32.xlu0 %v5114, 8
  %v5194 = vpop.permute.xlu0 %5193
  %5195 = vrot.lane.b32.xlu0 %v5115, 8
  %v5196 = vpop.permute.xlu0 %5195
  %5197 = vrot.lane.b32.xlu0 %v5116, 8
  %v5198 = vpop.permute.xlu0 %5197
  %5199 = vrot.lane.b32.xlu0 %v5117, 8
  %v5200 = vpop.permute.xlu0 %5199
  %5201 = vrot.lane.b32.xlu0 %v5118, 8
  %v5202 = vpop.permute.xlu0 %5201
  %5203 = vrot.lane.b32.xlu0 %v5119, 8
  %v5204 = vpop.permute.xlu0 %5203
  %5205 = vrot.lane.b32.xlu0 %v5120, 8
  %v5206 = vpop.permute.xlu0 %5205
  %5207 = vrot.lane.b32.xlu0 %v5121, 8
  %v5208 = vpop.permute.xlu0 %5207
  %5209 = vrot.lane.b32.xlu0 %v5122, 8
  %v5210 = vpop.permute.xlu0 %5209
  %5211 = vrot.lane.b32.xlu0 %v5123, 8
  %v5212 = vpop.permute.xlu0 %5211
  %5213 = vrot.lane.b32.xlu0 %v5124, 8
  %v5214 = vpop.permute.xlu0 %5213
  %5215 = vrot.lane.b32.xlu0 %v5125, 8
  %v5216 = vpop.permute.xlu0 %5215
  %5217 = vrot.lane.b32.xlu0 %v5126, 8
  %v5218 = vpop.permute.xlu0 %5217
  %5219 = vrot.lane.b32.xlu0 %v5127, 8
  %v5220 = vpop.permute.xlu0 %5219
  %5221 = vrot.lane.b32.xlu0 %v5128, 8
  %v5222 = vpop.permute.xlu0 %5221
  %5223 = vrot.lane.b32.xlu0 %v5129, 8
  %v5224 = vpop.permute.xlu0 %5223
  %5225 = vrot.lane.b32.xlu0 %v5130, 8
  %v5226 = vpop.permute.xlu0 %5225
  %5227 = vrot.lane.b32.xlu0 %v5131, 8
  %v5228 = vpop.permute.xlu0 %5227
  %5229 = vrot.lane.b32.xlu0 %v5132, 8
  %v5230 = vpop.permute.xlu0 %5229
  %5231 = vrot.lane.b32.xlu0 %v5133, 8
  %v5232 = vpop.permute.xlu0 %5231
  %5233 = vrot.lane.b32.xlu0 %v5134, 8
  %v5234 = vpop.permute.xlu0 %5233
  %5235 = vrot.lane.b32.xlu0 %v5135, 8
  %v5236 = vpop.permute.xlu0 %5235
  %5237 = vrot.lane.b32.xlu0 %v5136, 8
  %v5238 = vpop.permute.xlu0 %5237
  %5239 = vrot.lane.b32.xlu0 %v5137, 8
  %v5240 = vpop.permute.xlu0 %5239
  %5241 = vrot.lane.b32.xlu0 %v5138, 8
  %v5242 = vpop.permute.xlu0 %5241
  %5243 = vrot.lane.b32.xlu0 %v5139, 8
  %v5244 = vpop.permute.xlu0 %5243
  %5245 = vrot.lane.b32.xlu0 %v5140, 8
  %v5246 = vpop.permute.xlu0 %5245
  %5247 = vrot.lane.b32.xlu0 %v5141, 8
  %v5248 = vpop.permute.xlu0 %5247
  %5249 = vrot.lane.b32.xlu0 %v5142, 8
  %v5250 = vpop.permute.xlu0 %5249
  %5287 = vst.msk [vmem:[#allocation3 + $0x8] sm:$0xff] %vm1960, %v5180
  %5288 = vst.msk [vmem:[#allocation3 + $0x18] sm:$0xff] %vm1960, %v5182
  %5289 = vst.msk [vmem:[#allocation3 + $0x28] sm:$0xff] %vm1960, %v5184
  %5290 = vst.msk [vmem:[#allocation3 + $0x38] sm:$0xff] %vm1960, %v5186
  %5291 = vst.msk [vmem:[#allocation3 + $0x48] sm:$0xff] %vm1960, %v5188
  %5292 = vst.msk [vmem:[#allocation3 + $0x58] sm:$0xff] %vm1960, %v5190
  %5293 = vst.msk [vmem:[#allocation3 + $0x68] sm:$0xff] %vm1960, %v5192
  %5294 = vst.msk [vmem:[#allocation3 + $0x78] sm:$0xff] %vm1960, %v5194
  %5295 = vst.msk [vmem:[#allocation3 + $0x88] sm:$0xff] %vm1960, %v5196
  %5296 = vst.msk [vmem:[#allocation3 + $0x98] sm:$0xff] %vm1960, %v5198
  %5297 = vst.msk [vmem:[#allocation3 + $0xa8] sm:$0xff] %vm1960, %v5200
  %5298 = vst.msk [vmem:[#allocation3 + $0xb8] sm:$0xff] %vm1960, %v5202
  %5299 = vst.msk [vmem:[#allocation3 + $0xc8] sm:$0xff] %vm1960, %v5204
  %5300 = vst.msk [vmem:[#allocation3 + $0xd8] sm:$0xff] %vm1960, %v5206
  %5301 = vst.msk [vmem:[#allocation3 + $0xe8] sm:$0xff] %vm1960, %v5208
  %5302 = vst.msk [vmem:[#allocation3 + $0xf8] sm:$0xff] %vm1960, %v5210
  %5303 = vst.msk [vmem:[#allocation3 + $0x108] sm:$0xff] %vm1960, %v5212
  %5304 = vst.msk [vmem:[#allocation3 + $0x118] sm:$0xff] %vm1960, %v5214
  %5305 = vst.msk [vmem:[#allocation3 + $0x128] sm:$0xff] %vm1960, %v5216
  %5306 = vst.msk [vmem:[#allocation3 + $0x138] sm:$0xff] %vm1960, %v5218
  %5307 = vst.msk [vmem:[#allocation3 + $0x148] sm:$0xff] %vm1960, %v5220
  %5308 = vst.msk [vmem:[#allocation3 + $0x158] sm:$0xff] %vm1960, %v5222
  %5309 = vst.msk [vmem:[#allocation3 + $0x168] sm:$0xff] %vm1960, %v5224
  %5310 = vst.msk [vmem:[#allocation3 + $0x178] sm:$0xff] %vm1960, %v5226
  %5311 = vst.msk [vmem:[#allocation3 + $0x188] sm:$0xff] %vm1960, %v5228
  %5312 = vst.msk [vmem:[#allocation3 + $0x198] sm:$0xff] %vm1960, %v5230
  %5313 = vst.msk [vmem:[#allocation3 + $0x1a8] sm:$0xff] %vm1960, %v5232
  %5314 = vst.msk [vmem:[#allocation3 + $0x1b8] sm:$0xff] %vm1960, %v5234
  %5315 = vst.msk [vmem:[#allocation3 + $0x1c8] sm:$0xff] %vm1960, %v5236
  %5316 = vst.msk [vmem:[#allocation3 + $0x1d8] sm:$0xff] %vm1960, %v5238
  %5317 = vst.msk [vmem:[#allocation3 + $0x1e8] sm:$0xff] %vm1960, %v5240
  %5318 = vst.msk [vmem:[#allocation3 + $0x1f8] sm:$0xff] %vm1960, %v5242
  %5319 = vst.msk [vmem:[#allocation3 + $0x208] sm:$0xff] %vm1960, %v5244
  %5320 = vst.msk [vmem:[#allocation3 + $0x218] sm:$0xff] %vm1960, %v5246
  %5321 = vst.msk [vmem:[#allocation3 + $0x228] sm:$0xff] %vm1960, %v5248
  %5322 = vst.msk [vmem:[#allocation3 + $0x238] sm:$0xff] %vm1960, %v5250
  %v5323 = vld [vmem:[#allocation2 + $0x27] sm:$0xff]
  %v5324 = vld [vmem:[#allocation2 + $0x2f] sm:$0xff]
  %v5325 = vld [vmem:[#allocation2 + $0x37] sm:$0xff]
  %v5326 = vld [vmem:[#allocation2 + $0x3f] sm:$0xff]
  %v5327 = vld [vmem:[#allocation2 + $0x47] sm:$0xff]
  %v5328 = vld [vmem:[#allocation2 + $0x4f] sm:$0xff]
  %v5329 = vld [vmem:[#allocation2 + $0x57] sm:$0xff]
  %v5330 = vld [vmem:[#allocation2 + $0x5f] sm:$0xff]
  %v5331 = vld [vmem:[#allocation2 + $0x67] sm:$0xff]
  %v5332 = vld [vmem:[#allocation2 + $0x6f] sm:$0xff]
  %v5333 = vld [vmem:[#allocation2 + $0x77] sm:$0xff]
  %v5334 = vld [vmem:[#allocation2 + $0x7f] sm:$0xff]
  %v5335 = vld [vmem:[#allocation2 + $0x87] sm:$0xff]
  %v5336 = vld [vmem:[#allocation2 + $0x8f] sm:$0xff]
  %v5337 = vld [vmem:[#allocation2 + $0x97] sm:$0xff]
  %v5338 = vld [vmem:[#allocation2 + $0x9f] sm:$0xff]
  %v5339 = vld [vmem:[#allocation2 + $0xa7] sm:$0xff]
  %v5340 = vld [vmem:[#allocation2 + $0xaf] sm:$0xff]
  %v5341 = vld [vmem:[#allocation2 + $0xb7] sm:$0xff]
  %v5342 = vld [vmem:[#allocation2 + $0xbf] sm:$0xff]
  %v5343 = vld [vmem:[#allocation2 + $0xc7] sm:$0xff]
  %v5344 = vld [vmem:[#allocation2 + $0xcf] sm:$0xff]
  %v5345 = vld [vmem:[#allocation2 + $0xd7] sm:$0xff]
  %v5346 = vld [vmem:[#allocation2 + $0xdf] sm:$0xff]
  %v5347 = vld [vmem:[#allocation2 + $0xe7] sm:$0xff]
  %v5348 = vld [vmem:[#allocation2 + $0xef] sm:$0xff]
  %v5349 = vld [vmem:[#allocation2 + $0xf7] sm:$0xff]
  %v5350 = vld [vmem:[#allocation2 + $0xff] sm:$0xff]
  %v5351 = vld [vmem:[#allocation2 + $0x107] sm:$0xff]
  %v5352 = vld [vmem:[#allocation2 + $0x10f] sm:$0xff]
  %v5353 = vld [vmem:[#allocation2 + $0x117] sm:$0xff]
  %v5354 = vld [vmem:[#allocation2 + $0x11f] sm:$0xff]
  %v5355 = vld [vmem:[#allocation2 + $0x127] sm:$0xff]
  %v5356 = vld [vmem:[#allocation2 + $0x12f] sm:$0xff]
  %v5357 = vld [vmem:[#allocation2 + $0x137] sm:$0xff]
  %v5358 = vld [vmem:[#allocation2 + $0x13f] sm:$0xff]
  %5395 = vrot.lane.b32.xlu0 %v5323, 16
  %v5396 = vpop.permute.xlu0 %5395
  %5397 = vrot.lane.b32.xlu0 %v5324, 16
  %v5398 = vpop.permute.xlu0 %5397
  %5399 = vrot.lane.b32.xlu0 %v5325, 16
  %v5400 = vpop.permute.xlu0 %5399
  %5401 = vrot.lane.b32.xlu0 %v5326, 16
  %v5402 = vpop.permute.xlu0 %5401
  %5403 = vrot.lane.b32.xlu0 %v5327, 16
  %v5404 = vpop.permute.xlu0 %5403
  %5405 = vrot.lane.b32.xlu0 %v5328, 16
  %v5406 = vpop.permute.xlu0 %5405
  %5407 = vrot.lane.b32.xlu0 %v5329, 16
  %v5408 = vpop.permute.xlu0 %5407
  %5409 = vrot.lane.b32.xlu0 %v5330, 16
  %v5410 = vpop.permute.xlu0 %5409
  %5411 = vrot.lane.b32.xlu0 %v5331, 16
  %v5412 = vpop.permute.xlu0 %5411
  %5413 = vrot.lane.b32.xlu0 %v5332, 16
  %v5414 = vpop.permute.xlu0 %5413
  %5415 = vrot.lane.b32.xlu0 %v5333, 16
  %v5416 = vpop.permute.xlu0 %5415
  %5417 = vrot.lane.b32.xlu0 %v5334, 16
  %v5418 = vpop.permute.xlu0 %5417
  %5419 = vrot.lane.b32.xlu0 %v5335, 16
  %v5420 = vpop.permute.xlu0 %5419
  %5421 = vrot.lane.b32.xlu0 %v5336, 16
  %v5422 = vpop.permute.xlu0 %5421
  %5423 = vrot.lane.b32.xlu0 %v5337, 16
  %v5424 = vpop.permute.xlu0 %5423
  %5425 = vrot.lane.b32.xlu0 %v5338, 16
  %v5426 = vpop.permute.xlu0 %5425
  %5427 = vrot.lane.b32.xlu0 %v5339, 16
  %v5428 = vpop.permute.xlu0 %5427
  %5429 = vrot.lane.b32.xlu0 %v5340, 16
  %v5430 = vpop.permute.xlu0 %5429
  %5431 = vrot.lane.b32.xlu0 %v5341, 16
  %v5432 = vpop.permute.xlu0 %5431
  %5433 = vrot.lane.b32.xlu0 %v5342, 16
  %v5434 = vpop.permute.xlu0 %5433
  %5435 = vrot.lane.b32.xlu0 %v5343, 16
  %v5436 = vpop.permute.xlu0 %5435
  %5437 = vrot.lane.b32.xlu0 %v5344, 16
  %v5438 = vpop.permute.xlu0 %5437
  %5439 = vrot.lane.b32.xlu0 %v5345, 16
  %v5440 = vpop.permute.xlu0 %5439
  %5441 = vrot.lane.b32.xlu0 %v5346, 16
  %v5442 = vpop.permute.xlu0 %5441
  %5443 = vrot.lane.b32.xlu0 %v5347, 16
  %v5444 = vpop.permute.xlu0 %5443
  %5445 = vrot.lane.b32.xlu0 %v5348, 16
  %v5446 = vpop.permute.xlu0 %5445
  %5447 = vrot.lane.b32.xlu0 %v5349, 16
  %v5448 = vpop.permute.xlu0 %5447
  %5449 = vrot.lane.b32.xlu0 %v5350, 16
  %v5450 = vpop.permute.xlu0 %5449
  %5451 = vrot.lane.b32.xlu0 %v5351, 16
  %v5452 = vpop.permute.xlu0 %5451
  %5453 = vrot.lane.b32.xlu0 %v5352, 16
  %v5454 = vpop.permute.xlu0 %5453
  %5455 = vrot.lane.b32.xlu0 %v5353, 16
  %v5456 = vpop.permute.xlu0 %5455
  %5457 = vrot.lane.b32.xlu0 %v5354, 16
  %v5458 = vpop.permute.xlu0 %5457
  %5459 = vrot.lane.b32.xlu0 %v5355, 16
  %v5460 = vpop.permute.xlu0 %5459
  %5461 = vrot.lane.b32.xlu0 %v5356, 16
  %v5462 = vpop.permute.xlu0 %5461
  %5463 = vrot.lane.b32.xlu0 %v5357, 16
  %v5464 = vpop.permute.xlu0 %5463
  %5465 = vrot.lane.b32.xlu0 %v5358, 16
  %v5466 = vpop.permute.xlu0 %5465
  %5503 = vst.msk [vmem:[#allocation3 + $0x8] sm:$0xff] %vm2177, %v5396
  %5504 = vst.msk [vmem:[#allocation3 + $0x18] sm:$0xff] %vm2177, %v5398
  %5505 = vst.msk [vmem:[#allocation3 + $0x28] sm:$0xff] %vm2177, %v5400
  %5506 = vst.msk [vmem:[#allocation3 + $0x38] sm:$0xff] %vm2177, %v5402
  %5507 = vst.msk [vmem:[#allocation3 + $0x48] sm:$0xff] %vm2177, %v5404
  %5508 = vst.msk [vmem:[#allocation3 + $0x58] sm:$0xff] %vm2177, %v5406
  %5509 = vst.msk [vmem:[#allocation3 + $0x68] sm:$0xff] %vm2177, %v5408
  %5510 = vst.msk [vmem:[#allocation3 + $0x78] sm:$0xff] %vm2177, %v5410
  %5511 = vst.msk [vmem:[#allocation3 + $0x88] sm:$0xff] %vm2177, %v5412
  %5512 = vst.msk [vmem:[#allocation3 + $0x98] sm:$0xff] %vm2177, %v5414
  %5513 = vst.msk [vmem:[#allocation3 + $0xa8] sm:$0xff] %vm2177, %v5416
  %5514 = vst.msk [vmem:[#allocation3 + $0xb8] sm:$0xff] %vm2177, %v5418
  %5515 = vst.msk [vmem:[#allocation3 + $0xc8] sm:$0xff] %vm2177, %v5420
  %5516 = vst.msk [vmem:[#allocation3 + $0xd8] sm:$0xff] %vm2177, %v5422
  %5517 = vst.msk [vmem:[#allocation3 + $0xe8] sm:$0xff] %vm2177, %v5424
  %5518 = vst.msk [vmem:[#allocation3 + $0xf8] sm:$0xff] %vm2177, %v5426
  %5519 = vst.msk [vmem:[#allocation3 + $0x108] sm:$0xff] %vm2177, %v5428
  %5520 = vst.msk [vmem:[#allocation3 + $0x118] sm:$0xff] %vm2177, %v5430
  %5521 = vst.msk [vmem:[#allocation3 + $0x128] sm:$0xff] %vm2177, %v5432
  %5522 = vst.msk [vmem:[#allocation3 + $0x138] sm:$0xff] %vm2177, %v5434
  %5523 = vst.msk [vmem:[#allocation3 + $0x148] sm:$0xff] %vm2177, %v5436
  %5524 = vst.msk [vmem:[#allocation3 + $0x158] sm:$0xff] %vm2177, %v5438
  %5525 = vst.msk [vmem:[#allocation3 + $0x168] sm:$0xff] %vm2177, %v5440
  %5526 = vst.msk [vmem:[#allocation3 + $0x178] sm:$0xff] %vm2177, %v5442
  %5527 = vst.msk [vmem:[#allocation3 + $0x188] sm:$0xff] %vm2177, %v5444
  %5528 = vst.msk [vmem:[#allocation3 + $0x198] sm:$0xff] %vm2177, %v5446
  %5529 = vst.msk [vmem:[#allocation3 + $0x1a8] sm:$0xff] %vm2177, %v5448
  %5530 = vst.msk [vmem:[#allocation3 + $0x1b8] sm:$0xff] %vm2177, %v5450
  %5531 = vst.msk [vmem:[#allocation3 + $0x1c8] sm:$0xff] %vm2177, %v5452
  %5532 = vst.msk [vmem:[#allocation3 + $0x1d8] sm:$0xff] %vm2177, %v5454
  %5533 = vst.msk [vmem:[#allocation3 + $0x1e8] sm:$0xff] %vm2177, %v5456
  %5534 = vst.msk [vmem:[#allocation3 + $0x1f8] sm:$0xff] %vm2177, %v5458
  %5535 = vst.msk [vmem:[#allocation3 + $0x208] sm:$0xff] %vm2177, %v5460
  %5536 = vst.msk [vmem:[#allocation3 + $0x218] sm:$0xff] %vm2177, %v5462
  %5537 = vst.msk [vmem:[#allocation3 + $0x228] sm:$0xff] %vm2177, %v5464
  %5538 = vst.msk [vmem:[#allocation3 + $0x238] sm:$0xff] %vm2177, %v5466
  %v5539 = vld [vmem:[#allocation2 + $0x28] sm:$0xff]
  %v5540 = vld [vmem:[#allocation2 + $0x30] sm:$0xff]
  %v5541 = vld [vmem:[#allocation2 + $0x38] sm:$0xff]
  %v5542 = vld [vmem:[#allocation2 + $0x40] sm:$0xff]
  %v5543 = vld [vmem:[#allocation2 + $0x48] sm:$0xff]
  %v5544 = vld [vmem:[#allocation2 + $0x50] sm:$0xff]
  %v5545 = vld [vmem:[#allocation2 + $0x58] sm:$0xff]
  %v5546 = vld [vmem:[#allocation2 + $0x60] sm:$0xff]
  %v5547 = vld [vmem:[#allocation2 + $0x68] sm:$0xff]
  %v5548 = vld [vmem:[#allocation2 + $0x70] sm:$0xff]
  %v5549 = vld [vmem:[#allocation2 + $0x78] sm:$0xff]
  %v5550 = vld [vmem:[#allocation2 + $0x80] sm:$0xff]
  %v5551 = vld [vmem:[#allocation2 + $0x88] sm:$0xff]
  %v5552 = vld [vmem:[#allocation2 + $0x90] sm:$0xff]
  %v5553 = vld [vmem:[#allocation2 + $0x98] sm:$0xff]
  %v5554 = vld [vmem:[#allocation2 + $0xa0] sm:$0xff]
  %v5555 = vld [vmem:[#allocation2 + $0xa8] sm:$0xff]
  %v5556 = vld [vmem:[#allocation2 + $0xb0] sm:$0xff]
  %v5557 = vld [vmem:[#allocation2 + $0xb8] sm:$0xff]
  %v5558 = vld [vmem:[#allocation2 + $0xc0] sm:$0xff]
  %v5559 = vld [vmem:[#allocation2 + $0xc8] sm:$0xff]
  %v5560 = vld [vmem:[#allocation2 + $0xd0] sm:$0xff]
  %v5561 = vld [vmem:[#allocation2 + $0xd8] sm:$0xff]
  %v5562 = vld [vmem:[#allocation2 + $0xe0] sm:$0xff]
  %v5563 = vld [vmem:[#allocation2 + $0xe8] sm:$0xff]
  %v5564 = vld [vmem:[#allocation2 + $0xf0] sm:$0xff]
  %v5565 = vld [vmem:[#allocation2 + $0xf8] sm:$0xff]
  %v5566 = vld [vmem:[#allocation2 + $0x100] sm:$0xff]
  %v5567 = vld [vmem:[#allocation2 + $0x108] sm:$0xff]
  %v5568 = vld [vmem:[#allocation2 + $0x110] sm:$0xff]
  %v5569 = vld [vmem:[#allocation2 + $0x118] sm:$0xff]
  %v5570 = vld [vmem:[#allocation2 + $0x120] sm:$0xff]
  %v5571 = vld [vmem:[#allocation2 + $0x128] sm:$0xff]
  %v5572 = vld [vmem:[#allocation2 + $0x130] sm:$0xff]
  %v5573 = vld [vmem:[#allocation2 + $0x138] sm:$0xff]
  %v5574 = vld [vmem:[#allocation2 + $0x140] sm:$0xff]
  %5611 = vrot.lane.b32.xlu0 %v5539, 24
  %v5612 = vpop.permute.xlu0 %5611
  %5613 = vrot.lane.b32.xlu0 %v5540, 24
  %v5614 = vpop.permute.xlu0 %5613
  %5615 = vrot.lane.b32.xlu0 %v5541, 24
  %v5616 = vpop.permute.xlu0 %5615
  %5617 = vrot.lane.b32.xlu0 %v5542, 24
  %v5618 = vpop.permute.xlu0 %5617
  %5619 = vrot.lane.b32.xlu0 %v5543, 24
  %v5620 = vpop.permute.xlu0 %5619
  %5621 = vrot.lane.b32.xlu0 %v5544, 24
  %v5622 = vpop.permute.xlu0 %5621
  %5623 = vrot.lane.b32.xlu0 %v5545, 24
  %v5624 = vpop.permute.xlu0 %5623
  %5625 = vrot.lane.b32.xlu0 %v5546, 24
  %v5626 = vpop.permute.xlu0 %5625
  %5627 = vrot.lane.b32.xlu0 %v5547, 24
  %v5628 = vpop.permute.xlu0 %5627
  %5629 = vrot.lane.b32.xlu0 %v5548, 24
  %v5630 = vpop.permute.xlu0 %5629
  %5631 = vrot.lane.b32.xlu0 %v5549, 24
  %v5632 = vpop.permute.xlu0 %5631
  %5633 = vrot.lane.b32.xlu0 %v5550, 24
  %v5634 = vpop.permute.xlu0 %5633
  %5635 = vrot.lane.b32.xlu0 %v5551, 24
  %v5636 = vpop.permute.xlu0 %5635
  %5637 = vrot.lane.b32.xlu0 %v5552, 24
  %v5638 = vpop.permute.xlu0 %5637
  %5639 = vrot.lane.b32.xlu0 %v5553, 24
  %v5640 = vpop.permute.xlu0 %5639
  %5641 = vrot.lane.b32.xlu0 %v5554, 24
  %v5642 = vpop.permute.xlu0 %5641
  %5643 = vrot.lane.b32.xlu0 %v5555, 24
  %v5644 = vpop.permute.xlu0 %5643
  %5645 = vrot.lane.b32.xlu0 %v5556, 24
  %v5646 = vpop.permute.xlu0 %5645
  %5647 = vrot.lane.b32.xlu0 %v5557, 24
  %v5648 = vpop.permute.xlu0 %5647
  %5649 = vrot.lane.b32.xlu0 %v5558, 24
  %v5650 = vpop.permute.xlu0 %5649
  %5651 = vrot.lane.b32.xlu0 %v5559, 24
  %v5652 = vpop.permute.xlu0 %5651
  %5653 = vrot.lane.b32.xlu0 %v5560, 24
  %v5654 = vpop.permute.xlu0 %5653
  %5655 = vrot.lane.b32.xlu0 %v5561, 24
  %v5656 = vpop.permute.xlu0 %5655
  %5657 = vrot.lane.b32.xlu0 %v5562, 24
  %v5658 = vpop.permute.xlu0 %5657
  %5659 = vrot.lane.b32.xlu0 %v5563, 24
  %v5660 = vpop.permute.xlu0 %5659
  %5661 = vrot.lane.b32.xlu0 %v5564, 24
  %v5662 = vpop.permute.xlu0 %5661
  %5663 = vrot.lane.b32.xlu0 %v5565, 24
  %v5664 = vpop.permute.xlu0 %5663
  %5665 = vrot.lane.b32.xlu0 %v5566, 24
  %v5666 = vpop.permute.xlu0 %5665
  %5667 = vrot.lane.b32.xlu0 %v5567, 24
  %v5668 = vpop.permute.xlu0 %5667
  %5669 = vrot.lane.b32.xlu0 %v5568, 24
  %v5670 = vpop.permute.xlu0 %5669
  %5671 = vrot.lane.b32.xlu0 %v5569, 24
  %v5672 = vpop.permute.xlu0 %5671
  %5673 = vrot.lane.b32.xlu0 %v5570, 24
  %v5674 = vpop.permute.xlu0 %5673
  %5675 = vrot.lane.b32.xlu0 %v5571, 24
  %v5676 = vpop.permute.xlu0 %5675
  %5677 = vrot.lane.b32.xlu0 %v5572, 24
  %v5678 = vpop.permute.xlu0 %5677
  %5679 = vrot.lane.b32.xlu0 %v5573, 24
  %v5680 = vpop.permute.xlu0 %5679
  %5681 = vrot.lane.b32.xlu0 %v5574, 24
  %v5682 = vpop.permute.xlu0 %5681
  %5719 = vst.msk [vmem:[#allocation3 + $0x8] sm:$0xff] %vm2394, %v5612
  %5720 = vst.msk [vmem:[#allocation3 + $0x18] sm:$0xff] %vm2394, %v5614
  %5721 = vst.msk [vmem:[#allocation3 + $0x28] sm:$0xff] %vm2394, %v5616
  %5722 = vst.msk [vmem:[#allocation3 + $0x38] sm:$0xff] %vm2394, %v5618
  %5723 = vst.msk [vmem:[#allocation3 + $0x48] sm:$0xff] %vm2394, %v5620
  %5724 = vst.msk [vmem:[#allocation3 + $0x58] sm:$0xff] %vm2394, %v5622
  %5725 = vst.msk [vmem:[#allocation3 + $0x68] sm:$0xff] %vm2394, %v5624
  %5726 = vst.msk [vmem:[#allocation3 + $0x78] sm:$0xff] %vm2394, %v5626
  %5727 = vst.msk [vmem:[#allocation3 + $0x88] sm:$0xff] %vm2394, %v5628
  %5728 = vst.msk [vmem:[#allocation3 + $0x98] sm:$0xff] %vm2394, %v5630
  %5729 = vst.msk [vmem:[#allocation3 + $0xa8] sm:$0xff] %vm2394, %v5632
  %5730 = vst.msk [vmem:[#allocation3 + $0xb8] sm:$0xff] %vm2394, %v5634
  %5731 = vst.msk [vmem:[#allocation3 + $0xc8] sm:$0xff] %vm2394, %v5636
  %5732 = vst.msk [vmem:[#allocation3 + $0xd8] sm:$0xff] %vm2394, %v5638
  %5733 = vst.msk [vmem:[#allocation3 + $0xe8] sm:$0xff] %vm2394, %v5640
  %5734 = vst.msk [vmem:[#allocation3 + $0xf8] sm:$0xff] %vm2394, %v5642
  %5735 = vst.msk [vmem:[#allocation3 + $0x108] sm:$0xff] %vm2394, %v5644
  %5736 = vst.msk [vmem:[#allocation3 + $0x118] sm:$0xff] %vm2394, %v5646
  %5737 = vst.msk [vmem:[#allocation3 + $0x128] sm:$0xff] %vm2394, %v5648
  %5738 = vst.msk [vmem:[#allocation3 + $0x138] sm:$0xff] %vm2394, %v5650
  %5739 = vst.msk [vmem:[#allocation3 + $0x148] sm:$0xff] %vm2394, %v5652
  %5740 = vst.msk [vmem:[#allocation3 + $0x158] sm:$0xff] %vm2394, %v5654
  %5741 = vst.msk [vmem:[#allocation3 + $0x168] sm:$0xff] %vm2394, %v5656
  %5742 = vst.msk [vmem:[#allocation3 + $0x178] sm:$0xff] %vm2394, %v5658
  %5743 = vst.msk [vmem:[#allocation3 + $0x188] sm:$0xff] %vm2394, %v5660
  %5744 = vst.msk [vmem:[#allocation3 + $0x198] sm:$0xff] %vm2394, %v5662
  %5745 = vst.msk [vmem:[#allocation3 + $0x1a8] sm:$0xff] %vm2394, %v5664
  %5746 = vst.msk [vmem:[#allocation3 + $0x1b8] sm:$0xff] %vm2394, %v5666
  %5747 = vst.msk [vmem:[#allocation3 + $0x1c8] sm:$0xff] %vm2394, %v5668
  %5748 = vst.msk [vmem:[#allocation3 + $0x1d8] sm:$0xff] %vm2394, %v5670
  %5749 = vst.msk [vmem:[#allocation3 + $0x1e8] sm:$0xff] %vm2394, %v5672
  %5750 = vst.msk [vmem:[#allocation3 + $0x1f8] sm:$0xff] %vm2394, %v5674
  %5751 = vst.msk [vmem:[#allocation3 + $0x208] sm:$0xff] %vm2394, %v5676
  %5752 = vst.msk [vmem:[#allocation3 + $0x218] sm:$0xff] %vm2394, %v5678
  %5753 = vst.msk [vmem:[#allocation3 + $0x228] sm:$0xff] %vm2394, %v5680
  %5754 = vst.msk [vmem:[#allocation3 + $0x238] sm:$0xff] %vm2394, %v5682
  %v5755 = vld [vmem:[#allocation2 + $0x30] sm:$0xff]
  %v5756 = vld [vmem:[#allocation2 + $0x38] sm:$0xff]
  %v5757 = vld [vmem:[#allocation2 + $0x40] sm:$0xff]
  %v5758 = vld [vmem:[#allocation2 + $0x48] sm:$0xff]
  %v5759 = vld [vmem:[#allocation2 + $0x50] sm:$0xff]
  %v5760 = vld [vmem:[#allocation2 + $0x58] sm:$0xff]
  %v5761 = vld [vmem:[#allocation2 + $0x60] sm:$0xff]
  %v5762 = vld [vmem:[#allocation2 + $0x68] sm:$0xff]
  %v5763 = vld [vmem:[#allocation2 + $0x70] sm:$0xff]
  %v5764 = vld [vmem:[#allocation2 + $0x78] sm:$0xff]
  %v5765 = vld [vmem:[#allocation2 + $0x80] sm:$0xff]
  %v5766 = vld [vmem:[#allocation2 + $0x88] sm:$0xff]
  %v5767 = vld [vmem:[#allocation2 + $0x90] sm:$0xff]
  %v5768 = vld [vmem:[#allocation2 + $0x98] sm:$0xff]
  %v5769 = vld [vmem:[#allocation2 + $0xa0] sm:$0xff]
  %v5770 = vld [vmem:[#allocation2 + $0xa8] sm:$0xff]
  %v5771 = vld [vmem:[#allocation2 + $0xb0] sm:$0xff]
  %v5772 = vld [vmem:[#allocation2 + $0xb8] sm:$0xff]
  %v5773 = vld [vmem:[#allocation2 + $0xc0] sm:$0xff]
  %v5774 = vld [vmem:[#allocation2 + $0xc8] sm:$0xff]
  %v5775 = vld [vmem:[#allocation2 + $0xd0] sm:$0xff]
  %v5776 = vld [vmem:[#allocation2 + $0xd8] sm:$0xff]
  %v5777 = vld [vmem:[#allocation2 + $0xe0] sm:$0xff]
  %v5778 = vld [vmem:[#allocation2 + $0xe8] sm:$0xff]
  %v5779 = vld [vmem:[#allocation2 + $0xf0] sm:$0xff]
  %v5780 = vld [vmem:[#allocation2 + $0xf8] sm:$0xff]
  %v5781 = vld [vmem:[#allocation2 + $0x100] sm:$0xff]
  %v5782 = vld [vmem:[#allocation2 + $0x108] sm:$0xff]
  %v5783 = vld [vmem:[#allocation2 + $0x110] sm:$0xff]
  %v5784 = vld [vmem:[#allocation2 + $0x118] sm:$0xff]
  %v5785 = vld [vmem:[#allocation2 + $0x120] sm:$0xff]
  %v5786 = vld [vmem:[#allocation2 + $0x128] sm:$0xff]
  %v5787 = vld [vmem:[#allocation2 + $0x130] sm:$0xff]
  %v5788 = vld [vmem:[#allocation2 + $0x138] sm:$0xff]
  %v5789 = vld [vmem:[#allocation2 + $0x140] sm:$0xff]
  %v5790 = vld [vmem:[#allocation2 + $0x148] sm:$0xff]
  %5827 = vrot.lane.b32.xlu0 %v5755, 32
  %v5828 = vpop.permute.xlu0 %5827
  %5829 = vrot.lane.b32.xlu0 %v5756, 32
  %v5830 = vpop.permute.xlu0 %5829
  %5831 = vrot.lane.b32.xlu0 %v5757, 32
  %v5832 = vpop.permute.xlu0 %5831
  %5833 = vrot.lane.b32.xlu0 %v5758, 32
  %v5834 = vpop.permute.xlu0 %5833
  %5835 = vrot.lane.b32.xlu0 %v5759, 32
  %v5836 = vpop.permute.xlu0 %5835
  %5837 = vrot.lane.b32.xlu0 %v5760, 32
  %v5838 = vpop.permute.xlu0 %5837
  %5839 = vrot.lane.b32.xlu0 %v5761, 32
  %v5840 = vpop.permute.xlu0 %5839
  %5841 = vrot.lane.b32.xlu0 %v5762, 32
  %v5842 = vpop.permute.xlu0 %5841
  %5843 = vrot.lane.b32.xlu0 %v5763, 32
  %v5844 = vpop.permute.xlu0 %5843
  %5845 = vrot.lane.b32.xlu0 %v5764, 32
  %v5846 = vpop.permute.xlu0 %5845
  %5847 = vrot.lane.b32.xlu0 %v5765, 32
  %v5848 = vpop.permute.xlu0 %5847
  %5849 = vrot.lane.b32.xlu0 %v5766, 32
  %v5850 = vpop.permute.xlu0 %5849
  %5851 = vrot.lane.b32.xlu0 %v5767, 32
  %v5852 = vpop.permute.xlu0 %5851
  %5853 = vrot.lane.b32.xlu0 %v5768, 32
  %v5854 = vpop.permute.xlu0 %5853
  %5855 = vrot.lane.b32.xlu0 %v5769, 32
  %v5856 = vpop.permute.xlu0 %5855
  %5857 = vrot.lane.b32.xlu0 %v5770, 32
  %v5858 = vpop.permute.xlu0 %5857
  %5859 = vrot.lane.b32.xlu0 %v5771, 32
  %v5860 = vpop.permute.xlu0 %5859
  %5861 = vrot.lane.b32.xlu0 %v5772, 32
  %v5862 = vpop.permute.xlu0 %5861
  %5863 = vrot.lane.b32.xlu0 %v5773, 32
  %v5864 = vpop.permute.xlu0 %5863
  %5865 = vrot.lane.b32.xlu0 %v5774, 32
  %v5866 = vpop.permute.xlu0 %5865
  %5867 = vrot.lane.b32.xlu0 %v5775, 32
  %v5868 = vpop.permute.xlu0 %5867
  %5869 = vrot.lane.b32.xlu0 %v5776, 32
  %v5870 = vpop.permute.xlu0 %5869
  %5871 = vrot.lane.b32.xlu0 %v5777, 32
  %v5872 = vpop.permute.xlu0 %5871
  %5873 = vrot.lane.b32.xlu0 %v5778, 32
  %v5874 = vpop.permute.xlu0 %5873
  %5875 = vrot.lane.b32.xlu0 %v5779, 32
  %v5876 = vpop.permute.xlu0 %5875
  %5877 = vrot.lane.b32.xlu0 %v5780, 32
  %v5878 = vpop.permute.xlu0 %5877
  %5879 = vrot.lane.b32.xlu0 %v5781, 32
  %v5880 = vpop.permute.xlu0 %5879
  %5881 = vrot.lane.b32.xlu0 %v5782, 32
  %v5882 = vpop.permute.xlu0 %5881
  %5883 = vrot.lane.b32.xlu0 %v5783, 32
  %v5884 = vpop.permute.xlu0 %5883
  %5885 = vrot.lane.b32.xlu0 %v5784, 32
  %v5886 = vpop.permute.xlu0 %5885
  %5887 = vrot.lane.b32.xlu0 %v5785, 32
  %v5888 = vpop.permute.xlu0 %5887
  %5889 = vrot.lane.b32.xlu0 %v5786, 32
  %v5890 = vpop.permute.xlu0 %5889
  %5891 = vrot.lane.b32.xlu0 %v5787, 32
  %v5892 = vpop.permute.xlu0 %5891
  %5893 = vrot.lane.b32.xlu0 %v5788, 32
  %v5894 = vpop.permute.xlu0 %5893
  %5895 = vrot.lane.b32.xlu0 %v5789, 32
  %v5896 = vpop.permute.xlu0 %5895
  %5897 = vrot.lane.b32.xlu0 %v5790, 32
  %v5898 = vpop.permute.xlu0 %5897
  %5935 = vst.msk [vmem:[#allocation3 + $0x8] sm:$0xff] %vm2611, %v5828
  %5936 = vst.msk [vmem:[#allocation3 + $0x18] sm:$0xff] %vm2611, %v5830
  %5937 = vst.msk [vmem:[#allocation3 + $0x28] sm:$0xff] %vm2611, %v5832
  %5938 = vst.msk [vmem:[#allocation3 + $0x38] sm:$0xff] %vm2611, %v5834
  %5939 = vst.msk [vmem:[#allocation3 + $0x48] sm:$0xff] %vm2611, %v5836
  %5940 = vst.msk [vmem:[#allocation3 + $0x58] sm:$0xff] %vm2611, %v5838
  %5941 = vst.msk [vmem:[#allocation3 + $0x68] sm:$0xff] %vm2611, %v5840
  %5942 = vst.msk [vmem:[#allocation3 + $0x78] sm:$0xff] %vm2611, %v5842
  %5943 = vst.msk [vmem:[#allocation3 + $0x88] sm:$0xff] %vm2611, %v5844
  %5944 = vst.msk [vmem:[#allocation3 + $0x98] sm:$0xff] %vm2611, %v5846
  %5945 = vst.msk [vmem:[#allocation3 + $0xa8] sm:$0xff] %vm2611, %v5848
  %5946 = vst.msk [vmem:[#allocation3 + $0xb8] sm:$0xff] %vm2611, %v5850
  %5947 = vst.msk [vmem:[#allocation3 + $0xc8] sm:$0xff] %vm2611, %v5852
  %5948 = vst.msk [vmem:[#allocation3 + $0xd8] sm:$0xff] %vm2611, %v5854
  %5949 = vst.msk [vmem:[#allocation3 + $0xe8] sm:$0xff] %vm2611, %v5856
  %5950 = vst.msk [vmem:[#allocation3 + $0xf8] sm:$0xff] %vm2611, %v5858
  %5951 = vst.msk [vmem:[#allocation3 + $0x108] sm:$0xff] %vm2611, %v5860
  %5952 = vst.msk [vmem:[#allocation3 + $0x118] sm:$0xff] %vm2611, %v5862
  %5953 = vst.msk [vmem:[#allocation3 + $0x128] sm:$0xff] %vm2611, %v5864
  %5954 = vst.msk [vmem:[#allocation3 + $0x138] sm:$0xff] %vm2611, %v5866
  %5955 = vst.msk [vmem:[#allocation3 + $0x148] sm:$0xff] %vm2611, %v5868
  %5956 = vst.msk [vmem:[#allocation3 + $0x158] sm:$0xff] %vm2611, %v5870
  %5957 = vst.msk [vmem:[#allocation3 + $0x168] sm:$0xff] %vm2611, %v5872
  %5958 = vst.msk [vmem:[#allocation3 + $0x178] sm:$0xff] %vm2611, %v5874
  %5959 = vst.msk [vmem:[#allocation3 + $0x188] sm:$0xff] %vm2611, %v5876
  %5960 = vst.msk [vmem:[#allocation3 + $0x198] sm:$0xff] %vm2611, %v5878
  %5961 = vst.msk [vmem:[#allocation3 + $0x1a8] sm:$0xff] %vm2611, %v5880
  %5962 = vst.msk [vmem:[#allocation3 + $0x1b8] sm:$0xff] %vm2611, %v5882
  %5963 = vst.msk [vmem:[#allocation3 + $0x1c8] sm:$0xff] %vm2611, %v5884
  %5964 = vst.msk [vmem:[#allocation3 + $0x1d8] sm:$0xff] %vm2611, %v5886
  %5965 = vst.msk [vmem:[#allocation3 + $0x1e8] sm:$0xff] %vm2611, %v5888
  %5966 = vst.msk [vmem:[#allocation3 + $0x1f8] sm:$0xff] %vm2611, %v5890
  %5967 = vst.msk [vmem:[#allocation3 + $0x208] sm:$0xff] %vm2611, %v5892
  %5968 = vst.msk [vmem:[#allocation3 + $0x218] sm:$0xff] %vm2611, %v5894
  %5969 = vst.msk [vmem:[#allocation3 + $0x228] sm:$0xff] %vm2611, %v5896
  %5970 = vst.msk [vmem:[#allocation3 + $0x238] sm:$0xff] %vm2611, %v5898
  %v5971 = vld [vmem:[#allocation2 + $0x31] sm:$0xff]
  %v5972 = vld [vmem:[#allocation2 + $0x39] sm:$0xff]
  %v5973 = vld [vmem:[#allocation2 + $0x41] sm:$0xff]
  %v5974 = vld [vmem:[#allocation2 + $0x49] sm:$0xff]
  %v5975 = vld [vmem:[#allocation2 + $0x51] sm:$0xff]
  %v5976 = vld [vmem:[#allocation2 + $0x59] sm:$0xff]
  %v5977 = vld [vmem:[#allocation2 + $0x61] sm:$0xff]
  %v5978 = vld [vmem:[#allocation2 + $0x69] sm:$0xff]
  %v5979 = vld [vmem:[#allocation2 + $0x71] sm:$0xff]
  %v5980 = vld [vmem:[#allocation2 + $0x79] sm:$0xff]
  %v5981 = vld [vmem:[#allocation2 + $0x81] sm:$0xff]
  %v5982 = vld [vmem:[#allocation2 + $0x89] sm:$0xff]
  %v5983 = vld [vmem:[#allocation2 + $0x91] sm:$0xff]
  %v5984 = vld [vmem:[#allocation2 + $0x99] sm:$0xff]
  %v5985 = vld [vmem:[#allocation2 + $0xa1] sm:$0xff]
  %v5986 = vld [vmem:[#allocation2 + $0xa9] sm:$0xff]
  %v5987 = vld [vmem:[#allocation2 + $0xb1] sm:$0xff]
  %v5988 = vld [vmem:[#allocation2 + $0xb9] sm:$0xff]
  %v5989 = vld [vmem:[#allocation2 + $0xc1] sm:$0xff]
  %v5990 = vld [vmem:[#allocation2 + $0xc9] sm:$0xff]
  %v5991 = vld [vmem:[#allocation2 + $0xd1] sm:$0xff]
  %v5992 = vld [vmem:[#allocation2 + $0xd9] sm:$0xff]
  %v5993 = vld [vmem:[#allocation2 + $0xe1] sm:$0xff]
  %v5994 = vld [vmem:[#allocation2 + $0xe9] sm:$0xff]
  %v5995 = vld [vmem:[#allocation2 + $0xf1] sm:$0xff]
  %v5996 = vld [vmem:[#allocation2 + $0xf9] sm:$0xff]
  %v5997 = vld [vmem:[#allocation2 + $0x101] sm:$0xff]
  %v5998 = vld [vmem:[#allocation2 + $0x109] sm:$0xff]
  %v5999 = vld [vmem:[#allocation2 + $0x111] sm:$0xff]
  %v6000 = vld [vmem:[#allocation2 + $0x119] sm:$0xff]
  %v6001 = vld [vmem:[#allocation2 + $0x121] sm:$0xff]
  %v6002 = vld [vmem:[#allocation2 + $0x129] sm:$0xff]
  %v6003 = vld [vmem:[#allocation2 + $0x131] sm:$0xff]
  %v6004 = vld [vmem:[#allocation2 + $0x139] sm:$0xff]
  %v6005 = vld [vmem:[#allocation2 + $0x141] sm:$0xff]
  %v6006 = vld [vmem:[#allocation2 + $0x149] sm:$0xff]
  %6043 = vrot.lane.b32.xlu0 %v5971, 40
  %v6044 = vpop.permute.xlu0 %6043
  %6045 = vrot.lane.b32.xlu0 %v5972, 40
  %v6046 = vpop.permute.xlu0 %6045
  %6047 = vrot.lane.b32.xlu0 %v5973, 40
  %v6048 = vpop.permute.xlu0 %6047
  %6049 = vrot.lane.b32.xlu0 %v5974, 40
  %v6050 = vpop.permute.xlu0 %6049
  %6051 = vrot.lane.b32.xlu0 %v5975, 40
  %v6052 = vpop.permute.xlu0 %6051
  %6053 = vrot.lane.b32.xlu0 %v5976, 40
  %v6054 = vpop.permute.xlu0 %6053
  %6055 = vrot.lane.b32.xlu0 %v5977, 40
  %v6056 = vpop.permute.xlu0 %6055
  %6057 = vrot.lane.b32.xlu0 %v5978, 40
  %v6058 = vpop.permute.xlu0 %6057
  %6059 = vrot.lane.b32.xlu0 %v5979, 40
  %v6060 = vpop.permute.xlu0 %6059
  %6061 = vrot.lane.b32.xlu0 %v5980, 40
  %v6062 = vpop.permute.xlu0 %6061
  %6063 = vrot.lane.b32.xlu0 %v5981, 40
  %v6064 = vpop.permute.xlu0 %6063
  %6065 = vrot.lane.b32.xlu0 %v5982, 40
  %v6066 = vpop.permute.xlu0 %6065
  %6067 = vrot.lane.b32.xlu0 %v5983, 40
  %v6068 = vpop.permute.xlu0 %6067
  %6069 = vrot.lane.b32.xlu0 %v5984, 40
  %v6070 = vpop.permute.xlu0 %6069
  %6071 = vrot.lane.b32.xlu0 %v5985, 40
  %v6072 = vpop.permute.xlu0 %6071
  %6073 = vrot.lane.b32.xlu0 %v5986, 40
  %v6074 = vpop.permute.xlu0 %6073
  %6075 = vrot.lane.b32.xlu0 %v5987, 40
  %v6076 = vpop.permute.xlu0 %6075
  %6077 = vrot.lane.b32.xlu0 %v5988, 40
  %v6078 = vpop.permute.xlu0 %6077
  %6079 = vrot.lane.b32.xlu0 %v5989, 40
  %v6080 = vpop.permute.xlu0 %6079
  %6081 = vrot.lane.b32.xlu0 %v5990, 40
  %v6082 = vpop.permute.xlu0 %6081
  %6083 = vrot.lane.b32.xlu0 %v5991, 40
  %v6084 = vpop.permute.xlu0 %6083
  %6085 = vrot.lane.b32.xlu0 %v5992, 40
  %v6086 = vpop.permute.xlu0 %6085
  %6087 = vrot.lane.b32.xlu0 %v5993, 40
  %v6088 = vpop.permute.xlu0 %6087
  %6089 = vrot.lane.b32.xlu0 %v5994, 40
  %v6090 = vpop.permute.xlu0 %6089
  %6091 = vrot.lane.b32.xlu0 %v5995, 40
  %v6092 = vpop.permute.xlu0 %6091
  %6093 = vrot.lane.b32.xlu0 %v5996, 40
  %v6094 = vpop.permute.xlu0 %6093
  %6095 = vrot.lane.b32.xlu0 %v5997, 40
  %v6096 = vpop.permute.xlu0 %6095
  %6097 = vrot.lane.b32.xlu0 %v5998, 40
  %v6098 = vpop.permute.xlu0 %6097
  %6099 = vrot.lane.b32.xlu0 %v5999, 40
  %v6100 = vpop.permute.xlu0 %6099
  %6101 = vrot.lane.b32.xlu0 %v6000, 40
  %v6102 = vpop.permute.xlu0 %6101
  %6103 = vrot.lane.b32.xlu0 %v6001, 40
  %v6104 = vpop.permute.xlu0 %6103
  %6105 = vrot.lane.b32.xlu0 %v6002, 40
  %v6106 = vpop.permute.xlu0 %6105
  %6107 = vrot.lane.b32.xlu0 %v6003, 40
  %v6108 = vpop.permute.xlu0 %6107
  %6109 = vrot.lane.b32.xlu0 %v6004, 40
  %v6110 = vpop.permute.xlu0 %6109
  %6111 = vrot.lane.b32.xlu0 %v6005, 40
  %v6112 = vpop.permute.xlu0 %6111
  %6113 = vrot.lane.b32.xlu0 %v6006, 40
  %v6114 = vpop.permute.xlu0 %6113
  %6151 = vst.msk [vmem:[#allocation3 + $0x8] sm:$0xff] %vm2828, %v6044
  %6152 = vst.msk [vmem:[#allocation3 + $0x18] sm:$0xff] %vm2828, %v6046
  %6153 = vst.msk [vmem:[#allocation3 + $0x28] sm:$0xff] %vm2828, %v6048
  %6154 = vst.msk [vmem:[#allocation3 + $0x38] sm:$0xff] %vm2828, %v6050
  %6155 = vst.msk [vmem:[#allocation3 + $0x48] sm:$0xff] %vm2828, %v6052
  %6156 = vst.msk [vmem:[#allocation3 + $0x58] sm:$0xff] %vm2828, %v6054
  %6157 = vst.msk [vmem:[#allocation3 + $0x68] sm:$0xff] %vm2828, %v6056
  %6158 = vst.msk [vmem:[#allocation3 + $0x78] sm:$0xff] %vm2828, %v6058
  %6159 = vst.msk [vmem:[#allocation3 + $0x88] sm:$0xff] %vm2828, %v6060
  %6160 = vst.msk [vmem:[#allocation3 + $0x98] sm:$0xff] %vm2828, %v6062
  %6161 = vst.msk [vmem:[#allocation3 + $0xa8] sm:$0xff] %vm2828, %v6064
  %6162 = vst.msk [vmem:[#allocation3 + $0xb8] sm:$0xff] %vm2828, %v6066
  %6163 = vst.msk [vmem:[#allocation3 + $0xc8] sm:$0xff] %vm2828, %v6068
  %6164 = vst.msk [vmem:[#allocation3 + $0xd8] sm:$0xff] %vm2828, %v6070
  %6165 = vst.msk [vmem:[#allocation3 + $0xe8] sm:$0xff] %vm2828, %v6072
  %6166 = vst.msk [vmem:[#allocation3 + $0xf8] sm:$0xff] %vm2828, %v6074
  %6167 = vst.msk [vmem:[#allocation3 + $0x108] sm:$0xff] %vm2828, %v6076
  %6168 = vst.msk [vmem:[#allocation3 + $0x118] sm:$0xff] %vm2828, %v6078
  %6169 = vst.msk [vmem:[#allocation3 + $0x128] sm:$0xff] %vm2828, %v6080
  %6170 = vst.msk [vmem:[#allocation3 + $0x138] sm:$0xff] %vm2828, %v6082
  %6171 = vst.msk [vmem:[#allocation3 + $0x148] sm:$0xff] %vm2828, %v6084
  %6172 = vst.msk [vmem:[#allocation3 + $0x158] sm:$0xff] %vm2828, %v6086
  %6173 = vst.msk [vmem:[#allocation3 + $0x168] sm:$0xff] %vm2828, %v6088
  %6174 = vst.msk [vmem:[#allocation3 + $0x178] sm:$0xff] %vm2828, %v6090
  %6175 = vst.msk [vmem:[#allocation3 + $0x188] sm:$0xff] %vm2828, %v6092
  %6176 = vst.msk [vmem:[#allocation3 + $0x198] sm:$0xff] %vm2828, %v6094
  %6177 = vst.msk [vmem:[#allocation3 + $0x1a8] sm:$0xff] %vm2828, %v6096
  %6178 = vst.msk [vmem:[#allocation3 + $0x1b8] sm:$0xff] %vm2828, %v6098
  %6179 = vst.msk [vmem:[#allocation3 + $0x1c8] sm:$0xff] %vm2828, %v6100
  %6180 = vst.msk [vmem:[#allocation3 + $0x1d8] sm:$0xff] %vm2828, %v6102
  %6181 = vst.msk [vmem:[#allocation3 + $0x1e8] sm:$0xff] %vm2828, %v6104
  %6182 = vst.msk [vmem:[#allocation3 + $0x1f8] sm:$0xff] %vm2828, %v6106
  %6183 = vst.msk [vmem:[#allocation3 + $0x208] sm:$0xff] %vm2828, %v6108
  %6184 = vst.msk [vmem:[#allocation3 + $0x218] sm:$0xff] %vm2828, %v6110
  %6185 = vst.msk [vmem:[#allocation3 + $0x228] sm:$0xff] %vm2828, %v6112
  %6186 = vst.msk [vmem:[#allocation3 + $0x238] sm:$0xff] %vm2828, %v6114
  %v6187 = vld [vmem:[#allocation2 + $0x32] sm:$0xff]
  %v6188 = vld [vmem:[#allocation2 + $0x3a] sm:$0xff]
  %v6189 = vld [vmem:[#allocation2 + $0x42] sm:$0xff]
  %v6190 = vld [vmem:[#allocation2 + $0x4a] sm:$0xff]
  %v6191 = vld [vmem:[#allocation2 + $0x52] sm:$0xff]
  %v6192 = vld [vmem:[#allocation2 + $0x5a] sm:$0xff]
  %v6193 = vld [vmem:[#allocation2 + $0x62] sm:$0xff]
  %v6194 = vld [vmem:[#allocation2 + $0x6a] sm:$0xff]
  %v6195 = vld [vmem:[#allocation2 + $0x72] sm:$0xff]
  %v6196 = vld [vmem:[#allocation2 + $0x7a] sm:$0xff]
  %v6197 = vld [vmem:[#allocation2 + $0x82] sm:$0xff]
  %v6198 = vld [vmem:[#allocation2 + $0x8a] sm:$0xff]
  %v6199 = vld [vmem:[#allocation2 + $0x92] sm:$0xff]
  %v6200 = vld [vmem:[#allocation2 + $0x9a] sm:$0xff]
  %v6201 = vld [vmem:[#allocation2 + $0xa2] sm:$0xff]
  %v6202 = vld [vmem:[#allocation2 + $0xaa] sm:$0xff]
  %v6203 = vld [vmem:[#allocation2 + $0xb2] sm:$0xff]
  %v6204 = vld [vmem:[#allocation2 + $0xba] sm:$0xff]
  %v6205 = vld [vmem:[#allocation2 + $0xc2] sm:$0xff]
  %v6206 = vld [vmem:[#allocation2 + $0xca] sm:$0xff]
  %v6207 = vld [vmem:[#allocation2 + $0xd2] sm:$0xff]
  %v6208 = vld [vmem:[#allocation2 + $0xda] sm:$0xff]
  %v6209 = vld [vmem:[#allocation2 + $0xe2] sm:$0xff]
  %v6210 = vld [vmem:[#allocation2 + $0xea] sm:$0xff]
  %v6211 = vld [vmem:[#allocation2 + $0xf2] sm:$0xff]
  %v6212 = vld [vmem:[#allocation2 + $0xfa] sm:$0xff]
  %v6213 = vld [vmem:[#allocation2 + $0x102] sm:$0xff]
  %v6214 = vld [vmem:[#allocation2 + $0x10a] sm:$0xff]
  %v6215 = vld [vmem:[#allocation2 + $0x112] sm:$0xff]
  %v6216 = vld [vmem:[#allocation2 + $0x11a] sm:$0xff]
  %v6217 = vld [vmem:[#allocation2 + $0x122] sm:$0xff]
  %v6218 = vld [vmem:[#allocation2 + $0x12a] sm:$0xff]
  %v6219 = vld [vmem:[#allocation2 + $0x132] sm:$0xff]
  %v6220 = vld [vmem:[#allocation2 + $0x13a] sm:$0xff]
  %v6221 = vld [vmem:[#allocation2 + $0x142] sm:$0xff]
  %v6222 = vld [vmem:[#allocation2 + $0x14a] sm:$0xff]
  %6259 = vrot.lane.b32.xlu0 %v6187, 48
  %v6260 = vpop.permute.xlu0 %6259
  %6261 = vrot.lane.b32.xlu0 %v6188, 48
  %v6262 = vpop.permute.xlu0 %6261
  %6263 = vrot.lane.b32.xlu0 %v6189, 48
  %v6264 = vpop.permute.xlu0 %6263
  %6265 = vrot.lane.b32.xlu0 %v6190, 48
  %v6266 = vpop.permute.xlu0 %6265
  %6267 = vrot.lane.b32.xlu0 %v6191, 48
  %v6268 = vpop.permute.xlu0 %6267
  %6269 = vrot.lane.b32.xlu0 %v6192, 48
  %v6270 = vpop.permute.xlu0 %6269
  %6271 = vrot.lane.b32.xlu0 %v6193, 48
  %v6272 = vpop.permute.xlu0 %6271
  %6273 = vrot.lane.b32.xlu0 %v6194, 48
  %v6274 = vpop.permute.xlu0 %6273
  %6275 = vrot.lane.b32.xlu0 %v6195, 48
  %v6276 = vpop.permute.xlu0 %6275
  %6277 = vrot.lane.b32.xlu0 %v6196, 48
  %v6278 = vpop.permute.xlu0 %6277
  %6279 = vrot.lane.b32.xlu0 %v6197, 48
  %v6280 = vpop.permute.xlu0 %6279
  %6281 = vrot.lane.b32.xlu0 %v6198, 48
  %v6282 = vpop.permute.xlu0 %6281
  %6283 = vrot.lane.b32.xlu0 %v6199, 48
  %v6284 = vpop.permute.xlu0 %6283
  %6285 = vrot.lane.b32.xlu0 %v6200, 48
  %v6286 = vpop.permute.xlu0 %6285
  %6287 = vrot.lane.b32.xlu0 %v6201, 48
  %v6288 = vpop.permute.xlu0 %6287
  %6289 = vrot.lane.b32.xlu0 %v6202, 48
  %v6290 = vpop.permute.xlu0 %6289
  %6291 = vrot.lane.b32.xlu0 %v6203, 48
  %v6292 = vpop.permute.xlu0 %6291
  %6293 = vrot.lane.b32.xlu0 %v6204, 48
  %v6294 = vpop.permute.xlu0 %6293
  %6295 = vrot.lane.b32.xlu0 %v6205, 48
  %v6296 = vpop.permute.xlu0 %6295
  %6297 = vrot.lane.b32.xlu0 %v6206, 48
  %v6298 = vpop.permute.xlu0 %6297
  %6299 = vrot.lane.b32.xlu0 %v6207, 48
  %v6300 = vpop.permute.xlu0 %6299
  %6301 = vrot.lane.b32.xlu0 %v6208, 48
  %v6302 = vpop.permute.xlu0 %6301
  %6303 = vrot.lane.b32.xlu0 %v6209, 48
  %v6304 = vpop.permute.xlu0 %6303
  %6305 = vrot.lane.b32.xlu0 %v6210, 48
  %v6306 = vpop.permute.xlu0 %6305
  %6307 = vrot.lane.b32.xlu0 %v6211, 48
  %v6308 = vpop.permute.xlu0 %6307
  %6309 = vrot.lane.b32.xlu0 %v6212, 48
  %v6310 = vpop.permute.xlu0 %6309
  %6311 = vrot.lane.b32.xlu0 %v6213, 48
  %v6312 = vpop.permute.xlu0 %6311
  %6313 = vrot.lane.b32.xlu0 %v6214, 48
  %v6314 = vpop.permute.xlu0 %6313
  %6315 = vrot.lane.b32.xlu0 %v6215, 48
  %v6316 = vpop.permute.xlu0 %6315
  %6317 = vrot.lane.b32.xlu0 %v6216, 48
  %v6318 = vpop.permute.xlu0 %6317
  %6319 = vrot.lane.b32.xlu0 %v6217, 48
  %v6320 = vpop.permute.xlu0 %6319
  %6321 = vrot.lane.b32.xlu0 %v6218, 48
  %v6322 = vpop.permute.xlu0 %6321
  %6323 = vrot.lane.b32.xlu0 %v6219, 48
  %v6324 = vpop.permute.xlu0 %6323
  %6325 = vrot.lane.b32.xlu0 %v6220, 48
  %v6326 = vpop.permute.xlu0 %6325
  %6327 = vrot.lane.b32.xlu0 %v6221, 48
  %v6328 = vpop.permute.xlu0 %6327
  %6329 = vrot.lane.b32.xlu0 %v6222, 48
  %v6330 = vpop.permute.xlu0 %6329
  %6367 = vst.msk [vmem:[#allocation3 + $0x8] sm:$0xff] %vm3045, %v6260
  %6368 = vst.msk [vmem:[#allocation3 + $0x18] sm:$0xff] %vm3045, %v6262
  %6369 = vst.msk [vmem:[#allocation3 + $0x28] sm:$0xff] %vm3045, %v6264
  %6370 = vst.msk [vmem:[#allocation3 + $0x38] sm:$0xff] %vm3045, %v6266
  %6371 = vst.msk [vmem:[#allocation3 + $0x48] sm:$0xff] %vm3045, %v6268
  %6372 = vst.msk [vmem:[#allocation3 + $0x58] sm:$0xff] %vm3045, %v6270
  %6373 = vst.msk [vmem:[#allocation3 + $0x68] sm:$0xff] %vm3045, %v6272
  %6374 = vst.msk [vmem:[#allocation3 + $0x78] sm:$0xff] %vm3045, %v6274
  %6375 = vst.msk [vmem:[#allocation3 + $0x88] sm:$0xff] %vm3045, %v6276
  %6376 = vst.msk [vmem:[#allocation3 + $0x98] sm:$0xff] %vm3045, %v6278
  %6377 = vst.msk [vmem:[#allocation3 + $0xa8] sm:$0xff] %vm3045, %v6280
  %6378 = vst.msk [vmem:[#allocation3 + $0xb8] sm:$0xff] %vm3045, %v6282
  %6379 = vst.msk [vmem:[#allocation3 + $0xc8] sm:$0xff] %vm3045, %v6284
  %6380 = vst.msk [vmem:[#allocation3 + $0xd8] sm:$0xff] %vm3045, %v6286
  %6381 = vst.msk [vmem:[#allocation3 + $0xe8] sm:$0xff] %vm3045, %v6288
  %6382 = vst.msk [vmem:[#allocation3 + $0xf8] sm:$0xff] %vm3045, %v6290
  %6383 = vst.msk [vmem:[#allocation3 + $0x108] sm:$0xff] %vm3045, %v6292
  %6384 = vst.msk [vmem:[#allocation3 + $0x118] sm:$0xff] %vm3045, %v6294
  %6385 = vst.msk [vmem:[#allocation3 + $0x128] sm:$0xff] %vm3045, %v6296
  %6386 = vst.msk [vmem:[#allocation3 + $0x138] sm:$0xff] %vm3045, %v6298
  %6387 = vst.msk [vmem:[#allocation3 + $0x148] sm:$0xff] %vm3045, %v6300
  %6388 = vst.msk [vmem:[#allocation3 + $0x158] sm:$0xff] %vm3045, %v6302
  %6389 = vst.msk [vmem:[#allocation3 + $0x168] sm:$0xff] %vm3045, %v6304
  %6390 = vst.msk [vmem:[#allocation3 + $0x178] sm:$0xff] %vm3045, %v6306
  %6391 = vst.msk [vmem:[#allocation3 + $0x188] sm:$0xff] %vm3045, %v6308
  %6392 = vst.msk [vmem:[#allocation3 + $0x198] sm:$0xff] %vm3045, %v6310
  %6393 = vst.msk [vmem:[#allocation3 + $0x1a8] sm:$0xff] %vm3045, %v6312
  %6394 = vst.msk [vmem:[#allocation3 + $0x1b8] sm:$0xff] %vm3045, %v6314
  %6395 = vst.msk [vmem:[#allocation3 + $0x1c8] sm:$0xff] %vm3045, %v6316
  %6396 = vst.msk [vmem:[#allocation3 + $0x1d8] sm:$0xff] %vm3045, %v6318
  %6397 = vst.msk [vmem:[#allocation3 + $0x1e8] sm:$0xff] %vm3045, %v6320
  %6398 = vst.msk [vmem:[#allocation3 + $0x1f8] sm:$0xff] %vm3045, %v6322
  %6399 = vst.msk [vmem:[#allocation3 + $0x208] sm:$0xff] %vm3045, %v6324
  %6400 = vst.msk [vmem:[#allocation3 + $0x218] sm:$0xff] %vm3045, %v6326
  %6401 = vst.msk [vmem:[#allocation3 + $0x228] sm:$0xff] %vm3045, %v6328
  %6402 = vst.msk [vmem:[#allocation3 + $0x238] sm:$0xff] %vm3045, %v6330
  %v6403 = vld [vmem:[#allocation2 + $0x33] sm:$0xff]
  %v6404 = vld [vmem:[#allocation2 + $0x3b] sm:$0xff]
  %v6405 = vld [vmem:[#allocation2 + $0x43] sm:$0xff]
  %v6406 = vld [vmem:[#allocation2 + $0x4b] sm:$0xff]
  %v6407 = vld [vmem:[#allocation2 + $0x53] sm:$0xff]
  %v6408 = vld [vmem:[#allocation2 + $0x5b] sm:$0xff]
  %v6409 = vld [vmem:[#allocation2 + $0x63] sm:$0xff]
  %v6410 = vld [vmem:[#allocation2 + $0x6b] sm:$0xff]
  %v6411 = vld [vmem:[#allocation2 + $0x73] sm:$0xff]
  %v6412 = vld [vmem:[#allocation2 + $0x7b] sm:$0xff]
  %v6413 = vld [vmem:[#allocation2 + $0x83] sm:$0xff]
  %v6414 = vld [vmem:[#allocation2 + $0x8b] sm:$0xff]
  %v6415 = vld [vmem:[#allocation2 + $0x93] sm:$0xff]
  %v6416 = vld [vmem:[#allocation2 + $0x9b] sm:$0xff]
  %v6417 = vld [vmem:[#allocation2 + $0xa3] sm:$0xff]
  %v6418 = vld [vmem:[#allocation2 + $0xab] sm:$0xff]
  %v6419 = vld [vmem:[#allocation2 + $0xb3] sm:$0xff]
  %v6420 = vld [vmem:[#allocation2 + $0xbb] sm:$0xff]
  %v6421 = vld [vmem:[#allocation2 + $0xc3] sm:$0xff]
  %v6422 = vld [vmem:[#allocation2 + $0xcb] sm:$0xff]
  %v6423 = vld [vmem:[#allocation2 + $0xd3] sm:$0xff]
  %v6424 = vld [vmem:[#allocation2 + $0xdb] sm:$0xff]
  %v6425 = vld [vmem:[#allocation2 + $0xe3] sm:$0xff]
  %v6426 = vld [vmem:[#allocation2 + $0xeb] sm:$0xff]
  %v6427 = vld [vmem:[#allocation2 + $0xf3] sm:$0xff]
  %v6428 = vld [vmem:[#allocation2 + $0xfb] sm:$0xff]
  %v6429 = vld [vmem:[#allocation2 + $0x103] sm:$0xff]
  %v6430 = vld [vmem:[#allocation2 + $0x10b] sm:$0xff]
  %v6431 = vld [vmem:[#allocation2 + $0x113] sm:$0xff]
  %v6432 = vld [vmem:[#allocation2 + $0x11b] sm:$0xff]
  %v6433 = vld [vmem:[#allocation2 + $0x123] sm:$0xff]
  %v6434 = vld [vmem:[#allocation2 + $0x12b] sm:$0xff]
  %v6435 = vld [vmem:[#allocation2 + $0x133] sm:$0xff]
  %v6436 = vld [vmem:[#allocation2 + $0x13b] sm:$0xff]
  %v6437 = vld [vmem:[#allocation2 + $0x143] sm:$0xff]
  %v6438 = vld [vmem:[#allocation2 + $0x14b] sm:$0xff]
  %6475 = vrot.lane.b32.xlu0 %v6403, 56
  %v6476 = vpop.permute.xlu0 %6475
  %6477 = vrot.lane.b32.xlu0 %v6404, 56
  %v6478 = vpop.permute.xlu0 %6477
  %6479 = vrot.lane.b32.xlu0 %v6405, 56
  %v6480 = vpop.permute.xlu0 %6479
  %6481 = vrot.lane.b32.xlu0 %v6406, 56
  %v6482 = vpop.permute.xlu0 %6481
  %6483 = vrot.lane.b32.xlu0 %v6407, 56
  %v6484 = vpop.permute.xlu0 %6483
  %6485 = vrot.lane.b32.xlu0 %v6408, 56
  %v6486 = vpop.permute.xlu0 %6485
  %6487 = vrot.lane.b32.xlu0 %v6409, 56
  %v6488 = vpop.permute.xlu0 %6487
  %6489 = vrot.lane.b32.xlu0 %v6410, 56
  %v6490 = vpop.permute.xlu0 %6489
  %6491 = vrot.lane.b32.xlu0 %v6411, 56
  %v6492 = vpop.permute.xlu0 %6491
  %6493 = vrot.lane.b32.xlu0 %v6412, 56
  %v6494 = vpop.permute.xlu0 %6493
  %6495 = vrot.lane.b32.xlu0 %v6413, 56
  %v6496 = vpop.permute.xlu0 %6495
  %6497 = vrot.lane.b32.xlu0 %v6414, 56
  %v6498 = vpop.permute.xlu0 %6497
  %6499 = vrot.lane.b32.xlu0 %v6415, 56
  %v6500 = vpop.permute.xlu0 %6499
  %6501 = vrot.lane.b32.xlu0 %v6416, 56
  %v6502 = vpop.permute.xlu0 %6501
  %6503 = vrot.lane.b32.xlu0 %v6417, 56
  %v6504 = vpop.permute.xlu0 %6503
  %6505 = vrot.lane.b32.xlu0 %v6418, 56
  %v6506 = vpop.permute.xlu0 %6505
  %6507 = vrot.lane.b32.xlu0 %v6419, 56
  %v6508 = vpop.permute.xlu0 %6507
  %6509 = vrot.lane.b32.xlu0 %v6420, 56
  %v6510 = vpop.permute.xlu0 %6509
  %6511 = vrot.lane.b32.xlu0 %v6421, 56
  %v6512 = vpop.permute.xlu0 %6511
  %6513 = vrot.lane.b32.xlu0 %v6422, 56
  %v6514 = vpop.permute.xlu0 %6513
  %6515 = vrot.lane.b32.xlu0 %v6423, 56
  %v6516 = vpop.permute.xlu0 %6515
  %6517 = vrot.lane.b32.xlu0 %v6424, 56
  %v6518 = vpop.permute.xlu0 %6517
  %6519 = vrot.lane.b32.xlu0 %v6425, 56
  %v6520 = vpop.permute.xlu0 %6519
  %6521 = vrot.lane.b32.xlu0 %v6426, 56
  %v6522 = vpop.permute.xlu0 %6521
  %6523 = vrot.lane.b32.xlu0 %v6427, 56
  %v6524 = vpop.permute.xlu0 %6523
  %6525 = vrot.lane.b32.xlu0 %v6428, 56
  %v6526 = vpop.permute.xlu0 %6525
  %6527 = vrot.lane.b32.xlu0 %v6429, 56
  %v6528 = vpop.permute.xlu0 %6527
  %6529 = vrot.lane.b32.xlu0 %v6430, 56
  %v6530 = vpop.permute.xlu0 %6529
  %6531 = vrot.lane.b32.xlu0 %v6431, 56
  %v6532 = vpop.permute.xlu0 %6531
  %6533 = vrot.lane.b32.xlu0 %v6432, 56
  %v6534 = vpop.permute.xlu0 %6533
  %6535 = vrot.lane.b32.xlu0 %v6433, 56
  %v6536 = vpop.permute.xlu0 %6535
  %6537 = vrot.lane.b32.xlu0 %v6434, 56
  %v6538 = vpop.permute.xlu0 %6537
  %6539 = vrot.lane.b32.xlu0 %v6435, 56
  %v6540 = vpop.permute.xlu0 %6539
  %6541 = vrot.lane.b32.xlu0 %v6436, 56
  %v6542 = vpop.permute.xlu0 %6541
  %6543 = vrot.lane.b32.xlu0 %v6437, 56
  %v6544 = vpop.permute.xlu0 %6543
  %6545 = vrot.lane.b32.xlu0 %v6438, 56
  %v6546 = vpop.permute.xlu0 %6545
  %6583 = vst.msk [vmem:[#allocation3 + $0x8] sm:$0xff] %vm3262, %v6476
  %6584 = vst.msk [vmem:[#allocation3 + $0x18] sm:$0xff] %vm3262, %v6478
  %6585 = vst.msk [vmem:[#allocation3 + $0x28] sm:$0xff] %vm3262, %v6480
  %6586 = vst.msk [vmem:[#allocation3 + $0x38] sm:$0xff] %vm3262, %v6482
  %6587 = vst.msk [vmem:[#allocation3 + $0x48] sm:$0xff] %vm3262, %v6484
  %6588 = vst.msk [vmem:[#allocation3 + $0x58] sm:$0xff] %vm3262, %v6486
  %6589 = vst.msk [vmem:[#allocation3 + $0x68] sm:$0xff] %vm3262, %v6488
  %6590 = vst.msk [vmem:[#allocation3 + $0x78] sm:$0xff] %vm3262, %v6490
  %6591 = vst.msk [vmem:[#allocation3 + $0x88] sm:$0xff] %vm3262, %v6492
  %6592 = vst.msk [vmem:[#allocation3 + $0x98] sm:$0xff] %vm3262, %v6494
  %6593 = vst.msk [vmem:[#allocation3 + $0xa8] sm:$0xff] %vm3262, %v6496
  %6594 = vst.msk [vmem:[#allocation3 + $0xb8] sm:$0xff] %vm3262, %v6498
  %6595 = vst.msk [vmem:[#allocation3 + $0xc8] sm:$0xff] %vm3262, %v6500
  %6596 = vst.msk [vmem:[#allocation3 + $0xd8] sm:$0xff] %vm3262, %v6502
  %6597 = vst.msk [vmem:[#allocation3 + $0xe8] sm:$0xff] %vm3262, %v6504
  %6598 = vst.msk [vmem:[#allocation3 + $0xf8] sm:$0xff] %vm3262, %v6506
  %6599 = vst.msk [vmem:[#allocation3 + $0x108] sm:$0xff] %vm3262, %v6508
  %6600 = vst.msk [vmem:[#allocation3 + $0x118] sm:$0xff] %vm3262, %v6510
  %6601 = vst.msk [vmem:[#allocation3 + $0x128] sm:$0xff] %vm3262, %v6512
  %6602 = vst.msk [vmem:[#allocation3 + $0x138] sm:$0xff] %vm3262, %v6514
  %6603 = vst.msk [vmem:[#allocation3 + $0x148] sm:$0xff] %vm3262, %v6516
  %6604 = vst.msk [vmem:[#allocation3 + $0x158] sm:$0xff] %vm3262, %v6518
  %6605 = vst.msk [vmem:[#allocation3 + $0x168] sm:$0xff] %vm3262, %v6520
  %6606 = vst.msk [vmem:[#allocation3 + $0x178] sm:$0xff] %vm3262, %v6522
  %6607 = vst.msk [vmem:[#allocation3 + $0x188] sm:$0xff] %vm3262, %v6524
  %6608 = vst.msk [vmem:[#allocation3 + $0x198] sm:$0xff] %vm3262, %v6526
  %6609 = vst.msk [vmem:[#allocation3 + $0x1a8] sm:$0xff] %vm3262, %v6528
  %6610 = vst.msk [vmem:[#allocation3 + $0x1b8] sm:$0xff] %vm3262, %v6530
  %6611 = vst.msk [vmem:[#allocation3 + $0x1c8] sm:$0xff] %vm3262, %v6532
  %6612 = vst.msk [vmem:[#allocation3 + $0x1d8] sm:$0xff] %vm3262, %v6534
  %6613 = vst.msk [vmem:[#allocation3 + $0x1e8] sm:$0xff] %vm3262, %v6536
  %6614 = vst.msk [vmem:[#allocation3 + $0x1f8] sm:$0xff] %vm3262, %v6538
  %6615 = vst.msk [vmem:[#allocation3 + $0x208] sm:$0xff] %vm3262, %v6540
  %6616 = vst.msk [vmem:[#allocation3 + $0x218] sm:$0xff] %vm3262, %v6542
  %6617 = vst.msk [vmem:[#allocation3 + $0x228] sm:$0xff] %vm3262, %v6544
  %6618 = vst.msk [vmem:[#allocation3 + $0x238] sm:$0xff] %vm3262, %v6546
  %v6619 = vld [vmem:[#allocation2 + $0x34] sm:$0xff]
  %v6620 = vld [vmem:[#allocation2 + $0x3c] sm:$0xff]
  %v6621 = vld [vmem:[#allocation2 + $0x44] sm:$0xff]
  %v6622 = vld [vmem:[#allocation2 + $0x4c] sm:$0xff]
  %v6623 = vld [vmem:[#allocation2 + $0x54] sm:$0xff]
  %v6624 = vld [vmem:[#allocation2 + $0x5c] sm:$0xff]
  %v6625 = vld [vmem:[#allocation2 + $0x64] sm:$0xff]
  %v6626 = vld [vmem:[#allocation2 + $0x6c] sm:$0xff]
  %v6627 = vld [vmem:[#allocation2 + $0x74] sm:$0xff]
  %v6628 = vld [vmem:[#allocation2 + $0x7c] sm:$0xff]
  %v6629 = vld [vmem:[#allocation2 + $0x84] sm:$0xff]
  %v6630 = vld [vmem:[#allocation2 + $0x8c] sm:$0xff]
  %v6631 = vld [vmem:[#allocation2 + $0x94] sm:$0xff]
  %v6632 = vld [vmem:[#allocation2 + $0x9c] sm:$0xff]
  %v6633 = vld [vmem:[#allocation2 + $0xa4] sm:$0xff]
  %v6634 = vld [vmem:[#allocation2 + $0xac] sm:$0xff]
  %v6635 = vld [vmem:[#allocation2 + $0xb4] sm:$0xff]
  %v6636 = vld [vmem:[#allocation2 + $0xbc] sm:$0xff]
  %v6637 = vld [vmem:[#allocation2 + $0xc4] sm:$0xff]
  %v6638 = vld [vmem:[#allocation2 + $0xcc] sm:$0xff]
  %v6639 = vld [vmem:[#allocation2 + $0xd4] sm:$0xff]
  %v6640 = vld [vmem:[#allocation2 + $0xdc] sm:$0xff]
  %v6641 = vld [vmem:[#allocation2 + $0xe4] sm:$0xff]
  %v6642 = vld [vmem:[#allocation2 + $0xec] sm:$0xff]
  %v6643 = vld [vmem:[#allocation2 + $0xf4] sm:$0xff]
  %v6644 = vld [vmem:[#allocation2 + $0xfc] sm:$0xff]
  %v6645 = vld [vmem:[#allocation2 + $0x104] sm:$0xff]
  %v6646 = vld [vmem:[#allocation2 + $0x10c] sm:$0xff]
  %v6647 = vld [vmem:[#allocation2 + $0x114] sm:$0xff]
  %v6648 = vld [vmem:[#allocation2 + $0x11c] sm:$0xff]
  %v6649 = vld [vmem:[#allocation2 + $0x124] sm:$0xff]
  %v6650 = vld [vmem:[#allocation2 + $0x12c] sm:$0xff]
  %v6651 = vld [vmem:[#allocation2 + $0x134] sm:$0xff]
  %v6652 = vld [vmem:[#allocation2 + $0x13c] sm:$0xff]
  %v6653 = vld [vmem:[#allocation2 + $0x144] sm:$0xff]
  %v6654 = vld [vmem:[#allocation2 + $0x14c] sm:$0xff]
  %6691 = vrot.lane.b32.xlu0 %v6619, 64
  %v6692 = vpop.permute.xlu0 %6691
  %6693 = vrot.lane.b32.xlu0 %v6620, 64
  %v6694 = vpop.permute.xlu0 %6693
  %6695 = vrot.lane.b32.xlu0 %v6621, 64
  %v6696 = vpop.permute.xlu0 %6695
  %6697 = vrot.lane.b32.xlu0 %v6622, 64
  %v6698 = vpop.permute.xlu0 %6697
  %6699 = vrot.lane.b32.xlu0 %v6623, 64
  %v6700 = vpop.permute.xlu0 %6699
  %6701 = vrot.lane.b32.xlu0 %v6624, 64
  %v6702 = vpop.permute.xlu0 %6701
  %6703 = vrot.lane.b32.xlu0 %v6625, 64
  %v6704 = vpop.permute.xlu0 %6703
  %6705 = vrot.lane.b32.xlu0 %v6626, 64
  %v6706 = vpop.permute.xlu0 %6705
  %6707 = vrot.lane.b32.xlu0 %v6627, 64
  %v6708 = vpop.permute.xlu0 %6707
  %6709 = vrot.lane.b32.xlu0 %v6628, 64
  %v6710 = vpop.permute.xlu0 %6709
  %6711 = vrot.lane.b32.xlu0 %v6629, 64
  %v6712 = vpop.permute.xlu0 %6711
  %6713 = vrot.lane.b32.xlu0 %v6630, 64
  %v6714 = vpop.permute.xlu0 %6713
  %6715 = vrot.lane.b32.xlu0 %v6631, 64
  %v6716 = vpop.permute.xlu0 %6715
  %6717 = vrot.lane.b32.xlu0 %v6632, 64
  %v6718 = vpop.permute.xlu0 %6717
  %6719 = vrot.lane.b32.xlu0 %v6633, 64
  %v6720 = vpop.permute.xlu0 %6719
  %6721 = vrot.lane.b32.xlu0 %v6634, 64
  %v6722 = vpop.permute.xlu0 %6721
  %6723 = vrot.lane.b32.xlu0 %v6635, 64
  %v6724 = vpop.permute.xlu0 %6723
  %6725 = vrot.lane.b32.xlu0 %v6636, 64
  %v6726 = vpop.permute.xlu0 %6725
  %6727 = vrot.lane.b32.xlu0 %v6637, 64
  %v6728 = vpop.permute.xlu0 %6727
  %6729 = vrot.lane.b32.xlu0 %v6638, 64
  %v6730 = vpop.permute.xlu0 %6729
  %6731 = vrot.lane.b32.xlu0 %v6639, 64
  %v6732 = vpop.permute.xlu0 %6731
  %6733 = vrot.lane.b32.xlu0 %v6640, 64
  %v6734 = vpop.permute.xlu0 %6733
  %6735 = vrot.lane.b32.xlu0 %v6641, 64
  %v6736 = vpop.permute.xlu0 %6735
  %6737 = vrot.lane.b32.xlu0 %v6642, 64
  %v6738 = vpop.permute.xlu0 %6737
  %6739 = vrot.lane.b32.xlu0 %v6643, 64
  %v6740 = vpop.permute.xlu0 %6739
  %6741 = vrot.lane.b32.xlu0 %v6644, 64
  %v6742 = vpop.permute.xlu0 %6741
  %6743 = vrot.lane.b32.xlu0 %v6645, 64
  %v6744 = vpop.permute.xlu0 %6743
  %6745 = vrot.lane.b32.xlu0 %v6646, 64
  %v6746 = vpop.permute.xlu0 %6745
  %6747 = vrot.lane.b32.xlu0 %v6647, 64
  %v6748 = vpop.permute.xlu0 %6747
  %6749 = vrot.lane.b32.xlu0 %v6648, 64
  %v6750 = vpop.permute.xlu0 %6749
  %6751 = vrot.lane.b32.xlu0 %v6649, 64
  %v6752 = vpop.permute.xlu0 %6751
  %6753 = vrot.lane.b32.xlu0 %v6650, 64
  %v6754 = vpop.permute.xlu0 %6753
  %6755 = vrot.lane.b32.xlu0 %v6651, 64
  %v6756 = vpop.permute.xlu0 %6755
  %6757 = vrot.lane.b32.xlu0 %v6652, 64
  %v6758 = vpop.permute.xlu0 %6757
  %6759 = vrot.lane.b32.xlu0 %v6653, 64
  %v6760 = vpop.permute.xlu0 %6759
  %6761 = vrot.lane.b32.xlu0 %v6654, 64
  %v6762 = vpop.permute.xlu0 %6761
  %6799 = vst.msk [vmem:[#allocation3 + $0x8] sm:$0xff] %vm3479, %v6692
  %6800 = vst.msk [vmem:[#allocation3 + $0x18] sm:$0xff] %vm3479, %v6694
  %6801 = vst.msk [vmem:[#allocation3 + $0x28] sm:$0xff] %vm3479, %v6696
  %6802 = vst.msk [vmem:[#allocation3 + $0x38] sm:$0xff] %vm3479, %v6698
  %6803 = vst.msk [vmem:[#allocation3 + $0x48] sm:$0xff] %vm3479, %v6700
  %6804 = vst.msk [vmem:[#allocation3 + $0x58] sm:$0xff] %vm3479, %v6702
  %6805 = vst.msk [vmem:[#allocation3 + $0x68] sm:$0xff] %vm3479, %v6704
  %6806 = vst.msk [vmem:[#allocation3 + $0x78] sm:$0xff] %vm3479, %v6706
  %6807 = vst.msk [vmem:[#allocation3 + $0x88] sm:$0xff] %vm3479, %v6708
  %6808 = vst.msk [vmem:[#allocation3 + $0x98] sm:$0xff] %vm3479, %v6710
  %6809 = vst.msk [vmem:[#allocation3 + $0xa8] sm:$0xff] %vm3479, %v6712
  %6810 = vst.msk [vmem:[#allocation3 + $0xb8] sm:$0xff] %vm3479, %v6714
  %6811 = vst.msk [vmem:[#allocation3 + $0xc8] sm:$0xff] %vm3479, %v6716
  %6812 = vst.msk [vmem:[#allocation3 + $0xd8] sm:$0xff] %vm3479, %v6718
  %6813 = vst.msk [vmem:[#allocation3 + $0xe8] sm:$0xff] %vm3479, %v6720
  %6814 = vst.msk [vmem:[#allocation3 + $0xf8] sm:$0xff] %vm3479, %v6722
  %6815 = vst.msk [vmem:[#allocation3 + $0x108] sm:$0xff] %vm3479, %v6724
  %6816 = vst.msk [vmem:[#allocation3 + $0x118] sm:$0xff] %vm3479, %v6726
  %6817 = vst.msk [vmem:[#allocation3 + $0x128] sm:$0xff] %vm3479, %v6728
  %6818 = vst.msk [vmem:[#allocation3 + $0x138] sm:$0xff] %vm3479, %v6730
  %6819 = vst.msk [vmem:[#allocation3 + $0x148] sm:$0xff] %vm3479, %v6732
  %6820 = vst.msk [vmem:[#allocation3 + $0x158] sm:$0xff] %vm3479, %v6734
  %6821 = vst.msk [vmem:[#allocation3 + $0x168] sm:$0xff] %vm3479, %v6736
  %6822 = vst.msk [vmem:[#allocation3 + $0x178] sm:$0xff] %vm3479, %v6738
  %6823 = vst.msk [vmem:[#allocation3 + $0x188] sm:$0xff] %vm3479, %v6740
  %6824 = vst.msk [vmem:[#allocation3 + $0x198] sm:$0xff] %vm3479, %v6742
  %6825 = vst.msk [vmem:[#allocation3 + $0x1a8] sm:$0xff] %vm3479, %v6744
  %6826 = vst.msk [vmem:[#allocation3 + $0x1b8] sm:$0xff] %vm3479, %v6746
  %6827 = vst.msk [vmem:[#allocation3 + $0x1c8] sm:$0xff] %vm3479, %v6748
  %6828 = vst.msk [vmem:[#allocation3 + $0x1d8] sm:$0xff] %vm3479, %v6750
  %6829 = vst.msk [vmem:[#allocation3 + $0x1e8] sm:$0xff] %vm3479, %v6752
  %6830 = vst.msk [vmem:[#allocation3 + $0x1f8] sm:$0xff] %vm3479, %v6754
  %6831 = vst.msk [vmem:[#allocation3 + $0x208] sm:$0xff] %vm3479, %v6756
  %6832 = vst.msk [vmem:[#allocation3 + $0x218] sm:$0xff] %vm3479, %v6758
  %6833 = vst.msk [vmem:[#allocation3 + $0x228] sm:$0xff] %vm3479, %v6760
  %6834 = vst.msk [vmem:[#allocation3 + $0x238] sm:$0xff] %vm3479, %v6762
  %v6835 = vld [vmem:[#allocation3] sm:$0xff]
  %v6836 = vld [vmem:[#allocation3 + $0x8] sm:$0xff]
  %v6837 = vld [vmem:[#allocation3 + $0x10] sm:$0xff]
  %v6838 = vld [vmem:[#allocation3 + $0x18] sm:$0xff]
  %v6839 = vld [vmem:[#allocation3 + $0x20] sm:$0xff]
  %v6840 = vld [vmem:[#allocation3 + $0x28] sm:$0xff]
  %v6841 = vld [vmem:[#allocation3 + $0x30] sm:$0xff]
  %v6842 = vld [vmem:[#allocation3 + $0x38] sm:$0xff]
  %v6843 = vld [vmem:[#allocation3 + $0x40] sm:$0xff]
  %v6844 = vld [vmem:[#allocation3 + $0x48] sm:$0xff]
  %v6845 = vld [vmem:[#allocation3 + $0x50] sm:$0xff]
  %v6846 = vld [vmem:[#allocation3 + $0x58] sm:$0xff]
  %v6847 = vld [vmem:[#allocation3 + $0x60] sm:$0xff]
  %v6848 = vld [vmem:[#allocation3 + $0x68] sm:$0xff]
  %v6849 = vld [vmem:[#allocation3 + $0x70] sm:$0xff]
  %v6850 = vld [vmem:[#allocation3 + $0x78] sm:$0xff]
  %v6851 = vld [vmem:[#allocation3 + $0x80] sm:$0xff]
  %v6852 = vld [vmem:[#allocation3 + $0x88] sm:$0xff]
  %v6853 = vld [vmem:[#allocation3 + $0x90] sm:$0xff]
  %v6854 = vld [vmem:[#allocation3 + $0x98] sm:$0xff]
  %v6855 = vld [vmem:[#allocation3 + $0xa0] sm:$0xff]
  %v6856 = vld [vmem:[#allocation3 + $0xa8] sm:$0xff]
  %v6857 = vld [vmem:[#allocation3 + $0xb0] sm:$0xff]
  %v6858 = vld [vmem:[#allocation3 + $0xb8] sm:$0xff]
  %v6859 = vld [vmem:[#allocation3 + $0xc0] sm:$0xff]
  %v6860 = vld [vmem:[#allocation3 + $0xc8] sm:$0xff]
  %v6861 = vld [vmem:[#allocation3 + $0xd0] sm:$0xff]
  %v6862 = vld [vmem:[#allocation3 + $0xd8] sm:$0xff]
  %v6863 = vld [vmem:[#allocation3 + $0xe0] sm:$0xff]
  %v6864 = vld [vmem:[#allocation3 + $0xe8] sm:$0xff]
  %v6865 = vld [vmem:[#allocation3 + $0xf0] sm:$0xff]
  %v6866 = vld [vmem:[#allocation3 + $0xf8] sm:$0xff]
  %v6867 = vld [vmem:[#allocation3 + $0x100] sm:$0xff]
  %v6868 = vld [vmem:[#allocation3 + $0x108] sm:$0xff]
  %v6869 = vld [vmem:[#allocation3 + $0x110] sm:$0xff]
  %v6870 = vld [vmem:[#allocation3 + $0x118] sm:$0xff]
  %v6871 = vld [vmem:[#allocation3 + $0x120] sm:$0xff]
  %v6872 = vld [vmem:[#allocation3 + $0x128] sm:$0xff]
  %v6873 = vld [vmem:[#allocation3 + $0x130] sm:$0xff]
  %v6874 = vld [vmem:[#allocation3 + $0x138] sm:$0xff]
  %v6875 = vld [vmem:[#allocation3 + $0x140] sm:$0xff]
  %v6876 = vld [vmem:[#allocation3 + $0x148] sm:$0xff]
  %v6877 = vld [vmem:[#allocation3 + $0x150] sm:$0xff]
  %v6878 = vld [vmem:[#allocation3 + $0x158] sm:$0xff]
  %v6879 = vld [vmem:[#allocation3 + $0x160] sm:$0xff]
  %v6880 = vld [vmem:[#allocation3 + $0x168] sm:$0xff]
  %v6881 = vld [vmem:[#allocation3 + $0x170] sm:$0xff]
  %v6882 = vld [vmem:[#allocation3 + $0x178] sm:$0xff]
  %v6883 = vld [vmem:[#allocation3 + $0x180] sm:$0xff]
  %v6884 = vld [vmem:[#allocation3 + $0x188] sm:$0xff]
  %v6885 = vld [vmem:[#allocation3 + $0x190] sm:$0xff]
  %v6886 = vld [vmem:[#allocation3 + $0x198] sm:$0xff]
  %v6887 = vld [vmem:[#allocation3 + $0x1a0] sm:$0xff]
  %v6888 = vld [vmem:[#allocation3 + $0x1a8] sm:$0xff]
  %v6889 = vld [vmem:[#allocation3 + $0x1b0] sm:$0xff]
  %v6890 = vld [vmem:[#allocation3 + $0x1b8] sm:$0xff]
  %v6891 = vld [vmem:[#allocation3 + $0x1c0] sm:$0xff]
  %v6892 = vld [vmem:[#allocation3 + $0x1c8] sm:$0xff]
  %v6893 = vld [vmem:[#allocation3 + $0x1d0] sm:$0xff]
  %v6894 = vld [vmem:[#allocation3 + $0x1d8] sm:$0xff]
  %v6895 = vld [vmem:[#allocation3 + $0x1e0] sm:$0xff]
  %v6896 = vld [vmem:[#allocation3 + $0x1e8] sm:$0xff]
  %v6897 = vld [vmem:[#allocation3 + $0x1f0] sm:$0xff]
  %v6898 = vld [vmem:[#allocation3 + $0x1f8] sm:$0xff]
  %v6899 = vld [vmem:[#allocation3 + $0x200] sm:$0xff]
  %v6900 = vld [vmem:[#allocation3 + $0x208] sm:$0xff]
  %v6901 = vld [vmem:[#allocation3 + $0x210] sm:$0xff]
  %v6902 = vld [vmem:[#allocation3 + $0x218] sm:$0xff]
  %v6903 = vld [vmem:[#allocation3 + $0x220] sm:$0xff]
  %v6904 = vld [vmem:[#allocation3 + $0x228] sm:$0xff]
  %v6905 = vld [vmem:[#allocation3 + $0x230] sm:$0xff]
  %v6906 = vld [vmem:[#allocation3 + $0x238] sm:$0xff]
  %v6907 = vld [vmem:[%s3] sm:$0xff]
  %v6908 = vld [vmem:[%s3 + $0x8] sm:$0xff]
  %v6909 = vld [vmem:[%s3 + $0x10] sm:$0xff]
  %v6910 = vld [vmem:[%s3 + $0x18] sm:$0xff]
  %v6911 = vld [vmem:[%s3 + $0x20] sm:$0xff]
  %v6912 = vld [vmem:[%s3 + $0x28] sm:$0xff]
  %v6913 = vld [vmem:[%s3 + $0x30] sm:$0xff]
  %v6914 = vld [vmem:[%s3 + $0x38] sm:$0xff]
  %v6915 = vld [vmem:[%s3 + $0x40] sm:$0xff]
  %v6916 = vld [vmem:[%s3 + $0x48] sm:$0xff]
  %v6917 = vld [vmem:[%s3 + $0x50] sm:$0xff]
  %v6918 = vld [vmem:[%s3 + $0x58] sm:$0xff]
  %v6919 = vld [vmem:[%s3 + $0x60] sm:$0xff]
  %v6920 = vld [vmem:[%s3 + $0x68] sm:$0xff]
  %v6921 = vld [vmem:[%s3 + $0x70] sm:$0xff]
  %v6922 = vld [vmem:[%s3 + $0x78] sm:$0xff]
  %v6923 = vld [vmem:[%s3 + $0x80] sm:$0xff]
  %v6924 = vld [vmem:[%s3 + $0x88] sm:$0xff]
  %v6925 = vld [vmem:[%s3 + $0x90] sm:$0xff]
  %v6926 = vld [vmem:[%s3 + $0x98] sm:$0xff]
  %v6927 = vld [vmem:[%s3 + $0xa0] sm:$0xff]
  %v6928 = vld [vmem:[%s3 + $0xa8] sm:$0xff]
  %v6929 = vld [vmem:[%s3 + $0xb0] sm:$0xff]
  %v6930 = vld [vmem:[%s3 + $0xb8] sm:$0xff]
  %v6931 = vld [vmem:[%s3 + $0xc0] sm:$0xff]
  %v6932 = vld [vmem:[%s3 + $0xc8] sm:$0xff]
  %v6933 = vld [vmem:[%s3 + $0xd0] sm:$0xff]
  %v6934 = vld [vmem:[%s3 + $0xd8] sm:$0xff]
  %v6935 = vld [vmem:[%s3 + $0xe0] sm:$0xff]
  %v6936 = vld [vmem:[%s3 + $0xe8] sm:$0xff]
  %v6937 = vld [vmem:[%s3 + $0xf0] sm:$0xff]
  %v6938 = vld [vmem:[%s3 + $0xf8] sm:$0xff]
  %v6939 = vld [vmem:[%s4] sm:$0x1]
  %v6941 = vlaneseq
  %v6942 = vshrl.u32 %v6941, 7
  %v6943 = vsub.s32 0, %v6942
  %v6944 = vrot.slane %v6939, %v6943
  %6946 = vmatprep.subr.mxu0 0.0
  %6947 = vmatpush1.msra.mxu0 %v6907
  %6948 = vmatprep.subr.mxu0 0.0
  %6949 = vmatpush1.msra.mxu0 %v6908
  %6950 = vmatprep.subr.mxu0 0.0
  %6951 = vmatpush1.msra.mxu0 %v6909
  %6952 = vmatprep.subr.mxu0 0.0
  %6953 = vmatpush1.msra.mxu0 %v6910
  %6954 = vmatprep.subr.mxu0 0.0
  %6955 = vmatpush1.msra.mxu0 %v6911
  %6956 = vmatprep.subr.mxu0 0.0
  %6957 = vmatpush1.msra.mxu0 %v6912
  %6958 = vmatprep.subr.mxu0 0.0
  %6959 = vmatpush1.msra.mxu0 %v6913
  %6960 = vmatprep.subr.mxu0 0.0
  %6961 = vmatpush1.msra.mxu0 %v6914
  %6962 = vmatprep.subr.mxu0 0.0
  %6963 = vmatpush1.msra.mxu0 %v6915
  %6964 = vmatprep.subr.mxu0 0.0
  %6965 = vmatpush1.msra.mxu0 %v6916
  %6966 = vmatprep.subr.mxu0 0.0
  %6967 = vmatpush1.msra.mxu0 %v6917
  %6968 = vmatprep.subr.mxu0 0.0
  %6969 = vmatpush1.msra.mxu0 %v6918
  %6970 = vmatprep.subr.mxu0 0.0
  %6971 = vmatpush1.msra.mxu0 %v6919
  %6972 = vmatprep.subr.mxu0 0.0
  %6973 = vmatpush1.msra.mxu0 %v6920
  %6974 = vmatprep.subr.mxu0 0.0
  %6975 = vmatpush1.msra.mxu0 %v6921
  %6976 = vmatprep.subr.mxu0 0.0
  %6977 = vmatpush1.msra.mxu0 %v6922
  %6978 = vmatprep.subr.mxu0 0.0
  %6979 = vmatpush1.msra.mxu0 %v6923
  %6980 = vmatprep.subr.mxu0 0.0
  %6981 = vmatpush1.msra.mxu0 %v6924
  %6982 = vmatprep.subr.mxu0 0.0
  %6983 = vmatpush1.msra.mxu0 %v6925
  %6984 = vmatprep.subr.mxu0 0.0
  %6985 = vmatpush1.msra.mxu0 %v6926
  %6986 = vmatprep.subr.mxu0 0.0
  %6987 = vmatpush1.msra.mxu0 %v6927
  %6988 = vmatprep.subr.mxu0 0.0
  %6989 = vmatpush1.msra.mxu0 %v6928
  %6990 = vmatprep.subr.mxu0 0.0
  %6991 = vmatpush1.msra.mxu0 %v6929
  %6992 = vmatprep.subr.mxu0 0.0
  %6993 = vmatpush1.msra.mxu0 %v6930
  %6994 = vmatprep.subr.mxu0 0.0
  %6995 = vmatpush1.msra.mxu0 %v6931
  %6996 = vmatprep.subr.mxu0 0.0
  %6997 = vmatpush1.msra.mxu0 %v6932
  %6998 = vmatprep.subr.mxu0 0.0
  %6999 = vmatpush1.msra.mxu0 %v6933
  %7000 = vmatprep.subr.mxu0 0.0
  %7001 = vmatpush1.msra.mxu0 %v6934
  %7002 = vmatprep.subr.mxu0 0.0
  %7003 = vmatpush1.msra.mxu0 %v6935
  %7004 = vmatprep.subr.mxu0 0.0
  %7005 = vmatpush1.msra.mxu0 %v6936
  %7006 = vmatprep.subr.mxu0 0.0
  %7007 = vmatpush1.msra.mxu0 %v6937
  %7008 = vmatprep.subr.mxu0 0.0
  %7009 = vmatpush1.msra.mxu0 %v6938
  %7010 = vmatprep.mubr.f32.mxu0 %v6836
  %7011 = vmatmul.mubr.f32.gmra.mrb[0].mxu0 %v6835
  %v7012 = vpop.f32.mrb[0].mxu0
  %v7013 = vadd.f32 %v6944, %v7012
  %v7014 = vpop.f32.mrb[0].mxu0
  %7015 = vmatprep.mubr.f32.mxu0 %v6838
  %7016 = vmatmul.mubr.f32.gmra.mrb[0].mxu0 %v6837
  %v7017 = vpop.f32.mrb[0].mxu0
  %v7018 = vadd.f32 %v6944, %v7017
  %v7019 = vpop.f32.mrb[0].mxu0
  %7020 = vmatprep.mubr.f32.mxu0 %v6840
  %7021 = vmatmul.mubr.f32.gmra.mrb[0].mxu0 %v6839
  %v7022 = vpop.f32.mrb[0].mxu0
  %v7023 = vadd.f32 %v6944, %v7022
  %v7024 = vpop.f32.mrb[0].mxu0
  %7025 = vmatprep.mubr.f32.mxu0 %v6842
  %7026 = vmatmul.mubr.f32.gmra.mrb[0].mxu0 %v6841
  %v7027 = vpop.f32.mrb[0].mxu0
  %v7028 = vadd.f32 %v6944, %v7027
  %v7029 = vpop.f32.mrb[0].mxu0
  %7030 = vmatprep.mubr.f32.mxu0 %v6844
  %7031 = vmatmul.mubr.f32.gmra.mrb[0].mxu0 %v6843
  %v7032 = vpop.f32.mrb[0].mxu0
  %v7033 = vadd.f32 %v6944, %v7032
  %v7034 = vpop.f32.mrb[0].mxu0
  %7035 = vmatprep.mubr.f32.mxu0 %v6846
  %7036 = vmatmul.mubr.f32.gmra.mrb[0].mxu0 %v6845
  %v7037 = vpop.f32.mrb[0].mxu0
  %v7038 = vadd.f32 %v6944, %v7037
  %v7039 = vpop.f32.mrb[0].mxu0
  %7040 = vmatprep.mubr.f32.mxu0 %v6848
  %7041 = vmatmul.mubr.f32.gmra.mrb[0].mxu0 %v6847
  %v7042 = vpop.f32.mrb[0].mxu0
  %v7043 = vadd.f32 %v6944, %v7042
  %v7044 = vpop.f32.mrb[0].mxu0
  %7045 = vmatprep.mubr.f32.mxu0 %v6850
  %7046 = vmatmul.mubr.f32.gmra.mrb[0].mxu0 %v6849
  %v7047 = vpop.f32.mrb[0].mxu0
  %v7048 = vadd.f32 %v6944, %v7047
  %v7049 = vpop.f32.mrb[0].mxu0
  %7050 = vmatprep.mubr.f32.mxu0 %v6852
  %7051 = vmatmul.mubr.f32.gmra.mrb[0].mxu0 %v6851
  %v7052 = vpop.f32.mrb[0].mxu0
  %v7053 = vadd.f32 %v6944, %v7052
  %v7054 = vpop.f32.mrb[0].mxu0
  %7055 = vmatprep.mubr.f32.mxu0 %v6854
  %7056 = vmatmul.mubr.f32.gmra.mrb[0].mxu0 %v6853
  %v7057 = vpop.f32.mrb[0].mxu0
  %v7058 = vadd.f32 %v6944, %v7057
  %v7059 = vpop.f32.mrb[0].mxu0
  %7060 = vmatprep.mubr.f32.mxu0 %v6856
  %7061 = vmatmul.mubr.f32.gmra.mrb[0].mxu0 %v6855
  %v7062 = vpop.f32.mrb[0].mxu0
  %v7063 = vadd.f32 %v6944, %v7062
  %v7064 = vpop.f32.mrb[0].mxu0
  %7065 = vmatprep.mubr.f32.mxu0 %v6858
  %7066 = vmatmul.mubr.f32.gmra.mrb[0].mxu0 %v6857
  %v7067 = vpop.f32.mrb[0].mxu0
  %v7068 = vadd.f32 %v6944, %v7067
  %v7069 = vpop.f32.mrb[0].mxu0
  %7070 = vmatprep.mubr.f32.mxu0 %v6860
  %7071 = vmatmul.mubr.f32.gmra.mrb[0].mxu0 %v6859
  %v7072 = vpop.f32.mrb[0].mxu0
  %v7073 = vadd.f32 %v6944, %v7072
  %v7074 = vpop.f32.mrb[0].mxu0
  %7075 = vmatprep.mubr.f32.mxu0 %v6862
  %7076 = vmatmul.mubr.f32.gmra.mrb[0].mxu0 %v6861
  %v7077 = vpop.f32.mrb[0].mxu0
  %v7078 = vadd.f32 %v6944, %v7077
  %v7079 = vpop.f32.mrb[0].mxu0
  %7080 = vmatprep.mubr.f32.mxu0 %v6864
  %7081 = vmatmul.mubr.f32.gmra.mrb[0].mxu0 %v6863
  %v7082 = vpop.f32.mrb[0].mxu0
  %v7083 = vadd.f32 %v6944, %v7082
  %v7084 = vpop.f32.mrb[0].mxu0
  %7085 = vmatprep.mubr.f32.mxu0 %v6866
  %7086 = vmatmul.mubr.f32.gmra.mrb[0].mxu0 %v6865
  %v7087 = vpop.f32.mrb[0].mxu0
  %v7088 = vadd.f32 %v6944, %v7087
  %v7089 = vpop.f32.mrb[0].mxu0
  %7090 = vmatprep.mubr.f32.mxu0 %v6868
  %7091 = vmatmul.mubr.f32.gmra.mrb[0].mxu0 %v6867
  %v7092 = vpop.f32.mrb[0].mxu0
  %v7093 = vadd.f32 %v6944, %v7092
  %v7094 = vpop.f32.mrb[0].mxu0
  %7095 = vmatprep.mubr.f32.mxu0 %v6870
  %7096 = vmatmul.mubr.f32.gmra.mrb[0].mxu0 %v6869
  %v7097 = vpop.f32.mrb[0].mxu0
  %v7098 = vadd.f32 %v6944, %v7097
  %v7099 = vpop.f32.mrb[0].mxu0
  %7100 = vmatprep.mubr.f32.mxu0 %v6872
  %7101 = vmatmul.mubr.f32.gmra.mrb[0].mxu0 %v6871
  %v7102 = vpop.f32.mrb[0].mxu0
  %v7103 = vadd.f32 %v6944, %v7102
  %v7104 = vpop.f32.mrb[0].mxu0
  %7105 = vmatprep.mubr.f32.mxu0 %v6874
  %7106 = vmatmul.mubr.f32.gmra.mrb[0].mxu0 %v6873
  %v7107 = vpop.f32.mrb[0].mxu0
  %v7108 = vadd.f32 %v6944, %v7107
  %v7109 = vpop.f32.mrb[0].mxu0
  %7110 = vmatprep.mubr.f32.mxu0 %v6876
  %7111 = vmatmul.mubr.f32.gmra.mrb[0].mxu0 %v6875
  %v7112 = vpop.f32.mrb[0].mxu0
  %v7113 = vadd.f32 %v6944, %v7112
  %v7114 = vpop.f32.mrb[0].mxu0
  %7115 = vmatprep.mubr.f32.mxu0 %v6878
  %7116 = vmatmul.mubr.f32.gmra.mrb[0].mxu0 %v6877
  %v7117 = vpop.f32.mrb[0].mxu0
  %v7118 = vadd.f32 %v6944, %v7117
  %v7119 = vpop.f32.mrb[0].mxu0
  %7120 = vmatprep.mubr.f32.mxu0 %v6880
  %7121 = vmatmul.mubr.f32.gmra.mrb[0].mxu0 %v6879
  %v7122 = vpop.f32.mrb[0].mxu0
  %v7123 = vadd.f32 %v6944, %v7122
  %v7124 = vpop.f32.mrb[0].mxu0
  %7125 = vmatprep.mubr.f32.mxu0 %v6882
  %7126 = vmatmul.mubr.f32.gmra.mrb[0].mxu0 %v6881
  %v7127 = vpop.f32.mrb[0].mxu0
  %v7128 = vadd.f32 %v6944, %v7127
  %v7129 = vpop.f32.mrb[0].mxu0
  %7130 = vmatprep.mubr.f32.mxu0 %v6884
  %7131 = vmatmul.mubr.f32.gmra.mrb[0].mxu0 %v6883
  %v7132 = vpop.f32.mrb[0].mxu0
  %v7133 = vadd.f32 %v6944, %v7132
  %v7134 = vpop.f32.mrb[0].mxu0
  %7135 = vmatprep.mubr.f32.mxu0 %v6886
  %7136 = vmatmul.mubr.f32.gmra.mrb[0].mxu0 %v6885
  %v7137 = vpop.f32.mrb[0].mxu0
  %v7138 = vadd.f32 %v6944, %v7137
  %v7139 = vpop.f32.mrb[0].mxu0
  %7140 = vmatprep.mubr.f32.mxu0 %v6888
  %7141 = vmatmul.mubr.f32.gmra.mrb[0].mxu0 %v6887
  %v7142 = vpop.f32.mrb[0].mxu0
  %v7143 = vadd.f32 %v6944, %v7142
  %v7144 = vpop.f32.mrb[0].mxu0
  %7145 = vmatprep.mubr.f32.mxu0 %v6890
  %7146 = vmatmul.mubr.f32.gmra.mrb[0].mxu0 %v6889
  %v7147 = vpop.f32.mrb[0].mxu0
  %v7148 = vadd.f32 %v6944, %v7147
  %v7149 = vpop.f32.mrb[0].mxu0
  %7150 = vmatprep.mubr.f32.mxu0 %v6892
  %7151 = vmatmul.mubr.f32.gmra.mrb[0].mxu0 %v6891
  %v7152 = vpop.f32.mrb[0].mxu0
  %v7153 = vadd.f32 %v6944, %v7152
  %v7154 = vpop.f32.mrb[0].mxu0
  %7155 = vmatprep.mubr.f32.mxu0 %v6894
  %7156 = vmatmul.mubr.f32.gmra.mrb[0].mxu0 %v6893
  %v7157 = vpop.f32.mrb[0].mxu0
  %v7158 = vadd.f32 %v6944, %v7157
  %v7159 = vpop.f32.mrb[0].mxu0
  %7160 = vmatprep.mubr.f32.mxu0 %v6896
  %7161 = vmatmul.mubr.f32.gmra.mrb[0].mxu0 %v6895
  %v7162 = vpop.f32.mrb[0].mxu0
  %v7163 = vadd.f32 %v6944, %v7162
  %v7164 = vpop.f32.mrb[0].mxu0
  %7165 = vmatprep.mubr.f32.mxu0 %v6898
  %7166 = vmatmul.mubr.f32.gmra.mrb[0].mxu0 %v6897
  %v7167 = vpop.f32.mrb[0].mxu0
  %v7168 = vadd.f32 %v6944, %v7167
  %v7169 = vpop.f32.mrb[0].mxu0
  %7170 = vmatprep.mubr.f32.mxu0 %v6900
  %7171 = vmatmul.mubr.f32.gmra.mrb[0].mxu0 %v6899
  %v7172 = vpop.f32.mrb[0].mxu0
  %v7173 = vadd.f32 %v6944, %v7172
  %v7174 = vpop.f32.mrb[0].mxu0
  %7175 = vmatprep.mubr.f32.mxu0 %v6902
  %7176 = vmatmul.mubr.f32.gmra.mrb[0].mxu0 %v6901
  %v7177 = vpop.f32.mrb[0].mxu0
  %v7178 = vadd.f32 %v6944, %v7177
  %v7179 = vpop.f32.mrb[0].mxu0
  %7180 = vmatprep.mubr.f32.mxu0 %v6904
  %7181 = vmatmul.mubr.f32.gmra.mrb[0].mxu0 %v6903
  %v7182 = vpop.f32.mrb[0].mxu0
  %v7183 = vadd.f32 %v6944, %v7182
  %v7184 = vpop.f32.mrb[0].mxu0
  %7185 = vmatprep.mubr.f32.mxu0 %v6906
  %7186 = vmatmul.mubr.f32.gmra.mrb[0].mxu0 %v6905
  %v7187 = vpop.f32.mrb[0].mxu0
  %v7188 = vadd.f32 %v6944, %v7187
  %v7189 = vpop.f32.mrb[0].mxu0
  %7190 = vdwg.mxu0
  %v7191 = vmax.f32 %v7013, 0.0
  %v7192 = vmax.f32 %v7018, 0.0
  %v7193 = vmax.f32 %v7023, 0.0
  %v7194 = vmax.f32 %v7028, 0.0
  %v7195 = vmax.f32 %v7033, 0.0
  %v7196 = vmax.f32 %v7038, 0.0
  %v7197 = vmax.f32 %v7043, 0.0
  %v7198 = vmax.f32 %v7048, 0.0
  %v7199 = vmax.f32 %v7053, 0.0
  %v7200 = vmax.f32 %v7058, 0.0
  %v7201 = vmax.f32 %v7063, 0.0
  %v7202 = vmax.f32 %v7068, 0.0
  %v7203 = vmax.f32 %v7073, 0.0
  %v7204 = vmax.f32 %v7078, 0.0
  %v7205 = vmax.f32 %v7083, 0.0
  %v7206 = vmax.f32 %v7088, 0.0
  %v7207 = vmax.f32 %v7093, 0.0
  %v7208 = vmax.f32 %v7098, 0.0
  %v7209 = vmax.f32 %v7103, 0.0
  %v7210 = vmax.f32 %v7108, 0.0
  %v7211 = vmax.f32 %v7113, 0.0
  %v7212 = vmax.f32 %v7118, 0.0
  %v7213 = vmax.f32 %v7123, 0.0
  %v7214 = vmax.f32 %v7128, 0.0
  %v7215 = vmax.f32 %v7133, 0.0
  %v7216 = vmax.f32 %v7138, 0.0
  %v7217 = vmax.f32 %v7143, 0.0
  %v7218 = vmax.f32 %v7148, 0.0
  %v7219 = vmax.f32 %v7153, 0.0
  %v7220 = vmax.f32 %v7158, 0.0
  %v7221 = vmax.f32 %v7163, 0.0
  %v7222 = vmax.f32 %v7168, 0.0
  %v7223 = vmax.f32 %v7173, 0.0
  %v7224 = vmax.f32 %v7178, 0.0
  %v7225 = vmax.f32 %v7183, 0.0
  %v7226 = vmax.f32 %v7188, 0.0
  %7227 = vst [vmem:[#allocation4] sm:$0xff] %v7191
  %7228 = vst [vmem:[#allocation4 + $0x8] sm:$0xff] %v7192
  %7229 = vst [vmem:[#allocation4 + $0x10] sm:$0xff] %v7193
  %7230 = vst [vmem:[#allocation4 + $0x18] sm:$0xff] %v7194
  %7231 = vst [vmem:[#allocation4 + $0x20] sm:$0xff] %v7195
  %7232 = vst [vmem:[#allocation4 + $0x28] sm:$0xff] %v7196
  %7233 = vst [vmem:[#allocation4 + $0x30] sm:$0xff] %v7197
  %7234 = vst [vmem:[#allocation4 + $0x38] sm:$0xff] %v7198
  %7235 = vst [vmem:[#allocation4 + $0x40] sm:$0xff] %v7199
  %7236 = vst [vmem:[#allocation4 + $0x48] sm:$0xff] %v7200
  %7237 = vst [vmem:[#allocation4 + $0x50] sm:$0xff] %v7201
  %7238 = vst [vmem:[#allocation4 + $0x58] sm:$0xff] %v7202
  %7239 = vst [vmem:[#allocation4 + $0x60] sm:$0xff] %v7203
  %7240 = vst [vmem:[#allocation4 + $0x68] sm:$0xff] %v7204
  %7241 = vst [vmem:[#allocation4 + $0x70] sm:$0xff] %v7205
  %7242 = vst [vmem:[#allocation4 + $0x78] sm:$0xff] %v7206
  %7243 = vst [vmem:[#allocation4 + $0x80] sm:$0xff] %v7207
  %7244 = vst [vmem:[#allocation4 + $0x88] sm:$0xff] %v7208
  %7245 = vst [vmem:[#allocation4 + $0x90] sm:$0xff] %v7209
  %7246 = vst [vmem:[#allocation4 + $0x98] sm:$0xff] %v7210
  %7247 = vst [vmem:[#allocation4 + $0xa0] sm:$0xff] %v7211
  %7248 = vst [vmem:[#allocation4 + $0xa8] sm:$0xff] %v7212
  %7249 = vst [vmem:[#allocation4 + $0xb0] sm:$0xff] %v7213
  %7250 = vst [vmem:[#allocation4 + $0xb8] sm:$0xff] %v7214
  %7251 = vst [vmem:[#allocation4 + $0xc0] sm:$0xff] %v7215
  %7252 = vst [vmem:[#allocation4 + $0xc8] sm:$0xff] %v7216
  %7253 = vst [vmem:[#allocation4 + $0xd0] sm:$0xff] %v7217
  %7254 = vst [vmem:[#allocation4 + $0xd8] sm:$0xff] %v7218
  %7255 = vst [vmem:[#allocation4 + $0xe0] sm:$0xff] %v7219
  %7256 = vst [vmem:[#allocation4 + $0xe8] sm:$0xff] %v7220
  %7257 = vst [vmem:[#allocation4 + $0xf0] sm:$0xff] %v7221
  %7258 = vst [vmem:[#allocation4 + $0xf8] sm:$0xff] %v7222
  %7259 = vst [vmem:[#allocation4 + $0x100] sm:$0xff] %v7223
  %7260 = vst [vmem:[#allocation4 + $0x108] sm:$0xff] %v7224
  %7261 = vst [vmem:[#allocation4 + $0x110] sm:$0xff] %v7225
  %7262 = vst [vmem:[#allocation4 + $0x118] sm:$0xff] %v7226
  %7263 = vst [vmem:[#allocation5] sm:$0xff] 0.0
  %7264 = vst [vmem:[#allocation5 + $0x8] sm:$0xff] 0.0
  %v7265 = vld [vmem:[#allocation4] sm:$0x1]
  %v7266 = vld [vmem:[#allocation4 + $0x1] sm:$0x1]
  %v7267 = vmax.f32 %v7265, %v7266
  %v7268 = vld [vmem:[#allocation4 + $0xc] sm:$0x1]
  %v7269 = vld [vmem:[#allocation4 + $0xd] sm:$0x1]
  %v7270 = vmax.f32 %v7268, %v7269
  %v7271 = vmax.f32 %v7267, %v7270
  %vm7272 = vcmask 122880
  %7273 = vst.msk [vmem:[#allocation5] sm:$0x1] %vm7272, %v7271
  %v7274 = vld [vmem:[#allocation4 + $0x2] sm:$0x1]
  %v7275 = vld [vmem:[#allocation4 + $0x3] sm:$0x1]
  %v7276 = vmax.f32 %v7274, %v7275
  %v7277 = vld [vmem:[#allocation4 + $0xe] sm:$0x1]
  %v7278 = vld [vmem:[#allocation4 + $0xf] sm:$0x1]
  %v7279 = vmax.f32 %v7277, %v7278
  %v7280 = vmax.f32 %v7276, %v7279
  %7282 = vrot.lane.b32.xlu0 %v7280, 16
  %v7283 = vpop.permute.xlu0 %7282
  %vm7285 = vcmask 254080
  %7286 = vst.msk [vmem:[#allocation5] sm:$0x1] %vm7285, %v7283
  %v7287 = vld [vmem:[#allocation4 + $0x4] sm:$0x1]
  %v7288 = vld [vmem:[#allocation4 + $0x5] sm:$0x1]
  %v7289 = vmax.f32 %v7287, %v7288
  %v7290 = vld [vmem:[#allocation4 + $0x10] sm:$0x1]
  %v7291 = vld [vmem:[#allocation4 + $0x11] sm:$0x1]
  %v7292 = vmax.f32 %v7290, %v7291
  %v7293 = vmax.f32 %v7289, %v7292
  %7295 = vrot.lane.b32.xlu0 %v7293, 32
  %v7296 = vpop.permute.xlu0 %7295
  %vm7298 = vcmask 385280
  %7299 = vst.msk [vmem:[#allocation5] sm:$0x1] %vm7298, %v7296
  %v7300 = vld [vmem:[#allocation4 + $0x6] sm:$0x1]
  %v7301 = vld [vmem:[#allocation4 + $0x7] sm:$0x1]
  %v7302 = vmax.f32 %v7300, %v7301
  %v7303 = vld [vmem:[#allocation4 + $0x12] sm:$0x1]
  %v7304 = vld [vmem:[#allocation4 + $0x13] sm:$0x1]
  %v7305 = vmax.f32 %v7303, %v7304
  %v7306 = vmax.f32 %v7302, %v7305
  %7308 = vrot.lane.b32.xlu0 %v7306, 48
  %v7309 = vpop.permute.xlu0 %7308
  %vm7311 = vcmask 516480
  %7312 = vst.msk [vmem:[#allocation5] sm:$0x1] %vm7311, %v7309
  %v7313 = vld [vmem:[#allocation4 + $0x18] sm:$0x1]
  %v7314 = vld [vmem:[#allocation4 + $0x19] sm:$0x1]
  %v7315 = vmax.f32 %v7313, %v7314
  %v7316 = vld [vmem:[#allocation4 + $0x24] sm:$0x1]
  %v7317 = vld [vmem:[#allocation4 + $0x25] sm:$0x1]
  %v7318 = vmax.f32 %v7316, %v7317
  %v7319 = vmax.f32 %v7315, %v7318
  %7321 = vrot.lane.b32.xlu0 %v7319, 64
  %v7322 = vpop.permute.xlu0 %7321
  %vm7324 = vcmask 647680
  %7325 = vst.msk [vmem:[#allocation5] sm:$0x1] %vm7324, %v7322
  %v7326 = vld [vmem:[#allocation4 + $0x1a] sm:$0x1]
  %v7327 = vld [vmem:[#allocation4 + $0x1b] sm:$0x1]
  %v7328 = vmax.f32 %v7326, %v7327
  %v7329 = vld [vmem:[#allocation4 + $0x26] sm:$0x1]
  %v7330 = vld [vmem:[#allocation4 + $0x27] sm:$0x1]
  %v7331 = vmax.f32 %v7329, %v7330
  %v7332 = vmax.f32 %v7328, %v7331
  %7334 = vrot.lane.b32.xlu0 %v7332, 80
  %v7335 = vpop.permute.xlu0 %7334
  %vm7337 = vcmask 778880
  %7338 = vst.msk [vmem:[#allocation5] sm:$0x1] %vm7337, %v7335
  %v7339 = vld [vmem:[#allocation4 + $0x1c] sm:$0x1]
  %v7340 = vld [vmem:[#allocation4 + $0x1d] sm:$0x1]
  %v7341 = vmax.f32 %v7339, %v7340
  %v7342 = vld [vmem:[#allocation4 + $0x28] sm:$0x1]
  %v7343 = vld [vmem:[#allocation4 + $0x29] sm:$0x1]
  %v7344 = vmax.f32 %v7342, %v7343
  %v7345 = vmax.f32 %v7341, %v7344
  %7347 = vrot.lane.b32.xlu0 %v7345, 96
  %v7348 = vpop.permute.xlu0 %7347
  %vm7350 = vcmask 910080
  %7351 = vst.msk [vmem:[#allocation5] sm:$0x1] %vm7350, %v7348
  %v7352 = vld [vmem:[#allocation4 + $0x1e] sm:$0x1]
  %v7353 = vld [vmem:[#allocation4 + $0x1f] sm:$0x1]
  %v7354 = vmax.f32 %v7352, %v7353
  %v7355 = vld [vmem:[#allocation4 + $0x2a] sm:$0x1]
  %v7356 = vld [vmem:[#allocation4 + $0x2b] sm:$0x1]
  %v7357 = vmax.f32 %v7355, %v7356
  %v7358 = vmax.f32 %v7354, %v7357
  %7360 = vrot.lane.b32.xlu0 %v7358, 112
  %v7361 = vpop.permute.xlu0 %7360
  %vm7363 = vcmask 1041280
  %7364 = vst.msk [vmem:[#allocation5] sm:$0x1] %vm7363, %v7361
  %v7365 = vld [vmem:[#allocation4 + $0x30] sm:$0x1]
  %v7366 = vld [vmem:[#allocation4 + $0x31] sm:$0x1]
  %v7367 = vmax.f32 %v7365, %v7366
  %v7368 = vld [vmem:[#allocation4 + $0x3c] sm:$0x1]
  %v7369 = vld [vmem:[#allocation4 + $0x3d] sm:$0x1]
  %v7370 = vmax.f32 %v7368, %v7369
  %v7371 = vmax.f32 %v7367, %v7370
  %7372 = vst.msk [vmem:[#allocation5 + $0x8] sm:$0x1] %vm7272, %v7371
  %v7373 = vld [vmem:[#allocation4 + $0x32] sm:$0x1]
  %v7374 = vld [vmem:[#allocation4 + $0x33] sm:$0x1]
  %v7375 = vmax.f32 %v7373, %v7374
  %v7376 = vld [vmem:[#allocation4 + $0x3e] sm:$0x1]
  %v7377 = vld [vmem:[#allocation4 + $0x3f] sm:$0x1]
  %v7378 = vmax.f32 %v7376, %v7377
  %v7379 = vmax.f32 %v7375, %v7378
  %7381 = vrot.lane.b32.xlu0 %v7379, 16
  %v7382 = vpop.permute.xlu0 %7381
  %7384 = vst.msk [vmem:[#allocation5 + $0x8] sm:$0x1] %vm7285, %v7382
  %v7385 = vld [vmem:[#allocation4 + $0x34] sm:$0x1]
  %v7386 = vld [vmem:[#allocation4 + $0x35] sm:$0x1]
  %v7387 = vmax.f32 %v7385, %v7386
  %v7388 = vld [vmem:[#allocation4 + $0x40] sm:$0x1]
  %v7389 = vld [vmem:[#allocation4 + $0x41] sm:$0x1]
  %v7390 = vmax.f32 %v7388, %v7389
  %v7391 = vmax.f32 %v7387, %v7390
  %7393 = vrot.lane.b32.xlu0 %v7391, 32
  %v7394 = vpop.permute.xlu0 %7393
  %7396 = vst.msk [vmem:[#allocation5 + $0x8] sm:$0x1] %vm7298, %v7394
  %v7397 = vld [vmem:[#allocation4 + $0x36] sm:$0x1]
  %v7398 = vld [vmem:[#allocation4 + $0x37] sm:$0x1]
  %v7399 = vmax.f32 %v7397, %v7398
  %v7400 = vld [vmem:[#allocation4 + $0x42] sm:$0x1]
  %v7401 = vld [vmem:[#allocation4 + $0x43] sm:$0x1]
  %v7402 = vmax.f32 %v7400, %v7401
  %v7403 = vmax.f32 %v7399, %v7402
  %7405 = vrot.lane.b32.xlu0 %v7403, 48
  %v7406 = vpop.permute.xlu0 %7405
  %7408 = vst.msk [vmem:[#allocation5 + $0x8] sm:$0x1] %vm7311, %v7406
  %v7409 = vld [vmem:[#allocation4 + $0x48] sm:$0x1]
  %v7410 = vld [vmem:[#allocation4 + $0x49] sm:$0x1]
  %v7411 = vmax.f32 %v7409, %v7410
  %v7412 = vld [vmem:[#allocation4 + $0x54] sm:$0x1]
  %v7413 = vld [vmem:[#allocation4 + $0x55] sm:$0x1]
  %v7414 = vmax.f32 %v7412, %v7413
  %v7415 = vmax.f32 %v7411, %v7414
  %7417 = vrot.lane.b32.xlu0 %v7415, 64
  %v7418 = vpop.permute.xlu0 %7417
  %7420 = vst.msk [vmem:[#allocation5 + $0x8] sm:$0x1] %vm7324, %v7418
  %v7421 = vld [vmem:[#allocation4 + $0x4a] sm:$0x1]
  %v7422 = vld [vmem:[#allocation4 + $0x4b] sm:$0x1]
  %v7423 = vmax.f32 %v7421, %v7422
  %v7424 = vld [vmem:[#allocation4 + $0x56] sm:$0x1]
  %v7425 = vld [vmem:[#allocation4 + $0x57] sm:$0x1]
  %v7426 = vmax.f32 %v7424, %v7425
  %v7427 = vmax.f32 %v7423, %v7426
  %7429 = vrot.lane.b32.xlu0 %v7427, 80
  %v7430 = vpop.permute.xlu0 %7429
  %7432 = vst.msk [vmem:[#allocation5 + $0x8] sm:$0x1] %vm7337, %v7430
  %v7433 = vld [vmem:[#allocation4 + $0x4c] sm:$0x1]
  %v7434 = vld [vmem:[#allocation4 + $0x4d] sm:$0x1]
  %v7435 = vmax.f32 %v7433, %v7434
  %v7436 = vld [vmem:[#allocation4 + $0x58] sm:$0x1]
  %v7437 = vld [vmem:[#allocation4 + $0x59] sm:$0x1]
  %v7438 = vmax.f32 %v7436, %v7437
  %v7439 = vmax.f32 %v7435, %v7438
  %7441 = vrot.lane.b32.xlu0 %v7439, 96
  %v7442 = vpop.permute.xlu0 %7441
  %7444 = vst.msk [vmem:[#allocation5 + $0x8] sm:$0x1] %vm7350, %v7442
  %v7445 = vld [vmem:[#allocation4 + $0x4e] sm:$0x1]
  %v7446 = vld [vmem:[#allocation4 + $0x4f] sm:$0x1]
  %v7447 = vmax.f32 %v7445, %v7446
  %v7448 = vld [vmem:[#allocation4 + $0x5a] sm:$0x1]
  %v7449 = vld [vmem:[#allocation4 + $0x5b] sm:$0x1]
  %v7450 = vmax.f32 %v7448, %v7449
  %v7451 = vmax.f32 %v7447, %v7450
  %7453 = vrot.lane.b32.xlu0 %v7451, 112
  %v7454 = vpop.permute.xlu0 %7453
  %7456 = vst.msk [vmem:[#allocation5 + $0x8] sm:$0x1] %vm7363, %v7454
  %v7457 = vld [vmem:[#allocation4 + $0x90] sm:$0x1]
  %v7458 = vld [vmem:[#allocation4 + $0x91] sm:$0x1]
  %v7459 = vmax.f32 %v7457, %v7458
  %v7460 = vld [vmem:[#allocation4 + $0x9c] sm:$0x1]
  %v7461 = vld [vmem:[#allocation4 + $0x9d] sm:$0x1]
  %v7462 = vmax.f32 %v7460, %v7461
  %v7463 = vmax.f32 %v7459, %v7462
  %7464 = vst.msk [vmem:[#allocation5 + $0x1] sm:$0x1] %vm7272, %v7463
  %v7465 = vld [vmem:[#allocation4 + $0x92] sm:$0x1]
  %v7466 = vld [vmem:[#allocation4 + $0x93] sm:$0x1]
  %v7467 = vmax.f32 %v7465, %v7466
  %v7468 = vld [vmem:[#allocation4 + $0x9e] sm:$0x1]
  %v7469 = vld [vmem:[#allocation4 + $0x9f] sm:$0x1]
  %v7470 = vmax.f32 %v7468, %v7469
  %v7471 = vmax.f32 %v7467, %v7470
  %7473 = vrot.lane.b32.xlu0 %v7471, 16
  %v7474 = vpop.permute.xlu0 %7473
  %7476 = vst.msk [vmem:[#allocation5 + $0x1] sm:$0x1] %vm7285, %v7474
  %v7477 = vld [vmem:[#allocation4 + $0x94] sm:$0x1]
  %v7478 = vld [vmem:[#allocation4 + $0x95] sm:$0x1]
  %v7479 = vmax.f32 %v7477, %v7478
  %v7480 = vld [vmem:[#allocation4 + $0xa0] sm:$0x1]
  %v7481 = vld [vmem:[#allocation4 + $0xa1] sm:$0x1]
  %v7482 = vmax.f32 %v7480, %v7481
  %v7483 = vmax.f32 %v7479, %v7482
  %7485 = vrot.lane.b32.xlu0 %v7483, 32
  %v7486 = vpop.permute.xlu0 %7485
  %7488 = vst.msk [vmem:[#allocation5 + $0x1] sm:$0x1] %vm7298, %v7486
  %v7489 = vld [vmem:[#allocation4 + $0x96] sm:$0x1]
  %v7490 = vld [vmem:[#allocation4 + $0x97] sm:$0x1]
  %v7491 = vmax.f32 %v7489, %v7490
  %v7492 = vld [vmem:[#allocation4 + $0xa2] sm:$0x1]
  %v7493 = vld [vmem:[#allocation4 + $0xa3] sm:$0x1]
  %v7494 = vmax.f32 %v7492, %v7493
  %v7495 = vmax.f32 %v7491, %v7494
  %7497 = vrot.lane.b32.xlu0 %v7495, 48
  %v7498 = vpop.permute.xlu0 %7497
  %7500 = vst.msk [vmem:[#allocation5 + $0x1] sm:$0x1] %vm7311, %v7498
  %v7501 = vld [vmem:[#allocation4 + $0xa8] sm:$0x1]
  %v7502 = vld [vmem:[#allocation4 + $0xa9] sm:$0x1]
  %v7503 = vmax.f32 %v7501, %v7502
  %v7504 = vld [vmem:[#allocation4 + $0xb4] sm:$0x1]
  %v7505 = vld [vmem:[#allocation4 + $0xb5] sm:$0x1]
  %v7506 = vmax.f32 %v7504, %v7505
  %v7507 = vmax.f32 %v7503, %v7506
  %7509 = vrot.lane.b32.xlu0 %v7507, 64
  %v7510 = vpop.permute.xlu0 %7509
  %7512 = vst.msk [vmem:[#allocation5 + $0x1] sm:$0x1] %vm7324, %v7510
  %v7513 = vld [vmem:[#allocation4 + $0xaa] sm:$0x1]
  %v7514 = vld [vmem:[#allocation4 + $0xab] sm:$0x1]
  %v7515 = vmax.f32 %v7513, %v7514
  %v7516 = vld [vmem:[#allocation4 + $0xb6] sm:$0x1]
  %v7517 = vld [vmem:[#allocation4 + $0xb7] sm:$0x1]
  %v7518 = vmax.f32 %v7516, %v7517
  %v7519 = vmax.f32 %v7515, %v7518
  %7521 = vrot.lane.b32.xlu0 %v7519, 80
  %v7522 = vpop.permute.xlu0 %7521
  %7524 = vst.msk [vmem:[#allocation5 + $0x1] sm:$0x1] %vm7337, %v7522
  %v7525 = vld [vmem:[#allocation4 + $0xac] sm:$0x1]
  %v7526 = vld [vmem:[#allocation4 + $0xad] sm:$0x1]
  %v7527 = vmax.f32 %v7525, %v7526
  %v7528 = vld [vmem:[#allocation4 + $0xb8] sm:$0x1]
  %v7529 = vld [vmem:[#allocation4 + $0xb9] sm:$0x1]
  %v7530 = vmax.f32 %v7528, %v7529
  %v7531 = vmax.f32 %v7527, %v7530
  %7533 = vrot.lane.b32.xlu0 %v7531, 96
  %v7534 = vpop.permute.xlu0 %7533
  %7536 = vst.msk [vmem:[#allocation5 + $0x1] sm:$0x1] %vm7350, %v7534
  %v7537 = vld [vmem:[#allocation4 + $0xae] sm:$0x1]
  %v7538 = vld [vmem:[#allocation4 + $0xaf] sm:$0x1]
  %v7539 = vmax.f32 %v7537, %v7538
  %v7540 = vld [vmem:[#allocation4 + $0xba] sm:$0x1]
  %v7541 = vld [vmem:[#allocation4 + $0xbb] sm:$0x1]
  %v7542 = vmax.f32 %v7540, %v7541
  %v7543 = vmax.f32 %v7539, %v7542
  %7545 = vrot.lane.b32.xlu0 %v7543, 112
  %v7546 = vpop.permute.xlu0 %7545
  %7548 = vst.msk [vmem:[#allocation5 + $0x1] sm:$0x1] %vm7363, %v7546
  %v7549 = vld [vmem:[#allocation4 + $0xc0] sm:$0x1]
  %v7550 = vld [vmem:[#allocation4 + $0xc1] sm:$0x1]
  %v7551 = vmax.f32 %v7549, %v7550
  %v7552 = vld [vmem:[#allocation4 + $0xcc] sm:$0x1]
  %v7553 = vld [vmem:[#allocation4 + $0xcd] sm:$0x1]
  %v7554 = vmax.f32 %v7552, %v7553
  %v7555 = vmax.f32 %v7551, %v7554
  %7556 = vst.msk [vmem:[#allocation5 + $0x9] sm:$0x1] %vm7272, %v7555
  %v7557 = vld [vmem:[#allocation4 + $0xc2] sm:$0x1]
  %v7558 = vld [vmem:[#allocation4 + $0xc3] sm:$0x1]
  %v7559 = vmax.f32 %v7557, %v7558
  %v7560 = vld [vmem:[#allocation4 + $0xce] sm:$0x1]
  %v7561 = vld [vmem:[#allocation4 + $0xcf] sm:$0x1]
  %v7562 = vmax.f32 %v7560, %v7561
  %v7563 = vmax.f32 %v7559, %v7562
  %7565 = vrot.lane.b32.xlu0 %v7563, 16
  %v7566 = vpop.permute.xlu0 %7565
  %7568 = vst.msk [vmem:[#allocation5 + $0x9] sm:$0x1] %vm7285, %v7566
  %v7569 = vld [vmem:[#allocation4 + $0xc4] sm:$0x1]
  %v7570 = vld [vmem:[#allocation4 + $0xc5] sm:$0x1]
  %v7571 = vmax.f32 %v7569, %v7570
  %v7572 = vld [vmem:[#allocation4 + $0xd0] sm:$0x1]
  %v7573 = vld [vmem:[#allocation4 + $0xd1] sm:$0x1]
  %v7574 = vmax.f32 %v7572, %v7573
  %v7575 = vmax.f32 %v7571, %v7574
  %7577 = vrot.lane.b32.xlu0 %v7575, 32
  %v7578 = vpop.permute.xlu0 %7577
  %7580 = vst.msk [vmem:[#allocation5 + $0x9] sm:$0x1] %vm7298, %v7578
  %v7581 = vld [vmem:[#allocation4 + $0xc6] sm:$0x1]
  %v7582 = vld [vmem:[#allocation4 + $0xc7] sm:$0x1]
  %v7583 = vmax.f32 %v7581, %v7582
  %v7584 = vld [vmem:[#allocation4 + $0xd2] sm:$0x1]
  %v7585 = vld [vmem:[#allocation4 + $0xd3] sm:$0x1]
  %v7586 = vmax.f32 %v7584, %v7585
  %v7587 = vmax.f32 %v7583, %v7586
  %7589 = vrot.lane.b32.xlu0 %v7587, 48
  %v7590 = vpop.permute.xlu0 %7589
  %7592 = vst.msk [vmem:[#allocation5 + $0x9] sm:$0x1] %vm7311, %v7590
  %v7593 = vld [vmem:[#allocation4 + $0xd8] sm:$0x1]
  %v7594 = vld [vmem:[#allocation4 + $0xd9] sm:$0x1]
  %v7595 = vmax.f32 %v7593, %v7594
  %v7596 = vld [vmem:[#allocation4 + $0xe4] sm:$0x1]
  %v7597 = vld [vmem:[#allocation4 + $0xe5] sm:$0x1]
  %v7598 = vmax.f32 %v7596, %v7597
  %v7599 = vmax.f32 %v7595, %v7598
  %7601 = vrot.lane.b32.xlu0 %v7599, 64
  %v7602 = vpop.permute.xlu0 %7601
  %7604 = vst.msk [vmem:[#allocation5 + $0x9] sm:$0x1] %vm7324, %v7602
  %v7605 = vld [vmem:[#allocation4 + $0xda] sm:$0x1]
  %v7606 = vld [vmem:[#allocation4 + $0xdb] sm:$0x1]
  %v7607 = vmax.f32 %v7605, %v7606
  %v7608 = vld [vmem:[#allocation4 + $0xe6] sm:$0x1]
  %v7609 = vld [vmem:[#allocation4 + $0xe7] sm:$0x1]
  %v7610 = vmax.f32 %v7608, %v7609
  %v7611 = vmax.f32 %v7607, %v7610
  %7613 = vrot.lane.b32.xlu0 %v7611, 80
  %v7614 = vpop.permute.xlu0 %7613
  %7616 = vst.msk [vmem:[#allocation5 + $0x9] sm:$0x1] %vm7337, %v7614
  %v7617 = vld [vmem:[#allocation4 + $0xdc] sm:$0x1]
  %v7618 = vld [vmem:[#allocation4 + $0xdd] sm:$0x1]
  %v7619 = vmax.f32 %v7617, %v7618
  %v7620 = vld [vmem:[#allocation4 + $0xe8] sm:$0x1]
  %v7621 = vld [vmem:[#allocation4 + $0xe9] sm:$0x1]
  %v7622 = vmax.f32 %v7620, %v7621
  %v7623 = vmax.f32 %v7619, %v7622
  %7625 = vrot.lane.b32.xlu0 %v7623, 96
  %v7626 = vpop.permute.xlu0 %7625
  %7628 = vst.msk [vmem:[#allocation5 + $0x9] sm:$0x1] %vm7350, %v7626
  %v7629 = vld [vmem:[#allocation4 + $0xde] sm:$0x1]
  %v7630 = vld [vmem:[#allocation4 + $0xdf] sm:$0x1]
  %v7631 = vmax.f32 %v7629, %v7630
  %v7632 = vld [vmem:[#allocation4 + $0xea] sm:$0x1]
  %v7633 = vld [vmem:[#allocation4 + $0xeb] sm:$0x1]
  %v7634 = vmax.f32 %v7632, %v7633
  %v7635 = vmax.f32 %v7631, %v7634
  %7637 = vrot.lane.b32.xlu0 %v7635, 112
  %v7638 = vpop.permute.xlu0 %7637
  %7640 = vst.msk [vmem:[#allocation5 + $0x9] sm:$0x1] %vm7363, %v7638
  %v7641 = vld [vmem:[#allocation5] sm:$0xff]
  %v7642 = vld [vmem:[#allocation5 + $0x8] sm:$0xff]
  %v7643 = vld [vmem:[%s5] sm:$0xff]
  %v7644 = vld [vmem:[%s5 + $0x8] sm:$0xff]
  %v7645 = vld [vmem:[%s5 + $0x10] sm:$0xff]
  %v7646 = vld [vmem:[%s5 + $0x18] sm:$0xff]
  %v7647 = vld [vmem:[%s5 + $0x20] sm:$0xff]
  %v7648 = vld [vmem:[%s5 + $0x28] sm:$0xff]
  %v7649 = vld [vmem:[%s5 + $0x30] sm:$0xff]
  %v7650 = vld [vmem:[%s5 + $0x38] sm:$0xff]
  %v7651 = vld [vmem:[%s5 + $0x40] sm:$0xff]
  %v7652 = vld [vmem:[%s5 + $0x48] sm:$0xff]
  %v7653 = vld [vmem:[%s5 + $0x50] sm:$0xff]
  %v7654 = vld [vmem:[%s5 + $0x58] sm:$0xff]
  %v7655 = vld [vmem:[%s5 + $0x60] sm:$0xff]
  %v7656 = vld [vmem:[%s5 + $0x68] sm:$0xff]
  %v7657 = vld [vmem:[%s5 + $0x70] sm:$0xff]
  %v7658 = vld [vmem:[%s5 + $0x78] sm:$0xff]
  %v7659 = vld [vmem:[%s5 + $0x80] sm:$0xff]
  %v7660 = vld [vmem:[%s5 + $0x88] sm:$0xff]
  %v7661 = vld [vmem:[%s5 + $0x90] sm:$0xff]
  %v7662 = vld [vmem:[%s5 + $0x98] sm:$0xff]
  %v7663 = vld [vmem:[%s5 + $0xa0] sm:$0xff]
  %v7664 = vld [vmem:[%s5 + $0xa8] sm:$0xff]
  %v7665 = vld [vmem:[%s5 + $0xb0] sm:$0xff]
  %v7666 = vld [vmem:[%s5 + $0xb8] sm:$0xff]
  %v7667 = vld [vmem:[%s5 + $0xc0] sm:$0xff]
  %v7668 = vld [vmem:[%s5 + $0xc8] sm:$0xff]
  %v7669 = vld [vmem:[%s5 + $0xd0] sm:$0xff]
  %v7670 = vld [vmem:[%s5 + $0xd8] sm:$0xff]
  %v7671 = vld [vmem:[%s5 + $0xe0] sm:$0xff]
  %v7672 = vld [vmem:[%s5 + $0xe8] sm:$0xff]
  %v7673 = vld [vmem:[%s5 + $0xf0] sm:$0xff]
  %v7674 = vld [vmem:[%s5 + $0xf8] sm:$0xff]
  %v7675 = vld [vmem:[%s6] sm:$0x1]
  %v7677 = vlaneseq
  %v7678 = vshrl.u32 %v7677, 7
  %v7679 = vsub.s32 0, %v7678
  %v7680 = vrot.slane %v7675, %v7679
  %7682 = vmatprep.subr.mxu0 0.0
  %7683 = vmatpush1.msra.mxu0 %v7643
  %7684 = vmatprep.subr.mxu0 0.0
  %7685 = vmatpush1.msra.mxu0 %v7644
  %7686 = vmatprep.subr.mxu0 0.0
  %7687 = vmatpush1.msra.mxu0 %v7645
  %7688 = vmatprep.subr.mxu0 0.0
  %7689 = vmatpush1.msra.mxu0 %v7646
  %7690 = vmatprep.subr.mxu0 0.0
  %7691 = vmatpush1.msra.mxu0 %v7647
  %7692 = vmatprep.subr.mxu0 0.0
  %7693 = vmatpush1.msra.mxu0 %v7648
  %7694 = vmatprep.subr.mxu0 0.0
  %7695 = vmatpush1.msra.mxu0 %v7649
  %7696 = vmatprep.subr.mxu0 0.0
  %7697 = vmatpush1.msra.mxu0 %v7650
  %7698 = vmatprep.subr.mxu0 0.0
  %7699 = vmatpush1.msra.mxu0 %v7651
  %7700 = vmatprep.subr.mxu0 0.0
  %7701 = vmatpush1.msra.mxu0 %v7652
  %7702 = vmatprep.subr.mxu0 0.0
  %7703 = vmatpush1.msra.mxu0 %v7653
  %7704 = vmatprep.subr.mxu0 0.0
  %7705 = vmatpush1.msra.mxu0 %v7654
  %7706 = vmatprep.subr.mxu0 0.0
  %7707 = vmatpush1.msra.mxu0 %v7655
  %7708 = vmatprep.subr.mxu0 0.0
  %7709 = vmatpush1.msra.mxu0 %v7656
  %7710 = vmatprep.subr.mxu0 0.0
  %7711 = vmatpush1.msra.mxu0 %v7657
  %7712 = vmatprep.subr.mxu0 0.0
  %7713 = vmatpush1.msra.mxu0 %v7658
  %7714 = vmatprep.subr.mxu0 0.0
  %7715 = vmatpush1.msra.mxu0 %v7659
  %7716 = vmatprep.subr.mxu0 0.0
  %7717 = vmatpush1.msra.mxu0 %v7660
  %7718 = vmatprep.subr.mxu0 0.0
  %7719 = vmatpush1.msra.mxu0 %v7661
  %7720 = vmatprep.subr.mxu0 0.0
  %7721 = vmatpush1.msra.mxu0 %v7662
  %7722 = vmatprep.subr.mxu0 0.0
  %7723 = vmatpush1.msra.mxu0 %v7663
  %7724 = vmatprep.subr.mxu0 0.0
  %7725 = vmatpush1.msra.mxu0 %v7664
  %7726 = vmatprep.subr.mxu0 0.0
  %7727 = vmatpush1.msra.mxu0 %v7665
  %7728 = vmatprep.subr.mxu0 0.0
  %7729 = vmatpush1.msra.mxu0 %v7666
  %7730 = vmatprep.subr.mxu0 0.0
  %7731 = vmatpush1.msra.mxu0 %v7667
  %7732 = vmatprep.subr.mxu0 0.0
  %7733 = vmatpush1.msra.mxu0 %v7668
  %7734 = vmatprep.subr.mxu0 0.0
  %7735 = vmatpush1.msra.mxu0 %v7669
  %7736 = vmatprep.subr.mxu0 0.0
  %7737 = vmatpush1.msra.mxu0 %v7670
  %7738 = vmatprep.subr.mxu0 0.0
  %7739 = vmatpush1.msra.mxu0 %v7671
  %7740 = vmatprep.subr.mxu0 0.0
  %7741 = vmatpush1.msra.mxu0 %v7672
  %7742 = vmatprep.subr.mxu0 0.0
  %7743 = vmatpush1.msra.mxu0 %v7673
  %7744 = vmatprep.subr.mxu0 0.0
  %7745 = vmatpush1.msra.mxu0 %v7674
  %7746 = vmatprep.mubr.f32.mxu0 %v7642
  %7747 = vmatmul.mubr.f32.gmra.mrb[0].mxu0 %v7641
  %v7748 = vpop.f32.mrb[0].mxu0
  %v7749 = vadd.f32 %v7680, %v7748
  %v7750 = vpop.f32.mrb[0].mxu0
  %7751 = vdwg.mxu0
  %v7752 = vmax.f32 %v7749, 0.0
  %v7753 = vld [vmem:[%s7] sm:$0xff]
  %v7754 = vld [vmem:[%s7 + $0x8] sm:$0xff]
  %v7755 = vld [vmem:[%s7 + $0x10] sm:$0xff]
  %v7756 = vld [vmem:[%s7 + $0x18] sm:$0xff]
  %v7757 = vld [vmem:[%s7 + $0x20] sm:$0xff]
  %v7758 = vld [vmem:[%s7 + $0x28] sm:$0xff]
  %v7759 = vld [vmem:[%s7 + $0x30] sm:$0xff]
  %v7760 = vld [vmem:[%s7 + $0x38] sm:$0xff]
  %v7761 = vld [vmem:[%s7 + $0x40] sm:$0xff]
  %v7762 = vld [vmem:[%s7 + $0x48] sm:$0xff]
  %v7763 = vld [vmem:[%s7 + $0x50] sm:$0xff]
  %v7764 = vld [vmem:[%s7 + $0x58] sm:$0xff]
  %v7765 = vld [vmem:[%s7 + $0x60] sm:$0xff]
  %v7766 = vld [vmem:[%s7 + $0x68] sm:$0xff]
  %v7767 = vld [vmem:[%s7 + $0x70] sm:$0xff]
  %v7768 = vld [vmem:[%s7 + $0x78] sm:$0xff]
  %v7769 = vld [vmem:[%s8] sm:$0x1]
  %v7771 = vlaneseq
  %v7772 = vshrl.u32 %v7771, 7
  %v7773 = vsub.s32 0, %v7772
  %v7774 = vrot.slane %v7769, %v7773
  %7776 = vmatprep.subr.mxu0 0.0
  %7777 = vmatpush1.msra.mxu0 %v7753
  %7778 = vmatprep.subr.mxu0 0.0
  %7779 = vmatpush1.msra.mxu0 %v7754
  %7780 = vmatprep.subr.mxu0 0.0
  %7781 = vmatpush1.msra.mxu0 %v7755
  %7782 = vmatprep.subr.mxu0 0.0
  %7783 = vmatpush1.msra.mxu0 %v7756
  %7784 = vmatprep.subr.mxu0 0.0
  %7785 = vmatpush1.msra.mxu0 %v7757
  %7786 = vmatprep.subr.mxu0 0.0
  %7787 = vmatpush1.msra.mxu0 %v7758
  %7788 = vmatprep.subr.mxu0 0.0
  %7789 = vmatpush1.msra.mxu0 %v7759
  %7790 = vmatprep.subr.mxu0 0.0
  %7791 = vmatpush1.msra.mxu0 %v7760
  %7792 = vmatprep.subr.mxu0 0.0
  %7793 = vmatpush1.msra.mxu0 %v7761
  %7794 = vmatprep.subr.mxu0 0.0
  %7795 = vmatpush1.msra.mxu0 %v7762
  %7796 = vmatprep.subr.mxu0 0.0
  %7797 = vmatpush1.msra.mxu0 %v7763
  %7798 = vmatprep.subr.mxu0 0.0
  %7799 = vmatpush1.msra.mxu0 %v7764
  %7800 = vmatprep.subr.mxu0 0.0
  %7801 = vmatpush1.msra.mxu0 %v7765
  %7802 = vmatprep.subr.mxu0 0.0
  %7803 = vmatpush1.msra.mxu0 %v7766
  %7804 = vmatprep.subr.mxu0 0.0
  %7805 = vmatpush1.msra.mxu0 %v7767
  %7806 = vmatprep.subr.mxu0 0.0
  %7807 = vmatpush1.msra.mxu0 %v7768
  %7808 = vmatprep.subr.mxu0 0.0
  %7809 = vmatpush1.msra.mxu0 0.0
  %7810 = vmatprep.subr.mxu0 0.0
  %7811 = vmatpush1.msra.mxu0 0.0
  %7812 = vmatprep.subr.mxu0 0.0
  %7813 = vmatpush1.msra.mxu0 0.0
  %7814 = vmatprep.subr.mxu0 0.0
  %7815 = vmatpush1.msra.mxu0 0.0
  %7816 = vmatprep.subr.mxu0 0.0
  %7817 = vmatpush1.msra.mxu0 0.0
  %7818 = vmatprep.subr.mxu0 0.0
  %7819 = vmatpush1.msra.mxu0 0.0
  %7820 = vmatprep.subr.mxu0 0.0
  %7821 = vmatpush1.msra.mxu0 0.0
  %7822 = vmatprep.subr.mxu0 0.0
  %7823 = vmatpush1.msra.mxu0 0.0
  %7824 = vmatprep.subr.mxu0 0.0
  %7825 = vmatpush1.msra.mxu0 0.0
  %7826 = vmatprep.subr.mxu0 0.0
  %7827 = vmatpush1.msra.mxu0 0.0
  %7828 = vmatprep.subr.mxu0 0.0
  %7829 = vmatpush1.msra.mxu0 0.0
  %7830 = vmatprep.subr.mxu0 0.0
  %7831 = vmatpush1.msra.mxu0 0.0
  %7832 = vmatprep.subr.mxu0 0.0
  %7833 = vmatpush1.msra.mxu0 0.0
  %7834 = vmatprep.subr.mxu0 0.0
  %7835 = vmatpush1.msra.mxu0 0.0
  %7836 = vmatprep.subr.mxu0 0.0
  %7837 = vmatpush1.msra.mxu0 0.0
  %7838 = vmatprep.subr.mxu0 0.0
  %7839 = vmatpush1.msra.mxu0 0.0
  %7840 = vmatprep.mubr.f32.mxu0 0.0
  %7841 = vmatmul.mubr.f32.gmra.mrb[0].mxu0 %v7752
  %v7842 = vpop.f32.mrb[0].mxu0
  %v7843 = vadd.f32 %v7774, %v7842
  %v7844 = vpop.f32.mrb[0].mxu0
  %7845 = vdwg.mxu0
  %v7846 = vmax.f32 %v7843, 0.0
  %v7847 = vld [vmem:[%s9] sm:$0xff]
  %v7848 = vld [vmem:[%s9 + $0x8] sm:$0xff]
  %v7849 = vld [vmem:[%s9 + $0x10] sm:$0xff]
  %v7850 = vld [vmem:[%s9 + $0x18] sm:$0xff]
  %v7851 = vld [vmem:[%s9 + $0x20] sm:$0xff]
  %v7852 = vld [vmem:[%s9 + $0x28] sm:$0xff]
  %v7853 = vld [vmem:[%s9 + $0x30] sm:$0xff]
  %v7854 = vld [vmem:[%s9 + $0x38] sm:$0xff]
  %v7855 = vld [vmem:[%s9 + $0x40] sm:$0xff]
  %v7856 = vld [vmem:[%s9 + $0x48] sm:$0xff]
  %v7857 = vld [vmem:[%s9 + $0x50] sm:$0xff]
  %v7858 = vld [vmem:[%s9 + $0x58] sm:$0xff]
  %v7859 = vld [vmem:[%s9 + $0x60] sm:$0xff]
  %v7860 = vld [vmem:[%s9 + $0x68] sm:$0xff]
  %v7861 = vld [vmem:[%s9 + $0x70] sm:$0xff]
  %v7862 = vld [vmem:[%s9 + $0x78] sm:$0xff]
  %v7863 = vld [vmem:[%s10] sm:$0x1]
  %v7865 = vlaneseq
  %v7866 = vshrl.u32 %v7865, 7
  %v7867 = vsub.s32 0, %v7866
  %v7868 = vrot.slane %v7863, %v7867
  %7870 = vmatprep.subr.mxu0 0.0
  %7871 = vmatpush1.msra.mxu0 %v7847
  %7872 = vmatprep.subr.mxu0 0.0
  %7873 = vmatpush1.msra.mxu0 %v7848
  %7874 = vmatprep.subr.mxu0 0.0
  %7875 = vmatpush1.msra.mxu0 %v7849
  %7876 = vmatprep.subr.mxu0 0.0
  %7877 = vmatpush1.msra.mxu0 %v7850
  %7878 = vmatprep.subr.mxu0 0.0
  %7879 = vmatpush1.msra.mxu0 %v7851
  %7880 = vmatprep.subr.mxu0 0.0
  %7881 = vmatpush1.msra.mxu0 %v7852
  %7882 = vmatprep.subr.mxu0 0.0
  %7883 = vmatpush1.msra.mxu0 %v7853
  %7884 = vmatprep.subr.mxu0 0.0
  %7885 = vmatpush1.msra.mxu0 %v7854
  %7886 = vmatprep.subr.mxu0 0.0
  %7887 = vmatpush1.msra.mxu0 %v7855
  %7888 = vmatprep.subr.mxu0 0.0
  %7889 = vmatpush1.msra.mxu0 %v7856
  %7890 = vmatprep.subr.mxu0 0.0
  %7891 = vmatpush1.msra.mxu0 %v7857
  %7892 = vmatprep.subr.mxu0 0.0
  %7893 = vmatpush1.msra.mxu0 %v7858
  %7894 = vmatprep.subr.mxu0 0.0
  %7895 = vmatpush1.msra.mxu0 %v7859
  %7896 = vmatprep.subr.mxu0 0.0
  %7897 = vmatpush1.msra.mxu0 %v7860
  %7898 = vmatprep.subr.mxu0 0.0
  %7899 = vmatpush1.msra.mxu0 %v7861
  %7900 = vmatprep.subr.mxu0 0.0
  %7901 = vmatpush1.msra.mxu0 %v7862
  %7902 = vmatprep.subr.mxu0 0.0
  %7903 = vmatpush1.msra.mxu0 0.0
  %7904 = vmatprep.subr.mxu0 0.0
  %7905 = vmatpush1.msra.mxu0 0.0
  %7906 = vmatprep.subr.mxu0 0.0
  %7907 = vmatpush1.msra.mxu0 0.0
  %7908 = vmatprep.subr.mxu0 0.0
  %7909 = vmatpush1.msra.mxu0 0.0
  %7910 = vmatprep.subr.mxu0 0.0
  %7911 = vmatpush1.msra.mxu0 0.0
  %7912 = vmatprep.subr.mxu0 0.0
  %7913 = vmatpush1.msra.mxu0 0.0
  %7914 = vmatprep.subr.mxu0 0.0
  %7915 = vmatpush1.msra.mxu0 0.0
  %7916 = vmatprep.subr.mxu0 0.0
  %7917 = vmatpush1.msra.mxu0 0.0
  %7918 = vmatprep.subr.mxu0 0.0
  %7919 = vmatpush1.msra.mxu0 0.0
  %7920 = vmatprep.subr.mxu0 0.0
  %7921 = vmatpush1.msra.mxu0 0.0
  %7922 = vmatprep.subr.mxu0 0.0
  %7923 = vmatpush1.msra.mxu0 0.0
  %7924 = vmatprep.subr.mxu0 0.0
  %7925 = vmatpush1.msra.mxu0 0.0
  %7926 = vmatprep.subr.mxu0 0.0
  %7927 = vmatpush1.msra.mxu0 0.0
  %7928 = vmatprep.subr.mxu0 0.0
  %7929 = vmatpush1.msra.mxu0 0.0
  %7930 = vmatprep.subr.mxu0 0.0
  %7931 = vmatpush1.msra.mxu0 0.0
  %7932 = vmatprep.subr.mxu0 0.0
  %7933 = vmatpush1.msra.mxu0 0.0
  %7934 = vmatprep.mubr.f32.mxu0 0.0
  %7935 = vmatmul.mubr.f32.gmra.mrb[0].mxu0 %v7846
  %v7936 = vpop.f32.mrb[0].mxu0
  %v7937 = vadd.f32 %v7868, %v7936
  %v7938 = vpop.f32.mrb[0].mxu0
  %7939 = vdwg.mxu0
  %7940 = vst [vmem:[%s11] sm:$0xff] %v7937
  // Predicated region
  $region46: #{lenet_forward.1} parent=0 // pred_check
    _
  $region47: #{lenet_forward.1} parent=0 // pred_check_branch
    %7942 = sbr.rel (0) target = $region49
  $region48: #{lenet_forward.1} parent=0 // pred_region
    _
  $region49: #{lenet_forward.1} parent=0 // pred_fallthru
    _
  // Predicated region
  $region50: #{lenet_forward.1} parent=0 // pred_check
    _
  $region51: #{lenet_forward.1} parent=0 // pred_check_branch
    %7944 = sbr.rel (0) target = $region53
  $region52: #{lenet_forward.1} parent=0 // pred_region
    _
  $region53: #{lenet_forward.1} parent=0 // pred_fallthru
    _

</llo_original>
